<compile_context>
chip_gen: v7x
topology: tpu7x:2x2x1
jax: 0.10.0
libtpu: 0.0.40
codegen_flags: <defaults>
</compile_context>

<pallas_src>
import numpy as np
import jax
import jax.numpy as jnp
from jax.experimental import pallas as pl
from jax.experimental.pallas import tpu as pltpu

WIDTH = 8
LEVEL = 1
PADDING = 1
FC_HIDDEN = 512
_LAYER_NAMES = ("0", "1", "5")

# ---------------- near_sym_b biorthogonal filters (13/19 tap) ----------------
H0O = np.array([-0.0017578125, 0.0, 0.022265625, -0.046875, -0.0482421875,
                0.296875, 0.55546875, 0.296875, -0.0482421875, -0.046875,
                0.022265625, 0.0, -0.0017578125], dtype=np.float64)
H1O = np.array([-0.0000706, 0.0, 0.0013419, -0.0018834, -0.0071568,
                0.0238560, 0.0556431, -0.0516881, -0.2997576, 0.5594308,
                -0.2997576, -0.0516881, 0.0556431, 0.0238560, -0.0071568,
                -0.0018834, 0.0013419, 0.0, -0.0000706], dtype=np.float64)
G0O = np.array([(-1.0) ** (n - (len(H1O) // 2)) * H1O[n] for n in range(len(H1O))])
G1O = np.array([(-1.0) ** (n - (len(H0O) // 2)) * H0O[n] for n in range(len(H0O))])

_INV_SQRT2 = 1.0 / np.sqrt(2.0)
_SQRT1_2_F32 = float(1.0 / np.sqrt(2.0))


# ------------------- DTCWT (level 1) folded into two matrices ----------------
def _reflect_idx(n, m):
    x = np.arange(-m, n + m, dtype=np.float64)
    minx, maxx = -0.5, n - 0.5
    rng = maxx - minx
    mod = np.fmod(x - minx, 2.0 * rng)
    mod = np.where(mod < 0, mod + 2.0 * rng, mod)
    out = np.where(mod >= rng, 2.0 * rng - mod, mod) + minx
    return out.astype(np.int64)


def _fir_matrix(n, taps):
    # M such that (symmetric-pad + valid cross-correlation with `taps`) along
    # an axis of length n equals x @ M.
    taps = np.asarray(taps, np.float64)
    length = taps.shape[0]
    m = length // 2
    idx = _reflect_idx(n, m)
    mat = np.zeros((n, n), np.float64)
    for j in range(n):
        for t in range(length):
            mat[idx[j + t], j] += taps[t]
    return mat


def _rowf(x, m):
    return x @ m


def _colf(x, m):
    return np.swapaxes(np.swapaxes(x, -1, -2) @ m, -1, -2)


def _q2c(y):
    y = y * _INV_SQRT2
    a = y[..., 0::2, 0::2]
    b = y[..., 0::2, 1::2]
    c = y[..., 1::2, 0::2]
    d = y[..., 1::2, 1::2]
    return (a - d, b + c), (a + d, b - c)


def _c2q(w1r, w1i, w2r, w2i):
    x1 = w1r + w2r
    x2 = w1i + w2i
    x3 = w1i - w2i
    x4 = -w1r + w2r
    y = np.zeros(w1r.shape[:-2] + (2 * w1r.shape[-2], 2 * w1r.shape[-1]), np.float64)
    y[..., 0::2, 0::2] = x1
    y[..., 0::2, 1::2] = x2
    y[..., 1::2, 0::2] = x3
    y[..., 1::2, 1::2] = x4
    return y * _INV_SQRT2


def build_dtcwt_matrices(n):
    """Return (Wfwd, Winv) float32 matrices.

    Wfwd: (n*n, n*n + 6*(n//2)**2*2) maps pixels (row-major) to
          [LL | highpass flattened as (6, n/2, n/2, 2)].
    Winv: maps those coefficients back to pixels.  Built in float64 by
    pushing basis vectors through the exact separable rowfilter/colfilter +
    q2c/c2q chain, so it is identical (to rounding) to the separable code.
    """
    h0 = _fir_matrix(n, H0O)
    h1 = _fir_matrix(n, H1O)
    g0 = _fir_matrix(n, G0O)
    g1 = _fir_matrix(n, G1O)
    npx = n * n
    h = n // 2

    # ---- forward map ----
    basis = np.eye(npx).reshape(npx, n, n)
    lo = _rowf(basis, h0)
    hi = _rowf(basis, h1)
    ll = _colf(lo, h0)
    lh = _colf(lo, h1)
    hl = _colf(hi, h0)
    hh = _colf(hi, h1)
    (d15r, d15i), (d165r, d165i) = _q2c(lh)
    (d45r, d45i), (d135r, d135i) = _q2c(hh)
    (d75r, d75i), (d105r, d105i) = _q2c(hl)
    reals = np.stack([d15r, d45r, d75r, d105r, d135r, d165r], axis=1)
    imags = np.stack([d15i, d45i, d75i, d105i, d135i, d165i], axis=1)
    yh = np.stack([reals, imags], axis=-1)                         # (npx,6,h,h,2)
    wfwd = np.concatenate([ll.reshape(npx, npx),
                           yh.reshape(npx, 6 * h * h * 2)], axis=1)

    # ---- inverse map ----
    ncoef = wfwd.shape[1]
    cb = np.eye(ncoef)
    ll_b = cb[:, :npx].reshape(ncoef, n, n)
    yh_b = cb[:, npx:].reshape(ncoef, 6, h, h, 2)
    r = yh_b[..., 0]
    im = yh_b[..., 1]
    d15r, d45r, d75r, d105r, d135r, d165r = (r[:, k] for k in range(6))
    d15i, d45i, d75i, d105i, d135i, d165i = (im[:, k] for k in range(6))
    lh = _c2q(d15r, d15i, d165r, d165i)
    hl = _c2q(d75r, d75i, d105r, d105i)
    hh = _c2q(d45r, d45i, d135r, d135i)
    hi = _colf(hh, g1) + _colf(hl, g0)
    lo = _colf(lh, g1) + _colf(ll_b, g0)
    out = _rowf(hi, g1) + _rowf(lo, g0)
    winv = out.reshape(ncoef, npx)

    return jnp.asarray(wfwd, jnp.float32), jnp.asarray(winv, jnp.float32)


# ------------------------------ fused kernel ---------------------------------
def _erf(x):
    # Abramowitz & Stegun 7.1.26 rational approximation, |err| <= 1.5e-7,
    # built only from ops with guaranteed Mosaic lowerings (exp/div/select).
    p = 0.3275911
    a1, a2, a3, a4, a5 = (0.254829592, -0.284496736, 1.421413741,
                          -1.453152027, 1.061405429)
    ax = jnp.abs(x)
    t = 1.0 / (1.0 + p * ax)
    poly = ((((a5 * t + a4) * t + a3) * t + a2) * t + a1) * t
    y = 1.0 - poly * jnp.exp(-(ax * ax))
    return jnp.where(x < 0.0, -y, y)


def _gelu_exact(x):
    return 0.5 * x * (1.0 + _erf(x * _SQRT1_2_F32))


def _cwno2d_kernel(x_ref, fc0w_ref, fc0b_ref, wfwd_ref, winv_ref,
                   wmix_ref, w1x1_ref, b1x1_ref, fc1w_ref, fc2w_ref, fc2b_ref,
                   o_ref):
    bb = x_ref.shape[1]                       # samples per grid step
    npix = x_ref.shape[2]
    n_layers = wmix_ref.shape[0]
    width = wmix_ref.shape[1]
    ncoef = wfwd_ref.shape[1]
    rows = bb * width                         # MXU M dimension

    # ---- fc0 lift: block-diag (rows,BB)@(BB,P) matmul + padding-masked bias -
    xb = x_ref[0]                                               # (BB, P)
    v = (jnp.dot(fc0w_ref[...], xb, preferred_element_type=jnp.float32)
         + fc0b_ref[...])                                       # (rows, P)

    # ---- wavelet layers -----------------------------------------------------
    for l in range(n_layers):
        # forward DTCWT: one lane-dense bf16 MXU matmul (rows,P)@(P,NC)
        coeff = jnp.dot(v.astype(jnp.bfloat16), wfwd_ref[...],
                        preferred_element_type=jnp.float32)     # (rows, NC)
        # wavelet-domain channel mixing: O(width) sublane broadcasts, wmix is
        # broadcast over the BB leading dim (no replication).
        coeff3 = coeff.reshape(bb, width, ncoef)
        mixed3 = coeff3[:, 0:1, :] * wmix_ref[l, 0][None, :, :]
        for i in range(1, width):
            mixed3 = mixed3 + coeff3[:, i:i + 1, :] * wmix_ref[l, i][None, :, :]
        mixed = mixed3.reshape(rows, ncoef)
        # inverse DTCWT: (rows,NC)@(NC,P) in bf16
        x1 = jnp.dot(mixed.astype(jnp.bfloat16), winv_ref[...],
                     preferred_element_type=jnp.float32)        # (rows, P)
        # 1x1 conv branch as a block-diagonal matmul + pre-tiled bias
        x2 = (jnp.dot(w1x1_ref[l], v, preferred_element_type=jnp.float32)
              + b1x1_ref[l])                                    # (rows, P)
        v = x1 + x2
        if l != n_layers - 1:
            v = _gelu_exact(v)

    # ---- head: per-sample fc1(+bias via ones-row) -> tanh -> fc2 ------------
    hidden = fc1w_ref.shape[0]
    ones_row = jnp.ones((1, npix), jnp.float32)
    chunk = 128                              # keeps h at <= 32 vregs per chunk
    outs = []
    for b in range(bb):
        vaug = jnp.concatenate([v[b * width:(b + 1) * width], ones_row],
                               axis=0)                          # (width+1, P)
        ob = jnp.broadcast_to(fc2b_ref[...], (1, npix)).astype(jnp.float32)
        for j in range(0, hidden, chunk):
            j2 = min(j + chunk, hidden)
            h = jnp.tanh(jnp.dot(fc1w_ref[j:j2], vaug,
                                 preferred_element_type=jnp.float32))   # (c,P)
            ob = ob + jnp.dot(fc2w_ref[:, j:j2], h,
                              preferred_element_type=jnp.float32)        # (1,P)
        outs.append(ob)
    o_ref[0] = jnp.concatenate(outs, axis=0)                    # (BB, P)


def _const_spec(arr):
    rank = arr.ndim
    kwargs = {}
    if hasattr(pl, "Buffered"):
        # constant index_map across the grid -> single pipeline buffer
        kwargs["pipeline_mode"] = pl.Buffered(1)
    return pl.BlockSpec(arr.shape, lambda g, rank=rank: (0,) * rank, **kwargs)


def cwno2d_forward(params, x, wfwd, winv, block_batch=None):
    bsz, s, _, _ = x.shape
    npix = wfwd.shape[0]
    n = int(round(npix ** 0.5))
    width = params["fc0_w"].shape[1]

    # batch block: fill ~128 MXU rows (BB*width); small batches fuse into one
    # grid step.  (On v7x, pass block_batch explicitly to keep >=2 grid steps
    # if you want both TensorCores busy.)
    if block_batch is None:
        block_batch = max(1, min(bsz, 128 // width))
    bb = block_batch
    g = -(-bsz // bb)                         # cdiv
    bsz_pad = g * bb

    # pad spatially to the wavelet grid, pad batch to a multiple of BB,
    # single input channel, pixels on lanes.
    x_pad = jnp.pad(x[..., 0].astype(jnp.float32),
                    ((0, bsz_pad - bsz), (0, n - s), (0, n - s)))
    x_flat = x_pad.reshape(g, bb, npix)

    eye_bb = jnp.eye(bb, dtype=jnp.float32)
    # mask the fc0 bias so the padded region stays exactly zero (pad is AFTER
    # fc0 in the reference).
    mask = jnp.zeros((n, n), jnp.float32).at[:s, :s].set(1.0).reshape(1, npix)

    # fc0 as a tiny block-diagonal matmul + pre-tiled masked bias
    fc0w_bd = jnp.kron(eye_bb, params["fc0_w"].reshape(width, 1))       # (rows,BB)
    fc0b_rep = jnp.tile(params["fc0_b"].reshape(width, 1) * mask,
                        (bb, 1))                                        # (rows,P)

    # per-layer wavelet-domain mixing weights (Ci, Co, NC); NOT replicated
    # across BB (broadcast over the leading sample dim inside the kernel).
    wmix = jnp.stack(
        [jnp.concatenate(
            [params[f"conv{k}_w0"].reshape(width, width, npix),
             params[f"conv{k}_wh"].reshape(width, width, -1)], axis=-1)
         for k in _LAYER_NAMES], axis=0)                                # (3,Ci,Co,NC)

    # 1x1 convs as block-diagonal matmuls over the BB*width sublane rows
    w1x1_bd = jnp.stack([jnp.kron(eye_bb, params[f"w{k}_w"])
                         for k in _LAYER_NAMES], axis=0)                # (3,rows,rows)
    b1x1_rep = jnp.stack([jnp.tile(params[f"w{k}_b"].reshape(width, 1), (bb, 1))
                          for k in _LAYER_NAMES], axis=0)               # (3,rows,1)

    fc1w = jnp.concatenate([params["fc1_w"].T, params["fc1_b"][:, None]],
                           axis=1)                                      # (512,width+1)
    fc2w = params["fc2_w"].T                                            # (1,512)
    fc2b = params["fc2_b"].reshape(1, 1)

    consts = (fc0w_bd, fc0b_rep,
              wfwd.astype(jnp.bfloat16), winv.astype(jnp.bfloat16),
              wmix, w1x1_bd, b1x1_rep, fc1w, fc2w, fc2b)

    out_flat = pl.pallas_call(
        _cwno2d_kernel,
        out_shape=jax.ShapeDtypeStruct((g, bb, npix), jnp.float32),
        grid=(g,),
        in_specs=[pl.BlockSpec((1, bb, npix), lambda gi: (gi, 0, 0))]
                 + [_const_spec(a) for a in consts],
        out_specs=pl.BlockSpec((1, bb, npix), lambda gi: (gi, 0, 0)),
        compiler_params=pltpu.CompilerParams(
            dimension_semantics=("parallel",),
            vmem_limit_bytes=32 * 1024 * 1024),
    )(x_flat, *consts)

    out = out_flat.reshape(bsz_pad, n, n)[:bsz, :s, :s]
    return out[..., None]


# ------------------------------ parameter init -------------------------------
def init_params(key, width, modes1, modes2, modes21, modes22):
    keys = iter(jax.random.split(key, 32))
    scale = 1.0 / (width * width)

    def u(shape, lo, hi):
        return jax.random.uniform(next(keys), shape, jnp.float32, lo, hi)

    p = {}
    p["fc0_w"] = u((1, width), -1.0, 1.0)
    p["fc0_b"] = u((width,), -1.0, 1.0)
    kb = 1.0 / np.sqrt(width)
    for name in _LAYER_NAMES:
        p[f"conv{name}_w0"] = scale * u((width, width, modes1, modes2), 0.0, 1.0)
        p[f"conv{name}_wh"] = scale * u((width, width, 6, modes21, modes22, 2), 0.0, 1.0)
        p[f"w{name}_w"] = u((width, width), -kb, kb)
        p[f"w{name}_b"] = u((width,), -kb, kb)
    p["fc1_w"] = u((width, FC_HIDDEN), -kb, kb)
    p["fc1_b"] = u((FC_HIDDEN,), -kb, kb)
    k2 = 1.0 / np.sqrt(FC_HIDDEN)
    p["fc2_w"] = u((FC_HIDDEN, 1), -k2, k2)
    p["fc2_b"] = u((1,), -k2, k2)
    return p


if __name__ == "__main__":
    key = jax.random.PRNGKey(0)
    kx, kp = jax.random.split(key)

    batch, s = 2, 15                 # s + padding = 16 (even, required by DTCWT)
    x = jax.random.normal(kx, (batch, s, s, 1), jnp.float32)

    n = s + PADDING                  # spatial size seen by the wavelet block
    modes1 = modes2 = n              # J=1 lowpass keeps full resolution
    modes21 = modes22 = n // 2       # level-1 complex highpass resolution
    params = init_params(kp, WIDTH, modes1, modes2, modes21, modes22)

    wfwd, winv = build_dtcwt_matrices(n)

    fwd = jax.jit(cwno2d_forward)
    out = fwd(params, x, wfwd, winv)
    jax.block_until_ready(out)

    assert out.shape == (batch, s, s, 1), out.shape
    assert bool(jnp.all(jnp.isfinite(out)))
    print("KERNEL_OK")
</pallas_src>

<mosaic_0001>
module attributes {stable_mosaic.version = 11 : i64} {
  func.func @_cwno2d_kernel(%arg0: i32, %arg1: memref<1x2x256xf32, #tpu.memory_space<vmem>>, %arg2: memref<16x2xf32, #tpu.memory_space<vmem>>, %arg3: memref<16x256xf32, #tpu.memory_space<vmem>>, %arg4: memref<256x1024xbf16, #tpu.memory_space<vmem>>, %arg5: memref<1024x256xbf16, #tpu.memory_space<vmem>>, %arg6: memref<3x8x8x1024xf32, #tpu.memory_space<vmem>>, %arg7: memref<3x16x16xf32, #tpu.memory_space<vmem>>, %arg8: memref<3x16x1xf32, #tpu.memory_space<vmem>>, %arg9: memref<512x9xf32, #tpu.memory_space<vmem>>, %arg10: memref<1x512xf32, #tpu.memory_space<vmem>>, %arg11: memref<1x1xf32, #tpu.memory_space<vmem>>, %arg12: memref<1x2x256xf32, #tpu.memory_space<vmem>>) attributes {dimension_semantics = [#tpu.dimension_semantics<parallel>], iteration_bounds = array<i64: 1>, scalar_prefetch = 0 : i64, scratch_operands = 0 : i64, tpu.core_type = #tpu.core_type<tc>, window_params = [{transform_indices = @transform_0, window_bounds = array<i64: 1, 2, 256>}, {pipeline_mode = #tpu.pipeline_mode<synchronous>, transform_indices = @transform_1, window_bounds = array<i64: 16, 2>}, {pipeline_mode = #tpu.pipeline_mode<synchronous>, transform_indices = @transform_2, window_bounds = array<i64: 16, 256>}, {pipeline_mode = #tpu.pipeline_mode<synchronous>, transform_indices = @transform_3, window_bounds = array<i64: 256, 1024>}, {pipeline_mode = #tpu.pipeline_mode<synchronous>, transform_indices = @transform_4, window_bounds = array<i64: 1024, 256>}, {pipeline_mode = #tpu.pipeline_mode<synchronous>, transform_indices = @transform_5, window_bounds = array<i64: 3, 8, 8, 1024>}, {pipeline_mode = #tpu.pipeline_mode<synchronous>, transform_indices = @transform_6, window_bounds = array<i64: 3, 16, 16>}, {pipeline_mode = #tpu.pipeline_mode<synchronous>, transform_indices = @transform_7, window_bounds = array<i64: 3, 16, 1>}, {pipeline_mode = #tpu.pipeline_mode<synchronous>, transform_indices = @transform_8, window_bounds = array<i64: 512, 9>}, {pipeline_mode = #tpu.pipeline_mode<synchronous>, transform_indices = @transform_9, window_bounds = array<i64: 1, 512>}, {pipeline_mode = #tpu.pipeline_mode<synchronous>, transform_indices = @transform_10, window_bounds = array<i64: 1, 1>}, {transform_indices = @transform_11, window_bounds = array<i64: 1, 2, 256>}]} {
    %c0 = arith.constant 0 : index
    %c0_0 = arith.constant 0 : index
    %c0_1 = arith.constant 0 : index
    %0 = vector.load %arg1[%c0, %c0_0, %c0_1] : memref<1x2x256xf32, #tpu.memory_space<vmem>>, vector<1x2x256xf32>
    %1 = vector.shape_cast %0 : vector<1x2x256xf32> to vector<2x256xf32>
    %c0_2 = arith.constant 0 : index
    %c0_3 = arith.constant 0 : index
    %2 = vector.load %arg2[%c0_2, %c0_3] : memref<16x2xf32, #tpu.memory_space<vmem>>, vector<16x2xf32>
    %cst = arith.constant dense<0.000000e+00> : vector<16x256xf32>
    %3 = tpu.matmul %2, %1, %cst {dimension_numbers = #tpu.dot_dimension_numbers<[1], [0], [0], [1], [0, 0, 1, 1], [], []>} : vector<16x2xf32>, vector<2x256xf32>, vector<16x256xf32> -> vector<16x256xf32>
    %c0_4 = arith.constant 0 : index
    %c0_5 = arith.constant 0 : index
    %4 = vector.load %arg3[%c0_4, %c0_5] : memref<16x256xf32, #tpu.memory_space<vmem>>, vector<16x256xf32>
    %5 = arith.addf %3, %4 : vector<16x256xf32>
    %6 = arith.truncf %5 : vector<16x256xf32> to vector<16x256xbf16>
    %c0_6 = arith.constant 0 : index
    %c0_7 = arith.constant 0 : index
    %7 = vector.load %arg4[%c0_6, %c0_7] : memref<256x1024xbf16, #tpu.memory_space<vmem>>, vector<256x1024xbf16>
    %cst_8 = arith.constant dense<0.000000e+00> : vector<16x1024xf32>
    %8 = tpu.matmul %6, %7, %cst_8 {dimension_numbers = #tpu.dot_dimension_numbers<[1], [0], [0], [1], [0, 0, 1, 1], [], []>} : vector<16x256xbf16>, vector<256x1024xbf16>, vector<16x1024xf32> -> vector<16x1024xf32>
    %9 = vector.shape_cast %8 : vector<16x1024xf32> to vector<2x8x1024xf32>
    %10 = vector.extract_strided_slice %9 {offsets = [0, 0, 0], sizes = [2, 1, 1024], strides = [1, 1, 1]} : vector<2x8x1024xf32> to vector<2x1x1024xf32>
    %c0_9 = arith.constant 0 : index
    %c0_10 = arith.constant 0 : index
    %c0_11 = arith.constant 0 : index
    %c0_12 = arith.constant 0 : index
    %11 = vector.load %arg6[%c0_9, %c0_10, %c0_11, %c0_12] : memref<3x8x8x1024xf32, #tpu.memory_space<vmem>>, vector<1x1x8x1024xf32>
    %12 = vector.shape_cast %11 : vector<1x1x8x1024xf32> to vector<8x1024xf32>
    %13 = vector.shape_cast %12 : vector<8x1024xf32> to vector<1x8x1024xf32>
    %14 = vector.broadcast %10 : vector<2x1x1024xf32> to vector<2x8x1024xf32>
    %15 = vector.broadcast %13 : vector<1x8x1024xf32> to vector<2x8x1024xf32>
    %16 = arith.mulf %14, %15 : vector<2x8x1024xf32>
    %17 = vector.extract_strided_slice %9 {offsets = [0, 1, 0], sizes = [2, 1, 1024], strides = [1, 1, 1]} : vector<2x8x1024xf32> to vector<2x1x1024xf32>
    %c0_13 = arith.constant 0 : index
    %c1 = arith.constant 1 : index
    %c0_14 = arith.constant 0 : index
    %c0_15 = arith.constant 0 : index
    %18 = vector.load %arg6[%c0_13, %c1, %c0_14, %c0_15] : memref<3x8x8x1024xf32, #tpu.memory_space<vmem>>, vector<1x1x8x1024xf32>
    %19 = vector.shape_cast %18 : vector<1x1x8x1024xf32> to vector<8x1024xf32>
    %20 = vector.shape_cast %19 : vector<8x1024xf32> to vector<1x8x1024xf32>
    %21 = vector.broadcast %17 : vector<2x1x1024xf32> to vector<2x8x1024xf32>
    %22 = vector.broadcast %20 : vector<1x8x1024xf32> to vector<2x8x1024xf32>
    %23 = arith.mulf %21, %22 : vector<2x8x1024xf32>
    %24 = arith.addf %16, %23 : vector<2x8x1024xf32>
    %25 = vector.extract_strided_slice %9 {offsets = [0, 2, 0], sizes = [2, 1, 1024], strides = [1, 1, 1]} : vector<2x8x1024xf32> to vector<2x1x1024xf32>
    %c0_16 = arith.constant 0 : index
    %c2 = arith.constant 2 : index
    %c0_17 = arith.constant 0 : index
    %c0_18 = arith.constant 0 : index
    %26 = vector.load %arg6[%c0_16, %c2, %c0_17, %c0_18] : memref<3x8x8x1024xf32, #tpu.memory_space<vmem>>, vector<1x1x8x1024xf32>
    %27 = vector.shape_cast %26 : vector<1x1x8x1024xf32> to vector<8x1024xf32>
    %28 = vector.shape_cast %27 : vector<8x1024xf32> to vector<1x8x1024xf32>
    %29 = vector.broadcast %25 : vector<2x1x1024xf32> to vector<2x8x1024xf32>
    %30 = vector.broadcast %28 : vector<1x8x1024xf32> to vector<2x8x1024xf32>
    %31 = arith.mulf %29, %30 : vector<2x8x1024xf32>
    %32 = arith.addf %24, %31 : vector<2x8x1024xf32>
    %33 = vector.extract_strided_slice %9 {offsets = [0, 3, 0], sizes = [2, 1, 1024], strides = [1, 1, 1]} : vector<2x8x1024xf32> to vector<2x1x1024xf32>
    %c0_19 = arith.constant 0 : index
    %c3 = arith.constant 3 : index
    %c0_20 = arith.constant 0 : index
    %c0_21 = arith.constant 0 : index
    %34 = vector.load %arg6[%c0_19, %c3, %c0_20, %c0_21] : memref<3x8x8x1024xf32, #tpu.memory_space<vmem>>, vector<1x1x8x1024xf32>
    %35 = vector.shape_cast %34 : vector<1x1x8x1024xf32> to vector<8x1024xf32>
    %36 = vector.shape_cast %35 : vector<8x1024xf32> to vector<1x8x1024xf32>
    %37 = vector.broadcast %33 : vector<2x1x1024xf32> to vector<2x8x1024xf32>
    %38 = vector.broadcast %36 : vector<1x8x1024xf32> to vector<2x8x1024xf32>
    %39 = arith.mulf %37, %38 : vector<2x8x1024xf32>
    %40 = arith.addf %32, %39 : vector<2x8x1024xf32>
    %41 = vector.extract_strided_slice %9 {offsets = [0, 4, 0], sizes = [2, 1, 1024], strides = [1, 1, 1]} : vector<2x8x1024xf32> to vector<2x1x1024xf32>
    %c0_22 = arith.constant 0 : index
    %c4 = arith.constant 4 : index
    %c0_23 = arith.constant 0 : index
    %c0_24 = arith.constant 0 : index
    %42 = vector.load %arg6[%c0_22, %c4, %c0_23, %c0_24] : memref<3x8x8x1024xf32, #tpu.memory_space<vmem>>, vector<1x1x8x1024xf32>
    %43 = vector.shape_cast %42 : vector<1x1x8x1024xf32> to vector<8x1024xf32>
    %44 = vector.shape_cast %43 : vector<8x1024xf32> to vector<1x8x1024xf32>
    %45 = vector.broadcast %41 : vector<2x1x1024xf32> to vector<2x8x1024xf32>
    %46 = vector.broadcast %44 : vector<1x8x1024xf32> to vector<2x8x1024xf32>
    %47 = arith.mulf %45, %46 : vector<2x8x1024xf32>
    %48 = arith.addf %40, %47 : vector<2x8x1024xf32>
    %49 = vector.extract_strided_slice %9 {offsets = [0, 5, 0], sizes = [2, 1, 1024], strides = [1, 1, 1]} : vector<2x8x1024xf32> to vector<2x1x1024xf32>
    %c0_25 = arith.constant 0 : index
    %c5 = arith.constant 5 : index
    %c0_26 = arith.constant 0 : index
    %c0_27 = arith.constant 0 : index
    %50 = vector.load %arg6[%c0_25, %c5, %c0_26, %c0_27] : memref<3x8x8x1024xf32, #tpu.memory_space<vmem>>, vector<1x1x8x1024xf32>
    %51 = vector.shape_cast %50 : vector<1x1x8x1024xf32> to vector<8x1024xf32>
    %52 = vector.shape_cast %51 : vector<8x1024xf32> to vector<1x8x1024xf32>
    %53 = vector.broadcast %49 : vector<2x1x1024xf32> to vector<2x8x1024xf32>
    %54 = vector.broadcast %52 : vector<1x8x1024xf32> to vector<2x8x1024xf32>
    %55 = arith.mulf %53, %54 : vector<2x8x1024xf32>
    %56 = arith.addf %48, %55 : vector<2x8x1024xf32>
    %57 = vector.extract_strided_slice %9 {offsets = [0, 6, 0], sizes = [2, 1, 1024], strides = [1, 1, 1]} : vector<2x8x1024xf32> to vector<2x1x1024xf32>
    %c0_28 = arith.constant 0 : index
    %c6 = arith.constant 6 : index
    %c0_29 = arith.constant 0 : index
    %c0_30 = arith.constant 0 : index
    %58 = vector.load %arg6[%c0_28, %c6, %c0_29, %c0_30] : memref<3x8x8x1024xf32, #tpu.memory_space<vmem>>, vector<1x1x8x1024xf32>
    %59 = vector.shape_cast %58 : vector<1x1x8x1024xf32> to vector<8x1024xf32>
    %60 = vector.shape_cast %59 : vector<8x1024xf32> to vector<1x8x1024xf32>
    %61 = vector.broadcast %57 : vector<2x1x1024xf32> to vector<2x8x1024xf32>
    %62 = vector.broadcast %60 : vector<1x8x1024xf32> to vector<2x8x1024xf32>
    %63 = arith.mulf %61, %62 : vector<2x8x1024xf32>
    %64 = arith.addf %56, %63 : vector<2x8x1024xf32>
    %65 = vector.extract_strided_slice %9 {offsets = [0, 7, 0], sizes = [2, 1, 1024], strides = [1, 1, 1]} : vector<2x8x1024xf32> to vector<2x1x1024xf32>
    %c0_31 = arith.constant 0 : index
    %c7 = arith.constant 7 : index
    %c0_32 = arith.constant 0 : index
    %c0_33 = arith.constant 0 : index
    %66 = vector.load %arg6[%c0_31, %c7, %c0_32, %c0_33] : memref<3x8x8x1024xf32, #tpu.memory_space<vmem>>, vector<1x1x8x1024xf32>
    %67 = vector.shape_cast %66 : vector<1x1x8x1024xf32> to vector<8x1024xf32>
    %68 = vector.shape_cast %67 : vector<8x1024xf32> to vector<1x8x1024xf32>
    %69 = vector.broadcast %65 : vector<2x1x1024xf32> to vector<2x8x1024xf32>
    %70 = vector.broadcast %68 : vector<1x8x1024xf32> to vector<2x8x1024xf32>
    %71 = arith.mulf %69, %70 : vector<2x8x1024xf32>
    %72 = arith.addf %64, %71 : vector<2x8x1024xf32>
    %73 = vector.shape_cast %72 : vector<2x8x1024xf32> to vector<16x1024xf32>
    %74 = arith.truncf %73 : vector<16x1024xf32> to vector<16x1024xbf16>
    %c0_34 = arith.constant 0 : index
    %c0_35 = arith.constant 0 : index
    %75 = vector.load %arg5[%c0_34, %c0_35] : memref<1024x256xbf16, #tpu.memory_space<vmem>>, vector<1024x256xbf16>
    %cst_36 = arith.constant dense<0.000000e+00> : vector<16x256xf32>
    %76 = tpu.matmul %74, %75, %cst_36 {dimension_numbers = #tpu.dot_dimension_numbers<[1], [0], [0], [1], [0, 0, 1, 1], [], []>} : vector<16x1024xbf16>, vector<1024x256xbf16>, vector<16x256xf32> -> vector<16x256xf32>
    %c0_37 = arith.constant 0 : index
    %c0_38 = arith.constant 0 : index
    %c0_39 = arith.constant 0 : index
    %77 = vector.load %arg7[%c0_37, %c0_38, %c0_39] : memref<3x16x16xf32, #tpu.memory_space<vmem>>, vector<1x16x16xf32>
    %78 = vector.shape_cast %77 : vector<1x16x16xf32> to vector<16x16xf32>
    %cst_40 = arith.constant dense<0.000000e+00> : vector<16x256xf32>
    %79 = tpu.matmul %78, %5, %cst_40 {dimension_numbers = #tpu.dot_dimension_numbers<[1], [0], [0], [1], [0, 0, 1, 1], [], []>} : vector<16x16xf32>, vector<16x256xf32>, vector<16x256xf32> -> vector<16x256xf32>
    %c0_41 = arith.constant 0 : index
    %c0_42 = arith.constant 0 : index
    %c0_43 = arith.constant 0 : index
    %80 = vector.load %arg8[%c0_41, %c0_42, %c0_43] : memref<3x16x1xf32, #tpu.memory_space<vmem>>, vector<1x16x1xf32>
    %81 = vector.shape_cast %80 : vector<1x16x1xf32> to vector<16x1xf32>
    %82 = vector.broadcast %81 : vector<16x1xf32> to vector<16x256xf32>
    %83 = arith.addf %79, %82 : vector<16x256xf32>
    %84 = arith.addf %76, %83 : vector<16x256xf32>
    %cst_44 = arith.constant 5.000000e-01 : f32
    %85 = vector.broadcast %cst_44 : f32 to vector<16x256xf32>
    %86 = arith.mulf %85, %84 : vector<16x256xf32>
    %cst_45 = arith.constant 0.707106769 : f32
    %87 = vector.broadcast %cst_45 : f32 to vector<16x256xf32>
    %88 = arith.mulf %84, %87 : vector<16x256xf32>
    %89 = math.absf %88 : vector<16x256xf32>
    %cst_46 = arith.constant 0.327591091 : f32
    %90 = vector.broadcast %cst_46 : f32 to vector<16x256xf32>
    %91 = arith.mulf %90, %89 : vector<16x256xf32>
    %cst_47 = arith.constant 1.000000e+00 : f32
    %92 = vector.broadcast %cst_47 : f32 to vector<16x256xf32>
    %93 = arith.addf %92, %91 : vector<16x256xf32>
    %cst_48 = arith.constant 1.000000e+00 : f32
    %94 = vector.broadcast %cst_48 : f32 to vector<16x256xf32>
    %95 = arith.divf %94, %93 : vector<16x256xf32>
    %cst_49 = arith.constant 1.06140542 : f32
    %96 = vector.broadcast %cst_49 : f32 to vector<16x256xf32>
    %97 = arith.mulf %96, %95 : vector<16x256xf32>
    %cst_50 = arith.constant -1.45315206 : f32
    %98 = vector.broadcast %cst_50 : f32 to vector<16x256xf32>
    %99 = arith.addf %97, %98 : vector<16x256xf32>
    %100 = arith.mulf %99, %95 : vector<16x256xf32>
    %cst_51 = arith.constant 1.42141378 : f32
    %101 = vector.broadcast %cst_51 : f32 to vector<16x256xf32>
    %102 = arith.addf %100, %101 : vector<16x256xf32>
    %103 = arith.mulf %102, %95 : vector<16x256xf32>
    %cst_52 = arith.constant -0.284496725 : f32
    %104 = vector.broadcast %cst_52 : f32 to vector<16x256xf32>
    %105 = arith.addf %103, %104 : vector<16x256xf32>
    %106 = arith.mulf %105, %95 : vector<16x256xf32>
    %cst_53 = arith.constant 0.254829586 : f32
    %107 = vector.broadcast %cst_53 : f32 to vector<16x256xf32>
    %108 = arith.addf %106, %107 : vector<16x256xf32>
    %109 = arith.mulf %108, %95 : vector<16x256xf32>
    %110 = arith.mulf %89, %89 : vector<16x256xf32>
    %cst_54 = arith.constant 0.000000e+00 : f32
    %111 = vector.broadcast %cst_54 : f32 to vector<16x256xf32>
    %112 = arith.subf %111, %110 : vector<16x256xf32>
    %113 = math.exp %112 : vector<16x256xf32>
    %114 = arith.mulf %109, %113 : vector<16x256xf32>
    %cst_55 = arith.constant 1.000000e+00 : f32
    %115 = vector.broadcast %cst_55 : f32 to vector<16x256xf32>
    %116 = arith.subf %115, %114 : vector<16x256xf32>
    %cst_56 = arith.constant 0.000000e+00 : f32
    %117 = vector.broadcast %cst_56 : f32 to vector<16x256xf32>
    %118 = arith.cmpf olt, %88, %117 : vector<16x256xf32>
    %cst_57 = arith.constant 0.000000e+00 : f32
    %119 = vector.broadcast %cst_57 : f32 to vector<16x256xf32>
    %120 = arith.subf %119, %116 : vector<16x256xf32>
    %121 = arith.select %118, %120, %116 : vector<16x256xi1>, vector<16x256xf32>
    %cst_58 = arith.constant 1.000000e+00 : f32
    %122 = vector.broadcast %cst_58 : f32 to vector<16x256xf32>
    %123 = arith.addf %122, %121 : vector<16x256xf32>
    %124 = arith.mulf %86, %123 : vector<16x256xf32>
    %125 = arith.truncf %124 : vector<16x256xf32> to vector<16x256xbf16>
    %c0_59 = arith.constant 0 : index
    %c0_60 = arith.constant 0 : index
    %126 = vector.load %arg4[%c0_59, %c0_60] : memref<256x1024xbf16, #tpu.memory_space<vmem>>, vector<256x1024xbf16>
    %cst_61 = arith.constant dense<0.000000e+00> : vector<16x1024xf32>
    %127 = tpu.matmul %125, %126, %cst_61 {dimension_numbers = #tpu.dot_dimension_numbers<[1], [0], [0], [1], [0, 0, 1, 1], [], []>} : vector<16x256xbf16>, vector<256x1024xbf16>, vector<16x1024xf32> -> vector<16x1024xf32>
    %128 = vector.shape_cast %127 : vector<16x1024xf32> to vector<2x8x1024xf32>
    %129 = vector.extract_strided_slice %128 {offsets = [0, 0, 0], sizes = [2, 1, 1024], strides = [1, 1, 1]} : vector<2x8x1024xf32> to vector<2x1x1024xf32>
    %c1_62 = arith.constant 1 : index
    %c0_63 = arith.constant 0 : index
    %c0_64 = arith.constant 0 : index
    %c0_65 = arith.constant 0 : index
    %130 = vector.load %arg6[%c1_62, %c0_63, %c0_64, %c0_65] : memref<3x8x8x1024xf32, #tpu.memory_space<vmem>>, vector<1x1x8x1024xf32>
    %131 = vector.shape_cast %130 : vector<1x1x8x1024xf32> to vector<8x1024xf32>
    %132 = vector.shape_cast %131 : vector<8x1024xf32> to vector<1x8x1024xf32>
    %133 = vector.broadcast %129 : vector<2x1x1024xf32> to vector<2x8x1024xf32>
    %134 = vector.broadcast %132 : vector<1x8x1024xf32> to vector<2x8x1024xf32>
    %135 = arith.mulf %133, %134 : vector<2x8x1024xf32>
    %136 = vector.extract_strided_slice %128 {offsets = [0, 1, 0], sizes = [2, 1, 1024], strides = [1, 1, 1]} : vector<2x8x1024xf32> to vector<2x1x1024xf32>
    %c1_66 = arith.constant 1 : index
    %c1_67 = arith.constant 1 : index
    %c0_68 = arith.constant 0 : index
    %c0_69 = arith.constant 0 : index
    %137 = vector.load %arg6[%c1_66, %c1_67, %c0_68, %c0_69] : memref<3x8x8x1024xf32, #tpu.memory_space<vmem>>, vector<1x1x8x1024xf32>
    %138 = vector.shape_cast %137 : vector<1x1x8x1024xf32> to vector<8x1024xf32>
    %139 = vector.shape_cast %138 : vector<8x1024xf32> to vector<1x8x1024xf32>
    %140 = vector.broadcast %136 : vector<2x1x1024xf32> to vector<2x8x1024xf32>
    %141 = vector.broadcast %139 : vector<1x8x1024xf32> to vector<2x8x1024xf32>
    %142 = arith.mulf %140, %141 : vector<2x8x1024xf32>
    %143 = arith.addf %135, %142 : vector<2x8x1024xf32>
    %144 = vector.extract_strided_slice %128 {offsets = [0, 2, 0], sizes = [2, 1, 1024], strides = [1, 1, 1]} : vector<2x8x1024xf32> to vector<2x1x1024xf32>
    %c1_70 = arith.constant 1 : index
    %c2_71 = arith.constant 2 : index
    %c0_72 = arith.constant 0 : index
    %c0_73 = arith.constant 0 : index
    %145 = vector.load %arg6[%c1_70, %c2_71, %c0_72, %c0_73] : memref<3x8x8x1024xf32, #tpu.memory_space<vmem>>, vector<1x1x8x1024xf32>
    %146 = vector.shape_cast %145 : vector<1x1x8x1024xf32> to vector<8x1024xf32>
    %147 = vector.shape_cast %146 : vector<8x1024xf32> to vector<1x8x1024xf32>
    %148 = vector.broadcast %144 : vector<2x1x1024xf32> to vector<2x8x1024xf32>
    %149 = vector.broadcast %147 : vector<1x8x1024xf32> to vector<2x8x1024xf32>
    %150 = arith.mulf %148, %149 : vector<2x8x1024xf32>
    %151 = arith.addf %143, %150 : vector<2x8x1024xf32>
    %152 = vector.extract_strided_slice %128 {offsets = [0, 3, 0], sizes = [2, 1, 1024], strides = [1, 1, 1]} : vector<2x8x1024xf32> to vector<2x1x1024xf32>
    %c1_74 = arith.constant 1 : index
    %c3_75 = arith.constant 3 : index
    %c0_76 = arith.constant 0 : index
    %c0_77 = arith.constant 0 : index
    %153 = vector.load %arg6[%c1_74, %c3_75, %c0_76, %c0_77] : memref<3x8x8x1024xf32, #tpu.memory_space<vmem>>, vector<1x1x8x1024xf32>
    %154 = vector.shape_cast %153 : vector<1x1x8x1024xf32> to vector<8x1024xf32>
    %155 = vector.shape_cast %154 : vector<8x1024xf32> to vector<1x8x1024xf32>
    %156 = vector.broadcast %152 : vector<2x1x1024xf32> to vector<2x8x1024xf32>
    %157 = vector.broadcast %155 : vector<1x8x1024xf32> to vector<2x8x1024xf32>
    %158 = arith.mulf %156, %157 : vector<2x8x1024xf32>
    %159 = arith.addf %151, %158 : vector<2x8x1024xf32>
    %160 = vector.extract_strided_slice %128 {offsets = [0, 4, 0], sizes = [2, 1, 1024], strides = [1, 1, 1]} : vector<2x8x1024xf32> to vector<2x1x1024xf32>
    %c1_78 = arith.constant 1 : index
    %c4_79 = arith.constant 4 : index
    %c0_80 = arith.constant 0 : index
    %c0_81 = arith.constant 0 : index
    %161 = vector.load %arg6[%c1_78, %c4_79, %c0_80, %c0_81] : memref<3x8x8x1024xf32, #tpu.memory_space<vmem>>, vector<1x1x8x1024xf32>
    %162 = vector.shape_cast %161 : vector<1x1x8x1024xf32> to vector<8x1024xf32>
    %163 = vector.shape_cast %162 : vector<8x1024xf32> to vector<1x8x1024xf32>
    %164 = vector.broadcast %160 : vector<2x1x1024xf32> to vector<2x8x1024xf32>
    %165 = vector.broadcast %163 : vector<1x8x1024xf32> to vector<2x8x1024xf32>
    %166 = arith.mulf %164, %165 : vector<2x8x1024xf32>
    %167 = arith.addf %159, %166 : vector<2x8x1024xf32>
    %168 = vector.extract_strided_slice %128 {offsets = [0, 5, 0], sizes = [2, 1, 1024], strides = [1, 1, 1]} : vector<2x8x1024xf32> to vector<2x1x1024xf32>
    %c1_82 = arith.constant 1 : index
    %c5_83 = arith.constant 5 : index
    %c0_84 = arith.constant 0 : index
    %c0_85 = arith.constant 0 : index
    %169 = vector.load %arg6[%c1_82, %c5_83, %c0_84, %c0_85] : memref<3x8x8x1024xf32, #tpu.memory_space<vmem>>, vector<1x1x8x1024xf32>
    %170 = vector.shape_cast %169 : vector<1x1x8x1024xf32> to vector<8x1024xf32>
    %171 = vector.shape_cast %170 : vector<8x1024xf32> to vector<1x8x1024xf32>
    %172 = vector.broadcast %168 : vector<2x1x1024xf32> to vector<2x8x1024xf32>
    %173 = vector.broadcast %171 : vector<1x8x1024xf32> to vector<2x8x1024xf32>
    %174 = arith.mulf %172, %173 : vector<2x8x1024xf32>
    %175 = arith.addf %167, %174 : vector<2x8x1024xf32>
    %176 = vector.extract_strided_slice %128 {offsets = [0, 6, 0], sizes = [2, 1, 1024], strides = [1, 1, 1]} : vector<2x8x1024xf32> to vector<2x1x1024xf32>
    %c1_86 = arith.constant 1 : index
    %c6_87 = arith.constant 6 : index
    %c0_88 = arith.constant 0 : index
    %c0_89 = arith.constant 0 : index
    %177 = vector.load %arg6[%c1_86, %c6_87, %c0_88, %c0_89] : memref<3x8x8x1024xf32, #tpu.memory_space<vmem>>, vector<1x1x8x1024xf32>
    %178 = vector.shape_cast %177 : vector<1x1x8x1024xf32> to vector<8x1024xf32>
    %179 = vector.shape_cast %178 : vector<8x1024xf32> to vector<1x8x1024xf32>
    %180 = vector.broadcast %176 : vector<2x1x1024xf32> to vector<2x8x1024xf32>
    %181 = vector.broadcast %179 : vector<1x8x1024xf32> to vector<2x8x1024xf32>
    %182 = arith.mulf %180, %181 : vector<2x8x1024xf32>
    %183 = arith.addf %175, %182 : vector<2x8x1024xf32>
    %184 = vector.extract_strided_slice %128 {offsets = [0, 7, 0], sizes = [2, 1, 1024], strides = [1, 1, 1]} : vector<2x8x1024xf32> to vector<2x1x1024xf32>
    %c1_90 = arith.constant 1 : index
    %c7_91 = arith.constant 7 : index
    %c0_92 = arith.constant 0 : index
    %c0_93 = arith.constant 0 : index
    %185 = vector.load %arg6[%c1_90, %c7_91, %c0_92, %c0_93] : memref<3x8x8x1024xf32, #tpu.memory_space<vmem>>, vector<1x1x8x1024xf32>
    %186 = vector.shape_cast %185 : vector<1x1x8x1024xf32> to vector<8x1024xf32>
    %187 = vector.shape_cast %186 : vector<8x1024xf32> to vector<1x8x1024xf32>
    %188 = vector.broadcast %184 : vector<2x1x1024xf32> to vector<2x8x1024xf32>
    %189 = vector.broadcast %187 : vector<1x8x1024xf32> to vector<2x8x1024xf32>
    %190 = arith.mulf %188, %189 : vector<2x8x1024xf32>
    %191 = arith.addf %183, %190 : vector<2x8x1024xf32>
    %192 = vector.shape_cast %191 : vector<2x8x1024xf32> to vector<16x1024xf32>
    %193 = arith.truncf %192 : vector<16x1024xf32> to vector<16x1024xbf16>
    %c0_94 = arith.constant 0 : index
    %c0_95 = arith.constant 0 : index
    %194 = vector.load %arg5[%c0_94, %c0_95] : memref<1024x256xbf16, #tpu.memory_space<vmem>>, vector<1024x256xbf16>
    %cst_96 = arith.constant dense<0.000000e+00> : vector<16x256xf32>
    %195 = tpu.matmul %193, %194, %cst_96 {dimension_numbers = #tpu.dot_dimension_numbers<[1], [0], [0], [1], [0, 0, 1, 1], [], []>} : vector<16x1024xbf16>, vector<1024x256xbf16>, vector<16x256xf32> -> vector<16x256xf32>
    %c1_97 = arith.constant 1 : index
    %c0_98 = arith.constant 0 : index
    %c0_99 = arith.constant 0 : index
    %196 = vector.load %arg7[%c1_97, %c0_98, %c0_99] : memref<3x16x16xf32, #tpu.memory_space<vmem>>, vector<1x16x16xf32>
    %197 = vector.shape_cast %196 : vector<1x16x16xf32> to vector<16x16xf32>
    %cst_100 = arith.constant dense<0.000000e+00> : vector<16x256xf32>
    %198 = tpu.matmul %197, %124, %cst_100 {dimension_numbers = #tpu.dot_dimension_numbers<[1], [0], [0], [1], [0, 0, 1, 1], [], []>} : vector<16x16xf32>, vector<16x256xf32>, vector<16x256xf32> -> vector<16x256xf32>
    %c1_101 = arith.constant 1 : index
    %c0_102 = arith.constant 0 : index
    %c0_103 = arith.constant 0 : index
    %199 = vector.load %arg8[%c1_101, %c0_102, %c0_103] : memref<3x16x1xf32, #tpu.memory_space<vmem>>, vector<1x16x1xf32>
    %200 = vector.shape_cast %199 : vector<1x16x1xf32> to vector<16x1xf32>
    %201 = vector.broadcast %200 : vector<16x1xf32> to vector<16x256xf32>
    %202 = arith.addf %198, %201 : vector<16x256xf32>
    %203 = arith.addf %195, %202 : vector<16x256xf32>
    %cst_104 = arith.constant 5.000000e-01 : f32
    %204 = vector.broadcast %cst_104 : f32 to vector<16x256xf32>
    %205 = arith.mulf %204, %203 : vector<16x256xf32>
    %cst_105 = arith.constant 0.707106769 : f32
    %206 = vector.broadcast %cst_105 : f32 to vector<16x256xf32>
    %207 = arith.mulf %203, %206 : vector<16x256xf32>
    %208 = math.absf %207 : vector<16x256xf32>
    %cst_106 = arith.constant 0.327591091 : f32
    %209 = vector.broadcast %cst_106 : f32 to vector<16x256xf32>
    %210 = arith.mulf %209, %208 : vector<16x256xf32>
    %cst_107 = arith.constant 1.000000e+00 : f32
    %211 = vector.broadcast %cst_107 : f32 to vector<16x256xf32>
    %212 = arith.addf %211, %210 : vector<16x256xf32>
    %cst_108 = arith.constant 1.000000e+00 : f32
    %213 = vector.broadcast %cst_108 : f32 to vector<16x256xf32>
    %214 = arith.divf %213, %212 : vector<16x256xf32>
    %cst_109 = arith.constant 1.06140542 : f32
    %215 = vector.broadcast %cst_109 : f32 to vector<16x256xf32>
    %216 = arith.mulf %215, %214 : vector<16x256xf32>
    %cst_110 = arith.constant -1.45315206 : f32
    %217 = vector.broadcast %cst_110 : f32 to vector<16x256xf32>
    %218 = arith.addf %216, %217 : vector<16x256xf32>
    %219 = arith.mulf %218, %214 : vector<16x256xf32>
    %cst_111 = arith.constant 1.42141378 : f32
    %220 = vector.broadcast %cst_111 : f32 to vector<16x256xf32>
    %221 = arith.addf %219, %220 : vector<16x256xf32>
    %222 = arith.mulf %221, %214 : vector<16x256xf32>
    %cst_112 = arith.constant -0.284496725 : f32
    %223 = vector.broadcast %cst_112 : f32 to vector<16x256xf32>
    %224 = arith.addf %222, %223 : vector<16x256xf32>
    %225 = arith.mulf %224, %214 : vector<16x256xf32>
    %cst_113 = arith.constant 0.254829586 : f32
    %226 = vector.broadcast %cst_113 : f32 to vector<16x256xf32>
    %227 = arith.addf %225, %226 : vector<16x256xf32>
    %228 = arith.mulf %227, %214 : vector<16x256xf32>
    %229 = arith.mulf %208, %208 : vector<16x256xf32>
    %cst_114 = arith.constant 0.000000e+00 : f32
    %230 = vector.broadcast %cst_114 : f32 to vector<16x256xf32>
    %231 = arith.subf %230, %229 : vector<16x256xf32>
    %232 = math.exp %231 : vector<16x256xf32>
    %233 = arith.mulf %228, %232 : vector<16x256xf32>
    %cst_115 = arith.constant 1.000000e+00 : f32
    %234 = vector.broadcast %cst_115 : f32 to vector<16x256xf32>
    %235 = arith.subf %234, %233 : vector<16x256xf32>
    %cst_116 = arith.constant 0.000000e+00 : f32
    %236 = vector.broadcast %cst_116 : f32 to vector<16x256xf32>
    %237 = arith.cmpf olt, %207, %236 : vector<16x256xf32>
    %cst_117 = arith.constant 0.000000e+00 : f32
    %238 = vector.broadcast %cst_117 : f32 to vector<16x256xf32>
    %239 = arith.subf %238, %235 : vector<16x256xf32>
    %240 = arith.select %237, %239, %235 : vector<16x256xi1>, vector<16x256xf32>
    %cst_118 = arith.constant 1.000000e+00 : f32
    %241 = vector.broadcast %cst_118 : f32 to vector<16x256xf32>
    %242 = arith.addf %241, %240 : vector<16x256xf32>
    %243 = arith.mulf %205, %242 : vector<16x256xf32>
    %244 = arith.truncf %243 : vector<16x256xf32> to vector<16x256xbf16>
    %c0_119 = arith.constant 0 : index
    %c0_120 = arith.constant 0 : index
    %245 = vector.load %arg4[%c0_119, %c0_120] : memref<256x1024xbf16, #tpu.memory_space<vmem>>, vector<256x1024xbf16>
    %cst_121 = arith.constant dense<0.000000e+00> : vector<16x1024xf32>
    %246 = tpu.matmul %244, %245, %cst_121 {dimension_numbers = #tpu.dot_dimension_numbers<[1], [0], [0], [1], [0, 0, 1, 1], [], []>} : vector<16x256xbf16>, vector<256x1024xbf16>, vector<16x1024xf32> -> vector<16x1024xf32>
    %247 = vector.shape_cast %246 : vector<16x1024xf32> to vector<2x8x1024xf32>
    %248 = vector.extract_strided_slice %247 {offsets = [0, 0, 0], sizes = [2, 1, 1024], strides = [1, 1, 1]} : vector<2x8x1024xf32> to vector<2x1x1024xf32>
    %c2_122 = arith.constant 2 : index
    %c0_123 = arith.constant 0 : index
    %c0_124 = arith.constant 0 : index
    %c0_125 = arith.constant 0 : index
    %249 = vector.load %arg6[%c2_122, %c0_123, %c0_124, %c0_125] : memref<3x8x8x1024xf32, #tpu.memory_space<vmem>>, vector<1x1x8x1024xf32>
    %250 = vector.shape_cast %249 : vector<1x1x8x1024xf32> to vector<8x1024xf32>
    %251 = vector.shape_cast %250 : vector<8x1024xf32> to vector<1x8x1024xf32>
    %252 = vector.broadcast %248 : vector<2x1x1024xf32> to vector<2x8x1024xf32>
    %253 = vector.broadcast %251 : vector<1x8x1024xf32> to vector<2x8x1024xf32>
    %254 = arith.mulf %252, %253 : vector<2x8x1024xf32>
    %255 = vector.extract_strided_slice %247 {offsets = [0, 1, 0], sizes = [2, 1, 1024], strides = [1, 1, 1]} : vector<2x8x1024xf32> to vector<2x1x1024xf32>
    %c2_126 = arith.constant 2 : index
    %c1_127 = arith.constant 1 : index
    %c0_128 = arith.constant 0 : index
    %c0_129 = arith.constant 0 : index
    %256 = vector.load %arg6[%c2_126, %c1_127, %c0_128, %c0_129] : memref<3x8x8x1024xf32, #tpu.memory_space<vmem>>, vector<1x1x8x1024xf32>
    %257 = vector.shape_cast %256 : vector<1x1x8x1024xf32> to vector<8x1024xf32>
    %258 = vector.shape_cast %257 : vector<8x1024xf32> to vector<1x8x1024xf32>
    %259 = vector.broadcast %255 : vector<2x1x1024xf32> to vector<2x8x1024xf32>
    %260 = vector.broadcast %258 : vector<1x8x1024xf32> to vector<2x8x1024xf32>
    %261 = arith.mulf %259, %260 : vector<2x8x1024xf32>
    %262 = arith.addf %254, %261 : vector<2x8x1024xf32>
    %263 = vector.extract_strided_slice %247 {offsets = [0, 2, 0], sizes = [2, 1, 1024], strides = [1, 1, 1]} : vector<2x8x1024xf32> to vector<2x1x1024xf32>
    %c2_130 = arith.constant 2 : index
    %c2_131 = arith.constant 2 : index
    %c0_132 = arith.constant 0 : index
    %c0_133 = arith.constant 0 : index
    %264 = vector.load %arg6[%c2_130, %c2_131, %c0_132, %c0_133] : memref<3x8x8x1024xf32, #tpu.memory_space<vmem>>, vector<1x1x8x1024xf32>
    %265 = vector.shape_cast %264 : vector<1x1x8x1024xf32> to vector<8x1024xf32>
    %266 = vector.shape_cast %265 : vector<8x1024xf32> to vector<1x8x1024xf32>
    %267 = vector.broadcast %263 : vector<2x1x1024xf32> to vector<2x8x1024xf32>
    %268 = vector.broadcast %266 : vector<1x8x1024xf32> to vector<2x8x1024xf32>
    %269 = arith.mulf %267, %268 : vector<2x8x1024xf32>
    %270 = arith.addf %262, %269 : vector<2x8x1024xf32>
    %271 = vector.extract_strided_slice %247 {offsets = [0, 3, 0], sizes = [2, 1, 1024], strides = [1, 1, 1]} : vector<2x8x1024xf32> to vector<2x1x1024xf32>
    %c2_134 = arith.constant 2 : index
    %c3_135 = arith.constant 3 : index
    %c0_136 = arith.constant 0 : index
    %c0_137 = arith.constant 0 : index
    %272 = vector.load %arg6[%c2_134, %c3_135, %c0_136, %c0_137] : memref<3x8x8x1024xf32, #tpu.memory_space<vmem>>, vector<1x1x8x1024xf32>
    %273 = vector.shape_cast %272 : vector<1x1x8x1024xf32> to vector<8x1024xf32>
    %274 = vector.shape_cast %273 : vector<8x1024xf32> to vector<1x8x1024xf32>
    %275 = vector.broadcast %271 : vector<2x1x1024xf32> to vector<2x8x1024xf32>
    %276 = vector.broadcast %274 : vector<1x8x1024xf32> to vector<2x8x1024xf32>
    %277 = arith.mulf %275, %276 : vector<2x8x1024xf32>
    %278 = arith.addf %270, %277 : vector<2x8x1024xf32>
    %279 = vector.extract_strided_slice %247 {offsets = [0, 4, 0], sizes = [2, 1, 1024], strides = [1, 1, 1]} : vector<2x8x1024xf32> to vector<2x1x1024xf32>
    %c2_138 = arith.constant 2 : index
    %c4_139 = arith.constant 4 : index
    %c0_140 = arith.constant 0 : index
    %c0_141 = arith.constant 0 : index
    %280 = vector.load %arg6[%c2_138, %c4_139, %c0_140, %c0_141] : memref<3x8x8x1024xf32, #tpu.memory_space<vmem>>, vector<1x1x8x1024xf32>
    %281 = vector.shape_cast %280 : vector<1x1x8x1024xf32> to vector<8x1024xf32>
    %282 = vector.shape_cast %281 : vector<8x1024xf32> to vector<1x8x1024xf32>
    %283 = vector.broadcast %279 : vector<2x1x1024xf32> to vector<2x8x1024xf32>
    %284 = vector.broadcast %282 : vector<1x8x1024xf32> to vector<2x8x1024xf32>
    %285 = arith.mulf %283, %284 : vector<2x8x1024xf32>
    %286 = arith.addf %278, %285 : vector<2x8x1024xf32>
    %287 = vector.extract_strided_slice %247 {offsets = [0, 5, 0], sizes = [2, 1, 1024], strides = [1, 1, 1]} : vector<2x8x1024xf32> to vector<2x1x1024xf32>
    %c2_142 = arith.constant 2 : index
    %c5_143 = arith.constant 5 : index
    %c0_144 = arith.constant 0 : index
    %c0_145 = arith.constant 0 : index
    %288 = vector.load %arg6[%c2_142, %c5_143, %c0_144, %c0_145] : memref<3x8x8x1024xf32, #tpu.memory_space<vmem>>, vector<1x1x8x1024xf32>
    %289 = vector.shape_cast %288 : vector<1x1x8x1024xf32> to vector<8x1024xf32>
    %290 = vector.shape_cast %289 : vector<8x1024xf32> to vector<1x8x1024xf32>
    %291 = vector.broadcast %287 : vector<2x1x1024xf32> to vector<2x8x1024xf32>
    %292 = vector.broadcast %290 : vector<1x8x1024xf32> to vector<2x8x1024xf32>
    %293 = arith.mulf %291, %292 : vector<2x8x1024xf32>
    %294 = arith.addf %286, %293 : vector<2x8x1024xf32>
    %295 = vector.extract_strided_slice %247 {offsets = [0, 6, 0], sizes = [2, 1, 1024], strides = [1, 1, 1]} : vector<2x8x1024xf32> to vector<2x1x1024xf32>
    %c2_146 = arith.constant 2 : index
    %c6_147 = arith.constant 6 : index
    %c0_148 = arith.constant 0 : index
    %c0_149 = arith.constant 0 : index
    %296 = vector.load %arg6[%c2_146, %c6_147, %c0_148, %c0_149] : memref<3x8x8x1024xf32, #tpu.memory_space<vmem>>, vector<1x1x8x1024xf32>
    %297 = vector.shape_cast %296 : vector<1x1x8x1024xf32> to vector<8x1024xf32>
    %298 = vector.shape_cast %297 : vector<8x1024xf32> to vector<1x8x1024xf32>
    %299 = vector.broadcast %295 : vector<2x1x1024xf32> to vector<2x8x1024xf32>
    %300 = vector.broadcast %298 : vector<1x8x1024xf32> to vector<2x8x1024xf32>
    %301 = arith.mulf %299, %300 : vector<2x8x1024xf32>
    %302 = arith.addf %294, %301 : vector<2x8x1024xf32>
    %303 = vector.extract_strided_slice %247 {offsets = [0, 7, 0], sizes = [2, 1, 1024], strides = [1, 1, 1]} : vector<2x8x1024xf32> to vector<2x1x1024xf32>
    %c2_150 = arith.constant 2 : index
    %c7_151 = arith.constant 7 : index
    %c0_152 = arith.constant 0 : index
    %c0_153 = arith.constant 0 : index
    %304 = vector.load %arg6[%c2_150, %c7_151, %c0_152, %c0_153] : memref<3x8x8x1024xf32, #tpu.memory_space<vmem>>, vector<1x1x8x1024xf32>
    %305 = vector.shape_cast %304 : vector<1x1x8x1024xf32> to vector<8x1024xf32>
    %306 = vector.shape_cast %305 : vector<8x1024xf32> to vector<1x8x1024xf32>
    %307 = vector.broadcast %303 : vector<2x1x1024xf32> to vector<2x8x1024xf32>
    %308 = vector.broadcast %306 : vector<1x8x1024xf32> to vector<2x8x1024xf32>
    %309 = arith.mulf %307, %308 : vector<2x8x1024xf32>
    %310 = arith.addf %302, %309 : vector<2x8x1024xf32>
    %311 = vector.shape_cast %310 : vector<2x8x1024xf32> to vector<16x1024xf32>
    %312 = arith.truncf %311 : vector<16x1024xf32> to vector<16x1024xbf16>
    %c0_154 = arith.constant 0 : index
    %c0_155 = arith.constant 0 : index
    %313 = vector.load %arg5[%c0_154, %c0_155] : memref<1024x256xbf16, #tpu.memory_space<vmem>>, vector<1024x256xbf16>
    %cst_156 = arith.constant dense<0.000000e+00> : vector<16x256xf32>
    %314 = tpu.matmul %312, %313, %cst_156 {dimension_numbers = #tpu.dot_dimension_numbers<[1], [0], [0], [1], [0, 0, 1, 1], [], []>} : vector<16x1024xbf16>, vector<1024x256xbf16>, vector<16x256xf32> -> vector<16x256xf32>
    %c2_157 = arith.constant 2 : index
    %c0_158 = arith.constant 0 : index
    %c0_159 = arith.constant 0 : index
    %315 = vector.load %arg7[%c2_157, %c0_158, %c0_159] : memref<3x16x16xf32, #tpu.memory_space<vmem>>, vector<1x16x16xf32>
    %316 = vector.shape_cast %315 : vector<1x16x16xf32> to vector<16x16xf32>
    %cst_160 = arith.constant dense<0.000000e+00> : vector<16x256xf32>
    %317 = tpu.matmul %316, %243, %cst_160 {dimension_numbers = #tpu.dot_dimension_numbers<[1], [0], [0], [1], [0, 0, 1, 1], [], []>} : vector<16x16xf32>, vector<16x256xf32>, vector<16x256xf32> -> vector<16x256xf32>
    %c2_161 = arith.constant 2 : index
    %c0_162 = arith.constant 0 : index
    %c0_163 = arith.constant 0 : index
    %318 = vector.load %arg8[%c2_161, %c0_162, %c0_163] : memref<3x16x1xf32, #tpu.memory_space<vmem>>, vector<1x16x1xf32>
    %319 = vector.shape_cast %318 : vector<1x16x1xf32> to vector<16x1xf32>
    %320 = vector.broadcast %319 : vector<16x1xf32> to vector<16x256xf32>
    %321 = arith.addf %317, %320 : vector<16x256xf32>
    %322 = arith.addf %314, %321 : vector<16x256xf32>
    %cst_164 = arith.constant 1.000000e+00 : f32
    %323 = vector.broadcast %cst_164 : f32 to vector<1x256xf32>
    %324 = vector.extract_strided_slice %322 {offsets = [0, 0], sizes = [8, 256], strides = [1, 1]} : vector<16x256xf32> to vector<8x256xf32>
    %325 = tpu.concatenate %324, %323 in 0 : vector<8x256xf32>, vector<1x256xf32> -> vector<9x256xf32>
    %c0_165 = arith.constant 0 : index
    %c0_166 = arith.constant 0 : index
    %326 = vector.load %arg11[%c0_165, %c0_166] : memref<1x1xf32, #tpu.memory_space<vmem>>, vector<1x1xf32>
    %327 = vector.shape_cast %326 : vector<1x1xf32> to vector<1x1xf32>
    %328 = vector.broadcast %327 : vector<1x1xf32> to vector<1x256xf32>
    %c0_167 = arith.constant 0 : index
    %c0_168 = arith.constant 0 : index
    %329 = vector.load %arg9[%c0_167, %c0_168] : memref<512x9xf32, #tpu.memory_space<vmem>>, vector<128x9xf32>
    %cst_169 = arith.constant dense<0.000000e+00> : vector<128x256xf32>
    %330 = tpu.matmul %329, %325, %cst_169 {dimension_numbers = #tpu.dot_dimension_numbers<[1], [0], [0], [1], [0, 0, 1, 1], [], []>} : vector<128x9xf32>, vector<9x256xf32>, vector<128x256xf32> -> vector<128x256xf32>
    %331 = math.tanh %330 : vector<128x256xf32>
    %c0_170 = arith.constant 0 : index
    %c0_171 = arith.constant 0 : index
    %332 = vector.load %arg10[%c0_170, %c0_171] : memref<1x512xf32, #tpu.memory_space<vmem>>, vector<1x128xf32>
    %cst_172 = arith.constant dense<0.000000e+00> : vector<1x256xf32>
    %333 = tpu.matmul %332, %331, %cst_172 {dimension_numbers = #tpu.dot_dimension_numbers<[1], [0], [0], [1], [0, 0, 1, 1], [], []>} : vector<1x128xf32>, vector<128x256xf32>, vector<1x256xf32> -> vector<1x256xf32>
    %334 = arith.addf %328, %333 : vector<1x256xf32>
    %c128 = arith.constant 128 : index
    %c0_173 = arith.constant 0 : index
    %335 = vector.load %arg9[%c128, %c0_173] : memref<512x9xf32, #tpu.memory_space<vmem>>, vector<128x9xf32>
    %cst_174 = arith.constant dense<0.000000e+00> : vector<128x256xf32>
    %336 = tpu.matmul %335, %325, %cst_174 {dimension_numbers = #tpu.dot_dimension_numbers<[1], [0], [0], [1], [0, 0, 1, 1], [], []>} : vector<128x9xf32>, vector<9x256xf32>, vector<128x256xf32> -> vector<128x256xf32>
    %337 = math.tanh %336 : vector<128x256xf32>
    %c0_175 = arith.constant 0 : index
    %c128_176 = arith.constant 128 : index
    %338 = vector.load %arg10[%c0_175, %c128_176] : memref<1x512xf32, #tpu.memory_space<vmem>>, vector<1x128xf32>
    %cst_177 = arith.constant dense<0.000000e+00> : vector<1x256xf32>
    %339 = tpu.matmul %338, %337, %cst_177 {dimension_numbers = #tpu.dot_dimension_numbers<[1], [0], [0], [1], [0, 0, 1, 1], [], []>} : vector<1x128xf32>, vector<128x256xf32>, vector<1x256xf32> -> vector<1x256xf32>
    %340 = arith.addf %334, %339 : vector<1x256xf32>
    %c256 = arith.constant 256 : index
    %c0_178 = arith.constant 0 : index
    %341 = vector.load %arg9[%c256, %c0_178] : memref<512x9xf32, #tpu.memory_space<vmem>>, vector<128x9xf32>
    %cst_179 = arith.constant dense<0.000000e+00> : vector<128x256xf32>
    %342 = tpu.matmul %341, %325, %cst_179 {dimension_numbers = #tpu.dot_dimension_numbers<[1], [0], [0], [1], [0, 0, 1, 1], [], []>} : vector<128x9xf32>, vector<9x256xf32>, vector<128x256xf32> -> vector<128x256xf32>
    %343 = math.tanh %342 : vector<128x256xf32>
    %c0_180 = arith.constant 0 : index
    %c256_181 = arith.constant 256 : index
    %344 = vector.load %arg10[%c0_180, %c256_181] : memref<1x512xf32, #tpu.memory_space<vmem>>, vector<1x128xf32>
    %cst_182 = arith.constant dense<0.000000e+00> : vector<1x256xf32>
    %345 = tpu.matmul %344, %343, %cst_182 {dimension_numbers = #tpu.dot_dimension_numbers<[1], [0], [0], [1], [0, 0, 1, 1], [], []>} : vector<1x128xf32>, vector<128x256xf32>, vector<1x256xf32> -> vector<1x256xf32>
    %346 = arith.addf %340, %345 : vector<1x256xf32>
    %c384 = arith.constant 384 : index
    %c0_183 = arith.constant 0 : index
    %347 = vector.load %arg9[%c384, %c0_183] : memref<512x9xf32, #tpu.memory_space<vmem>>, vector<128x9xf32>
    %cst_184 = arith.constant dense<0.000000e+00> : vector<128x256xf32>
    %348 = tpu.matmul %347, %325, %cst_184 {dimension_numbers = #tpu.dot_dimension_numbers<[1], [0], [0], [1], [0, 0, 1, 1], [], []>} : vector<128x9xf32>, vector<9x256xf32>, vector<128x256xf32> -> vector<128x256xf32>
    %349 = math.tanh %348 : vector<128x256xf32>
    %c0_185 = arith.constant 0 : index
    %c384_186 = arith.constant 384 : index
    %350 = vector.load %arg10[%c0_185, %c384_186] : memref<1x512xf32, #tpu.memory_space<vmem>>, vector<1x128xf32>
    %cst_187 = arith.constant dense<0.000000e+00> : vector<1x256xf32>
    %351 = tpu.matmul %350, %349, %cst_187 {dimension_numbers = #tpu.dot_dimension_numbers<[1], [0], [0], [1], [0, 0, 1, 1], [], []>} : vector<1x128xf32>, vector<128x256xf32>, vector<1x256xf32> -> vector<1x256xf32>
    %352 = arith.addf %346, %351 : vector<1x256xf32>
    %353 = vector.extract_strided_slice %322 {offsets = [8, 0], sizes = [8, 256], strides = [1, 1]} : vector<16x256xf32> to vector<8x256xf32>
    %354 = tpu.concatenate %353, %323 in 0 : vector<8x256xf32>, vector<1x256xf32> -> vector<9x256xf32>
    %c0_188 = arith.constant 0 : index
    %c0_189 = arith.constant 0 : index
    %355 = vector.load %arg11[%c0_188, %c0_189] : memref<1x1xf32, #tpu.memory_space<vmem>>, vector<1x1xf32>
    %356 = vector.shape_cast %355 : vector<1x1xf32> to vector<1x1xf32>
    %357 = vector.broadcast %356 : vector<1x1xf32> to vector<1x256xf32>
    %c0_190 = arith.constant 0 : index
    %c0_191 = arith.constant 0 : index
    %358 = vector.load %arg9[%c0_190, %c0_191] : memref<512x9xf32, #tpu.memory_space<vmem>>, vector<128x9xf32>
    %cst_192 = arith.constant dense<0.000000e+00> : vector<128x256xf32>
    %359 = tpu.matmul %358, %354, %cst_192 {dimension_numbers = #tpu.dot_dimension_numbers<[1], [0], [0], [1], [0, 0, 1, 1], [], []>} : vector<128x9xf32>, vector<9x256xf32>, vector<128x256xf32> -> vector<128x256xf32>
    %360 = math.tanh %359 : vector<128x256xf32>
    %c0_193 = arith.constant 0 : index
    %c0_194 = arith.constant 0 : index
    %361 = vector.load %arg10[%c0_193, %c0_194] : memref<1x512xf32, #tpu.memory_space<vmem>>, vector<1x128xf32>
    %cst_195 = arith.constant dense<0.000000e+00> : vector<1x256xf32>
    %362 = tpu.matmul %361, %360, %cst_195 {dimension_numbers = #tpu.dot_dimension_numbers<[1], [0], [0], [1], [0, 0, 1, 1], [], []>} : vector<1x128xf32>, vector<128x256xf32>, vector<1x256xf32> -> vector<1x256xf32>
    %363 = arith.addf %357, %362 : vector<1x256xf32>
    %c128_196 = arith.constant 128 : index
    %c0_197 = arith.constant 0 : index
    %364 = vector.load %arg9[%c128_196, %c0_197] : memref<512x9xf32, #tpu.memory_space<vmem>>, vector<128x9xf32>
    %cst_198 = arith.constant dense<0.000000e+00> : vector<128x256xf32>
    %365 = tpu.matmul %364, %354, %cst_198 {dimension_numbers = #tpu.dot_dimension_numbers<[1], [0], [0], [1], [0, 0, 1, 1], [], []>} : vector<128x9xf32>, vector<9x256xf32>, vector<128x256xf32> -> vector<128x256xf32>
    %366 = math.tanh %365 : vector<128x256xf32>
    %c0_199 = arith.constant 0 : index
    %c128_200 = arith.constant 128 : index
    %367 = vector.load %arg10[%c0_199, %c128_200] : memref<1x512xf32, #tpu.memory_space<vmem>>, vector<1x128xf32>
    %cst_201 = arith.constant dense<0.000000e+00> : vector<1x256xf32>
    %368 = tpu.matmul %367, %366, %cst_201 {dimension_numbers = #tpu.dot_dimension_numbers<[1], [0], [0], [1], [0, 0, 1, 1], [], []>} : vector<1x128xf32>, vector<128x256xf32>, vector<1x256xf32> -> vector<1x256xf32>
    %369 = arith.addf %363, %368 : vector<1x256xf32>
    %c256_202 = arith.constant 256 : index
    %c0_203 = arith.constant 0 : index
    %370 = vector.load %arg9[%c256_202, %c0_203] : memref<512x9xf32, #tpu.memory_space<vmem>>, vector<128x9xf32>
    %cst_204 = arith.constant dense<0.000000e+00> : vector<128x256xf32>
    %371 = tpu.matmul %370, %354, %cst_204 {dimension_numbers = #tpu.dot_dimension_numbers<[1], [0], [0], [1], [0, 0, 1, 1], [], []>} : vector<128x9xf32>, vector<9x256xf32>, vector<128x256xf32> -> vector<128x256xf32>
    %372 = math.tanh %371 : vector<128x256xf32>
    %c0_205 = arith.constant 0 : index
    %c256_206 = arith.constant 256 : index
    %373 = vector.load %arg10[%c0_205, %c256_206] : memref<1x512xf32, #tpu.memory_space<vmem>>, vector<1x128xf32>
    %cst_207 = arith.constant dense<0.000000e+00> : vector<1x256xf32>
    %374 = tpu.matmul %373, %372, %cst_207 {dimension_numbers = #tpu.dot_dimension_numbers<[1], [0], [0], [1], [0, 0, 1, 1], [], []>} : vector<1x128xf32>, vector<128x256xf32>, vector<1x256xf32> -> vector<1x256xf32>
    %375 = arith.addf %369, %374 : vector<1x256xf32>
    %c384_208 = arith.constant 384 : index
    %c0_209 = arith.constant 0 : index
    %376 = vector.load %arg9[%c384_208, %c0_209] : memref<512x9xf32, #tpu.memory_space<vmem>>, vector<128x9xf32>
    %cst_210 = arith.constant dense<0.000000e+00> : vector<128x256xf32>
    %377 = tpu.matmul %376, %354, %cst_210 {dimension_numbers = #tpu.dot_dimension_numbers<[1], [0], [0], [1], [0, 0, 1, 1], [], []>} : vector<128x9xf32>, vector<9x256xf32>, vector<128x256xf32> -> vector<128x256xf32>
    %378 = math.tanh %377 : vector<128x256xf32>
    %c0_211 = arith.constant 0 : index
    %c384_212 = arith.constant 384 : index
    %379 = vector.load %arg10[%c0_211, %c384_212] : memref<1x512xf32, #tpu.memory_space<vmem>>, vector<1x128xf32>
    %cst_213 = arith.constant dense<0.000000e+00> : vector<1x256xf32>
    %380 = tpu.matmul %379, %378, %cst_213 {dimension_numbers = #tpu.dot_dimension_numbers<[1], [0], [0], [1], [0, 0, 1, 1], [], []>} : vector<1x128xf32>, vector<128x256xf32>, vector<1x256xf32> -> vector<1x256xf32>
    %381 = arith.addf %375, %380 : vector<1x256xf32>
    %382 = tpu.concatenate %352, %381 in 0 : vector<1x256xf32>, vector<1x256xf32> -> vector<2x256xf32>
    %c0_214 = arith.constant 0 : index
    %c0_215 = arith.constant 0 : index
    %c0_216 = arith.constant 0 : index
    %383 = vector.load %arg12[%c0_214, %c0_215, %c0_216] : memref<1x2x256xf32, #tpu.memory_space<vmem>>, vector<1x2x256xf32>
    %384 = vector.shape_cast %383 : vector<1x2x256xf32> to vector<2x256xf32>
    %385 = vector.shape_cast %382 : vector<2x256xf32> to vector<1x2x256xf32>
    tpu.vector_store %arg12[%c0_214, %c0_215, %c0_216], %385 {strides = array<i32>} : memref<1x2x256xf32, #tpu.memory_space<vmem>>, vector<1x2x256xf32>,
    return
  }
  func.func @transform_0(%arg0: i32) -> (i32, i32, i32) {
    %c0_i32 = arith.constant 0 : i32
    %c0_i32_0 = arith.constant 0 : i32
    %c0_i32_1 = arith.constant 0 : i32
    return %arg0, %c0_i32, %c0_i32_0 : i32, i32, i32
  }
  func.func @transform_1(%arg0: i32) -> (i32, i32) {
    %c0_i32 = arith.constant 0 : i32
    %c0_i32_0 = arith.constant 0 : i32
    %c0_i32_1 = arith.constant 0 : i32
    return %c0_i32, %c0_i32_0 : i32, i32
  }
  func.func @transform_2(%arg0: i32) -> (i32, i32) {
    %c0_i32 = arith.constant 0 : i32
    %c0_i32_0 = arith.constant 0 : i32
    %c0_i32_1 = arith.constant 0 : i32
    return %c0_i32, %c0_i32_0 : i32, i32
  }
  func.func @transform_3(%arg0: i32) -> (i32, i32) {
    %c0_i32 = arith.constant 0 : i32
    %c0_i32_0 = arith.constant 0 : i32
    %c0_i32_1 = arith.constant 0 : i32
    return %c0_i32, %c0_i32_0 : i32, i32
  }
  func.func @transform_4(%arg0: i32) -> (i32, i32) {
    %c0_i32 = arith.constant 0 : i32
    %c0_i32_0 = arith.constant 0 : i32
    %c0_i32_1 = arith.constant 0 : i32
    return %c0_i32, %c0_i32_0 : i32, i32
  }
  func.func @transform_5(%arg0: i32) -> (i32, i32, i32, i32) {
    %c0_i32 = arith.constant 0 : i32
    %c0_i32_0 = arith.constant 0 : i32
    %c0_i32_1 = arith.constant 0 : i32
    %c0_i32_2 = arith.constant 0 : i32
    %c0_i32_3 = arith.constant 0 : i32
    return %c0_i32, %c0_i32_0, %c0_i32_1, %c0_i32_2 : i32, i32, i32, i32
  }
  func.func @transform_6(%arg0: i32) -> (i32, i32, i32) {
    %c0_i32 = arith.constant 0 : i32
    %c0_i32_0 = arith.constant 0 : i32
    %c0_i32_1 = arith.constant 0 : i32
    %c0_i32_2 = arith.constant 0 : i32
    return %c0_i32, %c0_i32_0, %c0_i32_1 : i32, i32, i32
  }
  func.func @transform_7(%arg0: i32) -> (i32, i32, i32) {
    %c0_i32 = arith.constant 0 : i32
    %c0_i32_0 = arith.constant 0 : i32
    %c0_i32_1 = arith.constant 0 : i32
    %c0_i32_2 = arith.constant 0 : i32
    return %c0_i32, %c0_i32_0, %c0_i32_1 : i32, i32, i32
  }
  func.func @transform_8(%arg0: i32) -> (i32, i32) {
    %c0_i32 = arith.constant 0 : i32
    %c0_i32_0 = arith.constant 0 : i32
    %c0_i32_1 = arith.constant 0 : i32
    return %c0_i32, %c0_i32_0 : i32, i32
  }
  func.func @transform_9(%arg0: i32) -> (i32, i32) {
    %c0_i32 = arith.constant 0 : i32
    %c0_i32_0 = arith.constant 0 : i32
    %c0_i32_1 = arith.constant 0 : i32
    return %c0_i32, %c0_i32_0 : i32, i32
  }
  func.func @transform_10(%arg0: i32) -> (i32, i32) {
    %c0_i32 = arith.constant 0 : i32
    %c0_i32_0 = arith.constant 0 : i32
    %c0_i32_1 = arith.constant 0 : i32
    return %c0_i32, %c0_i32_0 : i32, i32
  }
  func.func @transform_11(%arg0: i32) -> (i32, i32, i32) {
    %c0_i32 = arith.constant 0 : i32
    %c0_i32_0 = arith.constant 0 : i32
    %c0_i32_1 = arith.constant 0 : i32
    return %arg0, %c0_i32, %c0_i32_0 : i32, i32, i32
  }
}

</mosaic_0001>

<llo_original>
// kernel: cwno2d_forward.1
$region0: #{cwno2d_forward.1}
  #allocation0 [shape = 'u32[]', space=smem, size = 0x4, offset = 0x4, fixed_abs, tag = 'smem constant byte address 0x4 - core index']
  #allocation1 [shape = 'u32[144,128]{1,0:T(1,128)}', space=vmem, size = 0x12000, scoped, tag = 'internal scratch']
  #allocation2 [shape = 'f32[1,1]{1,0:T(1,128)S(1)}', space=vmem, size = 0x200, scoped, tag = 'scoped memory for cwno2d_forward.1']
  %s0 = inlined_call_operand.vmem [shape: f32[1,2,256], index: 0, kind: input, shape index: {}]
  %s1 = inlined_call_operand.vmem [shape: f32[16,2], index: 1, kind: input, shape index: {}]
  %s2 = inlined_call_operand.vmem [shape: f32[16,256], index: 2, kind: input, shape index: {}]
  %s3 = inlined_call_operand.vmem [shape: bf16[256,1024], index: 3, kind: input, shape index: {}]
  %s4 = inlined_call_operand.vmem [shape: bf16[1024,256], index: 4, kind: input, shape index: {}]
  %s5 = inlined_call_operand.vmem [shape: f32[3,8,8,1024], index: 5, kind: input, shape index: {}]
  %s6 = inlined_call_operand.vmem [shape: f32[3,16,16], index: 6, kind: input, shape index: {}]
  %s7 = inlined_call_operand.vmem [shape: f32[3,16,1], index: 7, kind: input, shape index: {}]
  %s8 = inlined_call_operand.vmem [shape: f32[512,9], index: 8, kind: input, shape index: {}]
  %s9 = inlined_call_operand.vmem [shape: f32[1,512], index: 9, kind: input, shape index: {}]
  %s10 = inlined_call_operand.<no memory space> [shape: f32[1,1], index: 10, kind: input, shape index: {}]
  %s11 = inlined_call_operand.vmem [shape: f32[1,2,256], index: 11, kind: output, shape index: {}]
  %s12 = sld [smem:[#allocation0]]
  $region54: #{cwno2d_forward.1} parent=0
    _
  %s14 = ssub.s32 1, %s12
  %s15 = scalar_select 0, %s14, %s12
  %v16 = vstv %s10
  %17 = vst [vmem:[#allocation2] sm:$0x1] %v16
  // Predicated region
  $region2: #{cwno2d_forward.1} parent=0 // pred_check
    _
  $region3: #{cwno2d_forward.1} parent=0 // pred_check_branch
    %19 = sbr.rel (0) target = $region5
  $region4: #{cwno2d_forward.1} parent=0 // pred_region
    _
  $region5: #{cwno2d_forward.1} parent=0 // pred_fallthru
    _
  // Predicated region
  $region6: #{cwno2d_forward.1} parent=0 // pred_check
    _
  $region7: #{cwno2d_forward.1} parent=0 // pred_check_branch
    %21 = sbr.rel (0) target = $region9
  $region8: #{cwno2d_forward.1} parent=0 // pred_region
    _
  $region9: #{cwno2d_forward.1} parent=0 // pred_fallthru
    _
  // Predicated region
  $region10: #{cwno2d_forward.1} parent=0 // pred_check
    _
  $region11: #{cwno2d_forward.1} parent=0 // pred_check_branch
    %23 = sbr.rel (0) target = $region13
  $region12: #{cwno2d_forward.1} parent=0 // pred_region
    _
  $region13: #{cwno2d_forward.1} parent=0 // pred_fallthru
    _
  // Predicated region
  $region14: #{cwno2d_forward.1} parent=0 // pred_check
    _
  $region15: #{cwno2d_forward.1} parent=0 // pred_check_branch
    %25 = sbr.rel (0) target = $region17
  $region16: #{cwno2d_forward.1} parent=0 // pred_region
    _
  $region17: #{cwno2d_forward.1} parent=0 // pred_fallthru
    _
  // Predicated region
  $region18: #{cwno2d_forward.1} parent=0 // pred_check
    _
  $region19: #{cwno2d_forward.1} parent=0 // pred_check_branch
    %27 = sbr.rel (0) target = $region21
  $region20: #{cwno2d_forward.1} parent=0 // pred_region
    _
  $region21: #{cwno2d_forward.1} parent=0 // pred_fallthru
    _
  // Predicated region
  $region22: #{cwno2d_forward.1} parent=0 // pred_check
    _
  $region23: #{cwno2d_forward.1} parent=0 // pred_check_branch
    %29 = sbr.rel (0) target = $region25
  $region24: #{cwno2d_forward.1} parent=0 // pred_region
    _
  $region25: #{cwno2d_forward.1} parent=0 // pred_fallthru
    _
  // Predicated region
  $region26: #{cwno2d_forward.1} parent=0 // pred_check
    _
  $region27: #{cwno2d_forward.1} parent=0 // pred_check_branch
    %31 = sbr.rel (0) target = $region29
  $region28: #{cwno2d_forward.1} parent=0 // pred_region
    _
  $region29: #{cwno2d_forward.1} parent=0 // pred_fallthru
    _
  // Predicated region
  $region30: #{cwno2d_forward.1} parent=0 // pred_check
    _
  $region31: #{cwno2d_forward.1} parent=0 // pred_check_branch
    %33 = sbr.rel (0) target = $region33
  $region32: #{cwno2d_forward.1} parent=0 // pred_region
    _
  $region33: #{cwno2d_forward.1} parent=0 // pred_fallthru
    _
  // Predicated region
  $region34: #{cwno2d_forward.1} parent=0 // pred_check
    _
  $region35: #{cwno2d_forward.1} parent=0 // pred_check_branch
    %35 = sbr.rel (0) target = $region37
  $region36: #{cwno2d_forward.1} parent=0 // pred_region
    _
  $region37: #{cwno2d_forward.1} parent=0 // pred_fallthru
    _
  // Predicated region
  $region38: #{cwno2d_forward.1} parent=0 // pred_check
    _
  $region39: #{cwno2d_forward.1} parent=0 // pred_check_branch
    %37 = sbr.rel (0) target = $region41
  $region40: #{cwno2d_forward.1} parent=0 // pred_region
    _
  $region41: #{cwno2d_forward.1} parent=0 // pred_fallthru
    _
  // Predicated region
  $region42: #{cwno2d_forward.1} parent=0 // pred_check
    _
  $region43: #{cwno2d_forward.1} parent=0 // pred_check_branch
    %39 = sbr.rel (0) target = $region45
  $region44: #{cwno2d_forward.1} parent=0 // pred_region
    _
  $region45: #{cwno2d_forward.1} parent=0 // pred_fallthru
    _
  %v40 = vld [vmem:[%s0] sm:$0xf]
  %v41 = vld [vmem:[%s1] sm:$0xff]
  %v42 = vld [vmem:[%s1 + $0x8] sm:$0xff]
  %v43 = vld [vmem:[%s2] sm:$0xff]
  %v44 = vld [vmem:[%s2 + $0x8] sm:$0xff]
  %v45 = vld [vmem:[%s2 + $0x10] sm:$0xff]
  %v46 = vld [vmem:[%s2 + $0x18] sm:$0xff]
  %v49 = vunpack.c.l.s4 1983009808
  %v50 = vunpack.c.0.s8 %v49
  %v51 = vlaneseq
  %v52 = vshrl.u32 %v51, 7
  %v53 = vsub.s32 %v50, %v52
  %v54 = vrot.slane %v40, %v53
  %v55 = vcombine.high %v54, %v54
  %vm56 = vcmask 15360
  %v58 = vsel %vm56, %v41, 0
  %v61 = vsel %vm56, %v42, 0
  %vm63 = vcmask 1041408
  %v64 = vsel %vm63, %v54, 0
  %v66 = vsel %vm63, %v55, 0
  %68 = vmatprep.subr.mxu0 %v66
  %69 = vmatpush1.msra.mxu0 %v64
  %70 = vmatprep.subr.mxu0 0.0
  %71 = vmatpush1.msra.mxu0 0.0
  %72 = vmatprep.subr.mxu0 0.0
  %73 = vmatpush1.msra.mxu0 0.0
  %74 = vmatprep.subr.mxu0 0.0
  %75 = vmatpush1.msra.mxu0 0.0
  %76 = vmatprep.subr.mxu0 0.0
  %77 = vmatpush1.msra.mxu0 0.0
  %78 = vmatprep.subr.mxu0 0.0
  %79 = vmatpush1.msra.mxu0 0.0
  %80 = vmatprep.subr.mxu0 0.0
  %81 = vmatpush1.msra.mxu0 0.0
  %82 = vmatprep.subr.mxu0 0.0
  %83 = vmatpush1.msra.mxu0 0.0
  %84 = vmatprep.subr.mxu0 0.0
  %85 = vmatpush1.msra.mxu0 0.0
  %86 = vmatprep.subr.mxu0 0.0
  %87 = vmatpush1.msra.mxu0 0.0
  %88 = vmatprep.subr.mxu0 0.0
  %89 = vmatpush1.msra.mxu0 0.0
  %90 = vmatprep.subr.mxu0 0.0
  %91 = vmatpush1.msra.mxu0 0.0
  %92 = vmatprep.subr.mxu0 0.0
  %93 = vmatpush1.msra.mxu0 0.0
  %94 = vmatprep.subr.mxu0 0.0
  %95 = vmatpush1.msra.mxu0 0.0
  %96 = vmatprep.subr.mxu0 0.0
  %97 = vmatpush1.msra.mxu0 0.0
  %98 = vmatprep.subr.mxu0 0.0
  %99 = vmatpush1.msra.mxu0 0.0
  %100 = vmatprep.subr.mxu0 0.0
  %101 = vmatpush1.msra.mxu0 0.0
  %102 = vmatprep.subr.mxu0 0.0
  %103 = vmatpush1.msra.mxu0 0.0
  %104 = vmatprep.subr.mxu0 0.0
  %105 = vmatpush1.msra.mxu0 0.0
  %106 = vmatprep.subr.mxu0 0.0
  %107 = vmatpush1.msra.mxu0 0.0
  %108 = vmatprep.subr.mxu0 0.0
  %109 = vmatpush1.msra.mxu0 0.0
  %110 = vmatprep.subr.mxu0 0.0
  %111 = vmatpush1.msra.mxu0 0.0
  %112 = vmatprep.subr.mxu0 0.0
  %113 = vmatpush1.msra.mxu0 0.0
  %114 = vmatprep.subr.mxu0 0.0
  %115 = vmatpush1.msra.mxu0 0.0
  %116 = vmatprep.subr.mxu0 0.0
  %117 = vmatpush1.msra.mxu0 0.0
  %118 = vmatprep.subr.mxu0 0.0
  %119 = vmatpush1.msra.mxu0 0.0
  %120 = vmatprep.subr.mxu0 0.0
  %121 = vmatpush1.msra.mxu0 0.0
  %122 = vmatprep.subr.mxu0 0.0
  %123 = vmatpush1.msra.mxu0 0.0
  %124 = vmatprep.subr.mxu0 0.0
  %125 = vmatpush1.msra.mxu0 0.0
  %126 = vmatprep.subr.mxu0 0.0
  %127 = vmatpush1.msra.mxu0 0.0
  %128 = vmatprep.subr.mxu0 0.0
  %129 = vmatpush1.msra.mxu0 0.0
  %130 = vmatprep.subr.mxu0 0.0
  %131 = vmatpush1.msra.mxu0 0.0
  %132 = vmatprep.mubr.f32.mxu0 0.0
  %133 = vmatmul.mubr.f32.gmra.mrb[0].mxu0 %v58
  %v134 = vpop.f32.mrb[0].mxu0
  %v135 = vadd.f32 %v43, %v134
  %v136 = vpop.f32.mrb[0].mxu0
  %v137 = vadd.f32 %v44, %v136
  %138 = vmatprep.mubr.f32.mxu0 0.0
  %139 = vmatmul.mubr.f32.gmra.mrb[0].mxu0 %v61
  %v140 = vpop.f32.mrb[0].mxu0
  %v141 = vadd.f32 %v45, %v140
  %v142 = vpop.f32.mrb[0].mxu0
  %v143 = vadd.f32 %v46, %v142
  %144 = vdwg.mxu0
  %v145 = vpack.c.bf16 %v141, %v135
  %v146 = vpack.c.bf16 %v143, %v137
  %v147 = vld [vmem:[%s3] sm:$0xff]
  %v148 = vld [vmem:[%s3 + $0x8] sm:$0xff]
  %v149 = vld [vmem:[%s3 + $0x10] sm:$0xff]
  %v150 = vld [vmem:[%s3 + $0x18] sm:$0xff]
  %v151 = vld [vmem:[%s3 + $0x20] sm:$0xff]
  %v152 = vld [vmem:[%s3 + $0x28] sm:$0xff]
  %v153 = vld [vmem:[%s3 + $0x30] sm:$0xff]
  %v154 = vld [vmem:[%s3 + $0x38] sm:$0xff]
  %v155 = vld [vmem:[%s3 + $0x40] sm:$0xff]
  %v156 = vld [vmem:[%s3 + $0x48] sm:$0xff]
  %v157 = vld [vmem:[%s3 + $0x50] sm:$0xff]
  %v158 = vld [vmem:[%s3 + $0x58] sm:$0xff]
  %v159 = vld [vmem:[%s3 + $0x60] sm:$0xff]
  %v160 = vld [vmem:[%s3 + $0x68] sm:$0xff]
  %v161 = vld [vmem:[%s3 + $0x70] sm:$0xff]
  %v162 = vld [vmem:[%s3 + $0x78] sm:$0xff]
  %v163 = vld [vmem:[%s3 + $0x80] sm:$0xff]
  %v164 = vld [vmem:[%s3 + $0x88] sm:$0xff]
  %v165 = vld [vmem:[%s3 + $0x90] sm:$0xff]
  %v166 = vld [vmem:[%s3 + $0x98] sm:$0xff]
  %v167 = vld [vmem:[%s3 + $0xa0] sm:$0xff]
  %v168 = vld [vmem:[%s3 + $0xa8] sm:$0xff]
  %v169 = vld [vmem:[%s3 + $0xb0] sm:$0xff]
  %v170 = vld [vmem:[%s3 + $0xb8] sm:$0xff]
  %v171 = vld [vmem:[%s3 + $0xc0] sm:$0xff]
  %v172 = vld [vmem:[%s3 + $0xc8] sm:$0xff]
  %v173 = vld [vmem:[%s3 + $0xd0] sm:$0xff]
  %v174 = vld [vmem:[%s3 + $0xd8] sm:$0xff]
  %v175 = vld [vmem:[%s3 + $0xe0] sm:$0xff]
  %v176 = vld [vmem:[%s3 + $0xe8] sm:$0xff]
  %v177 = vld [vmem:[%s3 + $0xf0] sm:$0xff]
  %v178 = vld [vmem:[%s3 + $0xf8] sm:$0xff]
  %v179 = vld [vmem:[%s3 + $0x100] sm:$0xff]
  %v180 = vld [vmem:[%s3 + $0x108] sm:$0xff]
  %v181 = vld [vmem:[%s3 + $0x110] sm:$0xff]
  %v182 = vld [vmem:[%s3 + $0x118] sm:$0xff]
  %v183 = vld [vmem:[%s3 + $0x120] sm:$0xff]
  %v184 = vld [vmem:[%s3 + $0x128] sm:$0xff]
  %v185 = vld [vmem:[%s3 + $0x130] sm:$0xff]
  %v186 = vld [vmem:[%s3 + $0x138] sm:$0xff]
  %v187 = vld [vmem:[%s3 + $0x140] sm:$0xff]
  %v188 = vld [vmem:[%s3 + $0x148] sm:$0xff]
  %v189 = vld [vmem:[%s3 + $0x150] sm:$0xff]
  %v190 = vld [vmem:[%s3 + $0x158] sm:$0xff]
  %v191 = vld [vmem:[%s3 + $0x160] sm:$0xff]
  %v192 = vld [vmem:[%s3 + $0x168] sm:$0xff]
  %v193 = vld [vmem:[%s3 + $0x170] sm:$0xff]
  %v194 = vld [vmem:[%s3 + $0x178] sm:$0xff]
  %v195 = vld [vmem:[%s3 + $0x180] sm:$0xff]
  %v196 = vld [vmem:[%s3 + $0x188] sm:$0xff]
  %v197 = vld [vmem:[%s3 + $0x190] sm:$0xff]
  %v198 = vld [vmem:[%s3 + $0x198] sm:$0xff]
  %v199 = vld [vmem:[%s3 + $0x1a0] sm:$0xff]
  %v200 = vld [vmem:[%s3 + $0x1a8] sm:$0xff]
  %v201 = vld [vmem:[%s3 + $0x1b0] sm:$0xff]
  %v202 = vld [vmem:[%s3 + $0x1b8] sm:$0xff]
  %v203 = vld [vmem:[%s3 + $0x1c0] sm:$0xff]
  %v204 = vld [vmem:[%s3 + $0x1c8] sm:$0xff]
  %v205 = vld [vmem:[%s3 + $0x1d0] sm:$0xff]
  %v206 = vld [vmem:[%s3 + $0x1d8] sm:$0xff]
  %v207 = vld [vmem:[%s3 + $0x1e0] sm:$0xff]
  %v208 = vld [vmem:[%s3 + $0x1e8] sm:$0xff]
  %v209 = vld [vmem:[%s3 + $0x1f0] sm:$0xff]
  %v210 = vld [vmem:[%s3 + $0x1f8] sm:$0xff]
  %v211 = vld [vmem:[%s3 + $0x200] sm:$0xff]
  %v212 = vld [vmem:[%s3 + $0x208] sm:$0xff]
  %v213 = vld [vmem:[%s3 + $0x210] sm:$0xff]
  %v214 = vld [vmem:[%s3 + $0x218] sm:$0xff]
  %v215 = vld [vmem:[%s3 + $0x220] sm:$0xff]
  %v216 = vld [vmem:[%s3 + $0x228] sm:$0xff]
  %v217 = vld [vmem:[%s3 + $0x230] sm:$0xff]
  %v218 = vld [vmem:[%s3 + $0x238] sm:$0xff]
  %v219 = vld [vmem:[%s3 + $0x240] sm:$0xff]
  %v220 = vld [vmem:[%s3 + $0x248] sm:$0xff]
  %v221 = vld [vmem:[%s3 + $0x250] sm:$0xff]
  %v222 = vld [vmem:[%s3 + $0x258] sm:$0xff]
  %v223 = vld [vmem:[%s3 + $0x260] sm:$0xff]
  %v224 = vld [vmem:[%s3 + $0x268] sm:$0xff]
  %v225 = vld [vmem:[%s3 + $0x270] sm:$0xff]
  %v226 = vld [vmem:[%s3 + $0x278] sm:$0xff]
  %v227 = vld [vmem:[%s3 + $0x280] sm:$0xff]
  %v228 = vld [vmem:[%s3 + $0x288] sm:$0xff]
  %v229 = vld [vmem:[%s3 + $0x290] sm:$0xff]
  %v230 = vld [vmem:[%s3 + $0x298] sm:$0xff]
  %v231 = vld [vmem:[%s3 + $0x2a0] sm:$0xff]
  %v232 = vld [vmem:[%s3 + $0x2a8] sm:$0xff]
  %v233 = vld [vmem:[%s3 + $0x2b0] sm:$0xff]
  %v234 = vld [vmem:[%s3 + $0x2b8] sm:$0xff]
  %v235 = vld [vmem:[%s3 + $0x2c0] sm:$0xff]
  %v236 = vld [vmem:[%s3 + $0x2c8] sm:$0xff]
  %v237 = vld [vmem:[%s3 + $0x2d0] sm:$0xff]
  %v238 = vld [vmem:[%s3 + $0x2d8] sm:$0xff]
  %v239 = vld [vmem:[%s3 + $0x2e0] sm:$0xff]
  %v240 = vld [vmem:[%s3 + $0x2e8] sm:$0xff]
  %v241 = vld [vmem:[%s3 + $0x2f0] sm:$0xff]
  %v242 = vld [vmem:[%s3 + $0x2f8] sm:$0xff]
  %v243 = vld [vmem:[%s3 + $0x300] sm:$0xff]
  %v244 = vld [vmem:[%s3 + $0x308] sm:$0xff]
  %v245 = vld [vmem:[%s3 + $0x310] sm:$0xff]
  %v246 = vld [vmem:[%s3 + $0x318] sm:$0xff]
  %v247 = vld [vmem:[%s3 + $0x320] sm:$0xff]
  %v248 = vld [vmem:[%s3 + $0x328] sm:$0xff]
  %v249 = vld [vmem:[%s3 + $0x330] sm:$0xff]
  %v250 = vld [vmem:[%s3 + $0x338] sm:$0xff]
  %v251 = vld [vmem:[%s3 + $0x340] sm:$0xff]
  %v252 = vld [vmem:[%s3 + $0x348] sm:$0xff]
  %v253 = vld [vmem:[%s3 + $0x350] sm:$0xff]
  %v254 = vld [vmem:[%s3 + $0x358] sm:$0xff]
  %v255 = vld [vmem:[%s3 + $0x360] sm:$0xff]
  %v256 = vld [vmem:[%s3 + $0x368] sm:$0xff]
  %v257 = vld [vmem:[%s3 + $0x370] sm:$0xff]
  %v258 = vld [vmem:[%s3 + $0x378] sm:$0xff]
  %v259 = vld [vmem:[%s3 + $0x380] sm:$0xff]
  %v260 = vld [vmem:[%s3 + $0x388] sm:$0xff]
  %v261 = vld [vmem:[%s3 + $0x390] sm:$0xff]
  %v262 = vld [vmem:[%s3 + $0x398] sm:$0xff]
  %v263 = vld [vmem:[%s3 + $0x3a0] sm:$0xff]
  %v264 = vld [vmem:[%s3 + $0x3a8] sm:$0xff]
  %v265 = vld [vmem:[%s3 + $0x3b0] sm:$0xff]
  %v266 = vld [vmem:[%s3 + $0x3b8] sm:$0xff]
  %v267 = vld [vmem:[%s3 + $0x3c0] sm:$0xff]
  %v268 = vld [vmem:[%s3 + $0x3c8] sm:$0xff]
  %v269 = vld [vmem:[%s3 + $0x3d0] sm:$0xff]
  %v270 = vld [vmem:[%s3 + $0x3d8] sm:$0xff]
  %v271 = vld [vmem:[%s3 + $0x3e0] sm:$0xff]
  %v272 = vld [vmem:[%s3 + $0x3e8] sm:$0xff]
  %v273 = vld [vmem:[%s3 + $0x3f0] sm:$0xff]
  %v274 = vld [vmem:[%s3 + $0x3f8] sm:$0xff]
  %v403 = vunpack.c.l.b16 %v147
  %v404 = vunpack.c.h.b16 %v147
  %v405 = vunpack.c.l.b16 %v148
  %v406 = vunpack.c.h.b16 %v148
  %v407 = vunpack.c.l.b16 %v149
  %v408 = vunpack.c.h.b16 %v149
  %v409 = vunpack.c.l.b16 %v150
  %v410 = vunpack.c.h.b16 %v150
  %v411 = vunpack.c.l.b16 %v151
  %v412 = vunpack.c.h.b16 %v151
  %v413 = vunpack.c.l.b16 %v152
  %v414 = vunpack.c.h.b16 %v152
  %v415 = vunpack.c.l.b16 %v153
  %v416 = vunpack.c.h.b16 %v153
  %v417 = vunpack.c.l.b16 %v154
  %v418 = vunpack.c.h.b16 %v154
  %v419 = vunpack.c.l.b16 %v155
  %v420 = vunpack.c.h.b16 %v155
  %v421 = vunpack.c.l.b16 %v156
  %v422 = vunpack.c.h.b16 %v156
  %v423 = vunpack.c.l.b16 %v157
  %v424 = vunpack.c.h.b16 %v157
  %v425 = vunpack.c.l.b16 %v158
  %v426 = vunpack.c.h.b16 %v158
  %v427 = vunpack.c.l.b16 %v159
  %v428 = vunpack.c.h.b16 %v159
  %v429 = vunpack.c.l.b16 %v160
  %v430 = vunpack.c.h.b16 %v160
  %v431 = vunpack.c.l.b16 %v161
  %v432 = vunpack.c.h.b16 %v161
  %v433 = vunpack.c.l.b16 %v162
  %v434 = vunpack.c.h.b16 %v162
  %v435 = vunpack.c.l.b16 %v163
  %v436 = vunpack.c.h.b16 %v163
  %v437 = vunpack.c.l.b16 %v164
  %v438 = vunpack.c.h.b16 %v164
  %v439 = vunpack.c.l.b16 %v165
  %v440 = vunpack.c.h.b16 %v165
  %v441 = vunpack.c.l.b16 %v166
  %v442 = vunpack.c.h.b16 %v166
  %v443 = vunpack.c.l.b16 %v167
  %v444 = vunpack.c.h.b16 %v167
  %v445 = vunpack.c.l.b16 %v168
  %v446 = vunpack.c.h.b16 %v168
  %v447 = vunpack.c.l.b16 %v169
  %v448 = vunpack.c.h.b16 %v169
  %v449 = vunpack.c.l.b16 %v170
  %v450 = vunpack.c.h.b16 %v170
  %v451 = vunpack.c.l.b16 %v171
  %v452 = vunpack.c.h.b16 %v171
  %v453 = vunpack.c.l.b16 %v172
  %v454 = vunpack.c.h.b16 %v172
  %v455 = vunpack.c.l.b16 %v173
  %v456 = vunpack.c.h.b16 %v173
  %v457 = vunpack.c.l.b16 %v174
  %v458 = vunpack.c.h.b16 %v174
  %v459 = vunpack.c.l.b16 %v175
  %v460 = vunpack.c.h.b16 %v175
  %v461 = vunpack.c.l.b16 %v176
  %v462 = vunpack.c.h.b16 %v176
  %v463 = vunpack.c.l.b16 %v177
  %v464 = vunpack.c.h.b16 %v177
  %v465 = vunpack.c.l.b16 %v178
  %v466 = vunpack.c.h.b16 %v178
  %v467 = vunpack.c.l.b16 %v179
  %v468 = vunpack.c.h.b16 %v179
  %v469 = vunpack.c.l.b16 %v180
  %v470 = vunpack.c.h.b16 %v180
  %v471 = vunpack.c.l.b16 %v181
  %v472 = vunpack.c.h.b16 %v181
  %v473 = vunpack.c.l.b16 %v182
  %v474 = vunpack.c.h.b16 %v182
  %v475 = vunpack.c.l.b16 %v183
  %v476 = vunpack.c.h.b16 %v183
  %v477 = vunpack.c.l.b16 %v184
  %v478 = vunpack.c.h.b16 %v184
  %v479 = vunpack.c.l.b16 %v185
  %v480 = vunpack.c.h.b16 %v185
  %v481 = vunpack.c.l.b16 %v186
  %v482 = vunpack.c.h.b16 %v186
  %v483 = vunpack.c.l.b16 %v187
  %v484 = vunpack.c.h.b16 %v187
  %v485 = vunpack.c.l.b16 %v188
  %v486 = vunpack.c.h.b16 %v188
  %v487 = vunpack.c.l.b16 %v189
  %v488 = vunpack.c.h.b16 %v189
  %v489 = vunpack.c.l.b16 %v190
  %v490 = vunpack.c.h.b16 %v190
  %v491 = vunpack.c.l.b16 %v191
  %v492 = vunpack.c.h.b16 %v191
  %v493 = vunpack.c.l.b16 %v192
  %v494 = vunpack.c.h.b16 %v192
  %v495 = vunpack.c.l.b16 %v193
  %v496 = vunpack.c.h.b16 %v193
  %v497 = vunpack.c.l.b16 %v194
  %v498 = vunpack.c.h.b16 %v194
  %v499 = vunpack.c.l.b16 %v195
  %v500 = vunpack.c.h.b16 %v195
  %v501 = vunpack.c.l.b16 %v196
  %v502 = vunpack.c.h.b16 %v196
  %v503 = vunpack.c.l.b16 %v197
  %v504 = vunpack.c.h.b16 %v197
  %v505 = vunpack.c.l.b16 %v198
  %v506 = vunpack.c.h.b16 %v198
  %v507 = vunpack.c.l.b16 %v199
  %v508 = vunpack.c.h.b16 %v199
  %v509 = vunpack.c.l.b16 %v200
  %v510 = vunpack.c.h.b16 %v200
  %v511 = vunpack.c.l.b16 %v201
  %v512 = vunpack.c.h.b16 %v201
  %v513 = vunpack.c.l.b16 %v202
  %v514 = vunpack.c.h.b16 %v202
  %v515 = vunpack.c.l.b16 %v203
  %v516 = vunpack.c.h.b16 %v203
  %v517 = vunpack.c.l.b16 %v204
  %v518 = vunpack.c.h.b16 %v204
  %v519 = vunpack.c.l.b16 %v205
  %v520 = vunpack.c.h.b16 %v205
  %v521 = vunpack.c.l.b16 %v206
  %v522 = vunpack.c.h.b16 %v206
  %v523 = vunpack.c.l.b16 %v207
  %v524 = vunpack.c.h.b16 %v207
  %v525 = vunpack.c.l.b16 %v208
  %v526 = vunpack.c.h.b16 %v208
  %v527 = vunpack.c.l.b16 %v209
  %v528 = vunpack.c.h.b16 %v209
  %v529 = vunpack.c.l.b16 %v210
  %v530 = vunpack.c.h.b16 %v210
  %v531 = vunpack.c.l.b16 %v211
  %v532 = vunpack.c.h.b16 %v211
  %v533 = vunpack.c.l.b16 %v212
  %v534 = vunpack.c.h.b16 %v212
  %v535 = vunpack.c.l.b16 %v213
  %v536 = vunpack.c.h.b16 %v213
  %v537 = vunpack.c.l.b16 %v214
  %v538 = vunpack.c.h.b16 %v214
  %v539 = vunpack.c.l.b16 %v215
  %v540 = vunpack.c.h.b16 %v215
  %v541 = vunpack.c.l.b16 %v216
  %v542 = vunpack.c.h.b16 %v216
  %v543 = vunpack.c.l.b16 %v217
  %v544 = vunpack.c.h.b16 %v217
  %v545 = vunpack.c.l.b16 %v218
  %v546 = vunpack.c.h.b16 %v218
  %v547 = vunpack.c.l.b16 %v219
  %v548 = vunpack.c.h.b16 %v219
  %v549 = vunpack.c.l.b16 %v220
  %v550 = vunpack.c.h.b16 %v220
  %v551 = vunpack.c.l.b16 %v221
  %v552 = vunpack.c.h.b16 %v221
  %v553 = vunpack.c.l.b16 %v222
  %v554 = vunpack.c.h.b16 %v222
  %v555 = vunpack.c.l.b16 %v223
  %v556 = vunpack.c.h.b16 %v223
  %v557 = vunpack.c.l.b16 %v224
  %v558 = vunpack.c.h.b16 %v224
  %v559 = vunpack.c.l.b16 %v225
  %v560 = vunpack.c.h.b16 %v225
  %v561 = vunpack.c.l.b16 %v226
  %v562 = vunpack.c.h.b16 %v226
  %v563 = vunpack.c.l.b16 %v227
  %v564 = vunpack.c.h.b16 %v227
  %v565 = vunpack.c.l.b16 %v228
  %v566 = vunpack.c.h.b16 %v228
  %v567 = vunpack.c.l.b16 %v229
  %v568 = vunpack.c.h.b16 %v229
  %v569 = vunpack.c.l.b16 %v230
  %v570 = vunpack.c.h.b16 %v230
  %v571 = vunpack.c.l.b16 %v231
  %v572 = vunpack.c.h.b16 %v231
  %v573 = vunpack.c.l.b16 %v232
  %v574 = vunpack.c.h.b16 %v232
  %v575 = vunpack.c.l.b16 %v233
  %v576 = vunpack.c.h.b16 %v233
  %v577 = vunpack.c.l.b16 %v234
  %v578 = vunpack.c.h.b16 %v234
  %v579 = vunpack.c.l.b16 %v235
  %v580 = vunpack.c.h.b16 %v235
  %v581 = vunpack.c.l.b16 %v236
  %v582 = vunpack.c.h.b16 %v236
  %v583 = vunpack.c.l.b16 %v237
  %v584 = vunpack.c.h.b16 %v237
  %v585 = vunpack.c.l.b16 %v238
  %v586 = vunpack.c.h.b16 %v238
  %v587 = vunpack.c.l.b16 %v239
  %v588 = vunpack.c.h.b16 %v239
  %v589 = vunpack.c.l.b16 %v240
  %v590 = vunpack.c.h.b16 %v240
  %v591 = vunpack.c.l.b16 %v241
  %v592 = vunpack.c.h.b16 %v241
  %v593 = vunpack.c.l.b16 %v242
  %v594 = vunpack.c.h.b16 %v242
  %v595 = vunpack.c.l.b16 %v243
  %v596 = vunpack.c.h.b16 %v243
  %v597 = vunpack.c.l.b16 %v244
  %v598 = vunpack.c.h.b16 %v244
  %v599 = vunpack.c.l.b16 %v245
  %v600 = vunpack.c.h.b16 %v245
  %v601 = vunpack.c.l.b16 %v246
  %v602 = vunpack.c.h.b16 %v246
  %v603 = vunpack.c.l.b16 %v247
  %v604 = vunpack.c.h.b16 %v247
  %v605 = vunpack.c.l.b16 %v248
  %v606 = vunpack.c.h.b16 %v248
  %v607 = vunpack.c.l.b16 %v249
  %v608 = vunpack.c.h.b16 %v249
  %v609 = vunpack.c.l.b16 %v250
  %v610 = vunpack.c.h.b16 %v250
  %v611 = vunpack.c.l.b16 %v251
  %v612 = vunpack.c.h.b16 %v251
  %v613 = vunpack.c.l.b16 %v252
  %v614 = vunpack.c.h.b16 %v252
  %v615 = vunpack.c.l.b16 %v253
  %v616 = vunpack.c.h.b16 %v253
  %v617 = vunpack.c.l.b16 %v254
  %v618 = vunpack.c.h.b16 %v254
  %v619 = vunpack.c.l.b16 %v255
  %v620 = vunpack.c.h.b16 %v255
  %v621 = vunpack.c.l.b16 %v256
  %v622 = vunpack.c.h.b16 %v256
  %v623 = vunpack.c.l.b16 %v257
  %v624 = vunpack.c.h.b16 %v257
  %v625 = vunpack.c.l.b16 %v258
  %v626 = vunpack.c.h.b16 %v258
  %v627 = vunpack.c.l.b16 %v259
  %v628 = vunpack.c.h.b16 %v259
  %v629 = vunpack.c.l.b16 %v260
  %v630 = vunpack.c.h.b16 %v260
  %v631 = vunpack.c.l.b16 %v261
  %v632 = vunpack.c.h.b16 %v261
  %v633 = vunpack.c.l.b16 %v262
  %v634 = vunpack.c.h.b16 %v262
  %v635 = vunpack.c.l.b16 %v263
  %v636 = vunpack.c.h.b16 %v263
  %v637 = vunpack.c.l.b16 %v264
  %v638 = vunpack.c.h.b16 %v264
  %v639 = vunpack.c.l.b16 %v265
  %v640 = vunpack.c.h.b16 %v265
  %v641 = vunpack.c.l.b16 %v266
  %v642 = vunpack.c.h.b16 %v266
  %v643 = vunpack.c.l.b16 %v267
  %v644 = vunpack.c.h.b16 %v267
  %v645 = vunpack.c.l.b16 %v268
  %v646 = vunpack.c.h.b16 %v268
  %v647 = vunpack.c.l.b16 %v269
  %v648 = vunpack.c.h.b16 %v269
  %v649 = vunpack.c.l.b16 %v270
  %v650 = vunpack.c.h.b16 %v270
  %v651 = vunpack.c.l.b16 %v271
  %v652 = vunpack.c.h.b16 %v271
  %v653 = vunpack.c.l.b16 %v272
  %v654 = vunpack.c.h.b16 %v272
  %v655 = vunpack.c.l.b16 %v273
  %v656 = vunpack.c.h.b16 %v273
  %v657 = vunpack.c.l.b16 %v274
  %v658 = vunpack.c.h.b16 %v274
  %v659 = vpack.c.b16 %v411, %v403
  %v660 = vpack.c.b16 %v412, %v404
  %v661 = vpack.c.b16 %v413, %v405
  %v662 = vpack.c.b16 %v414, %v406
  %v663 = vpack.c.b16 %v415, %v407
  %v664 = vpack.c.b16 %v416, %v408
  %v665 = vpack.c.b16 %v417, %v409
  %v666 = vpack.c.b16 %v418, %v410
  %v667 = vpack.c.b16 %v427, %v419
  %v668 = vpack.c.b16 %v428, %v420
  %v669 = vpack.c.b16 %v429, %v421
  %v670 = vpack.c.b16 %v430, %v422
  %v671 = vpack.c.b16 %v431, %v423
  %v672 = vpack.c.b16 %v432, %v424
  %v673 = vpack.c.b16 %v433, %v425
  %v674 = vpack.c.b16 %v434, %v426
  %v675 = vpack.c.b16 %v443, %v435
  %v676 = vpack.c.b16 %v444, %v436
  %v677 = vpack.c.b16 %v445, %v437
  %v678 = vpack.c.b16 %v446, %v438
  %v679 = vpack.c.b16 %v447, %v439
  %v680 = vpack.c.b16 %v448, %v440
  %v681 = vpack.c.b16 %v449, %v441
  %v682 = vpack.c.b16 %v450, %v442
  %v683 = vpack.c.b16 %v459, %v451
  %v684 = vpack.c.b16 %v460, %v452
  %v685 = vpack.c.b16 %v461, %v453
  %v686 = vpack.c.b16 %v462, %v454
  %v687 = vpack.c.b16 %v463, %v455
  %v688 = vpack.c.b16 %v464, %v456
  %v689 = vpack.c.b16 %v465, %v457
  %v690 = vpack.c.b16 %v466, %v458
  %v691 = vpack.c.b16 %v475, %v467
  %v692 = vpack.c.b16 %v476, %v468
  %v693 = vpack.c.b16 %v477, %v469
  %v694 = vpack.c.b16 %v478, %v470
  %v695 = vpack.c.b16 %v479, %v471
  %v696 = vpack.c.b16 %v480, %v472
  %v697 = vpack.c.b16 %v481, %v473
  %v698 = vpack.c.b16 %v482, %v474
  %v699 = vpack.c.b16 %v491, %v483
  %v700 = vpack.c.b16 %v492, %v484
  %v701 = vpack.c.b16 %v493, %v485
  %v702 = vpack.c.b16 %v494, %v486
  %v703 = vpack.c.b16 %v495, %v487
  %v704 = vpack.c.b16 %v496, %v488
  %v705 = vpack.c.b16 %v497, %v489
  %v706 = vpack.c.b16 %v498, %v490
  %v707 = vpack.c.b16 %v507, %v499
  %v708 = vpack.c.b16 %v508, %v500
  %v709 = vpack.c.b16 %v509, %v501
  %v710 = vpack.c.b16 %v510, %v502
  %v711 = vpack.c.b16 %v511, %v503
  %v712 = vpack.c.b16 %v512, %v504
  %v713 = vpack.c.b16 %v513, %v505
  %v714 = vpack.c.b16 %v514, %v506
  %v715 = vpack.c.b16 %v523, %v515
  %v716 = vpack.c.b16 %v524, %v516
  %v717 = vpack.c.b16 %v525, %v517
  %v718 = vpack.c.b16 %v526, %v518
  %v719 = vpack.c.b16 %v527, %v519
  %v720 = vpack.c.b16 %v528, %v520
  %v721 = vpack.c.b16 %v529, %v521
  %v722 = vpack.c.b16 %v530, %v522
  %v723 = vpack.c.b16 %v539, %v531
  %v724 = vpack.c.b16 %v540, %v532
  %v725 = vpack.c.b16 %v541, %v533
  %v726 = vpack.c.b16 %v542, %v534
  %v727 = vpack.c.b16 %v543, %v535
  %v728 = vpack.c.b16 %v544, %v536
  %v729 = vpack.c.b16 %v545, %v537
  %v730 = vpack.c.b16 %v546, %v538
  %v731 = vpack.c.b16 %v555, %v547
  %v732 = vpack.c.b16 %v556, %v548
  %v733 = vpack.c.b16 %v557, %v549
  %v734 = vpack.c.b16 %v558, %v550
  %v735 = vpack.c.b16 %v559, %v551
  %v736 = vpack.c.b16 %v560, %v552
  %v737 = vpack.c.b16 %v561, %v553
  %v738 = vpack.c.b16 %v562, %v554
  %v739 = vpack.c.b16 %v571, %v563
  %v740 = vpack.c.b16 %v572, %v564
  %v741 = vpack.c.b16 %v573, %v565
  %v742 = vpack.c.b16 %v574, %v566
  %v743 = vpack.c.b16 %v575, %v567
  %v744 = vpack.c.b16 %v576, %v568
  %v745 = vpack.c.b16 %v577, %v569
  %v746 = vpack.c.b16 %v578, %v570
  %v747 = vpack.c.b16 %v587, %v579
  %v748 = vpack.c.b16 %v588, %v580
  %v749 = vpack.c.b16 %v589, %v581
  %v750 = vpack.c.b16 %v590, %v582
  %v751 = vpack.c.b16 %v591, %v583
  %v752 = vpack.c.b16 %v592, %v584
  %v753 = vpack.c.b16 %v593, %v585
  %v754 = vpack.c.b16 %v594, %v586
  %v755 = vpack.c.b16 %v603, %v595
  %v756 = vpack.c.b16 %v604, %v596
  %v757 = vpack.c.b16 %v605, %v597
  %v758 = vpack.c.b16 %v606, %v598
  %v759 = vpack.c.b16 %v607, %v599
  %v760 = vpack.c.b16 %v608, %v600
  %v761 = vpack.c.b16 %v609, %v601
  %v762 = vpack.c.b16 %v610, %v602
  %v763 = vpack.c.b16 %v619, %v611
  %v764 = vpack.c.b16 %v620, %v612
  %v765 = vpack.c.b16 %v621, %v613
  %v766 = vpack.c.b16 %v622, %v614
  %v767 = vpack.c.b16 %v623, %v615
  %v768 = vpack.c.b16 %v624, %v616
  %v769 = vpack.c.b16 %v625, %v617
  %v770 = vpack.c.b16 %v626, %v618
  %v771 = vpack.c.b16 %v635, %v627
  %v772 = vpack.c.b16 %v636, %v628
  %v773 = vpack.c.b16 %v637, %v629
  %v774 = vpack.c.b16 %v638, %v630
  %v775 = vpack.c.b16 %v639, %v631
  %v776 = vpack.c.b16 %v640, %v632
  %v777 = vpack.c.b16 %v641, %v633
  %v778 = vpack.c.b16 %v642, %v634
  %v779 = vpack.c.b16 %v651, %v643
  %v780 = vpack.c.b16 %v652, %v644
  %v781 = vpack.c.b16 %v653, %v645
  %v782 = vpack.c.b16 %v654, %v646
  %v783 = vpack.c.b16 %v655, %v647
  %v784 = vpack.c.b16 %v656, %v648
  %v785 = vpack.c.b16 %v657, %v649
  %v786 = vpack.c.b16 %v658, %v650
  %915 = vmatprep.subr.bf16.mxu0 %v660
  %916 = vmatpush1.bf16.msra.mxu0 %v659
  %917 = vmatprep.subr.bf16.mxu0 %v668
  %918 = vmatpush1.bf16.msra.mxu0 %v667
  %919 = vmatprep.subr.bf16.mxu0 %v676
  %920 = vmatpush1.bf16.msra.mxu0 %v675
  %921 = vmatprep.subr.bf16.mxu0 %v684
  %922 = vmatpush1.bf16.msra.mxu0 %v683
  %923 = vmatprep.subr.bf16.mxu0 %v692
  %924 = vmatpush1.bf16.msra.mxu0 %v691
  %925 = vmatprep.subr.bf16.mxu0 %v700
  %926 = vmatpush1.bf16.msra.mxu0 %v699
  %927 = vmatprep.subr.bf16.mxu0 %v708
  %928 = vmatpush1.bf16.msra.mxu0 %v707
  %929 = vmatprep.subr.bf16.mxu0 %v716
  %930 = vmatpush1.bf16.msra.mxu0 %v715
  %931 = vmatprep.subr.bf16.mxu0 %v724
  %932 = vmatpush1.bf16.msra.mxu0 %v723
  %933 = vmatprep.subr.bf16.mxu0 %v732
  %934 = vmatpush1.bf16.msra.mxu0 %v731
  %935 = vmatprep.subr.bf16.mxu0 %v740
  %936 = vmatpush1.bf16.msra.mxu0 %v739
  %937 = vmatprep.subr.bf16.mxu0 %v748
  %938 = vmatpush1.bf16.msra.mxu0 %v747
  %939 = vmatprep.subr.bf16.mxu0 %v756
  %940 = vmatpush1.bf16.msra.mxu0 %v755
  %941 = vmatprep.subr.bf16.mxu0 %v764
  %942 = vmatpush1.bf16.msra.mxu0 %v763
  %943 = vmatprep.subr.bf16.mxu0 %v772
  %944 = vmatpush1.bf16.msra.mxu0 %v771
  %945 = vmatprep.subr.bf16.mxu0 %v780
  %946 = vmatpush1.bf16.msra.mxu0 %v779
  %947 = vmatprep.mubr.bf16.mxu0 %v146
  %948 = vmatmul.mubr.bf16.gmra.mrb[0].mxu0 %v145
  %v949 = vpop.f32.mrb[0].mxu0
  %v950 = vadd.f32 0.0, %v949
  %v951 = vpop.f32.mrb[0].mxu0
  %v952 = vadd.f32 0.0, %v951
  %v953 = vpop.f32.mrb[0].mxu0
  %v954 = vadd.f32 0.0, %v953
  %v955 = vpop.f32.mrb[0].mxu0
  %v956 = vadd.f32 0.0, %v955
  %957 = vdwg.mxu0
  %958 = vmatprep.subr.bf16.mxu0 %v662
  %959 = vmatpush1.bf16.msra.mxu0 %v661
  %960 = vmatprep.subr.bf16.mxu0 %v670
  %961 = vmatpush1.bf16.msra.mxu0 %v669
  %962 = vmatprep.subr.bf16.mxu0 %v678
  %963 = vmatpush1.bf16.msra.mxu0 %v677
  %964 = vmatprep.subr.bf16.mxu0 %v686
  %965 = vmatpush1.bf16.msra.mxu0 %v685
  %966 = vmatprep.subr.bf16.mxu0 %v694
  %967 = vmatpush1.bf16.msra.mxu0 %v693
  %968 = vmatprep.subr.bf16.mxu0 %v702
  %969 = vmatpush1.bf16.msra.mxu0 %v701
  %970 = vmatprep.subr.bf16.mxu0 %v710
  %971 = vmatpush1.bf16.msra.mxu0 %v709
  %972 = vmatprep.subr.bf16.mxu0 %v718
  %973 = vmatpush1.bf16.msra.mxu0 %v717
  %974 = vmatprep.subr.bf16.mxu0 %v726
  %975 = vmatpush1.bf16.msra.mxu0 %v725
  %976 = vmatprep.subr.bf16.mxu0 %v734
  %977 = vmatpush1.bf16.msra.mxu0 %v733
  %978 = vmatprep.subr.bf16.mxu0 %v742
  %979 = vmatpush1.bf16.msra.mxu0 %v741
  %980 = vmatprep.subr.bf16.mxu0 %v750
  %981 = vmatpush1.bf16.msra.mxu0 %v749
  %982 = vmatprep.subr.bf16.mxu0 %v758
  %983 = vmatpush1.bf16.msra.mxu0 %v757
  %984 = vmatprep.subr.bf16.mxu0 %v766
  %985 = vmatpush1.bf16.msra.mxu0 %v765
  %986 = vmatprep.subr.bf16.mxu0 %v774
  %987 = vmatpush1.bf16.msra.mxu0 %v773
  %988 = vmatprep.subr.bf16.mxu0 %v782
  %989 = vmatpush1.bf16.msra.mxu0 %v781
  %990 = vmatprep.mubr.bf16.mxu0 %v146
  %991 = vmatmul.mubr.bf16.gmra.mrb[0].mxu0 %v145
  %v992 = vpop.f32.mrb[0].mxu0
  %v993 = vadd.f32 0.0, %v992
  %v994 = vpop.f32.mrb[0].mxu0
  %v995 = vadd.f32 0.0, %v994
  %v996 = vpop.f32.mrb[0].mxu0
  %v997 = vadd.f32 0.0, %v996
  %v998 = vpop.f32.mrb[0].mxu0
  %v999 = vadd.f32 0.0, %v998
  %1000 = vdwg.mxu0
  %1001 = vmatprep.subr.bf16.mxu0 %v664
  %1002 = vmatpush1.bf16.msra.mxu0 %v663
  %1003 = vmatprep.subr.bf16.mxu0 %v672
  %1004 = vmatpush1.bf16.msra.mxu0 %v671
  %1005 = vmatprep.subr.bf16.mxu0 %v680
  %1006 = vmatpush1.bf16.msra.mxu0 %v679
  %1007 = vmatprep.subr.bf16.mxu0 %v688
  %1008 = vmatpush1.bf16.msra.mxu0 %v687
  %1009 = vmatprep.subr.bf16.mxu0 %v696
  %1010 = vmatpush1.bf16.msra.mxu0 %v695
  %1011 = vmatprep.subr.bf16.mxu0 %v704
  %1012 = vmatpush1.bf16.msra.mxu0 %v703
  %1013 = vmatprep.subr.bf16.mxu0 %v712
  %1014 = vmatpush1.bf16.msra.mxu0 %v711
  %1015 = vmatprep.subr.bf16.mxu0 %v720
  %1016 = vmatpush1.bf16.msra.mxu0 %v719
  %1017 = vmatprep.subr.bf16.mxu0 %v728
  %1018 = vmatpush1.bf16.msra.mxu0 %v727
  %1019 = vmatprep.subr.bf16.mxu0 %v736
  %1020 = vmatpush1.bf16.msra.mxu0 %v735
  %1021 = vmatprep.subr.bf16.mxu0 %v744
  %1022 = vmatpush1.bf16.msra.mxu0 %v743
  %1023 = vmatprep.subr.bf16.mxu0 %v752
  %1024 = vmatpush1.bf16.msra.mxu0 %v751
  %1025 = vmatprep.subr.bf16.mxu0 %v760
  %1026 = vmatpush1.bf16.msra.mxu0 %v759
  %1027 = vmatprep.subr.bf16.mxu0 %v768
  %1028 = vmatpush1.bf16.msra.mxu0 %v767
  %1029 = vmatprep.subr.bf16.mxu0 %v776
  %1030 = vmatpush1.bf16.msra.mxu0 %v775
  %1031 = vmatprep.subr.bf16.mxu0 %v784
  %1032 = vmatpush1.bf16.msra.mxu0 %v783
  %1033 = vmatprep.mubr.bf16.mxu0 %v146
  %1034 = vmatmul.mubr.bf16.gmra.mrb[0].mxu0 %v145
  %v1035 = vpop.f32.mrb[0].mxu0
  %v1036 = vadd.f32 0.0, %v1035
  %v1037 = vpop.f32.mrb[0].mxu0
  %v1038 = vadd.f32 0.0, %v1037
  %v1039 = vpop.f32.mrb[0].mxu0
  %v1040 = vadd.f32 0.0, %v1039
  %v1041 = vpop.f32.mrb[0].mxu0
  %v1042 = vadd.f32 0.0, %v1041
  %1043 = vdwg.mxu0
  %1044 = vmatprep.subr.bf16.mxu0 %v666
  %1045 = vmatpush1.bf16.msra.mxu0 %v665
  %1046 = vmatprep.subr.bf16.mxu0 %v674
  %1047 = vmatpush1.bf16.msra.mxu0 %v673
  %1048 = vmatprep.subr.bf16.mxu0 %v682
  %1049 = vmatpush1.bf16.msra.mxu0 %v681
  %1050 = vmatprep.subr.bf16.mxu0 %v690
  %1051 = vmatpush1.bf16.msra.mxu0 %v689
  %1052 = vmatprep.subr.bf16.mxu0 %v698
  %1053 = vmatpush1.bf16.msra.mxu0 %v697
  %1054 = vmatprep.subr.bf16.mxu0 %v706
  %1055 = vmatpush1.bf16.msra.mxu0 %v705
  %1056 = vmatprep.subr.bf16.mxu0 %v714
  %1057 = vmatpush1.bf16.msra.mxu0 %v713
  %1058 = vmatprep.subr.bf16.mxu0 %v722
  %1059 = vmatpush1.bf16.msra.mxu0 %v721
  %1060 = vmatprep.subr.bf16.mxu0 %v730
  %1061 = vmatpush1.bf16.msra.mxu0 %v729
  %1062 = vmatprep.subr.bf16.mxu0 %v738
  %1063 = vmatpush1.bf16.msra.mxu0 %v737
  %1064 = vmatprep.subr.bf16.mxu0 %v746
  %1065 = vmatpush1.bf16.msra.mxu0 %v745
  %1066 = vmatprep.subr.bf16.mxu0 %v754
  %1067 = vmatpush1.bf16.msra.mxu0 %v753
  %1068 = vmatprep.subr.bf16.mxu0 %v762
  %1069 = vmatpush1.bf16.msra.mxu0 %v761
  %1070 = vmatprep.subr.bf16.mxu0 %v770
  %1071 = vmatpush1.bf16.msra.mxu0 %v769
  %1072 = vmatprep.subr.bf16.mxu0 %v778
  %1073 = vmatpush1.bf16.msra.mxu0 %v777
  %1074 = vmatprep.subr.bf16.mxu0 %v786
  %1075 = vmatpush1.bf16.msra.mxu0 %v785
  %1076 = vmatprep.mubr.bf16.mxu0 %v146
  %1077 = vmatmul.mubr.bf16.gmra.mrb[0].mxu0 %v145
  %v1078 = vpop.f32.mrb[0].mxu0
  %v1079 = vadd.f32 0.0, %v1078
  %v1080 = vpop.f32.mrb[0].mxu0
  %v1081 = vadd.f32 0.0, %v1080
  %v1082 = vpop.f32.mrb[0].mxu0
  %v1083 = vadd.f32 0.0, %v1082
  %v1084 = vpop.f32.mrb[0].mxu0
  %v1085 = vadd.f32 0.0, %v1084
  %1086 = vdwg.mxu0
  %v1087 = vld [vmem:[%s5] sm:$0xff]
  %v1088 = vld [vmem:[%s5 + $0x8] sm:$0xff]
  %v1089 = vld [vmem:[%s5 + $0x10] sm:$0xff]
  %v1090 = vld [vmem:[%s5 + $0x18] sm:$0xff]
  %v1091 = vld [vmem:[%s5 + $0x20] sm:$0xff]
  %v1092 = vld [vmem:[%s5 + $0x28] sm:$0xff]
  %v1093 = vld [vmem:[%s5 + $0x30] sm:$0xff]
  %v1094 = vld [vmem:[%s5 + $0x38] sm:$0xff]
  %v1095 = vlaneseq
  %v1096 = vshrl.u32 %v1095, 7
  %v1097 = vsub.s32 0, %v1096
  %v1098 = vrot.slane %v950, %v1097
  %v1099 = vlaneseq
  %v1100 = vshrl.u32 %v1099, 7
  %v1101 = vsub.s32 0, %v1100
  %v1102 = vrot.slane %v952, %v1101
  %v1103 = vlaneseq
  %v1104 = vshrl.u32 %v1103, 7
  %v1105 = vsub.s32 0, %v1104
  %v1106 = vrot.slane %v993, %v1105
  %v1107 = vlaneseq
  %v1108 = vshrl.u32 %v1107, 7
  %v1109 = vsub.s32 0, %v1108
  %v1110 = vrot.slane %v995, %v1109
  %v1111 = vlaneseq
  %v1112 = vshrl.u32 %v1111, 7
  %v1113 = vsub.s32 0, %v1112
  %v1114 = vrot.slane %v1036, %v1113
  %v1115 = vlaneseq
  %v1116 = vshrl.u32 %v1115, 7
  %v1117 = vsub.s32 0, %v1116
  %v1118 = vrot.slane %v1038, %v1117
  %v1119 = vlaneseq
  %v1120 = vshrl.u32 %v1119, 7
  %v1121 = vsub.s32 0, %v1120
  %v1122 = vrot.slane %v1079, %v1121
  %v1123 = vlaneseq
  %v1124 = vshrl.u32 %v1123, 7
  %v1125 = vsub.s32 0, %v1124
  %v1126 = vrot.slane %v1081, %v1125
  %v1127 = vlaneseq
  %v1128 = vshrl.u32 %v1127, 7
  %v1129 = vsub.s32 0, %v1128
  %v1130 = vrot.slane %v954, %v1129
  %v1131 = vlaneseq
  %v1132 = vshrl.u32 %v1131, 7
  %v1133 = vsub.s32 0, %v1132
  %v1134 = vrot.slane %v956, %v1133
  %v1135 = vlaneseq
  %v1136 = vshrl.u32 %v1135, 7
  %v1137 = vsub.s32 0, %v1136
  %v1138 = vrot.slane %v997, %v1137
  %v1139 = vlaneseq
  %v1140 = vshrl.u32 %v1139, 7
  %v1141 = vsub.s32 0, %v1140
  %v1142 = vrot.slane %v999, %v1141
  %v1143 = vlaneseq
  %v1144 = vshrl.u32 %v1143, 7
  %v1145 = vsub.s32 0, %v1144
  %v1146 = vrot.slane %v1040, %v1145
  %v1147 = vlaneseq
  %v1148 = vshrl.u32 %v1147, 7
  %v1149 = vsub.s32 0, %v1148
  %v1150 = vrot.slane %v1042, %v1149
  %v1151 = vlaneseq
  %v1152 = vshrl.u32 %v1151, 7
  %v1153 = vsub.s32 0, %v1152
  %v1154 = vrot.slane %v1083, %v1153
  %v1155 = vlaneseq
  %v1156 = vshrl.u32 %v1155, 7
  %v1157 = vsub.s32 0, %v1156
  %v1158 = vrot.slane %v1085, %v1157
  %v1159 = vmul.f32 %v1098, %v1087
  %v1160 = vmul.f32 %v1102, %v1088
  %v1161 = vmul.f32 %v1106, %v1089
  %v1162 = vmul.f32 %v1110, %v1090
  %v1163 = vmul.f32 %v1114, %v1091
  %v1164 = vmul.f32 %v1118, %v1092
  %v1165 = vmul.f32 %v1122, %v1093
  %v1166 = vmul.f32 %v1126, %v1094
  %v1167 = vmul.f32 %v1130, %v1087
  %v1168 = vmul.f32 %v1134, %v1088
  %v1169 = vmul.f32 %v1138, %v1089
  %v1170 = vmul.f32 %v1142, %v1090
  %v1171 = vmul.f32 %v1146, %v1091
  %v1172 = vmul.f32 %v1150, %v1092
  %v1173 = vmul.f32 %v1154, %v1093
  %v1174 = vmul.f32 %v1158, %v1094
  %s1175 = scalar_lea.vmem %s5, 64
  %v1176 = vld [vmem:[%s1175] sm:$0xff]
  %v1177 = vld [vmem:[%s1175 + $0x8] sm:$0xff]
  %v1178 = vld [vmem:[%s1175 + $0x10] sm:$0xff]
  %v1179 = vld [vmem:[%s1175 + $0x18] sm:$0xff]
  %v1180 = vld [vmem:[%s1175 + $0x20] sm:$0xff]
  %v1181 = vld [vmem:[%s1175 + $0x28] sm:$0xff]
  %v1182 = vld [vmem:[%s1175 + $0x30] sm:$0xff]
  %v1183 = vld [vmem:[%s1175 + $0x38] sm:$0xff]
  %v1184 = vlaneseq
  %v1185 = vshrl.u32 %v1184, 7
  %v1186 = vsub.s32 1, %v1185
  %v1187 = vrot.slane %v950, %v1186
  %v1188 = vlaneseq
  %v1189 = vshrl.u32 %v1188, 7
  %v1190 = vsub.s32 1, %v1189
  %v1191 = vrot.slane %v952, %v1190
  %v1192 = vlaneseq
  %v1193 = vshrl.u32 %v1192, 7
  %v1194 = vsub.s32 1, %v1193
  %v1195 = vrot.slane %v993, %v1194
  %v1196 = vlaneseq
  %v1197 = vshrl.u32 %v1196, 7
  %v1198 = vsub.s32 1, %v1197
  %v1199 = vrot.slane %v995, %v1198
  %v1200 = vlaneseq
  %v1201 = vshrl.u32 %v1200, 7
  %v1202 = vsub.s32 1, %v1201
  %v1203 = vrot.slane %v1036, %v1202
  %v1204 = vlaneseq
  %v1205 = vshrl.u32 %v1204, 7
  %v1206 = vsub.s32 1, %v1205
  %v1207 = vrot.slane %v1038, %v1206
  %v1208 = vlaneseq
  %v1209 = vshrl.u32 %v1208, 7
  %v1210 = vsub.s32 1, %v1209
  %v1211 = vrot.slane %v1079, %v1210
  %v1212 = vlaneseq
  %v1213 = vshrl.u32 %v1212, 7
  %v1214 = vsub.s32 1, %v1213
  %v1215 = vrot.slane %v1081, %v1214
  %v1216 = vlaneseq
  %v1217 = vshrl.u32 %v1216, 7
  %v1218 = vsub.s32 1, %v1217
  %v1219 = vrot.slane %v954, %v1218
  %v1220 = vlaneseq
  %v1221 = vshrl.u32 %v1220, 7
  %v1222 = vsub.s32 1, %v1221
  %v1223 = vrot.slane %v956, %v1222
  %v1224 = vlaneseq
  %v1225 = vshrl.u32 %v1224, 7
  %v1226 = vsub.s32 1, %v1225
  %v1227 = vrot.slane %v997, %v1226
  %v1228 = vlaneseq
  %v1229 = vshrl.u32 %v1228, 7
  %v1230 = vsub.s32 1, %v1229
  %v1231 = vrot.slane %v999, %v1230
  %v1232 = vlaneseq
  %v1233 = vshrl.u32 %v1232, 7
  %v1234 = vsub.s32 1, %v1233
  %v1235 = vrot.slane %v1040, %v1234
  %v1236 = vlaneseq
  %v1237 = vshrl.u32 %v1236, 7
  %v1238 = vsub.s32 1, %v1237
  %v1239 = vrot.slane %v1042, %v1238
  %v1240 = vlaneseq
  %v1241 = vshrl.u32 %v1240, 7
  %v1242 = vsub.s32 1, %v1241
  %v1243 = vrot.slane %v1083, %v1242
  %v1244 = vlaneseq
  %v1245 = vshrl.u32 %v1244, 7
  %v1246 = vsub.s32 1, %v1245
  %v1247 = vrot.slane %v1085, %v1246
  %v1248 = vmul.f32 %v1187, %v1176
  %v1249 = vmul.f32 %v1191, %v1177
  %v1250 = vmul.f32 %v1195, %v1178
  %v1251 = vmul.f32 %v1199, %v1179
  %v1252 = vmul.f32 %v1203, %v1180
  %v1253 = vmul.f32 %v1207, %v1181
  %v1254 = vmul.f32 %v1211, %v1182
  %v1255 = vmul.f32 %v1215, %v1183
  %v1256 = vmul.f32 %v1219, %v1176
  %v1257 = vmul.f32 %v1223, %v1177
  %v1258 = vmul.f32 %v1227, %v1178
  %v1259 = vmul.f32 %v1231, %v1179
  %v1260 = vmul.f32 %v1235, %v1180
  %v1261 = vmul.f32 %v1239, %v1181
  %v1262 = vmul.f32 %v1243, %v1182
  %v1263 = vmul.f32 %v1247, %v1183
  %v1264 = vadd.f32 %v1159, %v1248
  %v1265 = vadd.f32 %v1160, %v1249
  %v1266 = vadd.f32 %v1161, %v1250
  %v1267 = vadd.f32 %v1162, %v1251
  %v1268 = vadd.f32 %v1163, %v1252
  %v1269 = vadd.f32 %v1164, %v1253
  %v1270 = vadd.f32 %v1165, %v1254
  %v1271 = vadd.f32 %v1166, %v1255
  %v1272 = vadd.f32 %v1167, %v1256
  %v1273 = vadd.f32 %v1168, %v1257
  %v1274 = vadd.f32 %v1169, %v1258
  %v1275 = vadd.f32 %v1170, %v1259
  %v1276 = vadd.f32 %v1171, %v1260
  %v1277 = vadd.f32 %v1172, %v1261
  %v1278 = vadd.f32 %v1173, %v1262
  %v1279 = vadd.f32 %v1174, %v1263
  %s1280 = scalar_lea.vmem %s5, 128
  %v1281 = vld [vmem:[%s1280] sm:$0xff]
  %v1282 = vld [vmem:[%s1280 + $0x8] sm:$0xff]
  %v1283 = vld [vmem:[%s1280 + $0x10] sm:$0xff]
  %v1284 = vld [vmem:[%s1280 + $0x18] sm:$0xff]
  %v1285 = vld [vmem:[%s1280 + $0x20] sm:$0xff]
  %v1286 = vld [vmem:[%s1280 + $0x28] sm:$0xff]
  %v1287 = vld [vmem:[%s1280 + $0x30] sm:$0xff]
  %v1288 = vld [vmem:[%s1280 + $0x38] sm:$0xff]
  %v1289 = vlaneseq
  %v1290 = vshrl.u32 %v1289, 7
  %v1291 = vsub.s32 2, %v1290
  %v1292 = vrot.slane %v950, %v1291
  %v1293 = vlaneseq
  %v1294 = vshrl.u32 %v1293, 7
  %v1295 = vsub.s32 2, %v1294
  %v1296 = vrot.slane %v952, %v1295
  %v1297 = vlaneseq
  %v1298 = vshrl.u32 %v1297, 7
  %v1299 = vsub.s32 2, %v1298
  %v1300 = vrot.slane %v993, %v1299
  %v1301 = vlaneseq
  %v1302 = vshrl.u32 %v1301, 7
  %v1303 = vsub.s32 2, %v1302
  %v1304 = vrot.slane %v995, %v1303
  %v1305 = vlaneseq
  %v1306 = vshrl.u32 %v1305, 7
  %v1307 = vsub.s32 2, %v1306
  %v1308 = vrot.slane %v1036, %v1307
  %v1309 = vlaneseq
  %v1310 = vshrl.u32 %v1309, 7
  %v1311 = vsub.s32 2, %v1310
  %v1312 = vrot.slane %v1038, %v1311
  %v1313 = vlaneseq
  %v1314 = vshrl.u32 %v1313, 7
  %v1315 = vsub.s32 2, %v1314
  %v1316 = vrot.slane %v1079, %v1315
  %v1317 = vlaneseq
  %v1318 = vshrl.u32 %v1317, 7
  %v1319 = vsub.s32 2, %v1318
  %v1320 = vrot.slane %v1081, %v1319
  %v1321 = vlaneseq
  %v1322 = vshrl.u32 %v1321, 7
  %v1323 = vsub.s32 2, %v1322
  %v1324 = vrot.slane %v954, %v1323
  %v1325 = vlaneseq
  %v1326 = vshrl.u32 %v1325, 7
  %v1327 = vsub.s32 2, %v1326
  %v1328 = vrot.slane %v956, %v1327
  %v1329 = vlaneseq
  %v1330 = vshrl.u32 %v1329, 7
  %v1331 = vsub.s32 2, %v1330
  %v1332 = vrot.slane %v997, %v1331
  %v1333 = vlaneseq
  %v1334 = vshrl.u32 %v1333, 7
  %v1335 = vsub.s32 2, %v1334
  %v1336 = vrot.slane %v999, %v1335
  %v1337 = vlaneseq
  %v1338 = vshrl.u32 %v1337, 7
  %v1339 = vsub.s32 2, %v1338
  %v1340 = vrot.slane %v1040, %v1339
  %v1341 = vlaneseq
  %v1342 = vshrl.u32 %v1341, 7
  %v1343 = vsub.s32 2, %v1342
  %v1344 = vrot.slane %v1042, %v1343
  %v1345 = vlaneseq
  %v1346 = vshrl.u32 %v1345, 7
  %v1347 = vsub.s32 2, %v1346
  %v1348 = vrot.slane %v1083, %v1347
  %v1349 = vlaneseq
  %v1350 = vshrl.u32 %v1349, 7
  %v1351 = vsub.s32 2, %v1350
  %v1352 = vrot.slane %v1085, %v1351
  %v1353 = vmul.f32 %v1292, %v1281
  %v1354 = vmul.f32 %v1296, %v1282
  %v1355 = vmul.f32 %v1300, %v1283
  %v1356 = vmul.f32 %v1304, %v1284
  %v1357 = vmul.f32 %v1308, %v1285
  %v1358 = vmul.f32 %v1312, %v1286
  %v1359 = vmul.f32 %v1316, %v1287
  %v1360 = vmul.f32 %v1320, %v1288
  %v1361 = vmul.f32 %v1324, %v1281
  %v1362 = vmul.f32 %v1328, %v1282
  %v1363 = vmul.f32 %v1332, %v1283
  %v1364 = vmul.f32 %v1336, %v1284
  %v1365 = vmul.f32 %v1340, %v1285
  %v1366 = vmul.f32 %v1344, %v1286
  %v1367 = vmul.f32 %v1348, %v1287
  %v1368 = vmul.f32 %v1352, %v1288
  %v1369 = vadd.f32 %v1264, %v1353
  %v1370 = vadd.f32 %v1265, %v1354
  %v1371 = vadd.f32 %v1266, %v1355
  %v1372 = vadd.f32 %v1267, %v1356
  %v1373 = vadd.f32 %v1268, %v1357
  %v1374 = vadd.f32 %v1269, %v1358
  %v1375 = vadd.f32 %v1270, %v1359
  %v1376 = vadd.f32 %v1271, %v1360
  %v1377 = vadd.f32 %v1272, %v1361
  %v1378 = vadd.f32 %v1273, %v1362
  %v1379 = vadd.f32 %v1274, %v1363
  %v1380 = vadd.f32 %v1275, %v1364
  %v1381 = vadd.f32 %v1276, %v1365
  %v1382 = vadd.f32 %v1277, %v1366
  %v1383 = vadd.f32 %v1278, %v1367
  %v1384 = vadd.f32 %v1279, %v1368
  %s1385 = scalar_lea.vmem %s5, 192
  %v1386 = vld [vmem:[%s1385] sm:$0xff]
  %v1387 = vld [vmem:[%s1385 + $0x8] sm:$0xff]
  %v1388 = vld [vmem:[%s1385 + $0x10] sm:$0xff]
  %v1389 = vld [vmem:[%s1385 + $0x18] sm:$0xff]
  %v1390 = vld [vmem:[%s1385 + $0x20] sm:$0xff]
  %v1391 = vld [vmem:[%s1385 + $0x28] sm:$0xff]
  %v1392 = vld [vmem:[%s1385 + $0x30] sm:$0xff]
  %v1393 = vld [vmem:[%s1385 + $0x38] sm:$0xff]
  %v1394 = vlaneseq
  %v1395 = vshrl.u32 %v1394, 7
  %v1396 = vsub.s32 3, %v1395
  %v1397 = vrot.slane %v950, %v1396
  %v1398 = vlaneseq
  %v1399 = vshrl.u32 %v1398, 7
  %v1400 = vsub.s32 3, %v1399
  %v1401 = vrot.slane %v952, %v1400
  %v1402 = vlaneseq
  %v1403 = vshrl.u32 %v1402, 7
  %v1404 = vsub.s32 3, %v1403
  %v1405 = vrot.slane %v993, %v1404
  %v1406 = vlaneseq
  %v1407 = vshrl.u32 %v1406, 7
  %v1408 = vsub.s32 3, %v1407
  %v1409 = vrot.slane %v995, %v1408
  %v1410 = vlaneseq
  %v1411 = vshrl.u32 %v1410, 7
  %v1412 = vsub.s32 3, %v1411
  %v1413 = vrot.slane %v1036, %v1412
  %v1414 = vlaneseq
  %v1415 = vshrl.u32 %v1414, 7
  %v1416 = vsub.s32 3, %v1415
  %v1417 = vrot.slane %v1038, %v1416
  %v1418 = vlaneseq
  %v1419 = vshrl.u32 %v1418, 7
  %v1420 = vsub.s32 3, %v1419
  %v1421 = vrot.slane %v1079, %v1420
  %v1422 = vlaneseq
  %v1423 = vshrl.u32 %v1422, 7
  %v1424 = vsub.s32 3, %v1423
  %v1425 = vrot.slane %v1081, %v1424
  %v1426 = vlaneseq
  %v1427 = vshrl.u32 %v1426, 7
  %v1428 = vsub.s32 3, %v1427
  %v1429 = vrot.slane %v954, %v1428
  %v1430 = vlaneseq
  %v1431 = vshrl.u32 %v1430, 7
  %v1432 = vsub.s32 3, %v1431
  %v1433 = vrot.slane %v956, %v1432
  %v1434 = vlaneseq
  %v1435 = vshrl.u32 %v1434, 7
  %v1436 = vsub.s32 3, %v1435
  %v1437 = vrot.slane %v997, %v1436
  %v1438 = vlaneseq
  %v1439 = vshrl.u32 %v1438, 7
  %v1440 = vsub.s32 3, %v1439
  %v1441 = vrot.slane %v999, %v1440
  %v1442 = vlaneseq
  %v1443 = vshrl.u32 %v1442, 7
  %v1444 = vsub.s32 3, %v1443
  %v1445 = vrot.slane %v1040, %v1444
  %v1446 = vlaneseq
  %v1447 = vshrl.u32 %v1446, 7
  %v1448 = vsub.s32 3, %v1447
  %v1449 = vrot.slane %v1042, %v1448
  %v1450 = vlaneseq
  %v1451 = vshrl.u32 %v1450, 7
  %v1452 = vsub.s32 3, %v1451
  %v1453 = vrot.slane %v1083, %v1452
  %v1454 = vlaneseq
  %v1455 = vshrl.u32 %v1454, 7
  %v1456 = vsub.s32 3, %v1455
  %v1457 = vrot.slane %v1085, %v1456
  %v1458 = vmul.f32 %v1397, %v1386
  %v1459 = vmul.f32 %v1401, %v1387
  %v1460 = vmul.f32 %v1405, %v1388
  %v1461 = vmul.f32 %v1409, %v1389
  %v1462 = vmul.f32 %v1413, %v1390
  %v1463 = vmul.f32 %v1417, %v1391
  %v1464 = vmul.f32 %v1421, %v1392
  %v1465 = vmul.f32 %v1425, %v1393
  %v1466 = vmul.f32 %v1429, %v1386
  %v1467 = vmul.f32 %v1433, %v1387
  %v1468 = vmul.f32 %v1437, %v1388
  %v1469 = vmul.f32 %v1441, %v1389
  %v1470 = vmul.f32 %v1445, %v1390
  %v1471 = vmul.f32 %v1449, %v1391
  %v1472 = vmul.f32 %v1453, %v1392
  %v1473 = vmul.f32 %v1457, %v1393
  %v1474 = vadd.f32 %v1369, %v1458
  %v1475 = vadd.f32 %v1370, %v1459
  %v1476 = vadd.f32 %v1371, %v1460
  %v1477 = vadd.f32 %v1372, %v1461
  %v1478 = vadd.f32 %v1373, %v1462
  %v1479 = vadd.f32 %v1374, %v1463
  %v1480 = vadd.f32 %v1375, %v1464
  %v1481 = vadd.f32 %v1376, %v1465
  %v1482 = vadd.f32 %v1377, %v1466
  %v1483 = vadd.f32 %v1378, %v1467
  %v1484 = vadd.f32 %v1379, %v1468
  %v1485 = vadd.f32 %v1380, %v1469
  %v1486 = vadd.f32 %v1381, %v1470
  %v1487 = vadd.f32 %v1382, %v1471
  %v1488 = vadd.f32 %v1383, %v1472
  %v1489 = vadd.f32 %v1384, %v1473
  %s1490 = scalar_lea.vmem %s5, 256
  %v1491 = vld [vmem:[%s1490] sm:$0xff]
  %v1492 = vld [vmem:[%s1490 + $0x8] sm:$0xff]
  %v1493 = vld [vmem:[%s1490 + $0x10] sm:$0xff]
  %v1494 = vld [vmem:[%s1490 + $0x18] sm:$0xff]
  %v1495 = vld [vmem:[%s1490 + $0x20] sm:$0xff]
  %v1496 = vld [vmem:[%s1490 + $0x28] sm:$0xff]
  %v1497 = vld [vmem:[%s1490 + $0x30] sm:$0xff]
  %v1498 = vld [vmem:[%s1490 + $0x38] sm:$0xff]
  %v1499 = vlaneseq
  %v1500 = vshrl.u32 %v1499, 7
  %v1501 = vsub.s32 4, %v1500
  %v1502 = vrot.slane %v950, %v1501
  %v1503 = vlaneseq
  %v1504 = vshrl.u32 %v1503, 7
  %v1505 = vsub.s32 4, %v1504
  %v1506 = vrot.slane %v952, %v1505
  %v1507 = vlaneseq
  %v1508 = vshrl.u32 %v1507, 7
  %v1509 = vsub.s32 4, %v1508
  %v1510 = vrot.slane %v993, %v1509
  %v1511 = vlaneseq
  %v1512 = vshrl.u32 %v1511, 7
  %v1513 = vsub.s32 4, %v1512
  %v1514 = vrot.slane %v995, %v1513
  %v1515 = vlaneseq
  %v1516 = vshrl.u32 %v1515, 7
  %v1517 = vsub.s32 4, %v1516
  %v1518 = vrot.slane %v1036, %v1517
  %v1519 = vlaneseq
  %v1520 = vshrl.u32 %v1519, 7
  %v1521 = vsub.s32 4, %v1520
  %v1522 = vrot.slane %v1038, %v1521
  %v1523 = vlaneseq
  %v1524 = vshrl.u32 %v1523, 7
  %v1525 = vsub.s32 4, %v1524
  %v1526 = vrot.slane %v1079, %v1525
  %v1527 = vlaneseq
  %v1528 = vshrl.u32 %v1527, 7
  %v1529 = vsub.s32 4, %v1528
  %v1530 = vrot.slane %v1081, %v1529
  %v1531 = vlaneseq
  %v1532 = vshrl.u32 %v1531, 7
  %v1533 = vsub.s32 4, %v1532
  %v1534 = vrot.slane %v954, %v1533
  %v1535 = vlaneseq
  %v1536 = vshrl.u32 %v1535, 7
  %v1537 = vsub.s32 4, %v1536
  %v1538 = vrot.slane %v956, %v1537
  %v1539 = vlaneseq
  %v1540 = vshrl.u32 %v1539, 7
  %v1541 = vsub.s32 4, %v1540
  %v1542 = vrot.slane %v997, %v1541
  %v1543 = vlaneseq
  %v1544 = vshrl.u32 %v1543, 7
  %v1545 = vsub.s32 4, %v1544
  %v1546 = vrot.slane %v999, %v1545
  %v1547 = vlaneseq
  %v1548 = vshrl.u32 %v1547, 7
  %v1549 = vsub.s32 4, %v1548
  %v1550 = vrot.slane %v1040, %v1549
  %v1551 = vlaneseq
  %v1552 = vshrl.u32 %v1551, 7
  %v1553 = vsub.s32 4, %v1552
  %v1554 = vrot.slane %v1042, %v1553
  %v1555 = vlaneseq
  %v1556 = vshrl.u32 %v1555, 7
  %v1557 = vsub.s32 4, %v1556
  %v1558 = vrot.slane %v1083, %v1557
  %v1559 = vlaneseq
  %v1560 = vshrl.u32 %v1559, 7
  %v1561 = vsub.s32 4, %v1560
  %v1562 = vrot.slane %v1085, %v1561
  %v1563 = vmul.f32 %v1502, %v1491
  %v1564 = vmul.f32 %v1506, %v1492
  %v1565 = vmul.f32 %v1510, %v1493
  %v1566 = vmul.f32 %v1514, %v1494
  %v1567 = vmul.f32 %v1518, %v1495
  %v1568 = vmul.f32 %v1522, %v1496
  %v1569 = vmul.f32 %v1526, %v1497
  %v1570 = vmul.f32 %v1530, %v1498
  %v1571 = vmul.f32 %v1534, %v1491
  %v1572 = vmul.f32 %v1538, %v1492
  %v1573 = vmul.f32 %v1542, %v1493
  %v1574 = vmul.f32 %v1546, %v1494
  %v1575 = vmul.f32 %v1550, %v1495
  %v1576 = vmul.f32 %v1554, %v1496
  %v1577 = vmul.f32 %v1558, %v1497
  %v1578 = vmul.f32 %v1562, %v1498
  %v1579 = vadd.f32 %v1474, %v1563
  %v1580 = vadd.f32 %v1475, %v1564
  %v1581 = vadd.f32 %v1476, %v1565
  %v1582 = vadd.f32 %v1477, %v1566
  %v1583 = vadd.f32 %v1478, %v1567
  %v1584 = vadd.f32 %v1479, %v1568
  %v1585 = vadd.f32 %v1480, %v1569
  %v1586 = vadd.f32 %v1481, %v1570
  %v1587 = vadd.f32 %v1482, %v1571
  %v1588 = vadd.f32 %v1483, %v1572
  %v1589 = vadd.f32 %v1484, %v1573
  %v1590 = vadd.f32 %v1485, %v1574
  %v1591 = vadd.f32 %v1486, %v1575
  %v1592 = vadd.f32 %v1487, %v1576
  %v1593 = vadd.f32 %v1488, %v1577
  %v1594 = vadd.f32 %v1489, %v1578
  %s1595 = scalar_lea.vmem %s5, 320
  %v1596 = vld [vmem:[%s1595] sm:$0xff]
  %v1597 = vld [vmem:[%s1595 + $0x8] sm:$0xff]
  %v1598 = vld [vmem:[%s1595 + $0x10] sm:$0xff]
  %v1599 = vld [vmem:[%s1595 + $0x18] sm:$0xff]
  %v1600 = vld [vmem:[%s1595 + $0x20] sm:$0xff]
  %v1601 = vld [vmem:[%s1595 + $0x28] sm:$0xff]
  %v1602 = vld [vmem:[%s1595 + $0x30] sm:$0xff]
  %v1603 = vld [vmem:[%s1595 + $0x38] sm:$0xff]
  %v1604 = vlaneseq
  %v1605 = vshrl.u32 %v1604, 7
  %v1606 = vsub.s32 5, %v1605
  %v1607 = vrot.slane %v950, %v1606
  %v1608 = vlaneseq
  %v1609 = vshrl.u32 %v1608, 7
  %v1610 = vsub.s32 5, %v1609
  %v1611 = vrot.slane %v952, %v1610
  %v1612 = vlaneseq
  %v1613 = vshrl.u32 %v1612, 7
  %v1614 = vsub.s32 5, %v1613
  %v1615 = vrot.slane %v993, %v1614
  %v1616 = vlaneseq
  %v1617 = vshrl.u32 %v1616, 7
  %v1618 = vsub.s32 5, %v1617
  %v1619 = vrot.slane %v995, %v1618
  %v1620 = vlaneseq
  %v1621 = vshrl.u32 %v1620, 7
  %v1622 = vsub.s32 5, %v1621
  %v1623 = vrot.slane %v1036, %v1622
  %v1624 = vlaneseq
  %v1625 = vshrl.u32 %v1624, 7
  %v1626 = vsub.s32 5, %v1625
  %v1627 = vrot.slane %v1038, %v1626
  %v1628 = vlaneseq
  %v1629 = vshrl.u32 %v1628, 7
  %v1630 = vsub.s32 5, %v1629
  %v1631 = vrot.slane %v1079, %v1630
  %v1632 = vlaneseq
  %v1633 = vshrl.u32 %v1632, 7
  %v1634 = vsub.s32 5, %v1633
  %v1635 = vrot.slane %v1081, %v1634
  %v1636 = vlaneseq
  %v1637 = vshrl.u32 %v1636, 7
  %v1638 = vsub.s32 5, %v1637
  %v1639 = vrot.slane %v954, %v1638
  %v1640 = vlaneseq
  %v1641 = vshrl.u32 %v1640, 7
  %v1642 = vsub.s32 5, %v1641
  %v1643 = vrot.slane %v956, %v1642
  %v1644 = vlaneseq
  %v1645 = vshrl.u32 %v1644, 7
  %v1646 = vsub.s32 5, %v1645
  %v1647 = vrot.slane %v997, %v1646
  %v1648 = vlaneseq
  %v1649 = vshrl.u32 %v1648, 7
  %v1650 = vsub.s32 5, %v1649
  %v1651 = vrot.slane %v999, %v1650
  %v1652 = vlaneseq
  %v1653 = vshrl.u32 %v1652, 7
  %v1654 = vsub.s32 5, %v1653
  %v1655 = vrot.slane %v1040, %v1654
  %v1656 = vlaneseq
  %v1657 = vshrl.u32 %v1656, 7
  %v1658 = vsub.s32 5, %v1657
  %v1659 = vrot.slane %v1042, %v1658
  %v1660 = vlaneseq
  %v1661 = vshrl.u32 %v1660, 7
  %v1662 = vsub.s32 5, %v1661
  %v1663 = vrot.slane %v1083, %v1662
  %v1664 = vlaneseq
  %v1665 = vshrl.u32 %v1664, 7
  %v1666 = vsub.s32 5, %v1665
  %v1667 = vrot.slane %v1085, %v1666
  %v1668 = vmul.f32 %v1607, %v1596
  %v1669 = vmul.f32 %v1611, %v1597
  %v1670 = vmul.f32 %v1615, %v1598
  %v1671 = vmul.f32 %v1619, %v1599
  %v1672 = vmul.f32 %v1623, %v1600
  %v1673 = vmul.f32 %v1627, %v1601
  %v1674 = vmul.f32 %v1631, %v1602
  %v1675 = vmul.f32 %v1635, %v1603
  %v1676 = vmul.f32 %v1639, %v1596
  %v1677 = vmul.f32 %v1643, %v1597
  %v1678 = vmul.f32 %v1647, %v1598
  %v1679 = vmul.f32 %v1651, %v1599
  %v1680 = vmul.f32 %v1655, %v1600
  %v1681 = vmul.f32 %v1659, %v1601
  %v1682 = vmul.f32 %v1663, %v1602
  %v1683 = vmul.f32 %v1667, %v1603
  %v1684 = vadd.f32 %v1579, %v1668
  %v1685 = vadd.f32 %v1580, %v1669
  %v1686 = vadd.f32 %v1581, %v1670
  %v1687 = vadd.f32 %v1582, %v1671
  %v1688 = vadd.f32 %v1583, %v1672
  %v1689 = vadd.f32 %v1584, %v1673
  %v1690 = vadd.f32 %v1585, %v1674
  %v1691 = vadd.f32 %v1586, %v1675
  %v1692 = vadd.f32 %v1587, %v1676
  %v1693 = vadd.f32 %v1588, %v1677
  %v1694 = vadd.f32 %v1589, %v1678
  %v1695 = vadd.f32 %v1590, %v1679
  %v1696 = vadd.f32 %v1591, %v1680
  %v1697 = vadd.f32 %v1592, %v1681
  %v1698 = vadd.f32 %v1593, %v1682
  %v1699 = vadd.f32 %v1594, %v1683
  %s1700 = scalar_lea.vmem %s5, 384
  %v1701 = vld [vmem:[%s1700] sm:$0xff]
  %v1702 = vld [vmem:[%s1700 + $0x8] sm:$0xff]
  %v1703 = vld [vmem:[%s1700 + $0x10] sm:$0xff]
  %v1704 = vld [vmem:[%s1700 + $0x18] sm:$0xff]
  %v1705 = vld [vmem:[%s1700 + $0x20] sm:$0xff]
  %v1706 = vld [vmem:[%s1700 + $0x28] sm:$0xff]
  %v1707 = vld [vmem:[%s1700 + $0x30] sm:$0xff]
  %v1708 = vld [vmem:[%s1700 + $0x38] sm:$0xff]
  %v1709 = vlaneseq
  %v1710 = vshrl.u32 %v1709, 7
  %v1711 = vsub.s32 6, %v1710
  %v1712 = vrot.slane %v950, %v1711
  %v1713 = vlaneseq
  %v1714 = vshrl.u32 %v1713, 7
  %v1715 = vsub.s32 6, %v1714
  %v1716 = vrot.slane %v952, %v1715
  %v1717 = vlaneseq
  %v1718 = vshrl.u32 %v1717, 7
  %v1719 = vsub.s32 6, %v1718
  %v1720 = vrot.slane %v993, %v1719
  %v1721 = vlaneseq
  %v1722 = vshrl.u32 %v1721, 7
  %v1723 = vsub.s32 6, %v1722
  %v1724 = vrot.slane %v995, %v1723
  %v1725 = vlaneseq
  %v1726 = vshrl.u32 %v1725, 7
  %v1727 = vsub.s32 6, %v1726
  %v1728 = vrot.slane %v1036, %v1727
  %v1729 = vlaneseq
  %v1730 = vshrl.u32 %v1729, 7
  %v1731 = vsub.s32 6, %v1730
  %v1732 = vrot.slane %v1038, %v1731
  %v1733 = vlaneseq
  %v1734 = vshrl.u32 %v1733, 7
  %v1735 = vsub.s32 6, %v1734
  %v1736 = vrot.slane %v1079, %v1735
  %v1737 = vlaneseq
  %v1738 = vshrl.u32 %v1737, 7
  %v1739 = vsub.s32 6, %v1738
  %v1740 = vrot.slane %v1081, %v1739
  %v1741 = vlaneseq
  %v1742 = vshrl.u32 %v1741, 7
  %v1743 = vsub.s32 6, %v1742
  %v1744 = vrot.slane %v954, %v1743
  %v1745 = vlaneseq
  %v1746 = vshrl.u32 %v1745, 7
  %v1747 = vsub.s32 6, %v1746
  %v1748 = vrot.slane %v956, %v1747
  %v1749 = vlaneseq
  %v1750 = vshrl.u32 %v1749, 7
  %v1751 = vsub.s32 6, %v1750
  %v1752 = vrot.slane %v997, %v1751
  %v1753 = vlaneseq
  %v1754 = vshrl.u32 %v1753, 7
  %v1755 = vsub.s32 6, %v1754
  %v1756 = vrot.slane %v999, %v1755
  %v1757 = vlaneseq
  %v1758 = vshrl.u32 %v1757, 7
  %v1759 = vsub.s32 6, %v1758
  %v1760 = vrot.slane %v1040, %v1759
  %v1761 = vlaneseq
  %v1762 = vshrl.u32 %v1761, 7
  %v1763 = vsub.s32 6, %v1762
  %v1764 = vrot.slane %v1042, %v1763
  %v1765 = vlaneseq
  %v1766 = vshrl.u32 %v1765, 7
  %v1767 = vsub.s32 6, %v1766
  %v1768 = vrot.slane %v1083, %v1767
  %v1769 = vlaneseq
  %v1770 = vshrl.u32 %v1769, 7
  %v1771 = vsub.s32 6, %v1770
  %v1772 = vrot.slane %v1085, %v1771
  %v1773 = vmul.f32 %v1712, %v1701
  %v1774 = vmul.f32 %v1716, %v1702
  %v1775 = vmul.f32 %v1720, %v1703
  %v1776 = vmul.f32 %v1724, %v1704
  %v1777 = vmul.f32 %v1728, %v1705
  %v1778 = vmul.f32 %v1732, %v1706
  %v1779 = vmul.f32 %v1736, %v1707
  %v1780 = vmul.f32 %v1740, %v1708
  %v1781 = vmul.f32 %v1744, %v1701
  %v1782 = vmul.f32 %v1748, %v1702
  %v1783 = vmul.f32 %v1752, %v1703
  %v1784 = vmul.f32 %v1756, %v1704
  %v1785 = vmul.f32 %v1760, %v1705
  %v1786 = vmul.f32 %v1764, %v1706
  %v1787 = vmul.f32 %v1768, %v1707
  %v1788 = vmul.f32 %v1772, %v1708
  %v1789 = vadd.f32 %v1684, %v1773
  %v1790 = vadd.f32 %v1685, %v1774
  %v1791 = vadd.f32 %v1686, %v1775
  %v1792 = vadd.f32 %v1687, %v1776
  %v1793 = vadd.f32 %v1688, %v1777
  %v1794 = vadd.f32 %v1689, %v1778
  %v1795 = vadd.f32 %v1690, %v1779
  %v1796 = vadd.f32 %v1691, %v1780
  %v1797 = vadd.f32 %v1692, %v1781
  %v1798 = vadd.f32 %v1693, %v1782
  %v1799 = vadd.f32 %v1694, %v1783
  %v1800 = vadd.f32 %v1695, %v1784
  %v1801 = vadd.f32 %v1696, %v1785
  %v1802 = vadd.f32 %v1697, %v1786
  %v1803 = vadd.f32 %v1698, %v1787
  %v1804 = vadd.f32 %v1699, %v1788
  %s1805 = scalar_lea.vmem %s5, 448
  %v1806 = vld [vmem:[%s1805] sm:$0xff]
  %v1807 = vld [vmem:[%s1805 + $0x8] sm:$0xff]
  %v1808 = vld [vmem:[%s1805 + $0x10] sm:$0xff]
  %v1809 = vld [vmem:[%s1805 + $0x18] sm:$0xff]
  %v1810 = vld [vmem:[%s1805 + $0x20] sm:$0xff]
  %v1811 = vld [vmem:[%s1805 + $0x28] sm:$0xff]
  %v1812 = vld [vmem:[%s1805 + $0x30] sm:$0xff]
  %v1813 = vld [vmem:[%s1805 + $0x38] sm:$0xff]
  %v1814 = vlaneseq
  %v1815 = vshrl.u32 %v1814, 7
  %v1816 = vsub.s32 7, %v1815
  %v1817 = vrot.slane %v950, %v1816
  %v1818 = vlaneseq
  %v1819 = vshrl.u32 %v1818, 7
  %v1820 = vsub.s32 7, %v1819
  %v1821 = vrot.slane %v952, %v1820
  %v1822 = vlaneseq
  %v1823 = vshrl.u32 %v1822, 7
  %v1824 = vsub.s32 7, %v1823
  %v1825 = vrot.slane %v993, %v1824
  %v1826 = vlaneseq
  %v1827 = vshrl.u32 %v1826, 7
  %v1828 = vsub.s32 7, %v1827
  %v1829 = vrot.slane %v995, %v1828
  %v1830 = vlaneseq
  %v1831 = vshrl.u32 %v1830, 7
  %v1832 = vsub.s32 7, %v1831
  %v1833 = vrot.slane %v1036, %v1832
  %v1834 = vlaneseq
  %v1835 = vshrl.u32 %v1834, 7
  %v1836 = vsub.s32 7, %v1835
  %v1837 = vrot.slane %v1038, %v1836
  %v1838 = vlaneseq
  %v1839 = vshrl.u32 %v1838, 7
  %v1840 = vsub.s32 7, %v1839
  %v1841 = vrot.slane %v1079, %v1840
  %v1842 = vlaneseq
  %v1843 = vshrl.u32 %v1842, 7
  %v1844 = vsub.s32 7, %v1843
  %v1845 = vrot.slane %v1081, %v1844
  %v1846 = vlaneseq
  %v1847 = vshrl.u32 %v1846, 7
  %v1848 = vsub.s32 7, %v1847
  %v1849 = vrot.slane %v954, %v1848
  %v1850 = vlaneseq
  %v1851 = vshrl.u32 %v1850, 7
  %v1852 = vsub.s32 7, %v1851
  %v1853 = vrot.slane %v956, %v1852
  %v1854 = vlaneseq
  %v1855 = vshrl.u32 %v1854, 7
  %v1856 = vsub.s32 7, %v1855
  %v1857 = vrot.slane %v997, %v1856
  %v1858 = vlaneseq
  %v1859 = vshrl.u32 %v1858, 7
  %v1860 = vsub.s32 7, %v1859
  %v1861 = vrot.slane %v999, %v1860
  %v1862 = vlaneseq
  %v1863 = vshrl.u32 %v1862, 7
  %v1864 = vsub.s32 7, %v1863
  %v1865 = vrot.slane %v1040, %v1864
  %v1866 = vlaneseq
  %v1867 = vshrl.u32 %v1866, 7
  %v1868 = vsub.s32 7, %v1867
  %v1869 = vrot.slane %v1042, %v1868
  %v1870 = vlaneseq
  %v1871 = vshrl.u32 %v1870, 7
  %v1872 = vsub.s32 7, %v1871
  %v1873 = vrot.slane %v1083, %v1872
  %v1874 = vlaneseq
  %v1875 = vshrl.u32 %v1874, 7
  %v1876 = vsub.s32 7, %v1875
  %v1877 = vrot.slane %v1085, %v1876
  %v1878 = vmul.f32 %v1817, %v1806
  %v1879 = vmul.f32 %v1821, %v1807
  %v1880 = vmul.f32 %v1825, %v1808
  %v1881 = vmul.f32 %v1829, %v1809
  %v1882 = vmul.f32 %v1833, %v1810
  %v1883 = vmul.f32 %v1837, %v1811
  %v1884 = vmul.f32 %v1841, %v1812
  %v1885 = vmul.f32 %v1845, %v1813
  %v1886 = vmul.f32 %v1849, %v1806
  %v1887 = vmul.f32 %v1853, %v1807
  %v1888 = vmul.f32 %v1857, %v1808
  %v1889 = vmul.f32 %v1861, %v1809
  %v1890 = vmul.f32 %v1865, %v1810
  %v1891 = vmul.f32 %v1869, %v1811
  %v1892 = vmul.f32 %v1873, %v1812
  %v1893 = vmul.f32 %v1877, %v1813
  %v1894 = vadd.f32 %v1789, %v1878
  %v1895 = vadd.f32 %v1790, %v1879
  %v1896 = vadd.f32 %v1791, %v1880
  %v1897 = vadd.f32 %v1792, %v1881
  %v1898 = vadd.f32 %v1793, %v1882
  %v1899 = vadd.f32 %v1794, %v1883
  %v1900 = vadd.f32 %v1795, %v1884
  %v1901 = vadd.f32 %v1796, %v1885
  %v1902 = vadd.f32 %v1797, %v1886
  %v1903 = vadd.f32 %v1798, %v1887
  %v1904 = vadd.f32 %v1799, %v1888
  %v1905 = vadd.f32 %v1800, %v1889
  %v1906 = vadd.f32 %v1801, %v1890
  %v1907 = vadd.f32 %v1802, %v1891
  %v1908 = vadd.f32 %v1803, %v1892
  %v1909 = vadd.f32 %v1804, %v1893
  %v1910 = vpack.c.bf16 %v1902, %v1894
  %v1911 = vpack.c.bf16 %v1903, %v1895
  %v1912 = vpack.c.bf16 %v1904, %v1896
  %v1913 = vpack.c.bf16 %v1905, %v1897
  %v1914 = vpack.c.bf16 %v1906, %v1898
  %v1915 = vpack.c.bf16 %v1907, %v1899
  %v1916 = vpack.c.bf16 %v1908, %v1900
  %v1917 = vpack.c.bf16 %v1909, %v1901
  %v1918 = vld [vmem:[%s4] sm:$0xff]
  %v1919 = vld [vmem:[%s4 + $0x8] sm:$0xff]
  %v1920 = vld [vmem:[%s4 + $0x10] sm:$0xff]
  %v1921 = vld [vmem:[%s4 + $0x18] sm:$0xff]
  %v1922 = vld [vmem:[%s4 + $0x20] sm:$0xff]
  %v1923 = vld [vmem:[%s4 + $0x28] sm:$0xff]
  %v1924 = vld [vmem:[%s4 + $0x30] sm:$0xff]
  %v1925 = vld [vmem:[%s4 + $0x38] sm:$0xff]
  %v1926 = vld [vmem:[%s4 + $0x40] sm:$0xff]
  %v1927 = vld [vmem:[%s4 + $0x48] sm:$0xff]
  %v1928 = vld [vmem:[%s4 + $0x50] sm:$0xff]
  %v1929 = vld [vmem:[%s4 + $0x58] sm:$0xff]
  %v1930 = vld [vmem:[%s4 + $0x60] sm:$0xff]
  %v1931 = vld [vmem:[%s4 + $0x68] sm:$0xff]
  %v1932 = vld [vmem:[%s4 + $0x70] sm:$0xff]
  %v1933 = vld [vmem:[%s4 + $0x78] sm:$0xff]
  %v1934 = vld [vmem:[%s4 + $0x80] sm:$0xff]
  %v1935 = vld [vmem:[%s4 + $0x88] sm:$0xff]
  %v1936 = vld [vmem:[%s4 + $0x90] sm:$0xff]
  %v1937 = vld [vmem:[%s4 + $0x98] sm:$0xff]
  %v1938 = vld [vmem:[%s4 + $0xa0] sm:$0xff]
  %v1939 = vld [vmem:[%s4 + $0xa8] sm:$0xff]
  %v1940 = vld [vmem:[%s4 + $0xb0] sm:$0xff]
  %v1941 = vld [vmem:[%s4 + $0xb8] sm:$0xff]
  %v1942 = vld [vmem:[%s4 + $0xc0] sm:$0xff]
  %v1943 = vld [vmem:[%s4 + $0xc8] sm:$0xff]
  %v1944 = vld [vmem:[%s4 + $0xd0] sm:$0xff]
  %v1945 = vld [vmem:[%s4 + $0xd8] sm:$0xff]
  %v1946 = vld [vmem:[%s4 + $0xe0] sm:$0xff]
  %v1947 = vld [vmem:[%s4 + $0xe8] sm:$0xff]
  %v1948 = vld [vmem:[%s4 + $0xf0] sm:$0xff]
  %v1949 = vld [vmem:[%s4 + $0xf8] sm:$0xff]
  %v1950 = vld [vmem:[%s4 + $0x100] sm:$0xff]
  %v1951 = vld [vmem:[%s4 + $0x108] sm:$0xff]
  %v1952 = vld [vmem:[%s4 + $0x110] sm:$0xff]
  %v1953 = vld [vmem:[%s4 + $0x118] sm:$0xff]
  %v1954 = vld [vmem:[%s4 + $0x120] sm:$0xff]
  %v1955 = vld [vmem:[%s4 + $0x128] sm:$0xff]
  %v1956 = vld [vmem:[%s4 + $0x130] sm:$0xff]
  %v1957 = vld [vmem:[%s4 + $0x138] sm:$0xff]
  %v1958 = vld [vmem:[%s4 + $0x140] sm:$0xff]
  %v1959 = vld [vmem:[%s4 + $0x148] sm:$0xff]
  %v1960 = vld [vmem:[%s4 + $0x150] sm:$0xff]
  %v1961 = vld [vmem:[%s4 + $0x158] sm:$0xff]
  %v1962 = vld [vmem:[%s4 + $0x160] sm:$0xff]
  %v1963 = vld [vmem:[%s4 + $0x168] sm:$0xff]
  %v1964 = vld [vmem:[%s4 + $0x170] sm:$0xff]
  %v1965 = vld [vmem:[%s4 + $0x178] sm:$0xff]
  %v1966 = vld [vmem:[%s4 + $0x180] sm:$0xff]
  %v1967 = vld [vmem:[%s4 + $0x188] sm:$0xff]
  %v1968 = vld [vmem:[%s4 + $0x190] sm:$0xff]
  %v1969 = vld [vmem:[%s4 + $0x198] sm:$0xff]
  %v1970 = vld [vmem:[%s4 + $0x1a0] sm:$0xff]
  %v1971 = vld [vmem:[%s4 + $0x1a8] sm:$0xff]
  %v1972 = vld [vmem:[%s4 + $0x1b0] sm:$0xff]
  %v1973 = vld [vmem:[%s4 + $0x1b8] sm:$0xff]
  %v1974 = vld [vmem:[%s4 + $0x1c0] sm:$0xff]
  %v1975 = vld [vmem:[%s4 + $0x1c8] sm:$0xff]
  %v1976 = vld [vmem:[%s4 + $0x1d0] sm:$0xff]
  %v1977 = vld [vmem:[%s4 + $0x1d8] sm:$0xff]
  %v1978 = vld [vmem:[%s4 + $0x1e0] sm:$0xff]
  %v1979 = vld [vmem:[%s4 + $0x1e8] sm:$0xff]
  %v1980 = vld [vmem:[%s4 + $0x1f0] sm:$0xff]
  %v1981 = vld [vmem:[%s4 + $0x1f8] sm:$0xff]
  %v1982 = vld [vmem:[%s4 + $0x200] sm:$0xff]
  %v1983 = vld [vmem:[%s4 + $0x208] sm:$0xff]
  %v1984 = vld [vmem:[%s4 + $0x210] sm:$0xff]
  %v1985 = vld [vmem:[%s4 + $0x218] sm:$0xff]
  %v1986 = vld [vmem:[%s4 + $0x220] sm:$0xff]
  %v1987 = vld [vmem:[%s4 + $0x228] sm:$0xff]
  %v1988 = vld [vmem:[%s4 + $0x230] sm:$0xff]
  %v1989 = vld [vmem:[%s4 + $0x238] sm:$0xff]
  %v1990 = vld [vmem:[%s4 + $0x240] sm:$0xff]
  %v1991 = vld [vmem:[%s4 + $0x248] sm:$0xff]
  %v1992 = vld [vmem:[%s4 + $0x250] sm:$0xff]
  %v1993 = vld [vmem:[%s4 + $0x258] sm:$0xff]
  %v1994 = vld [vmem:[%s4 + $0x260] sm:$0xff]
  %v1995 = vld [vmem:[%s4 + $0x268] sm:$0xff]
  %v1996 = vld [vmem:[%s4 + $0x270] sm:$0xff]
  %v1997 = vld [vmem:[%s4 + $0x278] sm:$0xff]
  %v1998 = vld [vmem:[%s4 + $0x280] sm:$0xff]
  %v1999 = vld [vmem:[%s4 + $0x288] sm:$0xff]
  %v2000 = vld [vmem:[%s4 + $0x290] sm:$0xff]
  %v2001 = vld [vmem:[%s4 + $0x298] sm:$0xff]
  %v2002 = vld [vmem:[%s4 + $0x2a0] sm:$0xff]
  %v2003 = vld [vmem:[%s4 + $0x2a8] sm:$0xff]
  %v2004 = vld [vmem:[%s4 + $0x2b0] sm:$0xff]
  %v2005 = vld [vmem:[%s4 + $0x2b8] sm:$0xff]
  %v2006 = vld [vmem:[%s4 + $0x2c0] sm:$0xff]
  %v2007 = vld [vmem:[%s4 + $0x2c8] sm:$0xff]
  %v2008 = vld [vmem:[%s4 + $0x2d0] sm:$0xff]
  %v2009 = vld [vmem:[%s4 + $0x2d8] sm:$0xff]
  %v2010 = vld [vmem:[%s4 + $0x2e0] sm:$0xff]
  %v2011 = vld [vmem:[%s4 + $0x2e8] sm:$0xff]
  %v2012 = vld [vmem:[%s4 + $0x2f0] sm:$0xff]
  %v2013 = vld [vmem:[%s4 + $0x2f8] sm:$0xff]
  %v2014 = vld [vmem:[%s4 + $0x300] sm:$0xff]
  %v2015 = vld [vmem:[%s4 + $0x308] sm:$0xff]
  %v2016 = vld [vmem:[%s4 + $0x310] sm:$0xff]
  %v2017 = vld [vmem:[%s4 + $0x318] sm:$0xff]
  %v2018 = vld [vmem:[%s4 + $0x320] sm:$0xff]
  %v2019 = vld [vmem:[%s4 + $0x328] sm:$0xff]
  %v2020 = vld [vmem:[%s4 + $0x330] sm:$0xff]
  %v2021 = vld [vmem:[%s4 + $0x338] sm:$0xff]
  %v2022 = vld [vmem:[%s4 + $0x340] sm:$0xff]
  %v2023 = vld [vmem:[%s4 + $0x348] sm:$0xff]
  %v2024 = vld [vmem:[%s4 + $0x350] sm:$0xff]
  %v2025 = vld [vmem:[%s4 + $0x358] sm:$0xff]
  %v2026 = vld [vmem:[%s4 + $0x360] sm:$0xff]
  %v2027 = vld [vmem:[%s4 + $0x368] sm:$0xff]
  %v2028 = vld [vmem:[%s4 + $0x370] sm:$0xff]
  %v2029 = vld [vmem:[%s4 + $0x378] sm:$0xff]
  %v2030 = vld [vmem:[%s4 + $0x380] sm:$0xff]
  %v2031 = vld [vmem:[%s4 + $0x388] sm:$0xff]
  %v2032 = vld [vmem:[%s4 + $0x390] sm:$0xff]
  %v2033 = vld [vmem:[%s4 + $0x398] sm:$0xff]
  %v2034 = vld [vmem:[%s4 + $0x3a0] sm:$0xff]
  %v2035 = vld [vmem:[%s4 + $0x3a8] sm:$0xff]
  %v2036 = vld [vmem:[%s4 + $0x3b0] sm:$0xff]
  %v2037 = vld [vmem:[%s4 + $0x3b8] sm:$0xff]
  %v2038 = vld [vmem:[%s4 + $0x3c0] sm:$0xff]
  %v2039 = vld [vmem:[%s4 + $0x3c8] sm:$0xff]
  %v2040 = vld [vmem:[%s4 + $0x3d0] sm:$0xff]
  %v2041 = vld [vmem:[%s4 + $0x3d8] sm:$0xff]
  %v2042 = vld [vmem:[%s4 + $0x3e0] sm:$0xff]
  %v2043 = vld [vmem:[%s4 + $0x3e8] sm:$0xff]
  %v2044 = vld [vmem:[%s4 + $0x3f0] sm:$0xff]
  %v2045 = vld [vmem:[%s4 + $0x3f8] sm:$0xff]
  %v2046 = vld [vmem:[%s6] sm:$0xff]
  %v2047 = vld [vmem:[%s6 + $0x8] sm:$0xff]
  %v2048 = vld [vmem:[%s7] sm:$0xff]
  %v2049 = vld [vmem:[%s7 + $0x8] sm:$0xff]
  %2051 = vset.pattern.permute.xlu0 0
  %2052 = vperm.xlu0 %2051, %v2048
  %v2053 = vpop.permute.xlu0 %2052
  %2056 = vset.pattern.permute.xlu0 0
  %2057 = vperm.xlu0 %2056, %v2049
  %v2058 = vpop.permute.xlu0 %2057
  %vm2060 = vcmask 130048
  %v2062 = vsel %vm2060, %v2046, 0
  %v2065 = vsel %vm2060, %v2047, 0
  %2067 = vmatprep.subr.mxu0 %v137
  %2068 = vmatpush1.msra.mxu0 %v135
  %2069 = vmatprep.subr.mxu0 %v143
  %2070 = vmatpush1.msra.mxu0 %v141
  %2071 = vmatprep.subr.mxu0 0.0
  %2072 = vmatpush1.msra.mxu0 0.0
  %2073 = vmatprep.subr.mxu0 0.0
  %2074 = vmatpush1.msra.mxu0 0.0
  %2075 = vmatprep.subr.mxu0 0.0
  %2076 = vmatpush1.msra.mxu0 0.0
  %2077 = vmatprep.subr.mxu0 0.0
  %2078 = vmatpush1.msra.mxu0 0.0
  %2079 = vmatprep.subr.mxu0 0.0
  %2080 = vmatpush1.msra.mxu0 0.0
  %2081 = vmatprep.subr.mxu0 0.0
  %2082 = vmatpush1.msra.mxu0 0.0
  %2083 = vmatprep.subr.mxu0 0.0
  %2084 = vmatpush1.msra.mxu0 0.0
  %2085 = vmatprep.subr.mxu0 0.0
  %2086 = vmatpush1.msra.mxu0 0.0
  %2087 = vmatprep.subr.mxu0 0.0
  %2088 = vmatpush1.msra.mxu0 0.0
  %2089 = vmatprep.subr.mxu0 0.0
  %2090 = vmatpush1.msra.mxu0 0.0
  %2091 = vmatprep.subr.mxu0 0.0
  %2092 = vmatpush1.msra.mxu0 0.0
  %2093 = vmatprep.subr.mxu0 0.0
  %2094 = vmatpush1.msra.mxu0 0.0
  %2095 = vmatprep.subr.mxu0 0.0
  %2096 = vmatpush1.msra.mxu0 0.0
  %2097 = vmatprep.subr.mxu0 0.0
  %2098 = vmatpush1.msra.mxu0 0.0
  %2099 = vmatprep.subr.mxu0 0.0
  %2100 = vmatpush1.msra.mxu0 0.0
  %2101 = vmatprep.subr.mxu0 0.0
  %2102 = vmatpush1.msra.mxu0 0.0
  %2103 = vmatprep.subr.mxu0 0.0
  %2104 = vmatpush1.msra.mxu0 0.0
  %2105 = vmatprep.subr.mxu0 0.0
  %2106 = vmatpush1.msra.mxu0 0.0
  %2107 = vmatprep.subr.mxu0 0.0
  %2108 = vmatpush1.msra.mxu0 0.0
  %2109 = vmatprep.subr.mxu0 0.0
  %2110 = vmatpush1.msra.mxu0 0.0
  %2111 = vmatprep.subr.mxu0 0.0
  %2112 = vmatpush1.msra.mxu0 0.0
  %2113 = vmatprep.subr.mxu0 0.0
  %2114 = vmatpush1.msra.mxu0 0.0
  %2115 = vmatprep.subr.mxu0 0.0
  %2116 = vmatpush1.msra.mxu0 0.0
  %2117 = vmatprep.subr.mxu0 0.0
  %2118 = vmatpush1.msra.mxu0 0.0
  %2119 = vmatprep.subr.mxu0 0.0
  %2120 = vmatpush1.msra.mxu0 0.0
  %2121 = vmatprep.subr.mxu0 0.0
  %2122 = vmatpush1.msra.mxu0 0.0
  %2123 = vmatprep.subr.mxu0 0.0
  %2124 = vmatpush1.msra.mxu0 0.0
  %2125 = vmatprep.subr.mxu0 0.0
  %2126 = vmatpush1.msra.mxu0 0.0
  %2127 = vmatprep.subr.mxu0 0.0
  %2128 = vmatpush1.msra.mxu0 0.0
  %2129 = vmatprep.subr.mxu0 0.0
  %2130 = vmatpush1.msra.mxu0 0.0
  %2131 = vmatprep.mubr.f32.mxu0 0.0
  %2132 = vmatmul.mubr.f32.gmra.mrb[0].mxu0 %v2062
  %v2133 = vpop.f32.mrb[0].mxu0
  %v2134 = vadd.f32 %v2053, %v2133
  %v2135 = vpop.f32.mrb[0].mxu0
  %v2136 = vadd.f32 %v2053, %v2135
  %2137 = vmatprep.mubr.f32.mxu0 0.0
  %2138 = vmatmul.mubr.f32.gmra.mrb[0].mxu0 %v2065
  %v2139 = vpop.f32.mrb[0].mxu0
  %v2140 = vadd.f32 %v2058, %v2139
  %v2141 = vpop.f32.mrb[0].mxu0
  %v2142 = vadd.f32 %v2058, %v2141
  %2143 = vdwg.mxu0
  %v2272 = vunpack.c.l.b16 %v1918
  %v2273 = vunpack.c.h.b16 %v1918
  %v2274 = vunpack.c.l.b16 %v1919
  %v2275 = vunpack.c.h.b16 %v1919
  %v2276 = vunpack.c.l.b16 %v1920
  %v2277 = vunpack.c.h.b16 %v1920
  %v2278 = vunpack.c.l.b16 %v1921
  %v2279 = vunpack.c.h.b16 %v1921
  %v2280 = vunpack.c.l.b16 %v1922
  %v2281 = vunpack.c.h.b16 %v1922
  %v2282 = vunpack.c.l.b16 %v1923
  %v2283 = vunpack.c.h.b16 %v1923
  %v2284 = vunpack.c.l.b16 %v1924
  %v2285 = vunpack.c.h.b16 %v1924
  %v2286 = vunpack.c.l.b16 %v1925
  %v2287 = vunpack.c.h.b16 %v1925
  %v2288 = vunpack.c.l.b16 %v1926
  %v2289 = vunpack.c.h.b16 %v1926
  %v2290 = vunpack.c.l.b16 %v1927
  %v2291 = vunpack.c.h.b16 %v1927
  %v2292 = vunpack.c.l.b16 %v1928
  %v2293 = vunpack.c.h.b16 %v1928
  %v2294 = vunpack.c.l.b16 %v1929
  %v2295 = vunpack.c.h.b16 %v1929
  %v2296 = vunpack.c.l.b16 %v1930
  %v2297 = vunpack.c.h.b16 %v1930
  %v2298 = vunpack.c.l.b16 %v1931
  %v2299 = vunpack.c.h.b16 %v1931
  %v2300 = vunpack.c.l.b16 %v1932
  %v2301 = vunpack.c.h.b16 %v1932
  %v2302 = vunpack.c.l.b16 %v1933
  %v2303 = vunpack.c.h.b16 %v1933
  %v2304 = vunpack.c.l.b16 %v1934
  %v2305 = vunpack.c.h.b16 %v1934
  %v2306 = vunpack.c.l.b16 %v1935
  %v2307 = vunpack.c.h.b16 %v1935
  %v2308 = vunpack.c.l.b16 %v1936
  %v2309 = vunpack.c.h.b16 %v1936
  %v2310 = vunpack.c.l.b16 %v1937
  %v2311 = vunpack.c.h.b16 %v1937
  %v2312 = vunpack.c.l.b16 %v1938
  %v2313 = vunpack.c.h.b16 %v1938
  %v2314 = vunpack.c.l.b16 %v1939
  %v2315 = vunpack.c.h.b16 %v1939
  %v2316 = vunpack.c.l.b16 %v1940
  %v2317 = vunpack.c.h.b16 %v1940
  %v2318 = vunpack.c.l.b16 %v1941
  %v2319 = vunpack.c.h.b16 %v1941
  %v2320 = vunpack.c.l.b16 %v1942
  %v2321 = vunpack.c.h.b16 %v1942
  %v2322 = vunpack.c.l.b16 %v1943
  %v2323 = vunpack.c.h.b16 %v1943
  %v2324 = vunpack.c.l.b16 %v1944
  %v2325 = vunpack.c.h.b16 %v1944
  %v2326 = vunpack.c.l.b16 %v1945
  %v2327 = vunpack.c.h.b16 %v1945
  %v2328 = vunpack.c.l.b16 %v1946
  %v2329 = vunpack.c.h.b16 %v1946
  %v2330 = vunpack.c.l.b16 %v1947
  %v2331 = vunpack.c.h.b16 %v1947
  %v2332 = vunpack.c.l.b16 %v1948
  %v2333 = vunpack.c.h.b16 %v1948
  %v2334 = vunpack.c.l.b16 %v1949
  %v2335 = vunpack.c.h.b16 %v1949
  %v2336 = vunpack.c.l.b16 %v1950
  %v2337 = vunpack.c.h.b16 %v1950
  %v2338 = vunpack.c.l.b16 %v1951
  %v2339 = vunpack.c.h.b16 %v1951
  %v2340 = vunpack.c.l.b16 %v1952
  %v2341 = vunpack.c.h.b16 %v1952
  %v2342 = vunpack.c.l.b16 %v1953
  %v2343 = vunpack.c.h.b16 %v1953
  %v2344 = vunpack.c.l.b16 %v1954
  %v2345 = vunpack.c.h.b16 %v1954
  %v2346 = vunpack.c.l.b16 %v1955
  %v2347 = vunpack.c.h.b16 %v1955
  %v2348 = vunpack.c.l.b16 %v1956
  %v2349 = vunpack.c.h.b16 %v1956
  %v2350 = vunpack.c.l.b16 %v1957
  %v2351 = vunpack.c.h.b16 %v1957
  %v2352 = vunpack.c.l.b16 %v1958
  %v2353 = vunpack.c.h.b16 %v1958
  %v2354 = vunpack.c.l.b16 %v1959
  %v2355 = vunpack.c.h.b16 %v1959
  %v2356 = vunpack.c.l.b16 %v1960
  %v2357 = vunpack.c.h.b16 %v1960
  %v2358 = vunpack.c.l.b16 %v1961
  %v2359 = vunpack.c.h.b16 %v1961
  %v2360 = vunpack.c.l.b16 %v1962
  %v2361 = vunpack.c.h.b16 %v1962
  %v2362 = vunpack.c.l.b16 %v1963
  %v2363 = vunpack.c.h.b16 %v1963
  %v2364 = vunpack.c.l.b16 %v1964
  %v2365 = vunpack.c.h.b16 %v1964
  %v2366 = vunpack.c.l.b16 %v1965
  %v2367 = vunpack.c.h.b16 %v1965
  %v2368 = vunpack.c.l.b16 %v1966
  %v2369 = vunpack.c.h.b16 %v1966
  %v2370 = vunpack.c.l.b16 %v1967
  %v2371 = vunpack.c.h.b16 %v1967
  %v2372 = vunpack.c.l.b16 %v1968
  %v2373 = vunpack.c.h.b16 %v1968
  %v2374 = vunpack.c.l.b16 %v1969
  %v2375 = vunpack.c.h.b16 %v1969
  %v2376 = vunpack.c.l.b16 %v1970
  %v2377 = vunpack.c.h.b16 %v1970
  %v2378 = vunpack.c.l.b16 %v1971
  %v2379 = vunpack.c.h.b16 %v1971
  %v2380 = vunpack.c.l.b16 %v1972
  %v2381 = vunpack.c.h.b16 %v1972
  %v2382 = vunpack.c.l.b16 %v1973
  %v2383 = vunpack.c.h.b16 %v1973
  %v2384 = vunpack.c.l.b16 %v1974
  %v2385 = vunpack.c.h.b16 %v1974
  %v2386 = vunpack.c.l.b16 %v1975
  %v2387 = vunpack.c.h.b16 %v1975
  %v2388 = vunpack.c.l.b16 %v1976
  %v2389 = vunpack.c.h.b16 %v1976
  %v2390 = vunpack.c.l.b16 %v1977
  %v2391 = vunpack.c.h.b16 %v1977
  %v2392 = vunpack.c.l.b16 %v1978
  %v2393 = vunpack.c.h.b16 %v1978
  %v2394 = vunpack.c.l.b16 %v1979
  %v2395 = vunpack.c.h.b16 %v1979
  %v2396 = vunpack.c.l.b16 %v1980
  %v2397 = vunpack.c.h.b16 %v1980
  %v2398 = vunpack.c.l.b16 %v1981
  %v2399 = vunpack.c.h.b16 %v1981
  %v2400 = vunpack.c.l.b16 %v1982
  %v2401 = vunpack.c.h.b16 %v1982
  %v2402 = vunpack.c.l.b16 %v1983
  %v2403 = vunpack.c.h.b16 %v1983
  %v2404 = vunpack.c.l.b16 %v1984
  %v2405 = vunpack.c.h.b16 %v1984
  %v2406 = vunpack.c.l.b16 %v1985
  %v2407 = vunpack.c.h.b16 %v1985
  %v2408 = vunpack.c.l.b16 %v1986
  %v2409 = vunpack.c.h.b16 %v1986
  %v2410 = vunpack.c.l.b16 %v1987
  %v2411 = vunpack.c.h.b16 %v1987
  %v2412 = vunpack.c.l.b16 %v1988
  %v2413 = vunpack.c.h.b16 %v1988
  %v2414 = vunpack.c.l.b16 %v1989
  %v2415 = vunpack.c.h.b16 %v1989
  %v2416 = vunpack.c.l.b16 %v1990
  %v2417 = vunpack.c.h.b16 %v1990
  %v2418 = vunpack.c.l.b16 %v1991
  %v2419 = vunpack.c.h.b16 %v1991
  %v2420 = vunpack.c.l.b16 %v1992
  %v2421 = vunpack.c.h.b16 %v1992
  %v2422 = vunpack.c.l.b16 %v1993
  %v2423 = vunpack.c.h.b16 %v1993
  %v2424 = vunpack.c.l.b16 %v1994
  %v2425 = vunpack.c.h.b16 %v1994
  %v2426 = vunpack.c.l.b16 %v1995
  %v2427 = vunpack.c.h.b16 %v1995
  %v2428 = vunpack.c.l.b16 %v1996
  %v2429 = vunpack.c.h.b16 %v1996
  %v2430 = vunpack.c.l.b16 %v1997
  %v2431 = vunpack.c.h.b16 %v1997
  %v2432 = vunpack.c.l.b16 %v1998
  %v2433 = vunpack.c.h.b16 %v1998
  %v2434 = vunpack.c.l.b16 %v1999
  %v2435 = vunpack.c.h.b16 %v1999
  %v2436 = vunpack.c.l.b16 %v2000
  %v2437 = vunpack.c.h.b16 %v2000
  %v2438 = vunpack.c.l.b16 %v2001
  %v2439 = vunpack.c.h.b16 %v2001
  %v2440 = vunpack.c.l.b16 %v2002
  %v2441 = vunpack.c.h.b16 %v2002
  %v2442 = vunpack.c.l.b16 %v2003
  %v2443 = vunpack.c.h.b16 %v2003
  %v2444 = vunpack.c.l.b16 %v2004
  %v2445 = vunpack.c.h.b16 %v2004
  %v2446 = vunpack.c.l.b16 %v2005
  %v2447 = vunpack.c.h.b16 %v2005
  %v2448 = vunpack.c.l.b16 %v2006
  %v2449 = vunpack.c.h.b16 %v2006
  %v2450 = vunpack.c.l.b16 %v2007
  %v2451 = vunpack.c.h.b16 %v2007
  %v2452 = vunpack.c.l.b16 %v2008
  %v2453 = vunpack.c.h.b16 %v2008
  %v2454 = vunpack.c.l.b16 %v2009
  %v2455 = vunpack.c.h.b16 %v2009
  %v2456 = vunpack.c.l.b16 %v2010
  %v2457 = vunpack.c.h.b16 %v2010
  %v2458 = vunpack.c.l.b16 %v2011
  %v2459 = vunpack.c.h.b16 %v2011
  %v2460 = vunpack.c.l.b16 %v2012
  %v2461 = vunpack.c.h.b16 %v2012
  %v2462 = vunpack.c.l.b16 %v2013
  %v2463 = vunpack.c.h.b16 %v2013
  %v2464 = vunpack.c.l.b16 %v2014
  %v2465 = vunpack.c.h.b16 %v2014
  %v2466 = vunpack.c.l.b16 %v2015
  %v2467 = vunpack.c.h.b16 %v2015
  %v2468 = vunpack.c.l.b16 %v2016
  %v2469 = vunpack.c.h.b16 %v2016
  %v2470 = vunpack.c.l.b16 %v2017
  %v2471 = vunpack.c.h.b16 %v2017
  %v2472 = vunpack.c.l.b16 %v2018
  %v2473 = vunpack.c.h.b16 %v2018
  %v2474 = vunpack.c.l.b16 %v2019
  %v2475 = vunpack.c.h.b16 %v2019
  %v2476 = vunpack.c.l.b16 %v2020
  %v2477 = vunpack.c.h.b16 %v2020
  %v2478 = vunpack.c.l.b16 %v2021
  %v2479 = vunpack.c.h.b16 %v2021
  %v2480 = vunpack.c.l.b16 %v2022
  %v2481 = vunpack.c.h.b16 %v2022
  %v2482 = vunpack.c.l.b16 %v2023
  %v2483 = vunpack.c.h.b16 %v2023
  %v2484 = vunpack.c.l.b16 %v2024
  %v2485 = vunpack.c.h.b16 %v2024
  %v2486 = vunpack.c.l.b16 %v2025
  %v2487 = vunpack.c.h.b16 %v2025
  %v2488 = vunpack.c.l.b16 %v2026
  %v2489 = vunpack.c.h.b16 %v2026
  %v2490 = vunpack.c.l.b16 %v2027
  %v2491 = vunpack.c.h.b16 %v2027
  %v2492 = vunpack.c.l.b16 %v2028
  %v2493 = vunpack.c.h.b16 %v2028
  %v2494 = vunpack.c.l.b16 %v2029
  %v2495 = vunpack.c.h.b16 %v2029
  %v2496 = vunpack.c.l.b16 %v2030
  %v2497 = vunpack.c.h.b16 %v2030
  %v2498 = vunpack.c.l.b16 %v2031
  %v2499 = vunpack.c.h.b16 %v2031
  %v2500 = vunpack.c.l.b16 %v2032
  %v2501 = vunpack.c.h.b16 %v2032
  %v2502 = vunpack.c.l.b16 %v2033
  %v2503 = vunpack.c.h.b16 %v2033
  %v2504 = vunpack.c.l.b16 %v2034
  %v2505 = vunpack.c.h.b16 %v2034
  %v2506 = vunpack.c.l.b16 %v2035
  %v2507 = vunpack.c.h.b16 %v2035
  %v2508 = vunpack.c.l.b16 %v2036
  %v2509 = vunpack.c.h.b16 %v2036
  %v2510 = vunpack.c.l.b16 %v2037
  %v2511 = vunpack.c.h.b16 %v2037
  %v2512 = vunpack.c.l.b16 %v2038
  %v2513 = vunpack.c.h.b16 %v2038
  %v2514 = vunpack.c.l.b16 %v2039
  %v2515 = vunpack.c.h.b16 %v2039
  %v2516 = vunpack.c.l.b16 %v2040
  %v2517 = vunpack.c.h.b16 %v2040
  %v2518 = vunpack.c.l.b16 %v2041
  %v2519 = vunpack.c.h.b16 %v2041
  %v2520 = vunpack.c.l.b16 %v2042
  %v2521 = vunpack.c.h.b16 %v2042
  %v2522 = vunpack.c.l.b16 %v2043
  %v2523 = vunpack.c.h.b16 %v2043
  %v2524 = vunpack.c.l.b16 %v2044
  %v2525 = vunpack.c.h.b16 %v2044
  %v2526 = vunpack.c.l.b16 %v2045
  %v2527 = vunpack.c.h.b16 %v2045
  %v2528 = vpack.c.b16 %v2274, %v2272
  %v2529 = vpack.c.b16 %v2275, %v2273
  %v2530 = vpack.c.b16 %v2278, %v2276
  %v2531 = vpack.c.b16 %v2279, %v2277
  %v2532 = vpack.c.b16 %v2282, %v2280
  %v2533 = vpack.c.b16 %v2283, %v2281
  %v2534 = vpack.c.b16 %v2286, %v2284
  %v2535 = vpack.c.b16 %v2287, %v2285
  %v2536 = vpack.c.b16 %v2290, %v2288
  %v2537 = vpack.c.b16 %v2291, %v2289
  %v2538 = vpack.c.b16 %v2294, %v2292
  %v2539 = vpack.c.b16 %v2295, %v2293
  %v2540 = vpack.c.b16 %v2298, %v2296
  %v2541 = vpack.c.b16 %v2299, %v2297
  %v2542 = vpack.c.b16 %v2302, %v2300
  %v2543 = vpack.c.b16 %v2303, %v2301
  %v2544 = vpack.c.b16 %v2306, %v2304
  %v2545 = vpack.c.b16 %v2307, %v2305
  %v2546 = vpack.c.b16 %v2310, %v2308
  %v2547 = vpack.c.b16 %v2311, %v2309
  %v2548 = vpack.c.b16 %v2314, %v2312
  %v2549 = vpack.c.b16 %v2315, %v2313
  %v2550 = vpack.c.b16 %v2318, %v2316
  %v2551 = vpack.c.b16 %v2319, %v2317
  %v2552 = vpack.c.b16 %v2322, %v2320
  %v2553 = vpack.c.b16 %v2323, %v2321
  %v2554 = vpack.c.b16 %v2326, %v2324
  %v2555 = vpack.c.b16 %v2327, %v2325
  %v2556 = vpack.c.b16 %v2330, %v2328
  %v2557 = vpack.c.b16 %v2331, %v2329
  %v2558 = vpack.c.b16 %v2334, %v2332
  %v2559 = vpack.c.b16 %v2335, %v2333
  %v2560 = vpack.c.b16 %v2338, %v2336
  %v2561 = vpack.c.b16 %v2339, %v2337
  %v2562 = vpack.c.b16 %v2342, %v2340
  %v2563 = vpack.c.b16 %v2343, %v2341
  %v2564 = vpack.c.b16 %v2346, %v2344
  %v2565 = vpack.c.b16 %v2347, %v2345
  %v2566 = vpack.c.b16 %v2350, %v2348
  %v2567 = vpack.c.b16 %v2351, %v2349
  %v2568 = vpack.c.b16 %v2354, %v2352
  %v2569 = vpack.c.b16 %v2355, %v2353
  %v2570 = vpack.c.b16 %v2358, %v2356
  %v2571 = vpack.c.b16 %v2359, %v2357
  %v2572 = vpack.c.b16 %v2362, %v2360
  %v2573 = vpack.c.b16 %v2363, %v2361
  %v2574 = vpack.c.b16 %v2366, %v2364
  %v2575 = vpack.c.b16 %v2367, %v2365
  %v2576 = vpack.c.b16 %v2370, %v2368
  %v2577 = vpack.c.b16 %v2371, %v2369
  %v2578 = vpack.c.b16 %v2374, %v2372
  %v2579 = vpack.c.b16 %v2375, %v2373
  %v2580 = vpack.c.b16 %v2378, %v2376
  %v2581 = vpack.c.b16 %v2379, %v2377
  %v2582 = vpack.c.b16 %v2382, %v2380
  %v2583 = vpack.c.b16 %v2383, %v2381
  %v2584 = vpack.c.b16 %v2386, %v2384
  %v2585 = vpack.c.b16 %v2387, %v2385
  %v2586 = vpack.c.b16 %v2390, %v2388
  %v2587 = vpack.c.b16 %v2391, %v2389
  %v2588 = vpack.c.b16 %v2394, %v2392
  %v2589 = vpack.c.b16 %v2395, %v2393
  %v2590 = vpack.c.b16 %v2398, %v2396
  %v2591 = vpack.c.b16 %v2399, %v2397
  %v2592 = vpack.c.b16 %v2402, %v2400
  %v2593 = vpack.c.b16 %v2403, %v2401
  %v2594 = vpack.c.b16 %v2406, %v2404
  %v2595 = vpack.c.b16 %v2407, %v2405
  %v2596 = vpack.c.b16 %v2410, %v2408
  %v2597 = vpack.c.b16 %v2411, %v2409
  %v2598 = vpack.c.b16 %v2414, %v2412
  %v2599 = vpack.c.b16 %v2415, %v2413
  %v2600 = vpack.c.b16 %v2418, %v2416
  %v2601 = vpack.c.b16 %v2419, %v2417
  %v2602 = vpack.c.b16 %v2422, %v2420
  %v2603 = vpack.c.b16 %v2423, %v2421
  %v2604 = vpack.c.b16 %v2426, %v2424
  %v2605 = vpack.c.b16 %v2427, %v2425
  %v2606 = vpack.c.b16 %v2430, %v2428
  %v2607 = vpack.c.b16 %v2431, %v2429
  %v2608 = vpack.c.b16 %v2434, %v2432
  %v2609 = vpack.c.b16 %v2435, %v2433
  %v2610 = vpack.c.b16 %v2438, %v2436
  %v2611 = vpack.c.b16 %v2439, %v2437
  %v2612 = vpack.c.b16 %v2442, %v2440
  %v2613 = vpack.c.b16 %v2443, %v2441
  %v2614 = vpack.c.b16 %v2446, %v2444
  %v2615 = vpack.c.b16 %v2447, %v2445
  %v2616 = vpack.c.b16 %v2450, %v2448
  %v2617 = vpack.c.b16 %v2451, %v2449
  %v2618 = vpack.c.b16 %v2454, %v2452
  %v2619 = vpack.c.b16 %v2455, %v2453
  %v2620 = vpack.c.b16 %v2458, %v2456
  %v2621 = vpack.c.b16 %v2459, %v2457
  %v2622 = vpack.c.b16 %v2462, %v2460
  %v2623 = vpack.c.b16 %v2463, %v2461
  %v2624 = vpack.c.b16 %v2466, %v2464
  %v2625 = vpack.c.b16 %v2467, %v2465
  %v2626 = vpack.c.b16 %v2470, %v2468
  %v2627 = vpack.c.b16 %v2471, %v2469
  %v2628 = vpack.c.b16 %v2474, %v2472
  %v2629 = vpack.c.b16 %v2475, %v2473
  %v2630 = vpack.c.b16 %v2478, %v2476
  %v2631 = vpack.c.b16 %v2479, %v2477
  %v2632 = vpack.c.b16 %v2482, %v2480
  %v2633 = vpack.c.b16 %v2483, %v2481
  %v2634 = vpack.c.b16 %v2486, %v2484
  %v2635 = vpack.c.b16 %v2487, %v2485
  %v2636 = vpack.c.b16 %v2490, %v2488
  %v2637 = vpack.c.b16 %v2491, %v2489
  %v2638 = vpack.c.b16 %v2494, %v2492
  %v2639 = vpack.c.b16 %v2495, %v2493
  %v2640 = vpack.c.b16 %v2498, %v2496
  %v2641 = vpack.c.b16 %v2499, %v2497
  %v2642 = vpack.c.b16 %v2502, %v2500
  %v2643 = vpack.c.b16 %v2503, %v2501
  %v2644 = vpack.c.b16 %v2506, %v2504
  %v2645 = vpack.c.b16 %v2507, %v2505
  %v2646 = vpack.c.b16 %v2510, %v2508
  %v2647 = vpack.c.b16 %v2511, %v2509
  %v2648 = vpack.c.b16 %v2514, %v2512
  %v2649 = vpack.c.b16 %v2515, %v2513
  %v2650 = vpack.c.b16 %v2518, %v2516
  %v2651 = vpack.c.b16 %v2519, %v2517
  %v2652 = vpack.c.b16 %v2522, %v2520
  %v2653 = vpack.c.b16 %v2523, %v2521
  %v2654 = vpack.c.b16 %v2526, %v2524
  %v2655 = vpack.c.b16 %v2527, %v2525
  %2784 = vmatprep.subr.bf16.mxu0 %v2529
  %2785 = vmatpush1.bf16.msra.mxu0 %v2528
  %2786 = vmatprep.subr.bf16.mxu0 %v2531
  %2787 = vmatpush1.bf16.msra.mxu0 %v2530
  %2788 = vmatprep.subr.bf16.mxu0 %v2533
  %2789 = vmatpush1.bf16.msra.mxu0 %v2532
  %2790 = vmatprep.subr.bf16.mxu0 %v2535
  %2791 = vmatpush1.bf16.msra.mxu0 %v2534
  %2792 = vmatprep.subr.bf16.mxu0 %v2537
  %2793 = vmatpush1.bf16.msra.mxu0 %v2536
  %2794 = vmatprep.subr.bf16.mxu0 %v2539
  %2795 = vmatpush1.bf16.msra.mxu0 %v2538
  %2796 = vmatprep.subr.bf16.mxu0 %v2541
  %2797 = vmatpush1.bf16.msra.mxu0 %v2540
  %2798 = vmatprep.subr.bf16.mxu0 %v2543
  %2799 = vmatpush1.bf16.msra.mxu0 %v2542
  %2800 = vmatprep.subr.bf16.mxu0 %v2545
  %2801 = vmatpush1.bf16.msra.mxu0 %v2544
  %2802 = vmatprep.subr.bf16.mxu0 %v2547
  %2803 = vmatpush1.bf16.msra.mxu0 %v2546
  %2804 = vmatprep.subr.bf16.mxu0 %v2549
  %2805 = vmatpush1.bf16.msra.mxu0 %v2548
  %2806 = vmatprep.subr.bf16.mxu0 %v2551
  %2807 = vmatpush1.bf16.msra.mxu0 %v2550
  %2808 = vmatprep.subr.bf16.mxu0 %v2553
  %2809 = vmatpush1.bf16.msra.mxu0 %v2552
  %2810 = vmatprep.subr.bf16.mxu0 %v2555
  %2811 = vmatpush1.bf16.msra.mxu0 %v2554
  %2812 = vmatprep.subr.bf16.mxu0 %v2557
  %2813 = vmatpush1.bf16.msra.mxu0 %v2556
  %2814 = vmatprep.subr.bf16.mxu0 %v2559
  %2815 = vmatpush1.bf16.msra.mxu0 %v2558
  %2816 = vmatprep.mubr.bf16.mxu0 %v1911
  %2817 = vmatmul.mubr.bf16.gmra.mrb[0].mxu0 %v1910
  %v2818 = vpop.f32.mrb[0].mxu0
  %v2819 = vadd.f32 %v2134, %v2818
  %v2820 = vpop.f32.mrb[0].mxu0
  %v2821 = vadd.f32 %v2136, %v2820
  %v2822 = vpop.f32.mrb[0].mxu0
  %v2823 = vadd.f32 %v2140, %v2822
  %v2824 = vpop.f32.mrb[0].mxu0
  %v2825 = vadd.f32 %v2142, %v2824
  %2826 = vdwg.mxu0
  %2827 = vmatprep.subr.bf16.mxu0 %v2561
  %2828 = vmatpush1.bf16.msra.mxu0 %v2560
  %2829 = vmatprep.subr.bf16.mxu0 %v2563
  %2830 = vmatpush1.bf16.msra.mxu0 %v2562
  %2831 = vmatprep.subr.bf16.mxu0 %v2565
  %2832 = vmatpush1.bf16.msra.mxu0 %v2564
  %2833 = vmatprep.subr.bf16.mxu0 %v2567
  %2834 = vmatpush1.bf16.msra.mxu0 %v2566
  %2835 = vmatprep.subr.bf16.mxu0 %v2569
  %2836 = vmatpush1.bf16.msra.mxu0 %v2568
  %2837 = vmatprep.subr.bf16.mxu0 %v2571
  %2838 = vmatpush1.bf16.msra.mxu0 %v2570
  %2839 = vmatprep.subr.bf16.mxu0 %v2573
  %2840 = vmatpush1.bf16.msra.mxu0 %v2572
  %2841 = vmatprep.subr.bf16.mxu0 %v2575
  %2842 = vmatpush1.bf16.msra.mxu0 %v2574
  %2843 = vmatprep.subr.bf16.mxu0 %v2577
  %2844 = vmatpush1.bf16.msra.mxu0 %v2576
  %2845 = vmatprep.subr.bf16.mxu0 %v2579
  %2846 = vmatpush1.bf16.msra.mxu0 %v2578
  %2847 = vmatprep.subr.bf16.mxu0 %v2581
  %2848 = vmatpush1.bf16.msra.mxu0 %v2580
  %2849 = vmatprep.subr.bf16.mxu0 %v2583
  %2850 = vmatpush1.bf16.msra.mxu0 %v2582
  %2851 = vmatprep.subr.bf16.mxu0 %v2585
  %2852 = vmatpush1.bf16.msra.mxu0 %v2584
  %2853 = vmatprep.subr.bf16.mxu0 %v2587
  %2854 = vmatpush1.bf16.msra.mxu0 %v2586
  %2855 = vmatprep.subr.bf16.mxu0 %v2589
  %2856 = vmatpush1.bf16.msra.mxu0 %v2588
  %2857 = vmatprep.subr.bf16.mxu0 %v2591
  %2858 = vmatpush1.bf16.msra.mxu0 %v2590
  %2859 = vmatprep.mubr.bf16.mxu0 %v1913
  %2860 = vmatmul.mubr.bf16.gmra.mrb[0].mxu0 %v1912
  %v2861 = vpop.f32.mrb[0].mxu0
  %v2862 = vadd.f32 %v2819, %v2861
  %v2863 = vpop.f32.mrb[0].mxu0
  %v2864 = vadd.f32 %v2821, %v2863
  %v2865 = vpop.f32.mrb[0].mxu0
  %v2866 = vadd.f32 %v2823, %v2865
  %v2867 = vpop.f32.mrb[0].mxu0
  %v2868 = vadd.f32 %v2825, %v2867
  %2869 = vdwg.mxu0
  %2870 = vmatprep.subr.bf16.mxu0 %v2593
  %2871 = vmatpush1.bf16.msra.mxu0 %v2592
  %2872 = vmatprep.subr.bf16.mxu0 %v2595
  %2873 = vmatpush1.bf16.msra.mxu0 %v2594
  %2874 = vmatprep.subr.bf16.mxu0 %v2597
  %2875 = vmatpush1.bf16.msra.mxu0 %v2596
  %2876 = vmatprep.subr.bf16.mxu0 %v2599
  %2877 = vmatpush1.bf16.msra.mxu0 %v2598
  %2878 = vmatprep.subr.bf16.mxu0 %v2601
  %2879 = vmatpush1.bf16.msra.mxu0 %v2600
  %2880 = vmatprep.subr.bf16.mxu0 %v2603
  %2881 = vmatpush1.bf16.msra.mxu0 %v2602
  %2882 = vmatprep.subr.bf16.mxu0 %v2605
  %2883 = vmatpush1.bf16.msra.mxu0 %v2604
  %2884 = vmatprep.subr.bf16.mxu0 %v2607
  %2885 = vmatpush1.bf16.msra.mxu0 %v2606
  %2886 = vmatprep.subr.bf16.mxu0 %v2609
  %2887 = vmatpush1.bf16.msra.mxu0 %v2608
  %2888 = vmatprep.subr.bf16.mxu0 %v2611
  %2889 = vmatpush1.bf16.msra.mxu0 %v2610
  %2890 = vmatprep.subr.bf16.mxu0 %v2613
  %2891 = vmatpush1.bf16.msra.mxu0 %v2612
  %2892 = vmatprep.subr.bf16.mxu0 %v2615
  %2893 = vmatpush1.bf16.msra.mxu0 %v2614
  %2894 = vmatprep.subr.bf16.mxu0 %v2617
  %2895 = vmatpush1.bf16.msra.mxu0 %v2616
  %2896 = vmatprep.subr.bf16.mxu0 %v2619
  %2897 = vmatpush1.bf16.msra.mxu0 %v2618
  %2898 = vmatprep.subr.bf16.mxu0 %v2621
  %2899 = vmatpush1.bf16.msra.mxu0 %v2620
  %2900 = vmatprep.subr.bf16.mxu0 %v2623
  %2901 = vmatpush1.bf16.msra.mxu0 %v2622
  %2902 = vmatprep.mubr.bf16.mxu0 %v1915
  %2903 = vmatmul.mubr.bf16.gmra.mrb[0].mxu0 %v1914
  %v2904 = vpop.f32.mrb[0].mxu0
  %v2905 = vadd.f32 %v2862, %v2904
  %v2906 = vpop.f32.mrb[0].mxu0
  %v2907 = vadd.f32 %v2864, %v2906
  %v2908 = vpop.f32.mrb[0].mxu0
  %v2909 = vadd.f32 %v2866, %v2908
  %v2910 = vpop.f32.mrb[0].mxu0
  %v2911 = vadd.f32 %v2868, %v2910
  %2912 = vdwg.mxu0
  %2913 = vmatprep.subr.bf16.mxu0 %v2625
  %2914 = vmatpush1.bf16.msra.mxu0 %v2624
  %2915 = vmatprep.subr.bf16.mxu0 %v2627
  %2916 = vmatpush1.bf16.msra.mxu0 %v2626
  %2917 = vmatprep.subr.bf16.mxu0 %v2629
  %2918 = vmatpush1.bf16.msra.mxu0 %v2628
  %2919 = vmatprep.subr.bf16.mxu0 %v2631
  %2920 = vmatpush1.bf16.msra.mxu0 %v2630
  %2921 = vmatprep.subr.bf16.mxu0 %v2633
  %2922 = vmatpush1.bf16.msra.mxu0 %v2632
  %2923 = vmatprep.subr.bf16.mxu0 %v2635
  %2924 = vmatpush1.bf16.msra.mxu0 %v2634
  %2925 = vmatprep.subr.bf16.mxu0 %v2637
  %2926 = vmatpush1.bf16.msra.mxu0 %v2636
  %2927 = vmatprep.subr.bf16.mxu0 %v2639
  %2928 = vmatpush1.bf16.msra.mxu0 %v2638
  %2929 = vmatprep.subr.bf16.mxu0 %v2641
  %2930 = vmatpush1.bf16.msra.mxu0 %v2640
  %2931 = vmatprep.subr.bf16.mxu0 %v2643
  %2932 = vmatpush1.bf16.msra.mxu0 %v2642
  %2933 = vmatprep.subr.bf16.mxu0 %v2645
  %2934 = vmatpush1.bf16.msra.mxu0 %v2644
  %2935 = vmatprep.subr.bf16.mxu0 %v2647
  %2936 = vmatpush1.bf16.msra.mxu0 %v2646
  %2937 = vmatprep.subr.bf16.mxu0 %v2649
  %2938 = vmatpush1.bf16.msra.mxu0 %v2648
  %2939 = vmatprep.subr.bf16.mxu0 %v2651
  %2940 = vmatpush1.bf16.msra.mxu0 %v2650
  %2941 = vmatprep.subr.bf16.mxu0 %v2653
  %2942 = vmatpush1.bf16.msra.mxu0 %v2652
  %2943 = vmatprep.subr.bf16.mxu0 %v2655
  %2944 = vmatpush1.bf16.msra.mxu0 %v2654
  %2945 = vmatprep.mubr.bf16.mxu0 %v1917
  %2946 = vmatmul.mubr.bf16.gmra.mrb[0].mxu0 %v1916
  %v2947 = vpop.f32.mrb[0].mxu0
  %v2948 = vadd.f32 %v2905, %v2947
  %v2949 = vpop.f32.mrb[0].mxu0
  %v2950 = vadd.f32 %v2907, %v2949
  %v2951 = vpop.f32.mrb[0].mxu0
  %v2952 = vadd.f32 %v2909, %v2951
  %v2953 = vpop.f32.mrb[0].mxu0
  %v2954 = vadd.f32 %v2911, %v2953
  %2955 = vdwg.mxu0
  %v2956 = vmul.f32 %v2948, 0.5
  %v2957 = vmul.f32 %v2950, 0.5
  %v2958 = vmul.f32 %v2952, 0.5
  %v2959 = vmul.f32 %v2954, 0.5
  %v2960 = vmul.f32 %v2948, 0.70710677
  %v2961 = vmul.f32 %v2950, 0.70710677
  %v2962 = vmul.f32 %v2952, 0.70710677
  %v2963 = vmul.f32 %v2954, 0.70710677
  %v2964 = vand.u32 2147483647, %v2960
  %v2965 = vand.u32 2147483647, %v2961
  %v2966 = vand.u32 2147483647, %v2962
  %v2967 = vand.u32 2147483647, %v2963
  %v2968 = vmul.f32 %v2964, 0.3275911
  %v2969 = vmul.f32 %v2965, 0.3275911
  %v2970 = vmul.f32 %v2966, 0.3275911
  %v2971 = vmul.f32 %v2967, 0.3275911
  %v2972 = vadd.f32 %v2968, 1.0
  %v2973 = vadd.f32 %v2969, 1.0
  %v2974 = vadd.f32 %v2970, 1.0
  %v2975 = vadd.f32 %v2971, 1.0
  %v2976 = vrcp.pop %v2972
  %v2977 = vmul.f32 1.0, %v2976
  %v2978 = vrcp.pop %v2973
  %v2979 = vmul.f32 1.0, %v2978
  %v2980 = vrcp.pop %v2974
  %v2981 = vmul.f32 1.0, %v2980
  %v2982 = vrcp.pop %v2975
  %v2983 = vmul.f32 1.0, %v2982
  %v2984 = vmul.f32 %v2977, 1.0614054
  %v2985 = vmul.f32 %v2979, 1.0614054
  %v2986 = vmul.f32 %v2981, 1.0614054
  %v2987 = vmul.f32 %v2983, 1.0614054
  %v2988 = vadd.f32 %v2984, -1.4531521
  %v2989 = vadd.f32 %v2985, -1.4531521
  %v2990 = vadd.f32 %v2986, -1.4531521
  %v2991 = vadd.f32 %v2987, -1.4531521
  %v2992 = vmul.f32 %v2988, %v2977
  %v2993 = vmul.f32 %v2989, %v2979
  %v2994 = vmul.f32 %v2990, %v2981
  %v2995 = vmul.f32 %v2991, %v2983
  %v2996 = vadd.f32 %v2992, 1.4214138
  %v2997 = vadd.f32 %v2993, 1.4214138
  %v2998 = vadd.f32 %v2994, 1.4214138
  %v2999 = vadd.f32 %v2995, 1.4214138
  %v3000 = vmul.f32 %v2996, %v2977
  %v3001 = vmul.f32 %v2997, %v2979
  %v3002 = vmul.f32 %v2998, %v2981
  %v3003 = vmul.f32 %v2999, %v2983
  %v3004 = vadd.f32 %v3000, -0.28449672
  %v3005 = vadd.f32 %v3001, -0.28449672
  %v3006 = vadd.f32 %v3002, -0.28449672
  %v3007 = vadd.f32 %v3003, -0.28449672
  %v3008 = vmul.f32 %v3004, %v2977
  %v3009 = vmul.f32 %v3005, %v2979
  %v3010 = vmul.f32 %v3006, %v2981
  %v3011 = vmul.f32 %v3007, %v2983
  %v3012 = vadd.f32 %v3008, 0.2548296
  %v3013 = vadd.f32 %v3009, 0.2548296
  %v3014 = vadd.f32 %v3010, 0.2548296
  %v3015 = vadd.f32 %v3011, 0.2548296
  %v3016 = vmul.f32 %v3012, %v2977
  %v3017 = vmul.f32 %v3013, %v2979
  %v3018 = vmul.f32 %v3014, %v2981
  %v3019 = vmul.f32 %v3015, %v2983
  %v3020 = vmul.f32 %v2964, %v2964
  %v3021 = vmul.f32 %v2965, %v2965
  %v3022 = vmul.f32 %v2966, %v2966
  %v3023 = vmul.f32 %v2967, %v2967
  %v3024 = vsub.f32 0.0, %v3020
  %v3025 = vsub.f32 0.0, %v3021
  %v3026 = vsub.f32 0.0, %v3022
  %v3027 = vsub.f32 0.0, %v3023
  %v3028 = vmul.f32 %v3024, 1.442695
  %v3029 = vpow.pop %v3028
  %v3030 = vmul.f32 %v3025, 1.442695
  %v3031 = vpow.pop %v3030
  %v3032 = vmul.f32 %v3026, 1.442695
  %v3033 = vpow.pop %v3032
  %v3034 = vmul.f32 %v3027, 1.442695
  %v3035 = vpow.pop %v3034
  %v3036 = vmul.f32 %v3016, %v3029
  %v3037 = vmul.f32 %v3017, %v3031
  %v3038 = vmul.f32 %v3018, %v3033
  %v3039 = vmul.f32 %v3019, %v3035
  %v3040 = vsub.f32 1.0, %v3036
  %v3041 = vsub.f32 1.0, %v3037
  %v3042 = vsub.f32 1.0, %v3038
  %v3043 = vsub.f32 1.0, %v3039
  %vm3044 = vcmp.lt.f32.partialorder %v2960, 0.0
  %vm3045 = vcmp.lt.f32.partialorder %v2961, 0.0
  %vm3046 = vcmp.lt.f32.partialorder %v2962, 0.0
  %vm3047 = vcmp.lt.f32.partialorder %v2963, 0.0
  %v3048 = vsub.f32 0.0, %v3040
  %v3049 = vsub.f32 0.0, %v3041
  %v3050 = vsub.f32 0.0, %v3042
  %v3051 = vsub.f32 0.0, %v3043
  %v3052 = vsel %vm3044, %v3048, %v3040
  %v3053 = vsel %vm3045, %v3049, %v3041
  %v3054 = vsel %vm3046, %v3050, %v3042
  %v3055 = vsel %vm3047, %v3051, %v3043
  %v3056 = vadd.f32 %v3052, 1.0
  %v3057 = vadd.f32 %v3053, 1.0
  %v3058 = vadd.f32 %v3054, 1.0
  %v3059 = vadd.f32 %v3055, 1.0
  %v3060 = vmul.f32 %v2956, %v3056
  %v3061 = vmul.f32 %v2957, %v3057
  %v3062 = vmul.f32 %v2958, %v3058
  %v3063 = vmul.f32 %v2959, %v3059
  %v3064 = vpack.c.bf16 %v3062, %v3060
  %v3065 = vpack.c.bf16 %v3063, %v3061
  %3066 = vmatprep.subr.bf16.mxu0 %v660
  %3067 = vmatpush1.bf16.msra.mxu0 %v659
  %3068 = vmatprep.subr.bf16.mxu0 %v668
  %3069 = vmatpush1.bf16.msra.mxu0 %v667
  %3070 = vmatprep.subr.bf16.mxu0 %v676
  %3071 = vmatpush1.bf16.msra.mxu0 %v675
  %3072 = vmatprep.subr.bf16.mxu0 %v684
  %3073 = vmatpush1.bf16.msra.mxu0 %v683
  %3074 = vmatprep.subr.bf16.mxu0 %v692
  %3075 = vmatpush1.bf16.msra.mxu0 %v691
  %3076 = vmatprep.subr.bf16.mxu0 %v700
  %3077 = vmatpush1.bf16.msra.mxu0 %v699
  %3078 = vmatprep.subr.bf16.mxu0 %v708
  %3079 = vmatpush1.bf16.msra.mxu0 %v707
  %3080 = vmatprep.subr.bf16.mxu0 %v716
  %3081 = vmatpush1.bf16.msra.mxu0 %v715
  %3082 = vmatprep.subr.bf16.mxu0 %v724
  %3083 = vmatpush1.bf16.msra.mxu0 %v723
  %3084 = vmatprep.subr.bf16.mxu0 %v732
  %3085 = vmatpush1.bf16.msra.mxu0 %v731
  %3086 = vmatprep.subr.bf16.mxu0 %v740
  %3087 = vmatpush1.bf16.msra.mxu0 %v739
  %3088 = vmatprep.subr.bf16.mxu0 %v748
  %3089 = vmatpush1.bf16.msra.mxu0 %v747
  %3090 = vmatprep.subr.bf16.mxu0 %v756
  %3091 = vmatpush1.bf16.msra.mxu0 %v755
  %3092 = vmatprep.subr.bf16.mxu0 %v764
  %3093 = vmatpush1.bf16.msra.mxu0 %v763
  %3094 = vmatprep.subr.bf16.mxu0 %v772
  %3095 = vmatpush1.bf16.msra.mxu0 %v771
  %3096 = vmatprep.subr.bf16.mxu0 %v780
  %3097 = vmatpush1.bf16.msra.mxu0 %v779
  %3098 = vmatprep.mubr.bf16.mxu0 %v3065
  %3099 = vmatmul.mubr.bf16.gmra.mrb[0].mxu0 %v3064
  %v3100 = vpop.f32.mrb[0].mxu0
  %v3101 = vadd.f32 0.0, %v3100
  %v3102 = vpop.f32.mrb[0].mxu0
  %v3103 = vadd.f32 0.0, %v3102
  %v3104 = vpop.f32.mrb[0].mxu0
  %v3105 = vadd.f32 0.0, %v3104
  %v3106 = vpop.f32.mrb[0].mxu0
  %v3107 = vadd.f32 0.0, %v3106
  %3108 = vdwg.mxu0
  %3109 = vmatprep.subr.bf16.mxu0 %v662
  %3110 = vmatpush1.bf16.msra.mxu0 %v661
  %3111 = vmatprep.subr.bf16.mxu0 %v670
  %3112 = vmatpush1.bf16.msra.mxu0 %v669
  %3113 = vmatprep.subr.bf16.mxu0 %v678
  %3114 = vmatpush1.bf16.msra.mxu0 %v677
  %3115 = vmatprep.subr.bf16.mxu0 %v686
  %3116 = vmatpush1.bf16.msra.mxu0 %v685
  %3117 = vmatprep.subr.bf16.mxu0 %v694
  %3118 = vmatpush1.bf16.msra.mxu0 %v693
  %3119 = vmatprep.subr.bf16.mxu0 %v702
  %3120 = vmatpush1.bf16.msra.mxu0 %v701
  %3121 = vmatprep.subr.bf16.mxu0 %v710
  %3122 = vmatpush1.bf16.msra.mxu0 %v709
  %3123 = vmatprep.subr.bf16.mxu0 %v718
  %3124 = vmatpush1.bf16.msra.mxu0 %v717
  %3125 = vmatprep.subr.bf16.mxu0 %v726
  %3126 = vmatpush1.bf16.msra.mxu0 %v725
  %3127 = vmatprep.subr.bf16.mxu0 %v734
  %3128 = vmatpush1.bf16.msra.mxu0 %v733
  %3129 = vmatprep.subr.bf16.mxu0 %v742
  %3130 = vmatpush1.bf16.msra.mxu0 %v741
  %3131 = vmatprep.subr.bf16.mxu0 %v750
  %3132 = vmatpush1.bf16.msra.mxu0 %v749
  %3133 = vmatprep.subr.bf16.mxu0 %v758
  %3134 = vmatpush1.bf16.msra.mxu0 %v757
  %3135 = vmatprep.subr.bf16.mxu0 %v766
  %3136 = vmatpush1.bf16.msra.mxu0 %v765
  %3137 = vmatprep.subr.bf16.mxu0 %v774
  %3138 = vmatpush1.bf16.msra.mxu0 %v773
  %3139 = vmatprep.subr.bf16.mxu0 %v782
  %3140 = vmatpush1.bf16.msra.mxu0 %v781
  %3141 = vmatprep.mubr.bf16.mxu0 %v3065
  %3142 = vmatmul.mubr.bf16.gmra.mrb[0].mxu0 %v3064
  %v3143 = vpop.f32.mrb[0].mxu0
  %v3144 = vadd.f32 0.0, %v3143
  %v3145 = vpop.f32.mrb[0].mxu0
  %v3146 = vadd.f32 0.0, %v3145
  %v3147 = vpop.f32.mrb[0].mxu0
  %v3148 = vadd.f32 0.0, %v3147
  %v3149 = vpop.f32.mrb[0].mxu0
  %v3150 = vadd.f32 0.0, %v3149
  %3151 = vdwg.mxu0
  %3152 = vmatprep.subr.bf16.mxu0 %v664
  %3153 = vmatpush1.bf16.msra.mxu0 %v663
  %3154 = vmatprep.subr.bf16.mxu0 %v672
  %3155 = vmatpush1.bf16.msra.mxu0 %v671
  %3156 = vmatprep.subr.bf16.mxu0 %v680
  %3157 = vmatpush1.bf16.msra.mxu0 %v679
  %3158 = vmatprep.subr.bf16.mxu0 %v688
  %3159 = vmatpush1.bf16.msra.mxu0 %v687
  %3160 = vmatprep.subr.bf16.mxu0 %v696
  %3161 = vmatpush1.bf16.msra.mxu0 %v695
  %3162 = vmatprep.subr.bf16.mxu0 %v704
  %3163 = vmatpush1.bf16.msra.mxu0 %v703
  %3164 = vmatprep.subr.bf16.mxu0 %v712
  %3165 = vmatpush1.bf16.msra.mxu0 %v711
  %3166 = vmatprep.subr.bf16.mxu0 %v720
  %3167 = vmatpush1.bf16.msra.mxu0 %v719
  %3168 = vmatprep.subr.bf16.mxu0 %v728
  %3169 = vmatpush1.bf16.msra.mxu0 %v727
  %3170 = vmatprep.subr.bf16.mxu0 %v736
  %3171 = vmatpush1.bf16.msra.mxu0 %v735
  %3172 = vmatprep.subr.bf16.mxu0 %v744
  %3173 = vmatpush1.bf16.msra.mxu0 %v743
  %3174 = vmatprep.subr.bf16.mxu0 %v752
  %3175 = vmatpush1.bf16.msra.mxu0 %v751
  %3176 = vmatprep.subr.bf16.mxu0 %v760
  %3177 = vmatpush1.bf16.msra.mxu0 %v759
  %3178 = vmatprep.subr.bf16.mxu0 %v768
  %3179 = vmatpush1.bf16.msra.mxu0 %v767
  %3180 = vmatprep.subr.bf16.mxu0 %v776
  %3181 = vmatpush1.bf16.msra.mxu0 %v775
  %3182 = vmatprep.subr.bf16.mxu0 %v784
  %3183 = vmatpush1.bf16.msra.mxu0 %v783
  %3184 = vmatprep.mubr.bf16.mxu0 %v3065
  %3185 = vmatmul.mubr.bf16.gmra.mrb[0].mxu0 %v3064
  %v3186 = vpop.f32.mrb[0].mxu0
  %v3187 = vadd.f32 0.0, %v3186
  %v3188 = vpop.f32.mrb[0].mxu0
  %v3189 = vadd.f32 0.0, %v3188
  %v3190 = vpop.f32.mrb[0].mxu0
  %v3191 = vadd.f32 0.0, %v3190
  %v3192 = vpop.f32.mrb[0].mxu0
  %v3193 = vadd.f32 0.0, %v3192
  %3194 = vdwg.mxu0
  %3195 = vmatprep.subr.bf16.mxu0 %v666
  %3196 = vmatpush1.bf16.msra.mxu0 %v665
  %3197 = vmatprep.subr.bf16.mxu0 %v674
  %3198 = vmatpush1.bf16.msra.mxu0 %v673
  %3199 = vmatprep.subr.bf16.mxu0 %v682
  %3200 = vmatpush1.bf16.msra.mxu0 %v681
  %3201 = vmatprep.subr.bf16.mxu0 %v690
  %3202 = vmatpush1.bf16.msra.mxu0 %v689
  %3203 = vmatprep.subr.bf16.mxu0 %v698
  %3204 = vmatpush1.bf16.msra.mxu0 %v697
  %3205 = vmatprep.subr.bf16.mxu0 %v706
  %3206 = vmatpush1.bf16.msra.mxu0 %v705
  %3207 = vmatprep.subr.bf16.mxu0 %v714
  %3208 = vmatpush1.bf16.msra.mxu0 %v713
  %3209 = vmatprep.subr.bf16.mxu0 %v722
  %3210 = vmatpush1.bf16.msra.mxu0 %v721
  %3211 = vmatprep.subr.bf16.mxu0 %v730
  %3212 = vmatpush1.bf16.msra.mxu0 %v729
  %3213 = vmatprep.subr.bf16.mxu0 %v738
  %3214 = vmatpush1.bf16.msra.mxu0 %v737
  %3215 = vmatprep.subr.bf16.mxu0 %v746
  %3216 = vmatpush1.bf16.msra.mxu0 %v745
  %3217 = vmatprep.subr.bf16.mxu0 %v754
  %3218 = vmatpush1.bf16.msra.mxu0 %v753
  %3219 = vmatprep.subr.bf16.mxu0 %v762
  %3220 = vmatpush1.bf16.msra.mxu0 %v761
  %3221 = vmatprep.subr.bf16.mxu0 %v770
  %3222 = vmatpush1.bf16.msra.mxu0 %v769
  %3223 = vmatprep.subr.bf16.mxu0 %v778
  %3224 = vmatpush1.bf16.msra.mxu0 %v777
  %3225 = vmatprep.subr.bf16.mxu0 %v786
  %3226 = vmatpush1.bf16.msra.mxu0 %v785
  %3227 = vmatprep.mubr.bf16.mxu0 %v3065
  %3228 = vmatmul.mubr.bf16.gmra.mrb[0].mxu0 %v3064
  %v3229 = vpop.f32.mrb[0].mxu0
  %v3230 = vadd.f32 0.0, %v3229
  %v3231 = vpop.f32.mrb[0].mxu0
  %v3232 = vadd.f32 0.0, %v3231
  %v3233 = vpop.f32.mrb[0].mxu0
  %v3234 = vadd.f32 0.0, %v3233
  %v3235 = vpop.f32.mrb[0].mxu0
  %v3236 = vadd.f32 0.0, %v3235
  %3237 = vdwg.mxu0
  %s3238 = scalar_lea.vmem %s5, 512
  %v3239 = vld [vmem:[%s3238] sm:$0xff]
  %v3240 = vld [vmem:[%s3238 + $0x8] sm:$0xff]
  %v3241 = vld [vmem:[%s3238 + $0x10] sm:$0xff]
  %v3242 = vld [vmem:[%s3238 + $0x18] sm:$0xff]
  %v3243 = vld [vmem:[%s3238 + $0x20] sm:$0xff]
  %v3244 = vld [vmem:[%s3238 + $0x28] sm:$0xff]
  %v3245 = vld [vmem:[%s3238 + $0x30] sm:$0xff]
  %v3246 = vld [vmem:[%s3238 + $0x38] sm:$0xff]
  %v3247 = vlaneseq
  %v3248 = vshrl.u32 %v3247, 7
  %v3249 = vsub.s32 0, %v3248
  %v3250 = vrot.slane %v3101, %v3249
  %v3251 = vlaneseq
  %v3252 = vshrl.u32 %v3251, 7
  %v3253 = vsub.s32 0, %v3252
  %v3254 = vrot.slane %v3103, %v3253
  %v3255 = vlaneseq
  %v3256 = vshrl.u32 %v3255, 7
  %v3257 = vsub.s32 0, %v3256
  %v3258 = vrot.slane %v3144, %v3257
  %v3259 = vlaneseq
  %v3260 = vshrl.u32 %v3259, 7
  %v3261 = vsub.s32 0, %v3260
  %v3262 = vrot.slane %v3146, %v3261
  %v3263 = vlaneseq
  %v3264 = vshrl.u32 %v3263, 7
  %v3265 = vsub.s32 0, %v3264
  %v3266 = vrot.slane %v3187, %v3265
  %v3267 = vlaneseq
  %v3268 = vshrl.u32 %v3267, 7
  %v3269 = vsub.s32 0, %v3268
  %v3270 = vrot.slane %v3189, %v3269
  %v3271 = vlaneseq
  %v3272 = vshrl.u32 %v3271, 7
  %v3273 = vsub.s32 0, %v3272
  %v3274 = vrot.slane %v3230, %v3273
  %v3275 = vlaneseq
  %v3276 = vshrl.u32 %v3275, 7
  %v3277 = vsub.s32 0, %v3276
  %v3278 = vrot.slane %v3232, %v3277
  %v3279 = vlaneseq
  %v3280 = vshrl.u32 %v3279, 7
  %v3281 = vsub.s32 0, %v3280
  %v3282 = vrot.slane %v3105, %v3281
  %v3283 = vlaneseq
  %v3284 = vshrl.u32 %v3283, 7
  %v3285 = vsub.s32 0, %v3284
  %v3286 = vrot.slane %v3107, %v3285
  %v3287 = vlaneseq
  %v3288 = vshrl.u32 %v3287, 7
  %v3289 = vsub.s32 0, %v3288
  %v3290 = vrot.slane %v3148, %v3289
  %v3291 = vlaneseq
  %v3292 = vshrl.u32 %v3291, 7
  %v3293 = vsub.s32 0, %v3292
  %v3294 = vrot.slane %v3150, %v3293
  %v3295 = vlaneseq
  %v3296 = vshrl.u32 %v3295, 7
  %v3297 = vsub.s32 0, %v3296
  %v3298 = vrot.slane %v3191, %v3297
  %v3299 = vlaneseq
  %v3300 = vshrl.u32 %v3299, 7
  %v3301 = vsub.s32 0, %v3300
  %v3302 = vrot.slane %v3193, %v3301
  %v3303 = vlaneseq
  %v3304 = vshrl.u32 %v3303, 7
  %v3305 = vsub.s32 0, %v3304
  %v3306 = vrot.slane %v3234, %v3305
  %v3307 = vlaneseq
  %v3308 = vshrl.u32 %v3307, 7
  %v3309 = vsub.s32 0, %v3308
  %v3310 = vrot.slane %v3236, %v3309
  %v3311 = vmul.f32 %v3250, %v3239
  %v3312 = vmul.f32 %v3254, %v3240
  %v3313 = vmul.f32 %v3258, %v3241
  %v3314 = vmul.f32 %v3262, %v3242
  %v3315 = vmul.f32 %v3266, %v3243
  %v3316 = vmul.f32 %v3270, %v3244
  %v3317 = vmul.f32 %v3274, %v3245
  %v3318 = vmul.f32 %v3278, %v3246
  %v3319 = vmul.f32 %v3282, %v3239
  %v3320 = vmul.f32 %v3286, %v3240
  %v3321 = vmul.f32 %v3290, %v3241
  %v3322 = vmul.f32 %v3294, %v3242
  %v3323 = vmul.f32 %v3298, %v3243
  %v3324 = vmul.f32 %v3302, %v3244
  %v3325 = vmul.f32 %v3306, %v3245
  %v3326 = vmul.f32 %v3310, %v3246
  %s3327 = scalar_lea.vmem %s5, 576
  %v3328 = vld [vmem:[%s3327] sm:$0xff]
  %v3329 = vld [vmem:[%s3327 + $0x8] sm:$0xff]
  %v3330 = vld [vmem:[%s3327 + $0x10] sm:$0xff]
  %v3331 = vld [vmem:[%s3327 + $0x18] sm:$0xff]
  %v3332 = vld [vmem:[%s3327 + $0x20] sm:$0xff]
  %v3333 = vld [vmem:[%s3327 + $0x28] sm:$0xff]
  %v3334 = vld [vmem:[%s3327 + $0x30] sm:$0xff]
  %v3335 = vld [vmem:[%s3327 + $0x38] sm:$0xff]
  %v3336 = vlaneseq
  %v3337 = vshrl.u32 %v3336, 7
  %v3338 = vsub.s32 1, %v3337
  %v3339 = vrot.slane %v3101, %v3338
  %v3340 = vlaneseq
  %v3341 = vshrl.u32 %v3340, 7
  %v3342 = vsub.s32 1, %v3341
  %v3343 = vrot.slane %v3103, %v3342
  %v3344 = vlaneseq
  %v3345 = vshrl.u32 %v3344, 7
  %v3346 = vsub.s32 1, %v3345
  %v3347 = vrot.slane %v3144, %v3346
  %v3348 = vlaneseq
  %v3349 = vshrl.u32 %v3348, 7
  %v3350 = vsub.s32 1, %v3349
  %v3351 = vrot.slane %v3146, %v3350
  %v3352 = vlaneseq
  %v3353 = vshrl.u32 %v3352, 7
  %v3354 = vsub.s32 1, %v3353
  %v3355 = vrot.slane %v3187, %v3354
  %v3356 = vlaneseq
  %v3357 = vshrl.u32 %v3356, 7
  %v3358 = vsub.s32 1, %v3357
  %v3359 = vrot.slane %v3189, %v3358
  %v3360 = vlaneseq
  %v3361 = vshrl.u32 %v3360, 7
  %v3362 = vsub.s32 1, %v3361
  %v3363 = vrot.slane %v3230, %v3362
  %v3364 = vlaneseq
  %v3365 = vshrl.u32 %v3364, 7
  %v3366 = vsub.s32 1, %v3365
  %v3367 = vrot.slane %v3232, %v3366
  %v3368 = vlaneseq
  %v3369 = vshrl.u32 %v3368, 7
  %v3370 = vsub.s32 1, %v3369
  %v3371 = vrot.slane %v3105, %v3370
  %v3372 = vlaneseq
  %v3373 = vshrl.u32 %v3372, 7
  %v3374 = vsub.s32 1, %v3373
  %v3375 = vrot.slane %v3107, %v3374
  %v3376 = vlaneseq
  %v3377 = vshrl.u32 %v3376, 7
  %v3378 = vsub.s32 1, %v3377
  %v3379 = vrot.slane %v3148, %v3378
  %v3380 = vlaneseq
  %v3381 = vshrl.u32 %v3380, 7
  %v3382 = vsub.s32 1, %v3381
  %v3383 = vrot.slane %v3150, %v3382
  %v3384 = vlaneseq
  %v3385 = vshrl.u32 %v3384, 7
  %v3386 = vsub.s32 1, %v3385
  %v3387 = vrot.slane %v3191, %v3386
  %v3388 = vlaneseq
  %v3389 = vshrl.u32 %v3388, 7
  %v3390 = vsub.s32 1, %v3389
  %v3391 = vrot.slane %v3193, %v3390
  %v3392 = vlaneseq
  %v3393 = vshrl.u32 %v3392, 7
  %v3394 = vsub.s32 1, %v3393
  %v3395 = vrot.slane %v3234, %v3394
  %v3396 = vlaneseq
  %v3397 = vshrl.u32 %v3396, 7
  %v3398 = vsub.s32 1, %v3397
  %v3399 = vrot.slane %v3236, %v3398
  %v3400 = vmul.f32 %v3339, %v3328
  %v3401 = vmul.f32 %v3343, %v3329
  %v3402 = vmul.f32 %v3347, %v3330
  %v3403 = vmul.f32 %v3351, %v3331
  %v3404 = vmul.f32 %v3355, %v3332
  %v3405 = vmul.f32 %v3359, %v3333
  %v3406 = vmul.f32 %v3363, %v3334
  %v3407 = vmul.f32 %v3367, %v3335
  %v3408 = vmul.f32 %v3371, %v3328
  %v3409 = vmul.f32 %v3375, %v3329
  %v3410 = vmul.f32 %v3379, %v3330
  %v3411 = vmul.f32 %v3383, %v3331
  %v3412 = vmul.f32 %v3387, %v3332
  %v3413 = vmul.f32 %v3391, %v3333
  %v3414 = vmul.f32 %v3395, %v3334
  %v3415 = vmul.f32 %v3399, %v3335
  %v3416 = vadd.f32 %v3311, %v3400
  %v3417 = vadd.f32 %v3312, %v3401
  %v3418 = vadd.f32 %v3313, %v3402
  %v3419 = vadd.f32 %v3314, %v3403
  %v3420 = vadd.f32 %v3315, %v3404
  %v3421 = vadd.f32 %v3316, %v3405
  %v3422 = vadd.f32 %v3317, %v3406
  %v3423 = vadd.f32 %v3318, %v3407
  %v3424 = vadd.f32 %v3319, %v3408
  %v3425 = vadd.f32 %v3320, %v3409
  %v3426 = vadd.f32 %v3321, %v3410
  %v3427 = vadd.f32 %v3322, %v3411
  %v3428 = vadd.f32 %v3323, %v3412
  %v3429 = vadd.f32 %v3324, %v3413
  %v3430 = vadd.f32 %v3325, %v3414
  %v3431 = vadd.f32 %v3326, %v3415
  %s3432 = scalar_lea.vmem %s5, 640
  %v3433 = vld [vmem:[%s3432] sm:$0xff]
  %v3434 = vld [vmem:[%s3432 + $0x8] sm:$0xff]
  %v3435 = vld [vmem:[%s3432 + $0x10] sm:$0xff]
  %v3436 = vld [vmem:[%s3432 + $0x18] sm:$0xff]
  %v3437 = vld [vmem:[%s3432 + $0x20] sm:$0xff]
  %v3438 = vld [vmem:[%s3432 + $0x28] sm:$0xff]
  %v3439 = vld [vmem:[%s3432 + $0x30] sm:$0xff]
  %v3440 = vld [vmem:[%s3432 + $0x38] sm:$0xff]
  %v3441 = vlaneseq
  %v3442 = vshrl.u32 %v3441, 7
  %v3443 = vsub.s32 2, %v3442
  %v3444 = vrot.slane %v3101, %v3443
  %v3445 = vlaneseq
  %v3446 = vshrl.u32 %v3445, 7
  %v3447 = vsub.s32 2, %v3446
  %v3448 = vrot.slane %v3103, %v3447
  %v3449 = vlaneseq
  %v3450 = vshrl.u32 %v3449, 7
  %v3451 = vsub.s32 2, %v3450
  %v3452 = vrot.slane %v3144, %v3451
  %v3453 = vlaneseq
  %v3454 = vshrl.u32 %v3453, 7
  %v3455 = vsub.s32 2, %v3454
  %v3456 = vrot.slane %v3146, %v3455
  %v3457 = vlaneseq
  %v3458 = vshrl.u32 %v3457, 7
  %v3459 = vsub.s32 2, %v3458
  %v3460 = vrot.slane %v3187, %v3459
  %v3461 = vlaneseq
  %v3462 = vshrl.u32 %v3461, 7
  %v3463 = vsub.s32 2, %v3462
  %v3464 = vrot.slane %v3189, %v3463
  %v3465 = vlaneseq
  %v3466 = vshrl.u32 %v3465, 7
  %v3467 = vsub.s32 2, %v3466
  %v3468 = vrot.slane %v3230, %v3467
  %v3469 = vlaneseq
  %v3470 = vshrl.u32 %v3469, 7
  %v3471 = vsub.s32 2, %v3470
  %v3472 = vrot.slane %v3232, %v3471
  %v3473 = vlaneseq
  %v3474 = vshrl.u32 %v3473, 7
  %v3475 = vsub.s32 2, %v3474
  %v3476 = vrot.slane %v3105, %v3475
  %v3477 = vlaneseq
  %v3478 = vshrl.u32 %v3477, 7
  %v3479 = vsub.s32 2, %v3478
  %v3480 = vrot.slane %v3107, %v3479
  %v3481 = vlaneseq
  %v3482 = vshrl.u32 %v3481, 7
  %v3483 = vsub.s32 2, %v3482
  %v3484 = vrot.slane %v3148, %v3483
  %v3485 = vlaneseq
  %v3486 = vshrl.u32 %v3485, 7
  %v3487 = vsub.s32 2, %v3486
  %v3488 = vrot.slane %v3150, %v3487
  %v3489 = vlaneseq
  %v3490 = vshrl.u32 %v3489, 7
  %v3491 = vsub.s32 2, %v3490
  %v3492 = vrot.slane %v3191, %v3491
  %v3493 = vlaneseq
  %v3494 = vshrl.u32 %v3493, 7
  %v3495 = vsub.s32 2, %v3494
  %v3496 = vrot.slane %v3193, %v3495
  %v3497 = vlaneseq
  %v3498 = vshrl.u32 %v3497, 7
  %v3499 = vsub.s32 2, %v3498
  %v3500 = vrot.slane %v3234, %v3499
  %v3501 = vlaneseq
  %v3502 = vshrl.u32 %v3501, 7
  %v3503 = vsub.s32 2, %v3502
  %v3504 = vrot.slane %v3236, %v3503
  %v3505 = vmul.f32 %v3444, %v3433
  %v3506 = vmul.f32 %v3448, %v3434
  %v3507 = vmul.f32 %v3452, %v3435
  %v3508 = vmul.f32 %v3456, %v3436
  %v3509 = vmul.f32 %v3460, %v3437
  %v3510 = vmul.f32 %v3464, %v3438
  %v3511 = vmul.f32 %v3468, %v3439
  %v3512 = vmul.f32 %v3472, %v3440
  %v3513 = vmul.f32 %v3476, %v3433
  %v3514 = vmul.f32 %v3480, %v3434
  %v3515 = vmul.f32 %v3484, %v3435
  %v3516 = vmul.f32 %v3488, %v3436
  %v3517 = vmul.f32 %v3492, %v3437
  %v3518 = vmul.f32 %v3496, %v3438
  %v3519 = vmul.f32 %v3500, %v3439
  %v3520 = vmul.f32 %v3504, %v3440
  %v3521 = vadd.f32 %v3416, %v3505
  %v3522 = vadd.f32 %v3417, %v3506
  %v3523 = vadd.f32 %v3418, %v3507
  %v3524 = vadd.f32 %v3419, %v3508
  %v3525 = vadd.f32 %v3420, %v3509
  %v3526 = vadd.f32 %v3421, %v3510
  %v3527 = vadd.f32 %v3422, %v3511
  %v3528 = vadd.f32 %v3423, %v3512
  %v3529 = vadd.f32 %v3424, %v3513
  %v3530 = vadd.f32 %v3425, %v3514
  %v3531 = vadd.f32 %v3426, %v3515
  %v3532 = vadd.f32 %v3427, %v3516
  %v3533 = vadd.f32 %v3428, %v3517
  %v3534 = vadd.f32 %v3429, %v3518
  %v3535 = vadd.f32 %v3430, %v3519
  %v3536 = vadd.f32 %v3431, %v3520
  %s3537 = scalar_lea.vmem %s5, 704
  %v3538 = vld [vmem:[%s3537] sm:$0xff]
  %v3539 = vld [vmem:[%s3537 + $0x8] sm:$0xff]
  %v3540 = vld [vmem:[%s3537 + $0x10] sm:$0xff]
  %v3541 = vld [vmem:[%s3537 + $0x18] sm:$0xff]
  %v3542 = vld [vmem:[%s3537 + $0x20] sm:$0xff]
  %v3543 = vld [vmem:[%s3537 + $0x28] sm:$0xff]
  %v3544 = vld [vmem:[%s3537 + $0x30] sm:$0xff]
  %v3545 = vld [vmem:[%s3537 + $0x38] sm:$0xff]
  %v3546 = vlaneseq
  %v3547 = vshrl.u32 %v3546, 7
  %v3548 = vsub.s32 3, %v3547
  %v3549 = vrot.slane %v3101, %v3548
  %v3550 = vlaneseq
  %v3551 = vshrl.u32 %v3550, 7
  %v3552 = vsub.s32 3, %v3551
  %v3553 = vrot.slane %v3103, %v3552
  %v3554 = vlaneseq
  %v3555 = vshrl.u32 %v3554, 7
  %v3556 = vsub.s32 3, %v3555
  %v3557 = vrot.slane %v3144, %v3556
  %v3558 = vlaneseq
  %v3559 = vshrl.u32 %v3558, 7
  %v3560 = vsub.s32 3, %v3559
  %v3561 = vrot.slane %v3146, %v3560
  %v3562 = vlaneseq
  %v3563 = vshrl.u32 %v3562, 7
  %v3564 = vsub.s32 3, %v3563
  %v3565 = vrot.slane %v3187, %v3564
  %v3566 = vlaneseq
  %v3567 = vshrl.u32 %v3566, 7
  %v3568 = vsub.s32 3, %v3567
  %v3569 = vrot.slane %v3189, %v3568
  %v3570 = vlaneseq
  %v3571 = vshrl.u32 %v3570, 7
  %v3572 = vsub.s32 3, %v3571
  %v3573 = vrot.slane %v3230, %v3572
  %v3574 = vlaneseq
  %v3575 = vshrl.u32 %v3574, 7
  %v3576 = vsub.s32 3, %v3575
  %v3577 = vrot.slane %v3232, %v3576
  %v3578 = vlaneseq
  %v3579 = vshrl.u32 %v3578, 7
  %v3580 = vsub.s32 3, %v3579
  %v3581 = vrot.slane %v3105, %v3580
  %v3582 = vlaneseq
  %v3583 = vshrl.u32 %v3582, 7
  %v3584 = vsub.s32 3, %v3583
  %v3585 = vrot.slane %v3107, %v3584
  %v3586 = vlaneseq
  %v3587 = vshrl.u32 %v3586, 7
  %v3588 = vsub.s32 3, %v3587
  %v3589 = vrot.slane %v3148, %v3588
  %v3590 = vlaneseq
  %v3591 = vshrl.u32 %v3590, 7
  %v3592 = vsub.s32 3, %v3591
  %v3593 = vrot.slane %v3150, %v3592
  %v3594 = vlaneseq
  %v3595 = vshrl.u32 %v3594, 7
  %v3596 = vsub.s32 3, %v3595
  %v3597 = vrot.slane %v3191, %v3596
  %v3598 = vlaneseq
  %v3599 = vshrl.u32 %v3598, 7
  %v3600 = vsub.s32 3, %v3599
  %v3601 = vrot.slane %v3193, %v3600
  %v3602 = vlaneseq
  %v3603 = vshrl.u32 %v3602, 7
  %v3604 = vsub.s32 3, %v3603
  %v3605 = vrot.slane %v3234, %v3604
  %v3606 = vlaneseq
  %v3607 = vshrl.u32 %v3606, 7
  %v3608 = vsub.s32 3, %v3607
  %v3609 = vrot.slane %v3236, %v3608
  %v3610 = vmul.f32 %v3549, %v3538
  %v3611 = vmul.f32 %v3553, %v3539
  %v3612 = vmul.f32 %v3557, %v3540
  %v3613 = vmul.f32 %v3561, %v3541
  %v3614 = vmul.f32 %v3565, %v3542
  %v3615 = vmul.f32 %v3569, %v3543
  %v3616 = vmul.f32 %v3573, %v3544
  %v3617 = vmul.f32 %v3577, %v3545
  %v3618 = vmul.f32 %v3581, %v3538
  %v3619 = vmul.f32 %v3585, %v3539
  %v3620 = vmul.f32 %v3589, %v3540
  %v3621 = vmul.f32 %v3593, %v3541
  %v3622 = vmul.f32 %v3597, %v3542
  %v3623 = vmul.f32 %v3601, %v3543
  %v3624 = vmul.f32 %v3605, %v3544
  %v3625 = vmul.f32 %v3609, %v3545
  %v3626 = vadd.f32 %v3521, %v3610
  %v3627 = vadd.f32 %v3522, %v3611
  %v3628 = vadd.f32 %v3523, %v3612
  %v3629 = vadd.f32 %v3524, %v3613
  %v3630 = vadd.f32 %v3525, %v3614
  %v3631 = vadd.f32 %v3526, %v3615
  %v3632 = vadd.f32 %v3527, %v3616
  %v3633 = vadd.f32 %v3528, %v3617
  %v3634 = vadd.f32 %v3529, %v3618
  %v3635 = vadd.f32 %v3530, %v3619
  %v3636 = vadd.f32 %v3531, %v3620
  %v3637 = vadd.f32 %v3532, %v3621
  %v3638 = vadd.f32 %v3533, %v3622
  %v3639 = vadd.f32 %v3534, %v3623
  %v3640 = vadd.f32 %v3535, %v3624
  %v3641 = vadd.f32 %v3536, %v3625
  %s3642 = scalar_lea.vmem %s5, 768
  %v3643 = vld [vmem:[%s3642] sm:$0xff]
  %v3644 = vld [vmem:[%s3642 + $0x8] sm:$0xff]
  %v3645 = vld [vmem:[%s3642 + $0x10] sm:$0xff]
  %v3646 = vld [vmem:[%s3642 + $0x18] sm:$0xff]
  %v3647 = vld [vmem:[%s3642 + $0x20] sm:$0xff]
  %v3648 = vld [vmem:[%s3642 + $0x28] sm:$0xff]
  %v3649 = vld [vmem:[%s3642 + $0x30] sm:$0xff]
  %v3650 = vld [vmem:[%s3642 + $0x38] sm:$0xff]
  %v3651 = vlaneseq
  %v3652 = vshrl.u32 %v3651, 7
  %v3653 = vsub.s32 4, %v3652
  %v3654 = vrot.slane %v3101, %v3653
  %v3655 = vlaneseq
  %v3656 = vshrl.u32 %v3655, 7
  %v3657 = vsub.s32 4, %v3656
  %v3658 = vrot.slane %v3103, %v3657
  %v3659 = vlaneseq
  %v3660 = vshrl.u32 %v3659, 7
  %v3661 = vsub.s32 4, %v3660
  %v3662 = vrot.slane %v3144, %v3661
  %v3663 = vlaneseq
  %v3664 = vshrl.u32 %v3663, 7
  %v3665 = vsub.s32 4, %v3664
  %v3666 = vrot.slane %v3146, %v3665
  %v3667 = vlaneseq
  %v3668 = vshrl.u32 %v3667, 7
  %v3669 = vsub.s32 4, %v3668
  %v3670 = vrot.slane %v3187, %v3669
  %v3671 = vlaneseq
  %v3672 = vshrl.u32 %v3671, 7
  %v3673 = vsub.s32 4, %v3672
  %v3674 = vrot.slane %v3189, %v3673
  %v3675 = vlaneseq
  %v3676 = vshrl.u32 %v3675, 7
  %v3677 = vsub.s32 4, %v3676
  %v3678 = vrot.slane %v3230, %v3677
  %v3679 = vlaneseq
  %v3680 = vshrl.u32 %v3679, 7
  %v3681 = vsub.s32 4, %v3680
  %v3682 = vrot.slane %v3232, %v3681
  %v3683 = vlaneseq
  %v3684 = vshrl.u32 %v3683, 7
  %v3685 = vsub.s32 4, %v3684
  %v3686 = vrot.slane %v3105, %v3685
  %v3687 = vlaneseq
  %v3688 = vshrl.u32 %v3687, 7
  %v3689 = vsub.s32 4, %v3688
  %v3690 = vrot.slane %v3107, %v3689
  %v3691 = vlaneseq
  %v3692 = vshrl.u32 %v3691, 7
  %v3693 = vsub.s32 4, %v3692
  %v3694 = vrot.slane %v3148, %v3693
  %v3695 = vlaneseq
  %v3696 = vshrl.u32 %v3695, 7
  %v3697 = vsub.s32 4, %v3696
  %v3698 = vrot.slane %v3150, %v3697
  %v3699 = vlaneseq
  %v3700 = vshrl.u32 %v3699, 7
  %v3701 = vsub.s32 4, %v3700
  %v3702 = vrot.slane %v3191, %v3701
  %v3703 = vlaneseq
  %v3704 = vshrl.u32 %v3703, 7
  %v3705 = vsub.s32 4, %v3704
  %v3706 = vrot.slane %v3193, %v3705
  %v3707 = vlaneseq
  %v3708 = vshrl.u32 %v3707, 7
  %v3709 = vsub.s32 4, %v3708
  %v3710 = vrot.slane %v3234, %v3709
  %v3711 = vlaneseq
  %v3712 = vshrl.u32 %v3711, 7
  %v3713 = vsub.s32 4, %v3712
  %v3714 = vrot.slane %v3236, %v3713
  %v3715 = vmul.f32 %v3654, %v3643
  %v3716 = vmul.f32 %v3658, %v3644
  %v3717 = vmul.f32 %v3662, %v3645
  %v3718 = vmul.f32 %v3666, %v3646
  %v3719 = vmul.f32 %v3670, %v3647
  %v3720 = vmul.f32 %v3674, %v3648
  %v3721 = vmul.f32 %v3678, %v3649
  %v3722 = vmul.f32 %v3682, %v3650
  %v3723 = vmul.f32 %v3686, %v3643
  %v3724 = vmul.f32 %v3690, %v3644
  %v3725 = vmul.f32 %v3694, %v3645
  %v3726 = vmul.f32 %v3698, %v3646
  %v3727 = vmul.f32 %v3702, %v3647
  %v3728 = vmul.f32 %v3706, %v3648
  %v3729 = vmul.f32 %v3710, %v3649
  %v3730 = vmul.f32 %v3714, %v3650
  %v3731 = vadd.f32 %v3626, %v3715
  %v3732 = vadd.f32 %v3627, %v3716
  %v3733 = vadd.f32 %v3628, %v3717
  %v3734 = vadd.f32 %v3629, %v3718
  %v3735 = vadd.f32 %v3630, %v3719
  %v3736 = vadd.f32 %v3631, %v3720
  %v3737 = vadd.f32 %v3632, %v3721
  %v3738 = vadd.f32 %v3633, %v3722
  %v3739 = vadd.f32 %v3634, %v3723
  %v3740 = vadd.f32 %v3635, %v3724
  %v3741 = vadd.f32 %v3636, %v3725
  %v3742 = vadd.f32 %v3637, %v3726
  %v3743 = vadd.f32 %v3638, %v3727
  %v3744 = vadd.f32 %v3639, %v3728
  %v3745 = vadd.f32 %v3640, %v3729
  %v3746 = vadd.f32 %v3641, %v3730
  %s3747 = scalar_lea.vmem %s5, 832
  %v3748 = vld [vmem:[%s3747] sm:$0xff]
  %v3749 = vld [vmem:[%s3747 + $0x8] sm:$0xff]
  %v3750 = vld [vmem:[%s3747 + $0x10] sm:$0xff]
  %v3751 = vld [vmem:[%s3747 + $0x18] sm:$0xff]
  %v3752 = vld [vmem:[%s3747 + $0x20] sm:$0xff]
  %v3753 = vld [vmem:[%s3747 + $0x28] sm:$0xff]
  %v3754 = vld [vmem:[%s3747 + $0x30] sm:$0xff]
  %v3755 = vld [vmem:[%s3747 + $0x38] sm:$0xff]
  %v3756 = vlaneseq
  %v3757 = vshrl.u32 %v3756, 7
  %v3758 = vsub.s32 5, %v3757
  %v3759 = vrot.slane %v3101, %v3758
  %v3760 = vlaneseq
  %v3761 = vshrl.u32 %v3760, 7
  %v3762 = vsub.s32 5, %v3761
  %v3763 = vrot.slane %v3103, %v3762
  %v3764 = vlaneseq
  %v3765 = vshrl.u32 %v3764, 7
  %v3766 = vsub.s32 5, %v3765
  %v3767 = vrot.slane %v3144, %v3766
  %v3768 = vlaneseq
  %v3769 = vshrl.u32 %v3768, 7
  %v3770 = vsub.s32 5, %v3769
  %v3771 = vrot.slane %v3146, %v3770
  %v3772 = vlaneseq
  %v3773 = vshrl.u32 %v3772, 7
  %v3774 = vsub.s32 5, %v3773
  %v3775 = vrot.slane %v3187, %v3774
  %v3776 = vlaneseq
  %v3777 = vshrl.u32 %v3776, 7
  %v3778 = vsub.s32 5, %v3777
  %v3779 = vrot.slane %v3189, %v3778
  %v3780 = vlaneseq
  %v3781 = vshrl.u32 %v3780, 7
  %v3782 = vsub.s32 5, %v3781
  %v3783 = vrot.slane %v3230, %v3782
  %v3784 = vlaneseq
  %v3785 = vshrl.u32 %v3784, 7
  %v3786 = vsub.s32 5, %v3785
  %v3787 = vrot.slane %v3232, %v3786
  %v3788 = vlaneseq
  %v3789 = vshrl.u32 %v3788, 7
  %v3790 = vsub.s32 5, %v3789
  %v3791 = vrot.slane %v3105, %v3790
  %v3792 = vlaneseq
  %v3793 = vshrl.u32 %v3792, 7
  %v3794 = vsub.s32 5, %v3793
  %v3795 = vrot.slane %v3107, %v3794
  %v3796 = vlaneseq
  %v3797 = vshrl.u32 %v3796, 7
  %v3798 = vsub.s32 5, %v3797
  %v3799 = vrot.slane %v3148, %v3798
  %v3800 = vlaneseq
  %v3801 = vshrl.u32 %v3800, 7
  %v3802 = vsub.s32 5, %v3801
  %v3803 = vrot.slane %v3150, %v3802
  %v3804 = vlaneseq
  %v3805 = vshrl.u32 %v3804, 7
  %v3806 = vsub.s32 5, %v3805
  %v3807 = vrot.slane %v3191, %v3806
  %v3808 = vlaneseq
  %v3809 = vshrl.u32 %v3808, 7
  %v3810 = vsub.s32 5, %v3809
  %v3811 = vrot.slane %v3193, %v3810
  %v3812 = vlaneseq
  %v3813 = vshrl.u32 %v3812, 7
  %v3814 = vsub.s32 5, %v3813
  %v3815 = vrot.slane %v3234, %v3814
  %v3816 = vlaneseq
  %v3817 = vshrl.u32 %v3816, 7
  %v3818 = vsub.s32 5, %v3817
  %v3819 = vrot.slane %v3236, %v3818
  %v3820 = vmul.f32 %v3759, %v3748
  %v3821 = vmul.f32 %v3763, %v3749
  %v3822 = vmul.f32 %v3767, %v3750
  %v3823 = vmul.f32 %v3771, %v3751
  %v3824 = vmul.f32 %v3775, %v3752
  %v3825 = vmul.f32 %v3779, %v3753
  %v3826 = vmul.f32 %v3783, %v3754
  %v3827 = vmul.f32 %v3787, %v3755
  %v3828 = vmul.f32 %v3791, %v3748
  %v3829 = vmul.f32 %v3795, %v3749
  %v3830 = vmul.f32 %v3799, %v3750
  %v3831 = vmul.f32 %v3803, %v3751
  %v3832 = vmul.f32 %v3807, %v3752
  %v3833 = vmul.f32 %v3811, %v3753
  %v3834 = vmul.f32 %v3815, %v3754
  %v3835 = vmul.f32 %v3819, %v3755
  %v3836 = vadd.f32 %v3731, %v3820
  %v3837 = vadd.f32 %v3732, %v3821
  %v3838 = vadd.f32 %v3733, %v3822
  %v3839 = vadd.f32 %v3734, %v3823
  %v3840 = vadd.f32 %v3735, %v3824
  %v3841 = vadd.f32 %v3736, %v3825
  %v3842 = vadd.f32 %v3737, %v3826
  %v3843 = vadd.f32 %v3738, %v3827
  %v3844 = vadd.f32 %v3739, %v3828
  %v3845 = vadd.f32 %v3740, %v3829
  %v3846 = vadd.f32 %v3741, %v3830
  %v3847 = vadd.f32 %v3742, %v3831
  %v3848 = vadd.f32 %v3743, %v3832
  %v3849 = vadd.f32 %v3744, %v3833
  %v3850 = vadd.f32 %v3745, %v3834
  %v3851 = vadd.f32 %v3746, %v3835
  %s3852 = scalar_lea.vmem %s5, 896
  %v3853 = vld [vmem:[%s3852] sm:$0xff]
  %v3854 = vld [vmem:[%s3852 + $0x8] sm:$0xff]
  %v3855 = vld [vmem:[%s3852 + $0x10] sm:$0xff]
  %v3856 = vld [vmem:[%s3852 + $0x18] sm:$0xff]
  %v3857 = vld [vmem:[%s3852 + $0x20] sm:$0xff]
  %v3858 = vld [vmem:[%s3852 + $0x28] sm:$0xff]
  %v3859 = vld [vmem:[%s3852 + $0x30] sm:$0xff]
  %v3860 = vld [vmem:[%s3852 + $0x38] sm:$0xff]
  %v3861 = vlaneseq
  %v3862 = vshrl.u32 %v3861, 7
  %v3863 = vsub.s32 6, %v3862
  %v3864 = vrot.slane %v3101, %v3863
  %v3865 = vlaneseq
  %v3866 = vshrl.u32 %v3865, 7
  %v3867 = vsub.s32 6, %v3866
  %v3868 = vrot.slane %v3103, %v3867
  %v3869 = vlaneseq
  %v3870 = vshrl.u32 %v3869, 7
  %v3871 = vsub.s32 6, %v3870
  %v3872 = vrot.slane %v3144, %v3871
  %v3873 = vlaneseq
  %v3874 = vshrl.u32 %v3873, 7
  %v3875 = vsub.s32 6, %v3874
  %v3876 = vrot.slane %v3146, %v3875
  %v3877 = vlaneseq
  %v3878 = vshrl.u32 %v3877, 7
  %v3879 = vsub.s32 6, %v3878
  %v3880 = vrot.slane %v3187, %v3879
  %v3881 = vlaneseq
  %v3882 = vshrl.u32 %v3881, 7
  %v3883 = vsub.s32 6, %v3882
  %v3884 = vrot.slane %v3189, %v3883
  %v3885 = vlaneseq
  %v3886 = vshrl.u32 %v3885, 7
  %v3887 = vsub.s32 6, %v3886
  %v3888 = vrot.slane %v3230, %v3887
  %v3889 = vlaneseq
  %v3890 = vshrl.u32 %v3889, 7
  %v3891 = vsub.s32 6, %v3890
  %v3892 = vrot.slane %v3232, %v3891
  %v3893 = vlaneseq
  %v3894 = vshrl.u32 %v3893, 7
  %v3895 = vsub.s32 6, %v3894
  %v3896 = vrot.slane %v3105, %v3895
  %v3897 = vlaneseq
  %v3898 = vshrl.u32 %v3897, 7
  %v3899 = vsub.s32 6, %v3898
  %v3900 = vrot.slane %v3107, %v3899
  %v3901 = vlaneseq
  %v3902 = vshrl.u32 %v3901, 7
  %v3903 = vsub.s32 6, %v3902
  %v3904 = vrot.slane %v3148, %v3903
  %v3905 = vlaneseq
  %v3906 = vshrl.u32 %v3905, 7
  %v3907 = vsub.s32 6, %v3906
  %v3908 = vrot.slane %v3150, %v3907
  %v3909 = vlaneseq
  %v3910 = vshrl.u32 %v3909, 7
  %v3911 = vsub.s32 6, %v3910
  %v3912 = vrot.slane %v3191, %v3911
  %v3913 = vlaneseq
  %v3914 = vshrl.u32 %v3913, 7
  %v3915 = vsub.s32 6, %v3914
  %v3916 = vrot.slane %v3193, %v3915
  %v3917 = vlaneseq
  %v3918 = vshrl.u32 %v3917, 7
  %v3919 = vsub.s32 6, %v3918
  %v3920 = vrot.slane %v3234, %v3919
  %v3921 = vlaneseq
  %v3922 = vshrl.u32 %v3921, 7
  %v3923 = vsub.s32 6, %v3922
  %v3924 = vrot.slane %v3236, %v3923
  %v3925 = vmul.f32 %v3864, %v3853
  %v3926 = vmul.f32 %v3868, %v3854
  %v3927 = vmul.f32 %v3872, %v3855
  %v3928 = vmul.f32 %v3876, %v3856
  %v3929 = vmul.f32 %v3880, %v3857
  %v3930 = vmul.f32 %v3884, %v3858
  %v3931 = vmul.f32 %v3888, %v3859
  %v3932 = vmul.f32 %v3892, %v3860
  %v3933 = vmul.f32 %v3896, %v3853
  %v3934 = vmul.f32 %v3900, %v3854
  %v3935 = vmul.f32 %v3904, %v3855
  %v3936 = vmul.f32 %v3908, %v3856
  %v3937 = vmul.f32 %v3912, %v3857
  %v3938 = vmul.f32 %v3916, %v3858
  %v3939 = vmul.f32 %v3920, %v3859
  %v3940 = vmul.f32 %v3924, %v3860
  %v3941 = vadd.f32 %v3836, %v3925
  %v3942 = vadd.f32 %v3837, %v3926
  %v3943 = vadd.f32 %v3838, %v3927
  %v3944 = vadd.f32 %v3839, %v3928
  %v3945 = vadd.f32 %v3840, %v3929
  %v3946 = vadd.f32 %v3841, %v3930
  %v3947 = vadd.f32 %v3842, %v3931
  %v3948 = vadd.f32 %v3843, %v3932
  %v3949 = vadd.f32 %v3844, %v3933
  %v3950 = vadd.f32 %v3845, %v3934
  %v3951 = vadd.f32 %v3846, %v3935
  %v3952 = vadd.f32 %v3847, %v3936
  %v3953 = vadd.f32 %v3848, %v3937
  %v3954 = vadd.f32 %v3849, %v3938
  %v3955 = vadd.f32 %v3850, %v3939
  %v3956 = vadd.f32 %v3851, %v3940
  %s3957 = scalar_lea.vmem %s5, 960
  %v3958 = vld [vmem:[%s3957] sm:$0xff]
  %v3959 = vld [vmem:[%s3957 + $0x8] sm:$0xff]
  %v3960 = vld [vmem:[%s3957 + $0x10] sm:$0xff]
  %v3961 = vld [vmem:[%s3957 + $0x18] sm:$0xff]
  %v3962 = vld [vmem:[%s3957 + $0x20] sm:$0xff]
  %v3963 = vld [vmem:[%s3957 + $0x28] sm:$0xff]
  %v3964 = vld [vmem:[%s3957 + $0x30] sm:$0xff]
  %v3965 = vld [vmem:[%s3957 + $0x38] sm:$0xff]
  %v3966 = vlaneseq
  %v3967 = vshrl.u32 %v3966, 7
  %v3968 = vsub.s32 7, %v3967
  %v3969 = vrot.slane %v3101, %v3968
  %v3970 = vlaneseq
  %v3971 = vshrl.u32 %v3970, 7
  %v3972 = vsub.s32 7, %v3971
  %v3973 = vrot.slane %v3103, %v3972
  %v3974 = vlaneseq
  %v3975 = vshrl.u32 %v3974, 7
  %v3976 = vsub.s32 7, %v3975
  %v3977 = vrot.slane %v3144, %v3976
  %v3978 = vlaneseq
  %v3979 = vshrl.u32 %v3978, 7
  %v3980 = vsub.s32 7, %v3979
  %v3981 = vrot.slane %v3146, %v3980
  %v3982 = vlaneseq
  %v3983 = vshrl.u32 %v3982, 7
  %v3984 = vsub.s32 7, %v3983
  %v3985 = vrot.slane %v3187, %v3984
  %v3986 = vlaneseq
  %v3987 = vshrl.u32 %v3986, 7
  %v3988 = vsub.s32 7, %v3987
  %v3989 = vrot.slane %v3189, %v3988
  %v3990 = vlaneseq
  %v3991 = vshrl.u32 %v3990, 7
  %v3992 = vsub.s32 7, %v3991
  %v3993 = vrot.slane %v3230, %v3992
  %v3994 = vlaneseq
  %v3995 = vshrl.u32 %v3994, 7
  %v3996 = vsub.s32 7, %v3995
  %v3997 = vrot.slane %v3232, %v3996
  %v3998 = vlaneseq
  %v3999 = vshrl.u32 %v3998, 7
  %v4000 = vsub.s32 7, %v3999
  %v4001 = vrot.slane %v3105, %v4000
  %v4002 = vlaneseq
  %v4003 = vshrl.u32 %v4002, 7
  %v4004 = vsub.s32 7, %v4003
  %v4005 = vrot.slane %v3107, %v4004
  %v4006 = vlaneseq
  %v4007 = vshrl.u32 %v4006, 7
  %v4008 = vsub.s32 7, %v4007
  %v4009 = vrot.slane %v3148, %v4008
  %v4010 = vlaneseq
  %v4011 = vshrl.u32 %v4010, 7
  %v4012 = vsub.s32 7, %v4011
  %v4013 = vrot.slane %v3150, %v4012
  %v4014 = vlaneseq
  %v4015 = vshrl.u32 %v4014, 7
  %v4016 = vsub.s32 7, %v4015
  %v4017 = vrot.slane %v3191, %v4016
  %v4018 = vlaneseq
  %v4019 = vshrl.u32 %v4018, 7
  %v4020 = vsub.s32 7, %v4019
  %v4021 = vrot.slane %v3193, %v4020
  %v4022 = vlaneseq
  %v4023 = vshrl.u32 %v4022, 7
  %v4024 = vsub.s32 7, %v4023
  %v4025 = vrot.slane %v3234, %v4024
  %v4026 = vlaneseq
  %v4027 = vshrl.u32 %v4026, 7
  %v4028 = vsub.s32 7, %v4027
  %v4029 = vrot.slane %v3236, %v4028
  %v4030 = vmul.f32 %v3969, %v3958
  %v4031 = vmul.f32 %v3973, %v3959
  %v4032 = vmul.f32 %v3977, %v3960
  %v4033 = vmul.f32 %v3981, %v3961
  %v4034 = vmul.f32 %v3985, %v3962
  %v4035 = vmul.f32 %v3989, %v3963
  %v4036 = vmul.f32 %v3993, %v3964
  %v4037 = vmul.f32 %v3997, %v3965
  %v4038 = vmul.f32 %v4001, %v3958
  %v4039 = vmul.f32 %v4005, %v3959
  %v4040 = vmul.f32 %v4009, %v3960
  %v4041 = vmul.f32 %v4013, %v3961
  %v4042 = vmul.f32 %v4017, %v3962
  %v4043 = vmul.f32 %v4021, %v3963
  %v4044 = vmul.f32 %v4025, %v3964
  %v4045 = vmul.f32 %v4029, %v3965
  %v4046 = vadd.f32 %v3941, %v4030
  %v4047 = vadd.f32 %v3942, %v4031
  %v4048 = vadd.f32 %v3943, %v4032
  %v4049 = vadd.f32 %v3944, %v4033
  %v4050 = vadd.f32 %v3945, %v4034
  %v4051 = vadd.f32 %v3946, %v4035
  %v4052 = vadd.f32 %v3947, %v4036
  %v4053 = vadd.f32 %v3948, %v4037
  %v4054 = vadd.f32 %v3949, %v4038
  %v4055 = vadd.f32 %v3950, %v4039
  %v4056 = vadd.f32 %v3951, %v4040
  %v4057 = vadd.f32 %v3952, %v4041
  %v4058 = vadd.f32 %v3953, %v4042
  %v4059 = vadd.f32 %v3954, %v4043
  %v4060 = vadd.f32 %v3955, %v4044
  %v4061 = vadd.f32 %v3956, %v4045
  %v4062 = vpack.c.bf16 %v4054, %v4046
  %v4063 = vpack.c.bf16 %v4055, %v4047
  %v4064 = vpack.c.bf16 %v4056, %v4048
  %v4065 = vpack.c.bf16 %v4057, %v4049
  %v4066 = vpack.c.bf16 %v4058, %v4050
  %v4067 = vpack.c.bf16 %v4059, %v4051
  %v4068 = vpack.c.bf16 %v4060, %v4052
  %v4069 = vpack.c.bf16 %v4061, %v4053
  %s4070 = scalar_lea.vmem %s6, 16
  %v4071 = vld [vmem:[%s4070] sm:$0xff]
  %v4072 = vld [vmem:[%s4070 + $0x8] sm:$0xff]
  %s4073 = scalar_lea.vmem %s7, 16
  %v4074 = vld [vmem:[%s4073] sm:$0xff]
  %v4075 = vld [vmem:[%s4073 + $0x8] sm:$0xff]
  %4077 = vset.pattern.permute.xlu0 0
  %4078 = vperm.xlu0 %4077, %v4074
  %v4079 = vpop.permute.xlu0 %4078
  %4082 = vset.pattern.permute.xlu0 0
  %4083 = vperm.xlu0 %4082, %v4075
  %v4084 = vpop.permute.xlu0 %4083
  %v4087 = vsel %vm2060, %v4071, 0
  %v4090 = vsel %vm2060, %v4072, 0
  %4092 = vmatprep.subr.mxu0 %v3061
  %4093 = vmatpush1.msra.mxu0 %v3060
  %4094 = vmatprep.subr.mxu0 %v3063
  %4095 = vmatpush1.msra.mxu0 %v3062
  %4096 = vmatprep.subr.mxu0 0.0
  %4097 = vmatpush1.msra.mxu0 0.0
  %4098 = vmatprep.subr.mxu0 0.0
  %4099 = vmatpush1.msra.mxu0 0.0
  %4100 = vmatprep.subr.mxu0 0.0
  %4101 = vmatpush1.msra.mxu0 0.0
  %4102 = vmatprep.subr.mxu0 0.0
  %4103 = vmatpush1.msra.mxu0 0.0
  %4104 = vmatprep.subr.mxu0 0.0
  %4105 = vmatpush1.msra.mxu0 0.0
  %4106 = vmatprep.subr.mxu0 0.0
  %4107 = vmatpush1.msra.mxu0 0.0
  %4108 = vmatprep.subr.mxu0 0.0
  %4109 = vmatpush1.msra.mxu0 0.0
  %4110 = vmatprep.subr.mxu0 0.0
  %4111 = vmatpush1.msra.mxu0 0.0
  %4112 = vmatprep.subr.mxu0 0.0
  %4113 = vmatpush1.msra.mxu0 0.0
  %4114 = vmatprep.subr.mxu0 0.0
  %4115 = vmatpush1.msra.mxu0 0.0
  %4116 = vmatprep.subr.mxu0 0.0
  %4117 = vmatpush1.msra.mxu0 0.0
  %4118 = vmatprep.subr.mxu0 0.0
  %4119 = vmatpush1.msra.mxu0 0.0
  %4120 = vmatprep.subr.mxu0 0.0
  %4121 = vmatpush1.msra.mxu0 0.0
  %4122 = vmatprep.subr.mxu0 0.0
  %4123 = vmatpush1.msra.mxu0 0.0
  %4124 = vmatprep.subr.mxu0 0.0
  %4125 = vmatpush1.msra.mxu0 0.0
  %4126 = vmatprep.subr.mxu0 0.0
  %4127 = vmatpush1.msra.mxu0 0.0
  %4128 = vmatprep.subr.mxu0 0.0
  %4129 = vmatpush1.msra.mxu0 0.0
  %4130 = vmatprep.subr.mxu0 0.0
  %4131 = vmatpush1.msra.mxu0 0.0
  %4132 = vmatprep.subr.mxu0 0.0
  %4133 = vmatpush1.msra.mxu0 0.0
  %4134 = vmatprep.subr.mxu0 0.0
  %4135 = vmatpush1.msra.mxu0 0.0
  %4136 = vmatprep.subr.mxu0 0.0
  %4137 = vmatpush1.msra.mxu0 0.0
  %4138 = vmatprep.subr.mxu0 0.0
  %4139 = vmatpush1.msra.mxu0 0.0
  %4140 = vmatprep.subr.mxu0 0.0
  %4141 = vmatpush1.msra.mxu0 0.0
  %4142 = vmatprep.subr.mxu0 0.0
  %4143 = vmatpush1.msra.mxu0 0.0
  %4144 = vmatprep.subr.mxu0 0.0
  %4145 = vmatpush1.msra.mxu0 0.0
  %4146 = vmatprep.subr.mxu0 0.0
  %4147 = vmatpush1.msra.mxu0 0.0
  %4148 = vmatprep.subr.mxu0 0.0
  %4149 = vmatpush1.msra.mxu0 0.0
  %4150 = vmatprep.subr.mxu0 0.0
  %4151 = vmatpush1.msra.mxu0 0.0
  %4152 = vmatprep.subr.mxu0 0.0
  %4153 = vmatpush1.msra.mxu0 0.0
  %4154 = vmatprep.subr.mxu0 0.0
  %4155 = vmatpush1.msra.mxu0 0.0
  %4156 = vmatprep.mubr.f32.mxu0 0.0
  %4157 = vmatmul.mubr.f32.gmra.mrb[0].mxu0 %v4087
  %v4158 = vpop.f32.mrb[0].mxu0
  %v4159 = vadd.f32 %v4079, %v4158
  %v4160 = vpop.f32.mrb[0].mxu0
  %v4161 = vadd.f32 %v4079, %v4160
  %4162 = vmatprep.mubr.f32.mxu0 0.0
  %4163 = vmatmul.mubr.f32.gmra.mrb[0].mxu0 %v4090
  %v4164 = vpop.f32.mrb[0].mxu0
  %v4165 = vadd.f32 %v4084, %v4164
  %v4166 = vpop.f32.mrb[0].mxu0
  %v4167 = vadd.f32 %v4084, %v4166
  %4168 = vdwg.mxu0
  %4169 = vmatprep.subr.bf16.mxu0 %v2529
  %4170 = vmatpush1.bf16.msra.mxu0 %v2528
  %4171 = vmatprep.subr.bf16.mxu0 %v2531
  %4172 = vmatpush1.bf16.msra.mxu0 %v2530
  %4173 = vmatprep.subr.bf16.mxu0 %v2533
  %4174 = vmatpush1.bf16.msra.mxu0 %v2532
  %4175 = vmatprep.subr.bf16.mxu0 %v2535
  %4176 = vmatpush1.bf16.msra.mxu0 %v2534
  %4177 = vmatprep.subr.bf16.mxu0 %v2537
  %4178 = vmatpush1.bf16.msra.mxu0 %v2536
  %4179 = vmatprep.subr.bf16.mxu0 %v2539
  %4180 = vmatpush1.bf16.msra.mxu0 %v2538
  %4181 = vmatprep.subr.bf16.mxu0 %v2541
  %4182 = vmatpush1.bf16.msra.mxu0 %v2540
  %4183 = vmatprep.subr.bf16.mxu0 %v2543
  %4184 = vmatpush1.bf16.msra.mxu0 %v2542
  %4185 = vmatprep.subr.bf16.mxu0 %v2545
  %4186 = vmatpush1.bf16.msra.mxu0 %v2544
  %4187 = vmatprep.subr.bf16.mxu0 %v2547
  %4188 = vmatpush1.bf16.msra.mxu0 %v2546
  %4189 = vmatprep.subr.bf16.mxu0 %v2549
  %4190 = vmatpush1.bf16.msra.mxu0 %v2548
  %4191 = vmatprep.subr.bf16.mxu0 %v2551
  %4192 = vmatpush1.bf16.msra.mxu0 %v2550
  %4193 = vmatprep.subr.bf16.mxu0 %v2553
  %4194 = vmatpush1.bf16.msra.mxu0 %v2552
  %4195 = vmatprep.subr.bf16.mxu0 %v2555
  %4196 = vmatpush1.bf16.msra.mxu0 %v2554
  %4197 = vmatprep.subr.bf16.mxu0 %v2557
  %4198 = vmatpush1.bf16.msra.mxu0 %v2556
  %4199 = vmatprep.subr.bf16.mxu0 %v2559
  %4200 = vmatpush1.bf16.msra.mxu0 %v2558
  %4201 = vmatprep.mubr.bf16.mxu0 %v4063
  %4202 = vmatmul.mubr.bf16.gmra.mrb[0].mxu0 %v4062
  %v4203 = vpop.f32.mrb[0].mxu0
  %v4204 = vadd.f32 %v4159, %v4203
  %v4205 = vpop.f32.mrb[0].mxu0
  %v4206 = vadd.f32 %v4161, %v4205
  %v4207 = vpop.f32.mrb[0].mxu0
  %v4208 = vadd.f32 %v4165, %v4207
  %v4209 = vpop.f32.mrb[0].mxu0
  %v4210 = vadd.f32 %v4167, %v4209
  %4211 = vdwg.mxu0
  %4212 = vmatprep.subr.bf16.mxu0 %v2561
  %4213 = vmatpush1.bf16.msra.mxu0 %v2560
  %4214 = vmatprep.subr.bf16.mxu0 %v2563
  %4215 = vmatpush1.bf16.msra.mxu0 %v2562
  %4216 = vmatprep.subr.bf16.mxu0 %v2565
  %4217 = vmatpush1.bf16.msra.mxu0 %v2564
  %4218 = vmatprep.subr.bf16.mxu0 %v2567
  %4219 = vmatpush1.bf16.msra.mxu0 %v2566
  %4220 = vmatprep.subr.bf16.mxu0 %v2569
  %4221 = vmatpush1.bf16.msra.mxu0 %v2568
  %4222 = vmatprep.subr.bf16.mxu0 %v2571
  %4223 = vmatpush1.bf16.msra.mxu0 %v2570
  %4224 = vmatprep.subr.bf16.mxu0 %v2573
  %4225 = vmatpush1.bf16.msra.mxu0 %v2572
  %4226 = vmatprep.subr.bf16.mxu0 %v2575
  %4227 = vmatpush1.bf16.msra.mxu0 %v2574
  %4228 = vmatprep.subr.bf16.mxu0 %v2577
  %4229 = vmatpush1.bf16.msra.mxu0 %v2576
  %4230 = vmatprep.subr.bf16.mxu0 %v2579
  %4231 = vmatpush1.bf16.msra.mxu0 %v2578
  %4232 = vmatprep.subr.bf16.mxu0 %v2581
  %4233 = vmatpush1.bf16.msra.mxu0 %v2580
  %4234 = vmatprep.subr.bf16.mxu0 %v2583
  %4235 = vmatpush1.bf16.msra.mxu0 %v2582
  %4236 = vmatprep.subr.bf16.mxu0 %v2585
  %4237 = vmatpush1.bf16.msra.mxu0 %v2584
  %4238 = vmatprep.subr.bf16.mxu0 %v2587
  %4239 = vmatpush1.bf16.msra.mxu0 %v2586
  %4240 = vmatprep.subr.bf16.mxu0 %v2589
  %4241 = vmatpush1.bf16.msra.mxu0 %v2588
  %4242 = vmatprep.subr.bf16.mxu0 %v2591
  %4243 = vmatpush1.bf16.msra.mxu0 %v2590
  %4244 = vmatprep.mubr.bf16.mxu0 %v4065
  %4245 = vmatmul.mubr.bf16.gmra.mrb[0].mxu0 %v4064
  %v4246 = vpop.f32.mrb[0].mxu0
  %v4247 = vadd.f32 %v4204, %v4246
  %v4248 = vpop.f32.mrb[0].mxu0
  %v4249 = vadd.f32 %v4206, %v4248
  %v4250 = vpop.f32.mrb[0].mxu0
  %v4251 = vadd.f32 %v4208, %v4250
  %v4252 = vpop.f32.mrb[0].mxu0
  %v4253 = vadd.f32 %v4210, %v4252
  %4254 = vdwg.mxu0
  %4255 = vmatprep.subr.bf16.mxu0 %v2593
  %4256 = vmatpush1.bf16.msra.mxu0 %v2592
  %4257 = vmatprep.subr.bf16.mxu0 %v2595
  %4258 = vmatpush1.bf16.msra.mxu0 %v2594
  %4259 = vmatprep.subr.bf16.mxu0 %v2597
  %4260 = vmatpush1.bf16.msra.mxu0 %v2596
  %4261 = vmatprep.subr.bf16.mxu0 %v2599
  %4262 = vmatpush1.bf16.msra.mxu0 %v2598
  %4263 = vmatprep.subr.bf16.mxu0 %v2601
  %4264 = vmatpush1.bf16.msra.mxu0 %v2600
  %4265 = vmatprep.subr.bf16.mxu0 %v2603
  %4266 = vmatpush1.bf16.msra.mxu0 %v2602
  %4267 = vmatprep.subr.bf16.mxu0 %v2605
  %4268 = vmatpush1.bf16.msra.mxu0 %v2604
  %4269 = vmatprep.subr.bf16.mxu0 %v2607
  %4270 = vmatpush1.bf16.msra.mxu0 %v2606
  %4271 = vmatprep.subr.bf16.mxu0 %v2609
  %4272 = vmatpush1.bf16.msra.mxu0 %v2608
  %4273 = vmatprep.subr.bf16.mxu0 %v2611
  %4274 = vmatpush1.bf16.msra.mxu0 %v2610
  %4275 = vmatprep.subr.bf16.mxu0 %v2613
  %4276 = vmatpush1.bf16.msra.mxu0 %v2612
  %4277 = vmatprep.subr.bf16.mxu0 %v2615
  %4278 = vmatpush1.bf16.msra.mxu0 %v2614
  %4279 = vmatprep.subr.bf16.mxu0 %v2617
  %4280 = vmatpush1.bf16.msra.mxu0 %v2616
  %4281 = vmatprep.subr.bf16.mxu0 %v2619
  %4282 = vmatpush1.bf16.msra.mxu0 %v2618
  %4283 = vmatprep.subr.bf16.mxu0 %v2621
  %4284 = vmatpush1.bf16.msra.mxu0 %v2620
  %4285 = vmatprep.subr.bf16.mxu0 %v2623
  %4286 = vmatpush1.bf16.msra.mxu0 %v2622
  %4287 = vmatprep.mubr.bf16.mxu0 %v4067
  %4288 = vmatmul.mubr.bf16.gmra.mrb[0].mxu0 %v4066
  %v4289 = vpop.f32.mrb[0].mxu0
  %v4290 = vadd.f32 %v4247, %v4289
  %v4291 = vpop.f32.mrb[0].mxu0
  %v4292 = vadd.f32 %v4249, %v4291
  %v4293 = vpop.f32.mrb[0].mxu0
  %v4294 = vadd.f32 %v4251, %v4293
  %v4295 = vpop.f32.mrb[0].mxu0
  %v4296 = vadd.f32 %v4253, %v4295
  %4297 = vdwg.mxu0
  %4298 = vmatprep.subr.bf16.mxu0 %v2625
  %4299 = vmatpush1.bf16.msra.mxu0 %v2624
  %4300 = vmatprep.subr.bf16.mxu0 %v2627
  %4301 = vmatpush1.bf16.msra.mxu0 %v2626
  %4302 = vmatprep.subr.bf16.mxu0 %v2629
  %4303 = vmatpush1.bf16.msra.mxu0 %v2628
  %4304 = vmatprep.subr.bf16.mxu0 %v2631
  %4305 = vmatpush1.bf16.msra.mxu0 %v2630
  %4306 = vmatprep.subr.bf16.mxu0 %v2633
  %4307 = vmatpush1.bf16.msra.mxu0 %v2632
  %4308 = vmatprep.subr.bf16.mxu0 %v2635
  %4309 = vmatpush1.bf16.msra.mxu0 %v2634
  %4310 = vmatprep.subr.bf16.mxu0 %v2637
  %4311 = vmatpush1.bf16.msra.mxu0 %v2636
  %4312 = vmatprep.subr.bf16.mxu0 %v2639
  %4313 = vmatpush1.bf16.msra.mxu0 %v2638
  %4314 = vmatprep.subr.bf16.mxu0 %v2641
  %4315 = vmatpush1.bf16.msra.mxu0 %v2640
  %4316 = vmatprep.subr.bf16.mxu0 %v2643
  %4317 = vmatpush1.bf16.msra.mxu0 %v2642
  %4318 = vmatprep.subr.bf16.mxu0 %v2645
  %4319 = vmatpush1.bf16.msra.mxu0 %v2644
  %4320 = vmatprep.subr.bf16.mxu0 %v2647
  %4321 = vmatpush1.bf16.msra.mxu0 %v2646
  %4322 = vmatprep.subr.bf16.mxu0 %v2649
  %4323 = vmatpush1.bf16.msra.mxu0 %v2648
  %4324 = vmatprep.subr.bf16.mxu0 %v2651
  %4325 = vmatpush1.bf16.msra.mxu0 %v2650
  %4326 = vmatprep.subr.bf16.mxu0 %v2653
  %4327 = vmatpush1.bf16.msra.mxu0 %v2652
  %4328 = vmatprep.subr.bf16.mxu0 %v2655
  %4329 = vmatpush1.bf16.msra.mxu0 %v2654
  %4330 = vmatprep.mubr.bf16.mxu0 %v4069
  %4331 = vmatmul.mubr.bf16.gmra.mrb[0].mxu0 %v4068
  %v4332 = vpop.f32.mrb[0].mxu0
  %v4333 = vadd.f32 %v4290, %v4332
  %v4334 = vpop.f32.mrb[0].mxu0
  %v4335 = vadd.f32 %v4292, %v4334
  %v4336 = vpop.f32.mrb[0].mxu0
  %v4337 = vadd.f32 %v4294, %v4336
  %v4338 = vpop.f32.mrb[0].mxu0
  %v4339 = vadd.f32 %v4296, %v4338
  %4340 = vdwg.mxu0
  %v4341 = vmul.f32 %v4333, 0.5
  %v4342 = vmul.f32 %v4335, 0.5
  %v4343 = vmul.f32 %v4337, 0.5
  %v4344 = vmul.f32 %v4339, 0.5
  %v4345 = vmul.f32 %v4333, 0.70710677
  %v4346 = vmul.f32 %v4335, 0.70710677
  %v4347 = vmul.f32 %v4337, 0.70710677
  %v4348 = vmul.f32 %v4339, 0.70710677
  %v4349 = vand.u32 2147483647, %v4345
  %v4350 = vand.u32 2147483647, %v4346
  %v4351 = vand.u32 2147483647, %v4347
  %v4352 = vand.u32 2147483647, %v4348
  %v4353 = vmul.f32 %v4349, 0.3275911
  %v4354 = vmul.f32 %v4350, 0.3275911
  %v4355 = vmul.f32 %v4351, 0.3275911
  %v4356 = vmul.f32 %v4352, 0.3275911
  %v4357 = vadd.f32 %v4353, 1.0
  %v4358 = vadd.f32 %v4354, 1.0
  %v4359 = vadd.f32 %v4355, 1.0
  %v4360 = vadd.f32 %v4356, 1.0
  %v4361 = vrcp.pop %v4357
  %v4362 = vmul.f32 1.0, %v4361
  %v4363 = vrcp.pop %v4358
  %v4364 = vmul.f32 1.0, %v4363
  %v4365 = vrcp.pop %v4359
  %v4366 = vmul.f32 1.0, %v4365
  %v4367 = vrcp.pop %v4360
  %v4368 = vmul.f32 1.0, %v4367
  %v4369 = vmul.f32 %v4362, 1.0614054
  %v4370 = vmul.f32 %v4364, 1.0614054
  %v4371 = vmul.f32 %v4366, 1.0614054
  %v4372 = vmul.f32 %v4368, 1.0614054
  %v4373 = vadd.f32 %v4369, -1.4531521
  %v4374 = vadd.f32 %v4370, -1.4531521
  %v4375 = vadd.f32 %v4371, -1.4531521
  %v4376 = vadd.f32 %v4372, -1.4531521
  %v4377 = vmul.f32 %v4373, %v4362
  %v4378 = vmul.f32 %v4374, %v4364
  %v4379 = vmul.f32 %v4375, %v4366
  %v4380 = vmul.f32 %v4376, %v4368
  %v4381 = vadd.f32 %v4377, 1.4214138
  %v4382 = vadd.f32 %v4378, 1.4214138
  %v4383 = vadd.f32 %v4379, 1.4214138
  %v4384 = vadd.f32 %v4380, 1.4214138
  %v4385 = vmul.f32 %v4381, %v4362
  %v4386 = vmul.f32 %v4382, %v4364
  %v4387 = vmul.f32 %v4383, %v4366
  %v4388 = vmul.f32 %v4384, %v4368
  %v4389 = vadd.f32 %v4385, -0.28449672
  %v4390 = vadd.f32 %v4386, -0.28449672
  %v4391 = vadd.f32 %v4387, -0.28449672
  %v4392 = vadd.f32 %v4388, -0.28449672
  %v4393 = vmul.f32 %v4389, %v4362
  %v4394 = vmul.f32 %v4390, %v4364
  %v4395 = vmul.f32 %v4391, %v4366
  %v4396 = vmul.f32 %v4392, %v4368
  %v4397 = vadd.f32 %v4393, 0.2548296
  %v4398 = vadd.f32 %v4394, 0.2548296
  %v4399 = vadd.f32 %v4395, 0.2548296
  %v4400 = vadd.f32 %v4396, 0.2548296
  %v4401 = vmul.f32 %v4397, %v4362
  %v4402 = vmul.f32 %v4398, %v4364
  %v4403 = vmul.f32 %v4399, %v4366
  %v4404 = vmul.f32 %v4400, %v4368
  %v4405 = vmul.f32 %v4349, %v4349
  %v4406 = vmul.f32 %v4350, %v4350
  %v4407 = vmul.f32 %v4351, %v4351
  %v4408 = vmul.f32 %v4352, %v4352
  %v4409 = vsub.f32 0.0, %v4405
  %v4410 = vsub.f32 0.0, %v4406
  %v4411 = vsub.f32 0.0, %v4407
  %v4412 = vsub.f32 0.0, %v4408
  %v4413 = vmul.f32 %v4409, 1.442695
  %v4414 = vpow.pop %v4413
  %v4415 = vmul.f32 %v4410, 1.442695
  %v4416 = vpow.pop %v4415
  %v4417 = vmul.f32 %v4411, 1.442695
  %v4418 = vpow.pop %v4417
  %v4419 = vmul.f32 %v4412, 1.442695
  %v4420 = vpow.pop %v4419
  %v4421 = vmul.f32 %v4401, %v4414
  %v4422 = vmul.f32 %v4402, %v4416
  %v4423 = vmul.f32 %v4403, %v4418
  %v4424 = vmul.f32 %v4404, %v4420
  %v4425 = vsub.f32 1.0, %v4421
  %v4426 = vsub.f32 1.0, %v4422
  %v4427 = vsub.f32 1.0, %v4423
  %v4428 = vsub.f32 1.0, %v4424
  %vm4429 = vcmp.lt.f32.partialorder %v4345, 0.0
  %vm4430 = vcmp.lt.f32.partialorder %v4346, 0.0
  %vm4431 = vcmp.lt.f32.partialorder %v4347, 0.0
  %vm4432 = vcmp.lt.f32.partialorder %v4348, 0.0
  %v4433 = vsub.f32 0.0, %v4425
  %v4434 = vsub.f32 0.0, %v4426
  %v4435 = vsub.f32 0.0, %v4427
  %v4436 = vsub.f32 0.0, %v4428
  %v4437 = vsel %vm4429, %v4433, %v4425
  %v4438 = vsel %vm4430, %v4434, %v4426
  %v4439 = vsel %vm4431, %v4435, %v4427
  %v4440 = vsel %vm4432, %v4436, %v4428
  %v4441 = vadd.f32 %v4437, 1.0
  %v4442 = vadd.f32 %v4438, 1.0
  %v4443 = vadd.f32 %v4439, 1.0
  %v4444 = vadd.f32 %v4440, 1.0
  %v4445 = vmul.f32 %v4341, %v4441
  %v4446 = vmul.f32 %v4342, %v4442
  %v4447 = vmul.f32 %v4343, %v4443
  %v4448 = vmul.f32 %v4344, %v4444
  %v4449 = vpack.c.bf16 %v4447, %v4445
  %v4450 = vpack.c.bf16 %v4448, %v4446
  %4451 = vmatprep.subr.bf16.mxu0 %v660
  %4452 = vmatpush1.bf16.msra.mxu0 %v659
  %4453 = vmatprep.subr.bf16.mxu0 %v668
  %4454 = vmatpush1.bf16.msra.mxu0 %v667
  %4455 = vmatprep.subr.bf16.mxu0 %v676
  %4456 = vmatpush1.bf16.msra.mxu0 %v675
  %4457 = vmatprep.subr.bf16.mxu0 %v684
  %4458 = vmatpush1.bf16.msra.mxu0 %v683
  %4459 = vmatprep.subr.bf16.mxu0 %v692
  %4460 = vmatpush1.bf16.msra.mxu0 %v691
  %4461 = vmatprep.subr.bf16.mxu0 %v700
  %4462 = vmatpush1.bf16.msra.mxu0 %v699
  %4463 = vmatprep.subr.bf16.mxu0 %v708
  %4464 = vmatpush1.bf16.msra.mxu0 %v707
  %4465 = vmatprep.subr.bf16.mxu0 %v716
  %4466 = vmatpush1.bf16.msra.mxu0 %v715
  %4467 = vmatprep.subr.bf16.mxu0 %v724
  %4468 = vmatpush1.bf16.msra.mxu0 %v723
  %4469 = vmatprep.subr.bf16.mxu0 %v732
  %4470 = vmatpush1.bf16.msra.mxu0 %v731
  %4471 = vmatprep.subr.bf16.mxu0 %v740
  %4472 = vmatpush1.bf16.msra.mxu0 %v739
  %4473 = vmatprep.subr.bf16.mxu0 %v748
  %4474 = vmatpush1.bf16.msra.mxu0 %v747
  %4475 = vmatprep.subr.bf16.mxu0 %v756
  %4476 = vmatpush1.bf16.msra.mxu0 %v755
  %4477 = vmatprep.subr.bf16.mxu0 %v764
  %4478 = vmatpush1.bf16.msra.mxu0 %v763
  %4479 = vmatprep.subr.bf16.mxu0 %v772
  %4480 = vmatpush1.bf16.msra.mxu0 %v771
  %4481 = vmatprep.subr.bf16.mxu0 %v780
  %4482 = vmatpush1.bf16.msra.mxu0 %v779
  %4483 = vmatprep.mubr.bf16.mxu0 %v4450
  %4484 = vmatmul.mubr.bf16.gmra.mrb[0].mxu0 %v4449
  %v4485 = vpop.f32.mrb[0].mxu0
  %v4486 = vadd.f32 0.0, %v4485
  %v4487 = vpop.f32.mrb[0].mxu0
  %v4488 = vadd.f32 0.0, %v4487
  %v4489 = vpop.f32.mrb[0].mxu0
  %v4490 = vadd.f32 0.0, %v4489
  %v4491 = vpop.f32.mrb[0].mxu0
  %v4492 = vadd.f32 0.0, %v4491
  %4493 = vdwg.mxu0
  %4494 = vmatprep.subr.bf16.mxu0 %v662
  %4495 = vmatpush1.bf16.msra.mxu0 %v661
  %4496 = vmatprep.subr.bf16.mxu0 %v670
  %4497 = vmatpush1.bf16.msra.mxu0 %v669
  %4498 = vmatprep.subr.bf16.mxu0 %v678
  %4499 = vmatpush1.bf16.msra.mxu0 %v677
  %4500 = vmatprep.subr.bf16.mxu0 %v686
  %4501 = vmatpush1.bf16.msra.mxu0 %v685
  %4502 = vmatprep.subr.bf16.mxu0 %v694
  %4503 = vmatpush1.bf16.msra.mxu0 %v693
  %4504 = vmatprep.subr.bf16.mxu0 %v702
  %4505 = vmatpush1.bf16.msra.mxu0 %v701
  %4506 = vmatprep.subr.bf16.mxu0 %v710
  %4507 = vmatpush1.bf16.msra.mxu0 %v709
  %4508 = vmatprep.subr.bf16.mxu0 %v718
  %4509 = vmatpush1.bf16.msra.mxu0 %v717
  %4510 = vmatprep.subr.bf16.mxu0 %v726
  %4511 = vmatpush1.bf16.msra.mxu0 %v725
  %4512 = vmatprep.subr.bf16.mxu0 %v734
  %4513 = vmatpush1.bf16.msra.mxu0 %v733
  %4514 = vmatprep.subr.bf16.mxu0 %v742
  %4515 = vmatpush1.bf16.msra.mxu0 %v741
  %4516 = vmatprep.subr.bf16.mxu0 %v750
  %4517 = vmatpush1.bf16.msra.mxu0 %v749
  %4518 = vmatprep.subr.bf16.mxu0 %v758
  %4519 = vmatpush1.bf16.msra.mxu0 %v757
  %4520 = vmatprep.subr.bf16.mxu0 %v766
  %4521 = vmatpush1.bf16.msra.mxu0 %v765
  %4522 = vmatprep.subr.bf16.mxu0 %v774
  %4523 = vmatpush1.bf16.msra.mxu0 %v773
  %4524 = vmatprep.subr.bf16.mxu0 %v782
  %4525 = vmatpush1.bf16.msra.mxu0 %v781
  %4526 = vmatprep.mubr.bf16.mxu0 %v4450
  %4527 = vmatmul.mubr.bf16.gmra.mrb[0].mxu0 %v4449
  %v4528 = vpop.f32.mrb[0].mxu0
  %v4529 = vadd.f32 0.0, %v4528
  %v4530 = vpop.f32.mrb[0].mxu0
  %v4531 = vadd.f32 0.0, %v4530
  %v4532 = vpop.f32.mrb[0].mxu0
  %v4533 = vadd.f32 0.0, %v4532
  %v4534 = vpop.f32.mrb[0].mxu0
  %v4535 = vadd.f32 0.0, %v4534
  %4536 = vdwg.mxu0
  %4537 = vmatprep.subr.bf16.mxu0 %v664
  %4538 = vmatpush1.bf16.msra.mxu0 %v663
  %4539 = vmatprep.subr.bf16.mxu0 %v672
  %4540 = vmatpush1.bf16.msra.mxu0 %v671
  %4541 = vmatprep.subr.bf16.mxu0 %v680
  %4542 = vmatpush1.bf16.msra.mxu0 %v679
  %4543 = vmatprep.subr.bf16.mxu0 %v688
  %4544 = vmatpush1.bf16.msra.mxu0 %v687
  %4545 = vmatprep.subr.bf16.mxu0 %v696
  %4546 = vmatpush1.bf16.msra.mxu0 %v695
  %4547 = vmatprep.subr.bf16.mxu0 %v704
  %4548 = vmatpush1.bf16.msra.mxu0 %v703
  %4549 = vmatprep.subr.bf16.mxu0 %v712
  %4550 = vmatpush1.bf16.msra.mxu0 %v711
  %4551 = vmatprep.subr.bf16.mxu0 %v720
  %4552 = vmatpush1.bf16.msra.mxu0 %v719
  %4553 = vmatprep.subr.bf16.mxu0 %v728
  %4554 = vmatpush1.bf16.msra.mxu0 %v727
  %4555 = vmatprep.subr.bf16.mxu0 %v736
  %4556 = vmatpush1.bf16.msra.mxu0 %v735
  %4557 = vmatprep.subr.bf16.mxu0 %v744
  %4558 = vmatpush1.bf16.msra.mxu0 %v743
  %4559 = vmatprep.subr.bf16.mxu0 %v752
  %4560 = vmatpush1.bf16.msra.mxu0 %v751
  %4561 = vmatprep.subr.bf16.mxu0 %v760
  %4562 = vmatpush1.bf16.msra.mxu0 %v759
  %4563 = vmatprep.subr.bf16.mxu0 %v768
  %4564 = vmatpush1.bf16.msra.mxu0 %v767
  %4565 = vmatprep.subr.bf16.mxu0 %v776
  %4566 = vmatpush1.bf16.msra.mxu0 %v775
  %4567 = vmatprep.subr.bf16.mxu0 %v784
  %4568 = vmatpush1.bf16.msra.mxu0 %v783
  %4569 = vmatprep.mubr.bf16.mxu0 %v4450
  %4570 = vmatmul.mubr.bf16.gmra.mrb[0].mxu0 %v4449
  %v4571 = vpop.f32.mrb[0].mxu0
  %v4572 = vadd.f32 0.0, %v4571
  %v4573 = vpop.f32.mrb[0].mxu0
  %v4574 = vadd.f32 0.0, %v4573
  %v4575 = vpop.f32.mrb[0].mxu0
  %v4576 = vadd.f32 0.0, %v4575
  %v4577 = vpop.f32.mrb[0].mxu0
  %v4578 = vadd.f32 0.0, %v4577
  %4579 = vdwg.mxu0
  %4580 = vmatprep.subr.bf16.mxu0 %v666
  %4581 = vmatpush1.bf16.msra.mxu0 %v665
  %4582 = vmatprep.subr.bf16.mxu0 %v674
  %4583 = vmatpush1.bf16.msra.mxu0 %v673
  %4584 = vmatprep.subr.bf16.mxu0 %v682
  %4585 = vmatpush1.bf16.msra.mxu0 %v681
  %4586 = vmatprep.subr.bf16.mxu0 %v690
  %4587 = vmatpush1.bf16.msra.mxu0 %v689
  %4588 = vmatprep.subr.bf16.mxu0 %v698
  %4589 = vmatpush1.bf16.msra.mxu0 %v697
  %4590 = vmatprep.subr.bf16.mxu0 %v706
  %4591 = vmatpush1.bf16.msra.mxu0 %v705
  %4592 = vmatprep.subr.bf16.mxu0 %v714
  %4593 = vmatpush1.bf16.msra.mxu0 %v713
  %4594 = vmatprep.subr.bf16.mxu0 %v722
  %4595 = vmatpush1.bf16.msra.mxu0 %v721
  %4596 = vmatprep.subr.bf16.mxu0 %v730
  %4597 = vmatpush1.bf16.msra.mxu0 %v729
  %4598 = vmatprep.subr.bf16.mxu0 %v738
  %4599 = vmatpush1.bf16.msra.mxu0 %v737
  %4600 = vmatprep.subr.bf16.mxu0 %v746
  %4601 = vmatpush1.bf16.msra.mxu0 %v745
  %4602 = vmatprep.subr.bf16.mxu0 %v754
  %4603 = vmatpush1.bf16.msra.mxu0 %v753
  %4604 = vmatprep.subr.bf16.mxu0 %v762
  %4605 = vmatpush1.bf16.msra.mxu0 %v761
  %4606 = vmatprep.subr.bf16.mxu0 %v770
  %4607 = vmatpush1.bf16.msra.mxu0 %v769
  %4608 = vmatprep.subr.bf16.mxu0 %v778
  %4609 = vmatpush1.bf16.msra.mxu0 %v777
  %4610 = vmatprep.subr.bf16.mxu0 %v786
  %4611 = vmatpush1.bf16.msra.mxu0 %v785
  %4612 = vmatprep.mubr.bf16.mxu0 %v4450
  %4613 = vmatmul.mubr.bf16.gmra.mrb[0].mxu0 %v4449
  %v4614 = vpop.f32.mrb[0].mxu0
  %v4615 = vadd.f32 0.0, %v4614
  %v4616 = vpop.f32.mrb[0].mxu0
  %v4617 = vadd.f32 0.0, %v4616
  %v4618 = vpop.f32.mrb[0].mxu0
  %v4619 = vadd.f32 0.0, %v4618
  %v4620 = vpop.f32.mrb[0].mxu0
  %v4621 = vadd.f32 0.0, %v4620
  %4622 = vdwg.mxu0
  %s4623 = scalar_lea.vmem %s5, 1024
  %v4624 = vld [vmem:[%s4623] sm:$0xff]
  %v4625 = vld [vmem:[%s4623 + $0x8] sm:$0xff]
  %v4626 = vld [vmem:[%s4623 + $0x10] sm:$0xff]
  %v4627 = vld [vmem:[%s4623 + $0x18] sm:$0xff]
  %v4628 = vld [vmem:[%s4623 + $0x20] sm:$0xff]
  %v4629 = vld [vmem:[%s4623 + $0x28] sm:$0xff]
  %v4630 = vld [vmem:[%s4623 + $0x30] sm:$0xff]
  %v4631 = vld [vmem:[%s4623 + $0x38] sm:$0xff]
  %v4632 = vlaneseq
  %v4633 = vshrl.u32 %v4632, 7
  %v4634 = vsub.s32 0, %v4633
  %v4635 = vrot.slane %v4486, %v4634
  %v4636 = vlaneseq
  %v4637 = vshrl.u32 %v4636, 7
  %v4638 = vsub.s32 0, %v4637
  %v4639 = vrot.slane %v4488, %v4638
  %v4640 = vlaneseq
  %v4641 = vshrl.u32 %v4640, 7
  %v4642 = vsub.s32 0, %v4641
  %v4643 = vrot.slane %v4529, %v4642
  %v4644 = vlaneseq
  %v4645 = vshrl.u32 %v4644, 7
  %v4646 = vsub.s32 0, %v4645
  %v4647 = vrot.slane %v4531, %v4646
  %v4648 = vlaneseq
  %v4649 = vshrl.u32 %v4648, 7
  %v4650 = vsub.s32 0, %v4649
  %v4651 = vrot.slane %v4572, %v4650
  %v4652 = vlaneseq
  %v4653 = vshrl.u32 %v4652, 7
  %v4654 = vsub.s32 0, %v4653
  %v4655 = vrot.slane %v4574, %v4654
  %v4656 = vlaneseq
  %v4657 = vshrl.u32 %v4656, 7
  %v4658 = vsub.s32 0, %v4657
  %v4659 = vrot.slane %v4615, %v4658
  %v4660 = vlaneseq
  %v4661 = vshrl.u32 %v4660, 7
  %v4662 = vsub.s32 0, %v4661
  %v4663 = vrot.slane %v4617, %v4662
  %v4664 = vlaneseq
  %v4665 = vshrl.u32 %v4664, 7
  %v4666 = vsub.s32 0, %v4665
  %v4667 = vrot.slane %v4490, %v4666
  %v4668 = vlaneseq
  %v4669 = vshrl.u32 %v4668, 7
  %v4670 = vsub.s32 0, %v4669
  %v4671 = vrot.slane %v4492, %v4670
  %v4672 = vlaneseq
  %v4673 = vshrl.u32 %v4672, 7
  %v4674 = vsub.s32 0, %v4673
  %v4675 = vrot.slane %v4533, %v4674
  %v4676 = vlaneseq
  %v4677 = vshrl.u32 %v4676, 7
  %v4678 = vsub.s32 0, %v4677
  %v4679 = vrot.slane %v4535, %v4678
  %v4680 = vlaneseq
  %v4681 = vshrl.u32 %v4680, 7
  %v4682 = vsub.s32 0, %v4681
  %v4683 = vrot.slane %v4576, %v4682
  %v4684 = vlaneseq
  %v4685 = vshrl.u32 %v4684, 7
  %v4686 = vsub.s32 0, %v4685
  %v4687 = vrot.slane %v4578, %v4686
  %v4688 = vlaneseq
  %v4689 = vshrl.u32 %v4688, 7
  %v4690 = vsub.s32 0, %v4689
  %v4691 = vrot.slane %v4619, %v4690
  %v4692 = vlaneseq
  %v4693 = vshrl.u32 %v4692, 7
  %v4694 = vsub.s32 0, %v4693
  %v4695 = vrot.slane %v4621, %v4694
  %v4696 = vmul.f32 %v4635, %v4624
  %v4697 = vmul.f32 %v4639, %v4625
  %v4698 = vmul.f32 %v4643, %v4626
  %v4699 = vmul.f32 %v4647, %v4627
  %v4700 = vmul.f32 %v4651, %v4628
  %v4701 = vmul.f32 %v4655, %v4629
  %v4702 = vmul.f32 %v4659, %v4630
  %v4703 = vmul.f32 %v4663, %v4631
  %v4704 = vmul.f32 %v4667, %v4624
  %v4705 = vmul.f32 %v4671, %v4625
  %v4706 = vmul.f32 %v4675, %v4626
  %v4707 = vmul.f32 %v4679, %v4627
  %v4708 = vmul.f32 %v4683, %v4628
  %v4709 = vmul.f32 %v4687, %v4629
  %v4710 = vmul.f32 %v4691, %v4630
  %v4711 = vmul.f32 %v4695, %v4631
  %s4712 = scalar_lea.vmem %s5, 1088
  %v4713 = vld [vmem:[%s4712] sm:$0xff]
  %v4714 = vld [vmem:[%s4712 + $0x8] sm:$0xff]
  %v4715 = vld [vmem:[%s4712 + $0x10] sm:$0xff]
  %v4716 = vld [vmem:[%s4712 + $0x18] sm:$0xff]
  %v4717 = vld [vmem:[%s4712 + $0x20] sm:$0xff]
  %v4718 = vld [vmem:[%s4712 + $0x28] sm:$0xff]
  %v4719 = vld [vmem:[%s4712 + $0x30] sm:$0xff]
  %v4720 = vld [vmem:[%s4712 + $0x38] sm:$0xff]
  %v4721 = vlaneseq
  %v4722 = vshrl.u32 %v4721, 7
  %v4723 = vsub.s32 1, %v4722
  %v4724 = vrot.slane %v4486, %v4723
  %v4725 = vlaneseq
  %v4726 = vshrl.u32 %v4725, 7
  %v4727 = vsub.s32 1, %v4726
  %v4728 = vrot.slane %v4488, %v4727
  %v4729 = vlaneseq
  %v4730 = vshrl.u32 %v4729, 7
  %v4731 = vsub.s32 1, %v4730
  %v4732 = vrot.slane %v4529, %v4731
  %v4733 = vlaneseq
  %v4734 = vshrl.u32 %v4733, 7
  %v4735 = vsub.s32 1, %v4734
  %v4736 = vrot.slane %v4531, %v4735
  %v4737 = vlaneseq
  %v4738 = vshrl.u32 %v4737, 7
  %v4739 = vsub.s32 1, %v4738
  %v4740 = vrot.slane %v4572, %v4739
  %v4741 = vlaneseq
  %v4742 = vshrl.u32 %v4741, 7
  %v4743 = vsub.s32 1, %v4742
  %v4744 = vrot.slane %v4574, %v4743
  %v4745 = vlaneseq
  %v4746 = vshrl.u32 %v4745, 7
  %v4747 = vsub.s32 1, %v4746
  %v4748 = vrot.slane %v4615, %v4747
  %v4749 = vlaneseq
  %v4750 = vshrl.u32 %v4749, 7
  %v4751 = vsub.s32 1, %v4750
  %v4752 = vrot.slane %v4617, %v4751
  %v4753 = vlaneseq
  %v4754 = vshrl.u32 %v4753, 7
  %v4755 = vsub.s32 1, %v4754
  %v4756 = vrot.slane %v4490, %v4755
  %v4757 = vlaneseq
  %v4758 = vshrl.u32 %v4757, 7
  %v4759 = vsub.s32 1, %v4758
  %v4760 = vrot.slane %v4492, %v4759
  %v4761 = vlaneseq
  %v4762 = vshrl.u32 %v4761, 7
  %v4763 = vsub.s32 1, %v4762
  %v4764 = vrot.slane %v4533, %v4763
  %v4765 = vlaneseq
  %v4766 = vshrl.u32 %v4765, 7
  %v4767 = vsub.s32 1, %v4766
  %v4768 = vrot.slane %v4535, %v4767
  %v4769 = vlaneseq
  %v4770 = vshrl.u32 %v4769, 7
  %v4771 = vsub.s32 1, %v4770
  %v4772 = vrot.slane %v4576, %v4771
  %v4773 = vlaneseq
  %v4774 = vshrl.u32 %v4773, 7
  %v4775 = vsub.s32 1, %v4774
  %v4776 = vrot.slane %v4578, %v4775
  %v4777 = vlaneseq
  %v4778 = vshrl.u32 %v4777, 7
  %v4779 = vsub.s32 1, %v4778
  %v4780 = vrot.slane %v4619, %v4779
  %v4781 = vlaneseq
  %v4782 = vshrl.u32 %v4781, 7
  %v4783 = vsub.s32 1, %v4782
  %v4784 = vrot.slane %v4621, %v4783
  %v4785 = vmul.f32 %v4724, %v4713
  %v4786 = vmul.f32 %v4728, %v4714
  %v4787 = vmul.f32 %v4732, %v4715
  %v4788 = vmul.f32 %v4736, %v4716
  %v4789 = vmul.f32 %v4740, %v4717
  %v4790 = vmul.f32 %v4744, %v4718
  %v4791 = vmul.f32 %v4748, %v4719
  %v4792 = vmul.f32 %v4752, %v4720
  %v4793 = vmul.f32 %v4756, %v4713
  %v4794 = vmul.f32 %v4760, %v4714
  %v4795 = vmul.f32 %v4764, %v4715
  %v4796 = vmul.f32 %v4768, %v4716
  %v4797 = vmul.f32 %v4772, %v4717
  %v4798 = vmul.f32 %v4776, %v4718
  %v4799 = vmul.f32 %v4780, %v4719
  %v4800 = vmul.f32 %v4784, %v4720
  %v4801 = vadd.f32 %v4696, %v4785
  %v4802 = vadd.f32 %v4697, %v4786
  %v4803 = vadd.f32 %v4698, %v4787
  %v4804 = vadd.f32 %v4699, %v4788
  %v4805 = vadd.f32 %v4700, %v4789
  %v4806 = vadd.f32 %v4701, %v4790
  %v4807 = vadd.f32 %v4702, %v4791
  %v4808 = vadd.f32 %v4703, %v4792
  %v4809 = vadd.f32 %v4704, %v4793
  %v4810 = vadd.f32 %v4705, %v4794
  %v4811 = vadd.f32 %v4706, %v4795
  %v4812 = vadd.f32 %v4707, %v4796
  %v4813 = vadd.f32 %v4708, %v4797
  %v4814 = vadd.f32 %v4709, %v4798
  %v4815 = vadd.f32 %v4710, %v4799
  %v4816 = vadd.f32 %v4711, %v4800
  %s4817 = scalar_lea.vmem %s5, 1152
  %v4818 = vld [vmem:[%s4817] sm:$0xff]
  %v4819 = vld [vmem:[%s4817 + $0x8] sm:$0xff]
  %v4820 = vld [vmem:[%s4817 + $0x10] sm:$0xff]
  %v4821 = vld [vmem:[%s4817 + $0x18] sm:$0xff]
  %v4822 = vld [vmem:[%s4817 + $0x20] sm:$0xff]
  %v4823 = vld [vmem:[%s4817 + $0x28] sm:$0xff]
  %v4824 = vld [vmem:[%s4817 + $0x30] sm:$0xff]
  %v4825 = vld [vmem:[%s4817 + $0x38] sm:$0xff]
  %v4826 = vlaneseq
  %v4827 = vshrl.u32 %v4826, 7
  %v4828 = vsub.s32 2, %v4827
  %v4829 = vrot.slane %v4486, %v4828
  %v4830 = vlaneseq
  %v4831 = vshrl.u32 %v4830, 7
  %v4832 = vsub.s32 2, %v4831
  %v4833 = vrot.slane %v4488, %v4832
  %v4834 = vlaneseq
  %v4835 = vshrl.u32 %v4834, 7
  %v4836 = vsub.s32 2, %v4835
  %v4837 = vrot.slane %v4529, %v4836
  %v4838 = vlaneseq
  %v4839 = vshrl.u32 %v4838, 7
  %v4840 = vsub.s32 2, %v4839
  %v4841 = vrot.slane %v4531, %v4840
  %v4842 = vlaneseq
  %v4843 = vshrl.u32 %v4842, 7
  %v4844 = vsub.s32 2, %v4843
  %v4845 = vrot.slane %v4572, %v4844
  %v4846 = vlaneseq
  %v4847 = vshrl.u32 %v4846, 7
  %v4848 = vsub.s32 2, %v4847
  %v4849 = vrot.slane %v4574, %v4848
  %v4850 = vlaneseq
  %v4851 = vshrl.u32 %v4850, 7
  %v4852 = vsub.s32 2, %v4851
  %v4853 = vrot.slane %v4615, %v4852
  %v4854 = vlaneseq
  %v4855 = vshrl.u32 %v4854, 7
  %v4856 = vsub.s32 2, %v4855
  %v4857 = vrot.slane %v4617, %v4856
  %v4858 = vlaneseq
  %v4859 = vshrl.u32 %v4858, 7
  %v4860 = vsub.s32 2, %v4859
  %v4861 = vrot.slane %v4490, %v4860
  %v4862 = vlaneseq
  %v4863 = vshrl.u32 %v4862, 7
  %v4864 = vsub.s32 2, %v4863
  %v4865 = vrot.slane %v4492, %v4864
  %v4866 = vlaneseq
  %v4867 = vshrl.u32 %v4866, 7
  %v4868 = vsub.s32 2, %v4867
  %v4869 = vrot.slane %v4533, %v4868
  %v4870 = vlaneseq
  %v4871 = vshrl.u32 %v4870, 7
  %v4872 = vsub.s32 2, %v4871
  %v4873 = vrot.slane %v4535, %v4872
  %v4874 = vlaneseq
  %v4875 = vshrl.u32 %v4874, 7
  %v4876 = vsub.s32 2, %v4875
  %v4877 = vrot.slane %v4576, %v4876
  %v4878 = vlaneseq
  %v4879 = vshrl.u32 %v4878, 7
  %v4880 = vsub.s32 2, %v4879
  %v4881 = vrot.slane %v4578, %v4880
  %v4882 = vlaneseq
  %v4883 = vshrl.u32 %v4882, 7
  %v4884 = vsub.s32 2, %v4883
  %v4885 = vrot.slane %v4619, %v4884
  %v4886 = vlaneseq
  %v4887 = vshrl.u32 %v4886, 7
  %v4888 = vsub.s32 2, %v4887
  %v4889 = vrot.slane %v4621, %v4888
  %v4890 = vmul.f32 %v4829, %v4818
  %v4891 = vmul.f32 %v4833, %v4819
  %v4892 = vmul.f32 %v4837, %v4820
  %v4893 = vmul.f32 %v4841, %v4821
  %v4894 = vmul.f32 %v4845, %v4822
  %v4895 = vmul.f32 %v4849, %v4823
  %v4896 = vmul.f32 %v4853, %v4824
  %v4897 = vmul.f32 %v4857, %v4825
  %v4898 = vmul.f32 %v4861, %v4818
  %v4899 = vmul.f32 %v4865, %v4819
  %v4900 = vmul.f32 %v4869, %v4820
  %v4901 = vmul.f32 %v4873, %v4821
  %v4902 = vmul.f32 %v4877, %v4822
  %v4903 = vmul.f32 %v4881, %v4823
  %v4904 = vmul.f32 %v4885, %v4824
  %v4905 = vmul.f32 %v4889, %v4825
  %v4906 = vadd.f32 %v4801, %v4890
  %v4907 = vadd.f32 %v4802, %v4891
  %v4908 = vadd.f32 %v4803, %v4892
  %v4909 = vadd.f32 %v4804, %v4893
  %v4910 = vadd.f32 %v4805, %v4894
  %v4911 = vadd.f32 %v4806, %v4895
  %v4912 = vadd.f32 %v4807, %v4896
  %v4913 = vadd.f32 %v4808, %v4897
  %v4914 = vadd.f32 %v4809, %v4898
  %v4915 = vadd.f32 %v4810, %v4899
  %v4916 = vadd.f32 %v4811, %v4900
  %v4917 = vadd.f32 %v4812, %v4901
  %v4918 = vadd.f32 %v4813, %v4902
  %v4919 = vadd.f32 %v4814, %v4903
  %v4920 = vadd.f32 %v4815, %v4904
  %v4921 = vadd.f32 %v4816, %v4905
  %s4922 = scalar_lea.vmem %s5, 1216
  %v4923 = vld [vmem:[%s4922] sm:$0xff]
  %v4924 = vld [vmem:[%s4922 + $0x8] sm:$0xff]
  %v4925 = vld [vmem:[%s4922 + $0x10] sm:$0xff]
  %v4926 = vld [vmem:[%s4922 + $0x18] sm:$0xff]
  %v4927 = vld [vmem:[%s4922 + $0x20] sm:$0xff]
  %v4928 = vld [vmem:[%s4922 + $0x28] sm:$0xff]
  %v4929 = vld [vmem:[%s4922 + $0x30] sm:$0xff]
  %v4930 = vld [vmem:[%s4922 + $0x38] sm:$0xff]
  %v4931 = vlaneseq
  %v4932 = vshrl.u32 %v4931, 7
  %v4933 = vsub.s32 3, %v4932
  %v4934 = vrot.slane %v4486, %v4933
  %v4935 = vlaneseq
  %v4936 = vshrl.u32 %v4935, 7
  %v4937 = vsub.s32 3, %v4936
  %v4938 = vrot.slane %v4488, %v4937
  %v4939 = vlaneseq
  %v4940 = vshrl.u32 %v4939, 7
  %v4941 = vsub.s32 3, %v4940
  %v4942 = vrot.slane %v4529, %v4941
  %v4943 = vlaneseq
  %v4944 = vshrl.u32 %v4943, 7
  %v4945 = vsub.s32 3, %v4944
  %v4946 = vrot.slane %v4531, %v4945
  %v4947 = vlaneseq
  %v4948 = vshrl.u32 %v4947, 7
  %v4949 = vsub.s32 3, %v4948
  %v4950 = vrot.slane %v4572, %v4949
  %v4951 = vlaneseq
  %v4952 = vshrl.u32 %v4951, 7
  %v4953 = vsub.s32 3, %v4952
  %v4954 = vrot.slane %v4574, %v4953
  %v4955 = vlaneseq
  %v4956 = vshrl.u32 %v4955, 7
  %v4957 = vsub.s32 3, %v4956
  %v4958 = vrot.slane %v4615, %v4957
  %v4959 = vlaneseq
  %v4960 = vshrl.u32 %v4959, 7
  %v4961 = vsub.s32 3, %v4960
  %v4962 = vrot.slane %v4617, %v4961
  %v4963 = vlaneseq
  %v4964 = vshrl.u32 %v4963, 7
  %v4965 = vsub.s32 3, %v4964
  %v4966 = vrot.slane %v4490, %v4965
  %v4967 = vlaneseq
  %v4968 = vshrl.u32 %v4967, 7
  %v4969 = vsub.s32 3, %v4968
  %v4970 = vrot.slane %v4492, %v4969
  %v4971 = vlaneseq
  %v4972 = vshrl.u32 %v4971, 7
  %v4973 = vsub.s32 3, %v4972
  %v4974 = vrot.slane %v4533, %v4973
  %v4975 = vlaneseq
  %v4976 = vshrl.u32 %v4975, 7
  %v4977 = vsub.s32 3, %v4976
  %v4978 = vrot.slane %v4535, %v4977
  %v4979 = vlaneseq
  %v4980 = vshrl.u32 %v4979, 7
  %v4981 = vsub.s32 3, %v4980
  %v4982 = vrot.slane %v4576, %v4981
  %v4983 = vlaneseq
  %v4984 = vshrl.u32 %v4983, 7
  %v4985 = vsub.s32 3, %v4984
  %v4986 = vrot.slane %v4578, %v4985
  %v4987 = vlaneseq
  %v4988 = vshrl.u32 %v4987, 7
  %v4989 = vsub.s32 3, %v4988
  %v4990 = vrot.slane %v4619, %v4989
  %v4991 = vlaneseq
  %v4992 = vshrl.u32 %v4991, 7
  %v4993 = vsub.s32 3, %v4992
  %v4994 = vrot.slane %v4621, %v4993
  %v4995 = vmul.f32 %v4934, %v4923
  %v4996 = vmul.f32 %v4938, %v4924
  %v4997 = vmul.f32 %v4942, %v4925
  %v4998 = vmul.f32 %v4946, %v4926
  %v4999 = vmul.f32 %v4950, %v4927
  %v5000 = vmul.f32 %v4954, %v4928
  %v5001 = vmul.f32 %v4958, %v4929
  %v5002 = vmul.f32 %v4962, %v4930
  %v5003 = vmul.f32 %v4966, %v4923
  %v5004 = vmul.f32 %v4970, %v4924
  %v5005 = vmul.f32 %v4974, %v4925
  %v5006 = vmul.f32 %v4978, %v4926
  %v5007 = vmul.f32 %v4982, %v4927
  %v5008 = vmul.f32 %v4986, %v4928
  %v5009 = vmul.f32 %v4990, %v4929
  %v5010 = vmul.f32 %v4994, %v4930
  %v5011 = vadd.f32 %v4906, %v4995
  %v5012 = vadd.f32 %v4907, %v4996
  %v5013 = vadd.f32 %v4908, %v4997
  %v5014 = vadd.f32 %v4909, %v4998
  %v5015 = vadd.f32 %v4910, %v4999
  %v5016 = vadd.f32 %v4911, %v5000
  %v5017 = vadd.f32 %v4912, %v5001
  %v5018 = vadd.f32 %v4913, %v5002
  %v5019 = vadd.f32 %v4914, %v5003
  %v5020 = vadd.f32 %v4915, %v5004
  %v5021 = vadd.f32 %v4916, %v5005
  %v5022 = vadd.f32 %v4917, %v5006
  %v5023 = vadd.f32 %v4918, %v5007
  %v5024 = vadd.f32 %v4919, %v5008
  %v5025 = vadd.f32 %v4920, %v5009
  %v5026 = vadd.f32 %v4921, %v5010
  %s5027 = scalar_lea.vmem %s5, 1280
  %v5028 = vld [vmem:[%s5027] sm:$0xff]
  %v5029 = vld [vmem:[%s5027 + $0x8] sm:$0xff]
  %v5030 = vld [vmem:[%s5027 + $0x10] sm:$0xff]
  %v5031 = vld [vmem:[%s5027 + $0x18] sm:$0xff]
  %v5032 = vld [vmem:[%s5027 + $0x20] sm:$0xff]
  %v5033 = vld [vmem:[%s5027 + $0x28] sm:$0xff]
  %v5034 = vld [vmem:[%s5027 + $0x30] sm:$0xff]
  %v5035 = vld [vmem:[%s5027 + $0x38] sm:$0xff]
  %v5036 = vlaneseq
  %v5037 = vshrl.u32 %v5036, 7
  %v5038 = vsub.s32 4, %v5037
  %v5039 = vrot.slane %v4486, %v5038
  %v5040 = vlaneseq
  %v5041 = vshrl.u32 %v5040, 7
  %v5042 = vsub.s32 4, %v5041
  %v5043 = vrot.slane %v4488, %v5042
  %v5044 = vlaneseq
  %v5045 = vshrl.u32 %v5044, 7
  %v5046 = vsub.s32 4, %v5045
  %v5047 = vrot.slane %v4529, %v5046
  %v5048 = vlaneseq
  %v5049 = vshrl.u32 %v5048, 7
  %v5050 = vsub.s32 4, %v5049
  %v5051 = vrot.slane %v4531, %v5050
  %v5052 = vlaneseq
  %v5053 = vshrl.u32 %v5052, 7
  %v5054 = vsub.s32 4, %v5053
  %v5055 = vrot.slane %v4572, %v5054
  %v5056 = vlaneseq
  %v5057 = vshrl.u32 %v5056, 7
  %v5058 = vsub.s32 4, %v5057
  %v5059 = vrot.slane %v4574, %v5058
  %v5060 = vlaneseq
  %v5061 = vshrl.u32 %v5060, 7
  %v5062 = vsub.s32 4, %v5061
  %v5063 = vrot.slane %v4615, %v5062
  %v5064 = vlaneseq
  %v5065 = vshrl.u32 %v5064, 7
  %v5066 = vsub.s32 4, %v5065
  %v5067 = vrot.slane %v4617, %v5066
  %v5068 = vlaneseq
  %v5069 = vshrl.u32 %v5068, 7
  %v5070 = vsub.s32 4, %v5069
  %v5071 = vrot.slane %v4490, %v5070
  %v5072 = vlaneseq
  %v5073 = vshrl.u32 %v5072, 7
  %v5074 = vsub.s32 4, %v5073
  %v5075 = vrot.slane %v4492, %v5074
  %v5076 = vlaneseq
  %v5077 = vshrl.u32 %v5076, 7
  %v5078 = vsub.s32 4, %v5077
  %v5079 = vrot.slane %v4533, %v5078
  %v5080 = vlaneseq
  %v5081 = vshrl.u32 %v5080, 7
  %v5082 = vsub.s32 4, %v5081
  %v5083 = vrot.slane %v4535, %v5082
  %v5084 = vlaneseq
  %v5085 = vshrl.u32 %v5084, 7
  %v5086 = vsub.s32 4, %v5085
  %v5087 = vrot.slane %v4576, %v5086
  %v5088 = vlaneseq
  %v5089 = vshrl.u32 %v5088, 7
  %v5090 = vsub.s32 4, %v5089
  %v5091 = vrot.slane %v4578, %v5090
  %v5092 = vlaneseq
  %v5093 = vshrl.u32 %v5092, 7
  %v5094 = vsub.s32 4, %v5093
  %v5095 = vrot.slane %v4619, %v5094
  %v5096 = vlaneseq
  %v5097 = vshrl.u32 %v5096, 7
  %v5098 = vsub.s32 4, %v5097
  %v5099 = vrot.slane %v4621, %v5098
  %v5100 = vmul.f32 %v5039, %v5028
  %v5101 = vmul.f32 %v5043, %v5029
  %v5102 = vmul.f32 %v5047, %v5030
  %v5103 = vmul.f32 %v5051, %v5031
  %v5104 = vmul.f32 %v5055, %v5032
  %v5105 = vmul.f32 %v5059, %v5033
  %v5106 = vmul.f32 %v5063, %v5034
  %v5107 = vmul.f32 %v5067, %v5035
  %v5108 = vmul.f32 %v5071, %v5028
  %v5109 = vmul.f32 %v5075, %v5029
  %v5110 = vmul.f32 %v5079, %v5030
  %v5111 = vmul.f32 %v5083, %v5031
  %v5112 = vmul.f32 %v5087, %v5032
  %v5113 = vmul.f32 %v5091, %v5033
  %v5114 = vmul.f32 %v5095, %v5034
  %v5115 = vmul.f32 %v5099, %v5035
  %v5116 = vadd.f32 %v5011, %v5100
  %v5117 = vadd.f32 %v5012, %v5101
  %v5118 = vadd.f32 %v5013, %v5102
  %v5119 = vadd.f32 %v5014, %v5103
  %v5120 = vadd.f32 %v5015, %v5104
  %v5121 = vadd.f32 %v5016, %v5105
  %v5122 = vadd.f32 %v5017, %v5106
  %v5123 = vadd.f32 %v5018, %v5107
  %v5124 = vadd.f32 %v5019, %v5108
  %v5125 = vadd.f32 %v5020, %v5109
  %v5126 = vadd.f32 %v5021, %v5110
  %v5127 = vadd.f32 %v5022, %v5111
  %v5128 = vadd.f32 %v5023, %v5112
  %v5129 = vadd.f32 %v5024, %v5113
  %v5130 = vadd.f32 %v5025, %v5114
  %v5131 = vadd.f32 %v5026, %v5115
  %s5132 = scalar_lea.vmem %s5, 1344
  %v5133 = vld [vmem:[%s5132] sm:$0xff]
  %v5134 = vld [vmem:[%s5132 + $0x8] sm:$0xff]
  %v5135 = vld [vmem:[%s5132 + $0x10] sm:$0xff]
  %v5136 = vld [vmem:[%s5132 + $0x18] sm:$0xff]
  %v5137 = vld [vmem:[%s5132 + $0x20] sm:$0xff]
  %v5138 = vld [vmem:[%s5132 + $0x28] sm:$0xff]
  %v5139 = vld [vmem:[%s5132 + $0x30] sm:$0xff]
  %v5140 = vld [vmem:[%s5132 + $0x38] sm:$0xff]
  %v5141 = vlaneseq
  %v5142 = vshrl.u32 %v5141, 7
  %v5143 = vsub.s32 5, %v5142
  %v5144 = vrot.slane %v4486, %v5143
  %v5145 = vlaneseq
  %v5146 = vshrl.u32 %v5145, 7
  %v5147 = vsub.s32 5, %v5146
  %v5148 = vrot.slane %v4488, %v5147
  %v5149 = vlaneseq
  %v5150 = vshrl.u32 %v5149, 7
  %v5151 = vsub.s32 5, %v5150
  %v5152 = vrot.slane %v4529, %v5151
  %v5153 = vlaneseq
  %v5154 = vshrl.u32 %v5153, 7
  %v5155 = vsub.s32 5, %v5154
  %v5156 = vrot.slane %v4531, %v5155
  %v5157 = vlaneseq
  %v5158 = vshrl.u32 %v5157, 7
  %v5159 = vsub.s32 5, %v5158
  %v5160 = vrot.slane %v4572, %v5159
  %v5161 = vlaneseq
  %v5162 = vshrl.u32 %v5161, 7
  %v5163 = vsub.s32 5, %v5162
  %v5164 = vrot.slane %v4574, %v5163
  %v5165 = vlaneseq
  %v5166 = vshrl.u32 %v5165, 7
  %v5167 = vsub.s32 5, %v5166
  %v5168 = vrot.slane %v4615, %v5167
  %v5169 = vlaneseq
  %v5170 = vshrl.u32 %v5169, 7
  %v5171 = vsub.s32 5, %v5170
  %v5172 = vrot.slane %v4617, %v5171
  %v5173 = vlaneseq
  %v5174 = vshrl.u32 %v5173, 7
  %v5175 = vsub.s32 5, %v5174
  %v5176 = vrot.slane %v4490, %v5175
  %v5177 = vlaneseq
  %v5178 = vshrl.u32 %v5177, 7
  %v5179 = vsub.s32 5, %v5178
  %v5180 = vrot.slane %v4492, %v5179
  %v5181 = vlaneseq
  %v5182 = vshrl.u32 %v5181, 7
  %v5183 = vsub.s32 5, %v5182
  %v5184 = vrot.slane %v4533, %v5183
  %v5185 = vlaneseq
  %v5186 = vshrl.u32 %v5185, 7
  %v5187 = vsub.s32 5, %v5186
  %v5188 = vrot.slane %v4535, %v5187
  %v5189 = vlaneseq
  %v5190 = vshrl.u32 %v5189, 7
  %v5191 = vsub.s32 5, %v5190
  %v5192 = vrot.slane %v4576, %v5191
  %v5193 = vlaneseq
  %v5194 = vshrl.u32 %v5193, 7
  %v5195 = vsub.s32 5, %v5194
  %v5196 = vrot.slane %v4578, %v5195
  %v5197 = vlaneseq
  %v5198 = vshrl.u32 %v5197, 7
  %v5199 = vsub.s32 5, %v5198
  %v5200 = vrot.slane %v4619, %v5199
  %v5201 = vlaneseq
  %v5202 = vshrl.u32 %v5201, 7
  %v5203 = vsub.s32 5, %v5202
  %v5204 = vrot.slane %v4621, %v5203
  %v5205 = vmul.f32 %v5144, %v5133
  %v5206 = vmul.f32 %v5148, %v5134
  %v5207 = vmul.f32 %v5152, %v5135
  %v5208 = vmul.f32 %v5156, %v5136
  %v5209 = vmul.f32 %v5160, %v5137
  %v5210 = vmul.f32 %v5164, %v5138
  %v5211 = vmul.f32 %v5168, %v5139
  %v5212 = vmul.f32 %v5172, %v5140
  %v5213 = vmul.f32 %v5176, %v5133
  %v5214 = vmul.f32 %v5180, %v5134
  %v5215 = vmul.f32 %v5184, %v5135
  %v5216 = vmul.f32 %v5188, %v5136
  %v5217 = vmul.f32 %v5192, %v5137
  %v5218 = vmul.f32 %v5196, %v5138
  %v5219 = vmul.f32 %v5200, %v5139
  %v5220 = vmul.f32 %v5204, %v5140
  %v5221 = vadd.f32 %v5116, %v5205
  %v5222 = vadd.f32 %v5117, %v5206
  %v5223 = vadd.f32 %v5118, %v5207
  %v5224 = vadd.f32 %v5119, %v5208
  %v5225 = vadd.f32 %v5120, %v5209
  %v5226 = vadd.f32 %v5121, %v5210
  %v5227 = vadd.f32 %v5122, %v5211
  %v5228 = vadd.f32 %v5123, %v5212
  %v5229 = vadd.f32 %v5124, %v5213
  %v5230 = vadd.f32 %v5125, %v5214
  %v5231 = vadd.f32 %v5126, %v5215
  %v5232 = vadd.f32 %v5127, %v5216
  %v5233 = vadd.f32 %v5128, %v5217
  %v5234 = vadd.f32 %v5129, %v5218
  %v5235 = vadd.f32 %v5130, %v5219
  %v5236 = vadd.f32 %v5131, %v5220
  %s5237 = scalar_lea.vmem %s5, 1408
  %v5238 = vld [vmem:[%s5237] sm:$0xff]
  %v5239 = vld [vmem:[%s5237 + $0x8] sm:$0xff]
  %v5240 = vld [vmem:[%s5237 + $0x10] sm:$0xff]
  %v5241 = vld [vmem:[%s5237 + $0x18] sm:$0xff]
  %v5242 = vld [vmem:[%s5237 + $0x20] sm:$0xff]
  %v5243 = vld [vmem:[%s5237 + $0x28] sm:$0xff]
  %v5244 = vld [vmem:[%s5237 + $0x30] sm:$0xff]
  %v5245 = vld [vmem:[%s5237 + $0x38] sm:$0xff]
  %v5246 = vlaneseq
  %v5247 = vshrl.u32 %v5246, 7
  %v5248 = vsub.s32 6, %v5247
  %v5249 = vrot.slane %v4486, %v5248
  %v5250 = vlaneseq
  %v5251 = vshrl.u32 %v5250, 7
  %v5252 = vsub.s32 6, %v5251
  %v5253 = vrot.slane %v4488, %v5252
  %v5254 = vlaneseq
  %v5255 = vshrl.u32 %v5254, 7
  %v5256 = vsub.s32 6, %v5255
  %v5257 = vrot.slane %v4529, %v5256
  %v5258 = vlaneseq
  %v5259 = vshrl.u32 %v5258, 7
  %v5260 = vsub.s32 6, %v5259
  %v5261 = vrot.slane %v4531, %v5260
  %v5262 = vlaneseq
  %v5263 = vshrl.u32 %v5262, 7
  %v5264 = vsub.s32 6, %v5263
  %v5265 = vrot.slane %v4572, %v5264
  %v5266 = vlaneseq
  %v5267 = vshrl.u32 %v5266, 7
  %v5268 = vsub.s32 6, %v5267
  %v5269 = vrot.slane %v4574, %v5268
  %v5270 = vlaneseq
  %v5271 = vshrl.u32 %v5270, 7
  %v5272 = vsub.s32 6, %v5271
  %v5273 = vrot.slane %v4615, %v5272
  %v5274 = vlaneseq
  %v5275 = vshrl.u32 %v5274, 7
  %v5276 = vsub.s32 6, %v5275
  %v5277 = vrot.slane %v4617, %v5276
  %v5278 = vlaneseq
  %v5279 = vshrl.u32 %v5278, 7
  %v5280 = vsub.s32 6, %v5279
  %v5281 = vrot.slane %v4490, %v5280
  %v5282 = vlaneseq
  %v5283 = vshrl.u32 %v5282, 7
  %v5284 = vsub.s32 6, %v5283
  %v5285 = vrot.slane %v4492, %v5284
  %v5286 = vlaneseq
  %v5287 = vshrl.u32 %v5286, 7
  %v5288 = vsub.s32 6, %v5287
  %v5289 = vrot.slane %v4533, %v5288
  %v5290 = vlaneseq
  %v5291 = vshrl.u32 %v5290, 7
  %v5292 = vsub.s32 6, %v5291
  %v5293 = vrot.slane %v4535, %v5292
  %v5294 = vlaneseq
  %v5295 = vshrl.u32 %v5294, 7
  %v5296 = vsub.s32 6, %v5295
  %v5297 = vrot.slane %v4576, %v5296
  %v5298 = vlaneseq
  %v5299 = vshrl.u32 %v5298, 7
  %v5300 = vsub.s32 6, %v5299
  %v5301 = vrot.slane %v4578, %v5300
  %v5302 = vlaneseq
  %v5303 = vshrl.u32 %v5302, 7
  %v5304 = vsub.s32 6, %v5303
  %v5305 = vrot.slane %v4619, %v5304
  %v5306 = vlaneseq
  %v5307 = vshrl.u32 %v5306, 7
  %v5308 = vsub.s32 6, %v5307
  %v5309 = vrot.slane %v4621, %v5308
  %v5310 = vmul.f32 %v5249, %v5238
  %v5311 = vmul.f32 %v5253, %v5239
  %v5312 = vmul.f32 %v5257, %v5240
  %v5313 = vmul.f32 %v5261, %v5241
  %v5314 = vmul.f32 %v5265, %v5242
  %v5315 = vmul.f32 %v5269, %v5243
  %v5316 = vmul.f32 %v5273, %v5244
  %v5317 = vmul.f32 %v5277, %v5245
  %v5318 = vmul.f32 %v5281, %v5238
  %v5319 = vmul.f32 %v5285, %v5239
  %v5320 = vmul.f32 %v5289, %v5240
  %v5321 = vmul.f32 %v5293, %v5241
  %v5322 = vmul.f32 %v5297, %v5242
  %v5323 = vmul.f32 %v5301, %v5243
  %v5324 = vmul.f32 %v5305, %v5244
  %v5325 = vmul.f32 %v5309, %v5245
  %v5326 = vadd.f32 %v5221, %v5310
  %v5327 = vadd.f32 %v5222, %v5311
  %v5328 = vadd.f32 %v5223, %v5312
  %v5329 = vadd.f32 %v5224, %v5313
  %v5330 = vadd.f32 %v5225, %v5314
  %v5331 = vadd.f32 %v5226, %v5315
  %v5332 = vadd.f32 %v5227, %v5316
  %v5333 = vadd.f32 %v5228, %v5317
  %v5334 = vadd.f32 %v5229, %v5318
  %v5335 = vadd.f32 %v5230, %v5319
  %v5336 = vadd.f32 %v5231, %v5320
  %v5337 = vadd.f32 %v5232, %v5321
  %v5338 = vadd.f32 %v5233, %v5322
  %v5339 = vadd.f32 %v5234, %v5323
  %v5340 = vadd.f32 %v5235, %v5324
  %v5341 = vadd.f32 %v5236, %v5325
  %s5342 = scalar_lea.vmem %s5, 1472
  %v5343 = vld [vmem:[%s5342] sm:$0xff]
  %v5344 = vld [vmem:[%s5342 + $0x8] sm:$0xff]
  %v5345 = vld [vmem:[%s5342 + $0x10] sm:$0xff]
  %v5346 = vld [vmem:[%s5342 + $0x18] sm:$0xff]
  %v5347 = vld [vmem:[%s5342 + $0x20] sm:$0xff]
  %v5348 = vld [vmem:[%s5342 + $0x28] sm:$0xff]
  %v5349 = vld [vmem:[%s5342 + $0x30] sm:$0xff]
  %v5350 = vld [vmem:[%s5342 + $0x38] sm:$0xff]
  %v5351 = vlaneseq
  %v5352 = vshrl.u32 %v5351, 7
  %v5353 = vsub.s32 7, %v5352
  %v5354 = vrot.slane %v4486, %v5353
  %v5355 = vlaneseq
  %v5356 = vshrl.u32 %v5355, 7
  %v5357 = vsub.s32 7, %v5356
  %v5358 = vrot.slane %v4488, %v5357
  %v5359 = vlaneseq
  %v5360 = vshrl.u32 %v5359, 7
  %v5361 = vsub.s32 7, %v5360
  %v5362 = vrot.slane %v4529, %v5361
  %v5363 = vlaneseq
  %v5364 = vshrl.u32 %v5363, 7
  %v5365 = vsub.s32 7, %v5364
  %v5366 = vrot.slane %v4531, %v5365
  %v5367 = vlaneseq
  %v5368 = vshrl.u32 %v5367, 7
  %v5369 = vsub.s32 7, %v5368
  %v5370 = vrot.slane %v4572, %v5369
  %v5371 = vlaneseq
  %v5372 = vshrl.u32 %v5371, 7
  %v5373 = vsub.s32 7, %v5372
  %v5374 = vrot.slane %v4574, %v5373
  %v5375 = vlaneseq
  %v5376 = vshrl.u32 %v5375, 7
  %v5377 = vsub.s32 7, %v5376
  %v5378 = vrot.slane %v4615, %v5377
  %v5379 = vlaneseq
  %v5380 = vshrl.u32 %v5379, 7
  %v5381 = vsub.s32 7, %v5380
  %v5382 = vrot.slane %v4617, %v5381
  %v5383 = vlaneseq
  %v5384 = vshrl.u32 %v5383, 7
  %v5385 = vsub.s32 7, %v5384
  %v5386 = vrot.slane %v4490, %v5385
  %v5387 = vlaneseq
  %v5388 = vshrl.u32 %v5387, 7
  %v5389 = vsub.s32 7, %v5388
  %v5390 = vrot.slane %v4492, %v5389
  %v5391 = vlaneseq
  %v5392 = vshrl.u32 %v5391, 7
  %v5393 = vsub.s32 7, %v5392
  %v5394 = vrot.slane %v4533, %v5393
  %v5395 = vlaneseq
  %v5396 = vshrl.u32 %v5395, 7
  %v5397 = vsub.s32 7, %v5396
  %v5398 = vrot.slane %v4535, %v5397
  %v5399 = vlaneseq
  %v5400 = vshrl.u32 %v5399, 7
  %v5401 = vsub.s32 7, %v5400
  %v5402 = vrot.slane %v4576, %v5401
  %v5403 = vlaneseq
  %v5404 = vshrl.u32 %v5403, 7
  %v5405 = vsub.s32 7, %v5404
  %v5406 = vrot.slane %v4578, %v5405
  %v5407 = vlaneseq
  %v5408 = vshrl.u32 %v5407, 7
  %v5409 = vsub.s32 7, %v5408
  %v5410 = vrot.slane %v4619, %v5409
  %v5411 = vlaneseq
  %v5412 = vshrl.u32 %v5411, 7
  %v5413 = vsub.s32 7, %v5412
  %v5414 = vrot.slane %v4621, %v5413
  %v5415 = vmul.f32 %v5354, %v5343
  %v5416 = vmul.f32 %v5358, %v5344
  %v5417 = vmul.f32 %v5362, %v5345
  %v5418 = vmul.f32 %v5366, %v5346
  %v5419 = vmul.f32 %v5370, %v5347
  %v5420 = vmul.f32 %v5374, %v5348
  %v5421 = vmul.f32 %v5378, %v5349
  %v5422 = vmul.f32 %v5382, %v5350
  %v5423 = vmul.f32 %v5386, %v5343
  %v5424 = vmul.f32 %v5390, %v5344
  %v5425 = vmul.f32 %v5394, %v5345
  %v5426 = vmul.f32 %v5398, %v5346
  %v5427 = vmul.f32 %v5402, %v5347
  %v5428 = vmul.f32 %v5406, %v5348
  %v5429 = vmul.f32 %v5410, %v5349
  %v5430 = vmul.f32 %v5414, %v5350
  %v5431 = vadd.f32 %v5326, %v5415
  %v5432 = vadd.f32 %v5327, %v5416
  %v5433 = vadd.f32 %v5328, %v5417
  %v5434 = vadd.f32 %v5329, %v5418
  %v5435 = vadd.f32 %v5330, %v5419
  %v5436 = vadd.f32 %v5331, %v5420
  %v5437 = vadd.f32 %v5332, %v5421
  %v5438 = vadd.f32 %v5333, %v5422
  %v5439 = vadd.f32 %v5334, %v5423
  %v5440 = vadd.f32 %v5335, %v5424
  %v5441 = vadd.f32 %v5336, %v5425
  %v5442 = vadd.f32 %v5337, %v5426
  %v5443 = vadd.f32 %v5338, %v5427
  %v5444 = vadd.f32 %v5339, %v5428
  %v5445 = vadd.f32 %v5340, %v5429
  %v5446 = vadd.f32 %v5341, %v5430
  %v5447 = vpack.c.bf16 %v5439, %v5431
  %v5448 = vpack.c.bf16 %v5440, %v5432
  %v5449 = vpack.c.bf16 %v5441, %v5433
  %v5450 = vpack.c.bf16 %v5442, %v5434
  %v5451 = vpack.c.bf16 %v5443, %v5435
  %v5452 = vpack.c.bf16 %v5444, %v5436
  %v5453 = vpack.c.bf16 %v5445, %v5437
  %v5454 = vpack.c.bf16 %v5446, %v5438
  %s5455 = scalar_lea.vmem %s6, 32
  %v5456 = vld [vmem:[%s5455] sm:$0xff]
  %v5457 = vld [vmem:[%s5455 + $0x8] sm:$0xff]
  %s5458 = scalar_lea.vmem %s7, 32
  %v5459 = vld [vmem:[%s5458] sm:$0xff]
  %v5460 = vld [vmem:[%s5458 + $0x8] sm:$0xff]
  %5462 = vset.pattern.permute.xlu0 0
  %5463 = vperm.xlu0 %5462, %v5459
  %v5464 = vpop.permute.xlu0 %5463
  %5467 = vset.pattern.permute.xlu0 0
  %5468 = vperm.xlu0 %5467, %v5460
  %v5469 = vpop.permute.xlu0 %5468
  %v5472 = vsel %vm2060, %v5456, 0
  %v5475 = vsel %vm2060, %v5457, 0
  %5477 = vmatprep.subr.mxu0 %v4446
  %5478 = vmatpush1.msra.mxu0 %v4445
  %5479 = vmatprep.subr.mxu0 %v4448
  %5480 = vmatpush1.msra.mxu0 %v4447
  %5481 = vmatprep.subr.mxu0 0.0
  %5482 = vmatpush1.msra.mxu0 0.0
  %5483 = vmatprep.subr.mxu0 0.0
  %5484 = vmatpush1.msra.mxu0 0.0
  %5485 = vmatprep.subr.mxu0 0.0
  %5486 = vmatpush1.msra.mxu0 0.0
  %5487 = vmatprep.subr.mxu0 0.0
  %5488 = vmatpush1.msra.mxu0 0.0
  %5489 = vmatprep.subr.mxu0 0.0
  %5490 = vmatpush1.msra.mxu0 0.0
  %5491 = vmatprep.subr.mxu0 0.0
  %5492 = vmatpush1.msra.mxu0 0.0
  %5493 = vmatprep.subr.mxu0 0.0
  %5494 = vmatpush1.msra.mxu0 0.0
  %5495 = vmatprep.subr.mxu0 0.0
  %5496 = vmatpush1.msra.mxu0 0.0
  %5497 = vmatprep.subr.mxu0 0.0
  %5498 = vmatpush1.msra.mxu0 0.0
  %5499 = vmatprep.subr.mxu0 0.0
  %5500 = vmatpush1.msra.mxu0 0.0
  %5501 = vmatprep.subr.mxu0 0.0
  %5502 = vmatpush1.msra.mxu0 0.0
  %5503 = vmatprep.subr.mxu0 0.0
  %5504 = vmatpush1.msra.mxu0 0.0
  %5505 = vmatprep.subr.mxu0 0.0
  %5506 = vmatpush1.msra.mxu0 0.0
  %5507 = vmatprep.subr.mxu0 0.0
  %5508 = vmatpush1.msra.mxu0 0.0
  %5509 = vmatprep.subr.mxu0 0.0
  %5510 = vmatpush1.msra.mxu0 0.0
  %5511 = vmatprep.subr.mxu0 0.0
  %5512 = vmatpush1.msra.mxu0 0.0
  %5513 = vmatprep.subr.mxu0 0.0
  %5514 = vmatpush1.msra.mxu0 0.0
  %5515 = vmatprep.subr.mxu0 0.0
  %5516 = vmatpush1.msra.mxu0 0.0
  %5517 = vmatprep.subr.mxu0 0.0
  %5518 = vmatpush1.msra.mxu0 0.0
  %5519 = vmatprep.subr.mxu0 0.0
  %5520 = vmatpush1.msra.mxu0 0.0
  %5521 = vmatprep.subr.mxu0 0.0
  %5522 = vmatpush1.msra.mxu0 0.0
  %5523 = vmatprep.subr.mxu0 0.0
  %5524 = vmatpush1.msra.mxu0 0.0
  %5525 = vmatprep.subr.mxu0 0.0
  %5526 = vmatpush1.msra.mxu0 0.0
  %5527 = vmatprep.subr.mxu0 0.0
  %5528 = vmatpush1.msra.mxu0 0.0
  %5529 = vmatprep.subr.mxu0 0.0
  %5530 = vmatpush1.msra.mxu0 0.0
  %5531 = vmatprep.subr.mxu0 0.0
  %5532 = vmatpush1.msra.mxu0 0.0
  %5533 = vmatprep.subr.mxu0 0.0
  %5534 = vmatpush1.msra.mxu0 0.0
  %5535 = vmatprep.subr.mxu0 0.0
  %5536 = vmatpush1.msra.mxu0 0.0
  %5537 = vmatprep.subr.mxu0 0.0
  %5538 = vmatpush1.msra.mxu0 0.0
  %5539 = vmatprep.subr.mxu0 0.0
  %5540 = vmatpush1.msra.mxu0 0.0
  %5541 = vmatprep.mubr.f32.mxu0 0.0
  %5542 = vmatmul.mubr.f32.gmra.mrb[0].mxu0 %v5472
  %v5543 = vpop.f32.mrb[0].mxu0
  %v5544 = vadd.f32 %v5464, %v5543
  %v5545 = vpop.f32.mrb[0].mxu0
  %v5546 = vadd.f32 %v5464, %v5545
  %5547 = vmatprep.mubr.f32.mxu0 0.0
  %5548 = vmatmul.mubr.f32.gmra.mrb[0].mxu0 %v5475
  %v5549 = vpop.f32.mrb[0].mxu0
  %v5550 = vadd.f32 %v5469, %v5549
  %v5551 = vpop.f32.mrb[0].mxu0
  %v5552 = vadd.f32 %v5469, %v5551
  %5553 = vdwg.mxu0
  %5554 = vmatprep.subr.bf16.mxu0 %v2529
  %5555 = vmatpush1.bf16.msra.mxu0 %v2528
  %5556 = vmatprep.subr.bf16.mxu0 %v2531
  %5557 = vmatpush1.bf16.msra.mxu0 %v2530
  %5558 = vmatprep.subr.bf16.mxu0 %v2533
  %5559 = vmatpush1.bf16.msra.mxu0 %v2532
  %5560 = vmatprep.subr.bf16.mxu0 %v2535
  %5561 = vmatpush1.bf16.msra.mxu0 %v2534
  %5562 = vmatprep.subr.bf16.mxu0 %v2537
  %5563 = vmatpush1.bf16.msra.mxu0 %v2536
  %5564 = vmatprep.subr.bf16.mxu0 %v2539
  %5565 = vmatpush1.bf16.msra.mxu0 %v2538
  %5566 = vmatprep.subr.bf16.mxu0 %v2541
  %5567 = vmatpush1.bf16.msra.mxu0 %v2540
  %5568 = vmatprep.subr.bf16.mxu0 %v2543
  %5569 = vmatpush1.bf16.msra.mxu0 %v2542
  %5570 = vmatprep.subr.bf16.mxu0 %v2545
  %5571 = vmatpush1.bf16.msra.mxu0 %v2544
  %5572 = vmatprep.subr.bf16.mxu0 %v2547
  %5573 = vmatpush1.bf16.msra.mxu0 %v2546
  %5574 = vmatprep.subr.bf16.mxu0 %v2549
  %5575 = vmatpush1.bf16.msra.mxu0 %v2548
  %5576 = vmatprep.subr.bf16.mxu0 %v2551
  %5577 = vmatpush1.bf16.msra.mxu0 %v2550
  %5578 = vmatprep.subr.bf16.mxu0 %v2553
  %5579 = vmatpush1.bf16.msra.mxu0 %v2552
  %5580 = vmatprep.subr.bf16.mxu0 %v2555
  %5581 = vmatpush1.bf16.msra.mxu0 %v2554
  %5582 = vmatprep.subr.bf16.mxu0 %v2557
  %5583 = vmatpush1.bf16.msra.mxu0 %v2556
  %5584 = vmatprep.subr.bf16.mxu0 %v2559
  %5585 = vmatpush1.bf16.msra.mxu0 %v2558
  %5586 = vmatprep.mubr.bf16.mxu0 %v5448
  %5587 = vmatmul.mubr.bf16.gmra.mrb[0].mxu0 %v5447
  %v5588 = vpop.f32.mrb[0].mxu0
  %v5589 = vadd.f32 %v5544, %v5588
  %v5590 = vpop.f32.mrb[0].mxu0
  %v5591 = vadd.f32 %v5546, %v5590
  %v5592 = vpop.f32.mrb[0].mxu0
  %v5593 = vadd.f32 %v5550, %v5592
  %v5594 = vpop.f32.mrb[0].mxu0
  %v5595 = vadd.f32 %v5552, %v5594
  %5596 = vdwg.mxu0
  %5597 = vmatprep.subr.bf16.mxu0 %v2561
  %5598 = vmatpush1.bf16.msra.mxu0 %v2560
  %5599 = vmatprep.subr.bf16.mxu0 %v2563
  %5600 = vmatpush1.bf16.msra.mxu0 %v2562
  %5601 = vmatprep.subr.bf16.mxu0 %v2565
  %5602 = vmatpush1.bf16.msra.mxu0 %v2564
  %5603 = vmatprep.subr.bf16.mxu0 %v2567
  %5604 = vmatpush1.bf16.msra.mxu0 %v2566
  %5605 = vmatprep.subr.bf16.mxu0 %v2569
  %5606 = vmatpush1.bf16.msra.mxu0 %v2568
  %5607 = vmatprep.subr.bf16.mxu0 %v2571
  %5608 = vmatpush1.bf16.msra.mxu0 %v2570
  %5609 = vmatprep.subr.bf16.mxu0 %v2573
  %5610 = vmatpush1.bf16.msra.mxu0 %v2572
  %5611 = vmatprep.subr.bf16.mxu0 %v2575
  %5612 = vmatpush1.bf16.msra.mxu0 %v2574
  %5613 = vmatprep.subr.bf16.mxu0 %v2577
  %5614 = vmatpush1.bf16.msra.mxu0 %v2576
  %5615 = vmatprep.subr.bf16.mxu0 %v2579
  %5616 = vmatpush1.bf16.msra.mxu0 %v2578
  %5617 = vmatprep.subr.bf16.mxu0 %v2581
  %5618 = vmatpush1.bf16.msra.mxu0 %v2580
  %5619 = vmatprep.subr.bf16.mxu0 %v2583
  %5620 = vmatpush1.bf16.msra.mxu0 %v2582
  %5621 = vmatprep.subr.bf16.mxu0 %v2585
  %5622 = vmatpush1.bf16.msra.mxu0 %v2584
  %5623 = vmatprep.subr.bf16.mxu0 %v2587
  %5624 = vmatpush1.bf16.msra.mxu0 %v2586
  %5625 = vmatprep.subr.bf16.mxu0 %v2589
  %5626 = vmatpush1.bf16.msra.mxu0 %v2588
  %5627 = vmatprep.subr.bf16.mxu0 %v2591
  %5628 = vmatpush1.bf16.msra.mxu0 %v2590
  %5629 = vmatprep.mubr.bf16.mxu0 %v5450
  %5630 = vmatmul.mubr.bf16.gmra.mrb[0].mxu0 %v5449
  %v5631 = vpop.f32.mrb[0].mxu0
  %v5632 = vadd.f32 %v5589, %v5631
  %v5633 = vpop.f32.mrb[0].mxu0
  %v5634 = vadd.f32 %v5591, %v5633
  %v5635 = vpop.f32.mrb[0].mxu0
  %v5636 = vadd.f32 %v5593, %v5635
  %v5637 = vpop.f32.mrb[0].mxu0
  %v5638 = vadd.f32 %v5595, %v5637
  %5639 = vdwg.mxu0
  %5640 = vmatprep.subr.bf16.mxu0 %v2593
  %5641 = vmatpush1.bf16.msra.mxu0 %v2592
  %5642 = vmatprep.subr.bf16.mxu0 %v2595
  %5643 = vmatpush1.bf16.msra.mxu0 %v2594
  %5644 = vmatprep.subr.bf16.mxu0 %v2597
  %5645 = vmatpush1.bf16.msra.mxu0 %v2596
  %5646 = vmatprep.subr.bf16.mxu0 %v2599
  %5647 = vmatpush1.bf16.msra.mxu0 %v2598
  %5648 = vmatprep.subr.bf16.mxu0 %v2601
  %5649 = vmatpush1.bf16.msra.mxu0 %v2600
  %5650 = vmatprep.subr.bf16.mxu0 %v2603
  %5651 = vmatpush1.bf16.msra.mxu0 %v2602
  %5652 = vmatprep.subr.bf16.mxu0 %v2605
  %5653 = vmatpush1.bf16.msra.mxu0 %v2604
  %5654 = vmatprep.subr.bf16.mxu0 %v2607
  %5655 = vmatpush1.bf16.msra.mxu0 %v2606
  %5656 = vmatprep.subr.bf16.mxu0 %v2609
  %5657 = vmatpush1.bf16.msra.mxu0 %v2608
  %5658 = vmatprep.subr.bf16.mxu0 %v2611
  %5659 = vmatpush1.bf16.msra.mxu0 %v2610
  %5660 = vmatprep.subr.bf16.mxu0 %v2613
  %5661 = vmatpush1.bf16.msra.mxu0 %v2612
  %5662 = vmatprep.subr.bf16.mxu0 %v2615
  %5663 = vmatpush1.bf16.msra.mxu0 %v2614
  %5664 = vmatprep.subr.bf16.mxu0 %v2617
  %5665 = vmatpush1.bf16.msra.mxu0 %v2616
  %5666 = vmatprep.subr.bf16.mxu0 %v2619
  %5667 = vmatpush1.bf16.msra.mxu0 %v2618
  %5668 = vmatprep.subr.bf16.mxu0 %v2621
  %5669 = vmatpush1.bf16.msra.mxu0 %v2620
  %5670 = vmatprep.subr.bf16.mxu0 %v2623
  %5671 = vmatpush1.bf16.msra.mxu0 %v2622
  %5672 = vmatprep.mubr.bf16.mxu0 %v5452
  %5673 = vmatmul.mubr.bf16.gmra.mrb[0].mxu0 %v5451
  %v5674 = vpop.f32.mrb[0].mxu0
  %v5675 = vadd.f32 %v5632, %v5674
  %v5676 = vpop.f32.mrb[0].mxu0
  %v5677 = vadd.f32 %v5634, %v5676
  %v5678 = vpop.f32.mrb[0].mxu0
  %v5679 = vadd.f32 %v5636, %v5678
  %v5680 = vpop.f32.mrb[0].mxu0
  %v5681 = vadd.f32 %v5638, %v5680
  %5682 = vdwg.mxu0
  %5683 = vmatprep.subr.bf16.mxu0 %v2625
  %5684 = vmatpush1.bf16.msra.mxu0 %v2624
  %5685 = vmatprep.subr.bf16.mxu0 %v2627
  %5686 = vmatpush1.bf16.msra.mxu0 %v2626
  %5687 = vmatprep.subr.bf16.mxu0 %v2629
  %5688 = vmatpush1.bf16.msra.mxu0 %v2628
  %5689 = vmatprep.subr.bf16.mxu0 %v2631
  %5690 = vmatpush1.bf16.msra.mxu0 %v2630
  %5691 = vmatprep.subr.bf16.mxu0 %v2633
  %5692 = vmatpush1.bf16.msra.mxu0 %v2632
  %5693 = vmatprep.subr.bf16.mxu0 %v2635
  %5694 = vmatpush1.bf16.msra.mxu0 %v2634
  %5695 = vmatprep.subr.bf16.mxu0 %v2637
  %5696 = vmatpush1.bf16.msra.mxu0 %v2636
  %5697 = vmatprep.subr.bf16.mxu0 %v2639
  %5698 = vmatpush1.bf16.msra.mxu0 %v2638
  %5699 = vmatprep.subr.bf16.mxu0 %v2641
  %5700 = vmatpush1.bf16.msra.mxu0 %v2640
  %5701 = vmatprep.subr.bf16.mxu0 %v2643
  %5702 = vmatpush1.bf16.msra.mxu0 %v2642
  %5703 = vmatprep.subr.bf16.mxu0 %v2645
  %5704 = vmatpush1.bf16.msra.mxu0 %v2644
  %5705 = vmatprep.subr.bf16.mxu0 %v2647
  %5706 = vmatpush1.bf16.msra.mxu0 %v2646
  %5707 = vmatprep.subr.bf16.mxu0 %v2649
  %5708 = vmatpush1.bf16.msra.mxu0 %v2648
  %5709 = vmatprep.subr.bf16.mxu0 %v2651
  %5710 = vmatpush1.bf16.msra.mxu0 %v2650
  %5711 = vmatprep.subr.bf16.mxu0 %v2653
  %5712 = vmatpush1.bf16.msra.mxu0 %v2652
  %5713 = vmatprep.subr.bf16.mxu0 %v2655
  %5714 = vmatpush1.bf16.msra.mxu0 %v2654
  %5715 = vmatprep.mubr.bf16.mxu0 %v5454
  %5716 = vmatmul.mubr.bf16.gmra.mrb[0].mxu0 %v5453
  %v5717 = vpop.f32.mrb[0].mxu0
  %v5718 = vadd.f32 %v5675, %v5717
  %v5719 = vpop.f32.mrb[0].mxu0
  %v5720 = vadd.f32 %v5677, %v5719
  %v5721 = vpop.f32.mrb[0].mxu0
  %v5722 = vadd.f32 %v5679, %v5721
  %v5723 = vpop.f32.mrb[0].mxu0
  %v5724 = vadd.f32 %v5681, %v5723
  %5725 = vdwg.mxu0
  %v5726 = vld [vmem:[#allocation2] sm:$0x1]
  %5728 = vset.pattern.permute.xlu0 0
  %5729 = vperm.xlu0 %5728, %v5726
  %v5730 = vpop.permute.xlu0 %5729
  %v5732 = vlaneseq
  %v5733 = vshrl.u32 %v5732, 7
  %v5734 = vsub.s32 0, %v5733
  %v5735 = vrot.slane %v5730, %v5734
  %v5736 = vld [vmem:[%s8] sm:$0xff]
  %v5737 = vld [vmem:[%s8 + $0x8] sm:$0xff]
  %v5738 = vld [vmem:[%s8 + $0x10] sm:$0xff]
  %v5739 = vld [vmem:[%s8 + $0x18] sm:$0xff]
  %v5740 = vld [vmem:[%s8 + $0x20] sm:$0xff]
  %v5741 = vld [vmem:[%s8 + $0x28] sm:$0xff]
  %v5742 = vld [vmem:[%s8 + $0x30] sm:$0xff]
  %v5743 = vld [vmem:[%s8 + $0x38] sm:$0xff]
  %v5744 = vld [vmem:[%s8 + $0x40] sm:$0xff]
  %v5745 = vld [vmem:[%s8 + $0x48] sm:$0xff]
  %v5746 = vld [vmem:[%s8 + $0x50] sm:$0xff]
  %v5747 = vld [vmem:[%s8 + $0x58] sm:$0xff]
  %v5748 = vld [vmem:[%s8 + $0x60] sm:$0xff]
  %v5749 = vld [vmem:[%s8 + $0x68] sm:$0xff]
  %v5750 = vld [vmem:[%s8 + $0x70] sm:$0xff]
  %v5751 = vld [vmem:[%s8 + $0x78] sm:$0xff]
  %vm5752 = vcmask 72704
  %v5754 = vsel %vm5752, %v5736, 0
  %v5757 = vsel %vm5752, %v5737, 0
  %v5760 = vsel %vm5752, %v5738, 0
  %v5763 = vsel %vm5752, %v5739, 0
  %v5766 = vsel %vm5752, %v5740, 0
  %v5769 = vsel %vm5752, %v5741, 0
  %v5772 = vsel %vm5752, %v5742, 0
  %v5775 = vsel %vm5752, %v5743, 0
  %v5778 = vsel %vm5752, %v5744, 0
  %v5781 = vsel %vm5752, %v5745, 0
  %v5784 = vsel %vm5752, %v5746, 0
  %v5787 = vsel %vm5752, %v5747, 0
  %v5790 = vsel %vm5752, %v5748, 0
  %v5793 = vsel %vm5752, %v5749, 0
  %v5796 = vsel %vm5752, %v5750, 0
  %v5799 = vsel %vm5752, %v5751, 0
  %vm5801 = vcmask 1040384
  %v5803 = vsel %vm5801, 1.0, 0
  %5805 = vmatprep.subr.mxu0 %v5720
  %5806 = vmatpush1.msra.mxu0 %v5718
  %5807 = vmatprep.subr.mxu0 %v5803
  %5808 = vmatpush1.msra.mxu0 %v5803
  %5809 = vmatprep.subr.mxu0 0.0
  %5810 = vmatpush1.msra.mxu0 0.0
  %5811 = vmatprep.subr.mxu0 0.0
  %5812 = vmatpush1.msra.mxu0 0.0
  %5813 = vmatprep.subr.mxu0 0.0
  %5814 = vmatpush1.msra.mxu0 0.0
  %5815 = vmatprep.subr.mxu0 0.0
  %5816 = vmatpush1.msra.mxu0 0.0
  %5817 = vmatprep.subr.mxu0 0.0
  %5818 = vmatpush1.msra.mxu0 0.0
  %5819 = vmatprep.subr.mxu0 0.0
  %5820 = vmatpush1.msra.mxu0 0.0
  %5821 = vmatprep.subr.mxu0 0.0
  %5822 = vmatpush1.msra.mxu0 0.0
  %5823 = vmatprep.subr.mxu0 0.0
  %5824 = vmatpush1.msra.mxu0 0.0
  %5825 = vmatprep.subr.mxu0 0.0
  %5826 = vmatpush1.msra.mxu0 0.0
  %5827 = vmatprep.subr.mxu0 0.0
  %5828 = vmatpush1.msra.mxu0 0.0
  %5829 = vmatprep.subr.mxu0 0.0
  %5830 = vmatpush1.msra.mxu0 0.0
  %5831 = vmatprep.subr.mxu0 0.0
  %5832 = vmatpush1.msra.mxu0 0.0
  %5833 = vmatprep.subr.mxu0 0.0
  %5834 = vmatpush1.msra.mxu0 0.0
  %5835 = vmatprep.subr.mxu0 0.0
  %5836 = vmatpush1.msra.mxu0 0.0
  %5837 = vmatprep.subr.mxu0 0.0
  %5838 = vmatpush1.msra.mxu0 0.0
  %5839 = vmatprep.subr.mxu0 0.0
  %5840 = vmatpush1.msra.mxu0 0.0
  %5841 = vmatprep.subr.mxu0 0.0
  %5842 = vmatpush1.msra.mxu0 0.0
  %5843 = vmatprep.subr.mxu0 0.0
  %5844 = vmatpush1.msra.mxu0 0.0
  %5845 = vmatprep.subr.mxu0 0.0
  %5846 = vmatpush1.msra.mxu0 0.0
  %5847 = vmatprep.subr.mxu0 0.0
  %5848 = vmatpush1.msra.mxu0 0.0
  %5849 = vmatprep.subr.mxu0 0.0
  %5850 = vmatpush1.msra.mxu0 0.0
  %5851 = vmatprep.subr.mxu0 0.0
  %5852 = vmatpush1.msra.mxu0 0.0
  %5853 = vmatprep.subr.mxu0 0.0
  %5854 = vmatpush1.msra.mxu0 0.0
  %5855 = vmatprep.subr.mxu0 0.0
  %5856 = vmatpush1.msra.mxu0 0.0
  %5857 = vmatprep.subr.mxu0 0.0
  %5858 = vmatpush1.msra.mxu0 0.0
  %5859 = vmatprep.subr.mxu0 0.0
  %5860 = vmatpush1.msra.mxu0 0.0
  %5861 = vmatprep.subr.mxu0 0.0
  %5862 = vmatpush1.msra.mxu0 0.0
  %5863 = vmatprep.subr.mxu0 0.0
  %5864 = vmatpush1.msra.mxu0 0.0
  %5865 = vmatprep.subr.mxu0 0.0
  %5866 = vmatpush1.msra.mxu0 0.0
  %5867 = vmatprep.subr.mxu0 0.0
  %5868 = vmatpush1.msra.mxu0 0.0
  %5869 = vmatprep.mubr.f32.mxu0 0.0
  %5870 = vmatmul.mubr.f32.gmra.mrb[0].mxu0 %v5754
  %v5871 = vpop.f32.mrb[0].mxu0
  %v5872 = vadd.f32 0.0, %v5871
  %v5873 = vpop.f32.mrb[0].mxu0
  %v5874 = vadd.f32 0.0, %v5873
  %5875 = vmatprep.mubr.f32.mxu0 0.0
  %5876 = vmatmul.mubr.f32.gmra.mrb[0].mxu0 %v5757
  %v5877 = vpop.f32.mrb[0].mxu0
  %v5878 = vadd.f32 0.0, %v5877
  %v5879 = vpop.f32.mrb[0].mxu0
  %v5880 = vadd.f32 0.0, %v5879
  %5881 = vmatprep.mubr.f32.mxu0 0.0
  %5882 = vmatmul.mubr.f32.gmra.mrb[0].mxu0 %v5760
  %v5883 = vpop.f32.mrb[0].mxu0
  %v5884 = vadd.f32 0.0, %v5883
  %v5885 = vpop.f32.mrb[0].mxu0
  %v5886 = vadd.f32 0.0, %v5885
  %5887 = vmatprep.mubr.f32.mxu0 0.0
  %5888 = vmatmul.mubr.f32.gmra.mrb[0].mxu0 %v5763
  %v5889 = vpop.f32.mrb[0].mxu0
  %v5890 = vadd.f32 0.0, %v5889
  %v5891 = vpop.f32.mrb[0].mxu0
  %v5892 = vadd.f32 0.0, %v5891
  %5893 = vmatprep.mubr.f32.mxu0 0.0
  %5894 = vmatmul.mubr.f32.gmra.mrb[0].mxu0 %v5766
  %v5895 = vpop.f32.mrb[0].mxu0
  %v5896 = vadd.f32 0.0, %v5895
  %v5897 = vpop.f32.mrb[0].mxu0
  %v5898 = vadd.f32 0.0, %v5897
  %5899 = vmatprep.mubr.f32.mxu0 0.0
  %5900 = vmatmul.mubr.f32.gmra.mrb[0].mxu0 %v5769
  %v5901 = vpop.f32.mrb[0].mxu0
  %v5902 = vadd.f32 0.0, %v5901
  %v5903 = vpop.f32.mrb[0].mxu0
  %v5904 = vadd.f32 0.0, %v5903
  %5905 = vmatprep.mubr.f32.mxu0 0.0
  %5906 = vmatmul.mubr.f32.gmra.mrb[0].mxu0 %v5772
  %v5907 = vpop.f32.mrb[0].mxu0
  %v5908 = vadd.f32 0.0, %v5907
  %v5909 = vpop.f32.mrb[0].mxu0
  %v5910 = vadd.f32 0.0, %v5909
  %5911 = vmatprep.mubr.f32.mxu0 0.0
  %5912 = vmatmul.mubr.f32.gmra.mrb[0].mxu0 %v5775
  %v5913 = vpop.f32.mrb[0].mxu0
  %v5914 = vadd.f32 0.0, %v5913
  %v5915 = vpop.f32.mrb[0].mxu0
  %v5916 = vadd.f32 0.0, %v5915
  %5917 = vmatprep.mubr.f32.mxu0 0.0
  %5918 = vmatmul.mubr.f32.gmra.mrb[0].mxu0 %v5778
  %v5919 = vpop.f32.mrb[0].mxu0
  %v5920 = vadd.f32 0.0, %v5919
  %v5921 = vpop.f32.mrb[0].mxu0
  %v5922 = vadd.f32 0.0, %v5921
  %5923 = vmatprep.mubr.f32.mxu0 0.0
  %5924 = vmatmul.mubr.f32.gmra.mrb[0].mxu0 %v5781
  %v5925 = vpop.f32.mrb[0].mxu0
  %v5926 = vadd.f32 0.0, %v5925
  %v5927 = vpop.f32.mrb[0].mxu0
  %v5928 = vadd.f32 0.0, %v5927
  %5929 = vmatprep.mubr.f32.mxu0 0.0
  %5930 = vmatmul.mubr.f32.gmra.mrb[0].mxu0 %v5784
  %v5931 = vpop.f32.mrb[0].mxu0
  %v5932 = vadd.f32 0.0, %v5931
  %v5933 = vpop.f32.mrb[0].mxu0
  %v5934 = vadd.f32 0.0, %v5933
  %5935 = vmatprep.mubr.f32.mxu0 0.0
  %5936 = vmatmul.mubr.f32.gmra.mrb[0].mxu0 %v5787
  %v5937 = vpop.f32.mrb[0].mxu0
  %v5938 = vadd.f32 0.0, %v5937
  %v5939 = vpop.f32.mrb[0].mxu0
  %v5940 = vadd.f32 0.0, %v5939
  %5941 = vmatprep.mubr.f32.mxu0 0.0
  %5942 = vmatmul.mubr.f32.gmra.mrb[0].mxu0 %v5790
  %v5943 = vpop.f32.mrb[0].mxu0
  %v5944 = vadd.f32 0.0, %v5943
  %v5945 = vpop.f32.mrb[0].mxu0
  %v5946 = vadd.f32 0.0, %v5945
  %5947 = vmatprep.mubr.f32.mxu0 0.0
  %5948 = vmatmul.mubr.f32.gmra.mrb[0].mxu0 %v5793
  %v5949 = vpop.f32.mrb[0].mxu0
  %v5950 = vadd.f32 0.0, %v5949
  %v5951 = vpop.f32.mrb[0].mxu0
  %v5952 = vadd.f32 0.0, %v5951
  %5953 = vmatprep.mubr.f32.mxu0 0.0
  %5954 = vmatmul.mubr.f32.gmra.mrb[0].mxu0 %v5796
  %v5955 = vpop.f32.mrb[0].mxu0
  %v5956 = vadd.f32 0.0, %v5955
  %v5957 = vpop.f32.mrb[0].mxu0
  %v5958 = vadd.f32 0.0, %v5957
  %5959 = vmatprep.mubr.f32.mxu0 0.0
  %5960 = vmatmul.mubr.f32.gmra.mrb[0].mxu0 %v5799
  %v5961 = vpop.f32.mrb[0].mxu0
  %v5962 = vadd.f32 0.0, %v5961
  %v5963 = vpop.f32.mrb[0].mxu0
  %v5964 = vadd.f32 0.0, %v5963
  %5965 = vdwg.mxu0
  %v5966 = vtanh.pop %v5872
  %v5967 = vtanh.pop %v5874
  %v5968 = vtanh.pop %v5878
  %v5969 = vtanh.pop %v5880
  %v5970 = vtanh.pop %v5884
  %v5971 = vtanh.pop %v5886
  %v5972 = vtanh.pop %v5890
  %v5973 = vtanh.pop %v5892
  %v5974 = vtanh.pop %v5896
  %v5975 = vtanh.pop %v5898
  %v5976 = vtanh.pop %v5902
  %v5977 = vtanh.pop %v5904
  %v5978 = vtanh.pop %v5908
  %v5979 = vtanh.pop %v5910
  %v5980 = vtanh.pop %v5914
  %v5981 = vtanh.pop %v5916
  %v5982 = vtanh.pop %v5920
  %v5983 = vtanh.pop %v5922
  %v5984 = vtanh.pop %v5926
  %v5985 = vtanh.pop %v5928
  %v5986 = vtanh.pop %v5932
  %v5987 = vtanh.pop %v5934
  %v5988 = vtanh.pop %v5938
  %v5989 = vtanh.pop %v5940
  %v5990 = vtanh.pop %v5944
  %v5991 = vtanh.pop %v5946
  %v5992 = vtanh.pop %v5950
  %v5993 = vtanh.pop %v5952
  %v5994 = vtanh.pop %v5956
  %v5995 = vtanh.pop %v5958
  %v5996 = vtanh.pop %v5962
  %v5997 = vtanh.pop %v5964
  %v5998 = vld [vmem:[%s9] sm:$0x1]
  %5999 = vmatprep.subr.mxu0 %v5967
  %6000 = vmatpush1.msra.mxu0 %v5966
  %6001 = vmatprep.subr.mxu0 %v5969
  %6002 = vmatpush1.msra.mxu0 %v5968
  %6003 = vmatprep.subr.mxu0 %v5971
  %6004 = vmatpush1.msra.mxu0 %v5970
  %6005 = vmatprep.subr.mxu0 %v5973
  %6006 = vmatpush1.msra.mxu0 %v5972
  %6007 = vmatprep.subr.mxu0 %v5975
  %6008 = vmatpush1.msra.mxu0 %v5974
  %6009 = vmatprep.subr.mxu0 %v5977
  %6010 = vmatpush1.msra.mxu0 %v5976
  %6011 = vmatprep.subr.mxu0 %v5979
  %6012 = vmatpush1.msra.mxu0 %v5978
  %6013 = vmatprep.subr.mxu0 %v5981
  %6014 = vmatpush1.msra.mxu0 %v5980
  %6015 = vmatprep.subr.mxu0 %v5983
  %6016 = vmatpush1.msra.mxu0 %v5982
  %6017 = vmatprep.subr.mxu0 %v5985
  %6018 = vmatpush1.msra.mxu0 %v5984
  %6019 = vmatprep.subr.mxu0 %v5987
  %6020 = vmatpush1.msra.mxu0 %v5986
  %6021 = vmatprep.subr.mxu0 %v5989
  %6022 = vmatpush1.msra.mxu0 %v5988
  %6023 = vmatprep.subr.mxu0 %v5991
  %6024 = vmatpush1.msra.mxu0 %v5990
  %6025 = vmatprep.subr.mxu0 %v5993
  %6026 = vmatpush1.msra.mxu0 %v5992
  %6027 = vmatprep.subr.mxu0 %v5995
  %6028 = vmatpush1.msra.mxu0 %v5994
  %6029 = vmatprep.subr.mxu0 %v5997
  %6030 = vmatpush1.msra.mxu0 %v5996
  %6031 = vmatprep.subr.mxu0 0.0
  %6032 = vmatpush1.msra.mxu0 0.0
  %6033 = vmatprep.subr.mxu0 0.0
  %6034 = vmatpush1.msra.mxu0 0.0
  %6035 = vmatprep.subr.mxu0 0.0
  %6036 = vmatpush1.msra.mxu0 0.0
  %6037 = vmatprep.subr.mxu0 0.0
  %6038 = vmatpush1.msra.mxu0 0.0
  %6039 = vmatprep.subr.mxu0 0.0
  %6040 = vmatpush1.msra.mxu0 0.0
  %6041 = vmatprep.subr.mxu0 0.0
  %6042 = vmatpush1.msra.mxu0 0.0
  %6043 = vmatprep.subr.mxu0 0.0
  %6044 = vmatpush1.msra.mxu0 0.0
  %6045 = vmatprep.subr.mxu0 0.0
  %6046 = vmatpush1.msra.mxu0 0.0
  %6047 = vmatprep.subr.mxu0 0.0
  %6048 = vmatpush1.msra.mxu0 0.0
  %6049 = vmatprep.subr.mxu0 0.0
  %6050 = vmatpush1.msra.mxu0 0.0
  %6051 = vmatprep.subr.mxu0 0.0
  %6052 = vmatpush1.msra.mxu0 0.0
  %6053 = vmatprep.subr.mxu0 0.0
  %6054 = vmatpush1.msra.mxu0 0.0
  %6055 = vmatprep.subr.mxu0 0.0
  %6056 = vmatpush1.msra.mxu0 0.0
  %6057 = vmatprep.subr.mxu0 0.0
  %6058 = vmatpush1.msra.mxu0 0.0
  %6059 = vmatprep.subr.mxu0 0.0
  %6060 = vmatpush1.msra.mxu0 0.0
  %6061 = vmatprep.subr.mxu0 0.0
  %6062 = vmatpush1.msra.mxu0 0.0
  %6063 = vmatprep.mubr.f32.mxu0 0.0
  %6064 = vmatmul.mubr.f32.gmra.mrb[0].mxu0 %v5998
  %v6065 = vpop.f32.mrb[0].mxu0
  %v6066 = vadd.f32 0.0, %v6065
  %v6067 = vpop.f32.mrb[0].mxu0
  %v6068 = vadd.f32 0.0, %v6067
  %6069 = vdwg.mxu0
  %v6070 = vadd.f32 %v5735, %v6066
  %v6071 = vadd.f32 %v5735, %v6068
  %v6072 = vld [vmem:[%s8 + $0x80] sm:$0xff]
  %v6073 = vld [vmem:[%s8 + $0x88] sm:$0xff]
  %v6074 = vld [vmem:[%s8 + $0x90] sm:$0xff]
  %v6075 = vld [vmem:[%s8 + $0x98] sm:$0xff]
  %v6076 = vld [vmem:[%s8 + $0xa0] sm:$0xff]
  %v6077 = vld [vmem:[%s8 + $0xa8] sm:$0xff]
  %v6078 = vld [vmem:[%s8 + $0xb0] sm:$0xff]
  %v6079 = vld [vmem:[%s8 + $0xb8] sm:$0xff]
  %v6080 = vld [vmem:[%s8 + $0xc0] sm:$0xff]
  %v6081 = vld [vmem:[%s8 + $0xc8] sm:$0xff]
  %v6082 = vld [vmem:[%s8 + $0xd0] sm:$0xff]
  %v6083 = vld [vmem:[%s8 + $0xd8] sm:$0xff]
  %v6084 = vld [vmem:[%s8 + $0xe0] sm:$0xff]
  %v6085 = vld [vmem:[%s8 + $0xe8] sm:$0xff]
  %v6086 = vld [vmem:[%s8 + $0xf0] sm:$0xff]
  %v6087 = vld [vmem:[%s8 + $0xf8] sm:$0xff]
  %v6089 = vsel %vm5752, %v6072, 0
  %v6092 = vsel %vm5752, %v6073, 0
  %v6095 = vsel %vm5752, %v6074, 0
  %v6098 = vsel %vm5752, %v6075, 0
  %v6101 = vsel %vm5752, %v6076, 0
  %v6104 = vsel %vm5752, %v6077, 0
  %v6107 = vsel %vm5752, %v6078, 0
  %v6110 = vsel %vm5752, %v6079, 0
  %v6113 = vsel %vm5752, %v6080, 0
  %v6116 = vsel %vm5752, %v6081, 0
  %v6119 = vsel %vm5752, %v6082, 0
  %v6122 = vsel %vm5752, %v6083, 0
  %v6125 = vsel %vm5752, %v6084, 0
  %v6128 = vsel %vm5752, %v6085, 0
  %v6131 = vsel %vm5752, %v6086, 0
  %v6134 = vsel %vm5752, %v6087, 0
  %6136 = vmatprep.subr.mxu0 %v5720
  %6137 = vmatpush1.msra.mxu0 %v5718
  %6138 = vmatprep.subr.mxu0 %v5803
  %6139 = vmatpush1.msra.mxu0 %v5803
  %6140 = vmatprep.subr.mxu0 0.0
  %6141 = vmatpush1.msra.mxu0 0.0
  %6142 = vmatprep.subr.mxu0 0.0
  %6143 = vmatpush1.msra.mxu0 0.0
  %6144 = vmatprep.subr.mxu0 0.0
  %6145 = vmatpush1.msra.mxu0 0.0
  %6146 = vmatprep.subr.mxu0 0.0
  %6147 = vmatpush1.msra.mxu0 0.0
  %6148 = vmatprep.subr.mxu0 0.0
  %6149 = vmatpush1.msra.mxu0 0.0
  %6150 = vmatprep.subr.mxu0 0.0
  %6151 = vmatpush1.msra.mxu0 0.0
  %6152 = vmatprep.subr.mxu0 0.0
  %6153 = vmatpush1.msra.mxu0 0.0
  %6154 = vmatprep.subr.mxu0 0.0
  %6155 = vmatpush1.msra.mxu0 0.0
  %6156 = vmatprep.subr.mxu0 0.0
  %6157 = vmatpush1.msra.mxu0 0.0
  %6158 = vmatprep.subr.mxu0 0.0
  %6159 = vmatpush1.msra.mxu0 0.0
  %6160 = vmatprep.subr.mxu0 0.0
  %6161 = vmatpush1.msra.mxu0 0.0
  %6162 = vmatprep.subr.mxu0 0.0
  %6163 = vmatpush1.msra.mxu0 0.0
  %6164 = vmatprep.subr.mxu0 0.0
  %6165 = vmatpush1.msra.mxu0 0.0
  %6166 = vmatprep.subr.mxu0 0.0
  %6167 = vmatpush1.msra.mxu0 0.0
  %6168 = vmatprep.subr.mxu0 0.0
  %6169 = vmatpush1.msra.mxu0 0.0
  %6170 = vmatprep.subr.mxu0 0.0
  %6171 = vmatpush1.msra.mxu0 0.0
  %6172 = vmatprep.subr.mxu0 0.0
  %6173 = vmatpush1.msra.mxu0 0.0
  %6174 = vmatprep.subr.mxu0 0.0
  %6175 = vmatpush1.msra.mxu0 0.0
  %6176 = vmatprep.subr.mxu0 0.0
  %6177 = vmatpush1.msra.mxu0 0.0
  %6178 = vmatprep.subr.mxu0 0.0
  %6179 = vmatpush1.msra.mxu0 0.0
  %6180 = vmatprep.subr.mxu0 0.0
  %6181 = vmatpush1.msra.mxu0 0.0
  %6182 = vmatprep.subr.mxu0 0.0
  %6183 = vmatpush1.msra.mxu0 0.0
  %6184 = vmatprep.subr.mxu0 0.0
  %6185 = vmatpush1.msra.mxu0 0.0
  %6186 = vmatprep.subr.mxu0 0.0
  %6187 = vmatpush1.msra.mxu0 0.0
  %6188 = vmatprep.subr.mxu0 0.0
  %6189 = vmatpush1.msra.mxu0 0.0
  %6190 = vmatprep.subr.mxu0 0.0
  %6191 = vmatpush1.msra.mxu0 0.0
  %6192 = vmatprep.subr.mxu0 0.0
  %6193 = vmatpush1.msra.mxu0 0.0
  %6194 = vmatprep.subr.mxu0 0.0
  %6195 = vmatpush1.msra.mxu0 0.0
  %6196 = vmatprep.subr.mxu0 0.0
  %6197 = vmatpush1.msra.mxu0 0.0
  %6198 = vmatprep.subr.mxu0 0.0
  %6199 = vmatpush1.msra.mxu0 0.0
  %6200 = vmatprep.mubr.f32.mxu0 0.0
  %6201 = vmatmul.mubr.f32.gmra.mrb[0].mxu0 %v6089
  %v6202 = vpop.f32.mrb[0].mxu0
  %v6203 = vadd.f32 0.0, %v6202
  %v6204 = vpop.f32.mrb[0].mxu0
  %v6205 = vadd.f32 0.0, %v6204
  %6206 = vmatprep.mubr.f32.mxu0 0.0
  %6207 = vmatmul.mubr.f32.gmra.mrb[0].mxu0 %v6092
  %v6208 = vpop.f32.mrb[0].mxu0
  %v6209 = vadd.f32 0.0, %v6208
  %v6210 = vpop.f32.mrb[0].mxu0
  %v6211 = vadd.f32 0.0, %v6210
  %6212 = vmatprep.mubr.f32.mxu0 0.0
  %6213 = vmatmul.mubr.f32.gmra.mrb[0].mxu0 %v6095
  %v6214 = vpop.f32.mrb[0].mxu0
  %v6215 = vadd.f32 0.0, %v6214
  %v6216 = vpop.f32.mrb[0].mxu0
  %v6217 = vadd.f32 0.0, %v6216
  %6218 = vmatprep.mubr.f32.mxu0 0.0
  %6219 = vmatmul.mubr.f32.gmra.mrb[0].mxu0 %v6098
  %v6220 = vpop.f32.mrb[0].mxu0
  %v6221 = vadd.f32 0.0, %v6220
  %v6222 = vpop.f32.mrb[0].mxu0
  %v6223 = vadd.f32 0.0, %v6222
  %6224 = vmatprep.mubr.f32.mxu0 0.0
  %6225 = vmatmul.mubr.f32.gmra.mrb[0].mxu0 %v6101
  %v6226 = vpop.f32.mrb[0].mxu0
  %v6227 = vadd.f32 0.0, %v6226
  %v6228 = vpop.f32.mrb[0].mxu0
  %v6229 = vadd.f32 0.0, %v6228
  %6230 = vmatprep.mubr.f32.mxu0 0.0
  %6231 = vmatmul.mubr.f32.gmra.mrb[0].mxu0 %v6104
  %v6232 = vpop.f32.mrb[0].mxu0
  %v6233 = vadd.f32 0.0, %v6232
  %v6234 = vpop.f32.mrb[0].mxu0
  %v6235 = vadd.f32 0.0, %v6234
  %6236 = vmatprep.mubr.f32.mxu0 0.0
  %6237 = vmatmul.mubr.f32.gmra.mrb[0].mxu0 %v6107
  %v6238 = vpop.f32.mrb[0].mxu0
  %v6239 = vadd.f32 0.0, %v6238
  %v6240 = vpop.f32.mrb[0].mxu0
  %v6241 = vadd.f32 0.0, %v6240
  %6242 = vmatprep.mubr.f32.mxu0 0.0
  %6243 = vmatmul.mubr.f32.gmra.mrb[0].mxu0 %v6110
  %v6244 = vpop.f32.mrb[0].mxu0
  %v6245 = vadd.f32 0.0, %v6244
  %v6246 = vpop.f32.mrb[0].mxu0
  %v6247 = vadd.f32 0.0, %v6246
  %6248 = vmatprep.mubr.f32.mxu0 0.0
  %6249 = vmatmul.mubr.f32.gmra.mrb[0].mxu0 %v6113
  %v6250 = vpop.f32.mrb[0].mxu0
  %v6251 = vadd.f32 0.0, %v6250
  %v6252 = vpop.f32.mrb[0].mxu0
  %v6253 = vadd.f32 0.0, %v6252
  %6254 = vmatprep.mubr.f32.mxu0 0.0
  %6255 = vmatmul.mubr.f32.gmra.mrb[0].mxu0 %v6116
  %v6256 = vpop.f32.mrb[0].mxu0
  %v6257 = vadd.f32 0.0, %v6256
  %v6258 = vpop.f32.mrb[0].mxu0
  %v6259 = vadd.f32 0.0, %v6258
  %6260 = vmatprep.mubr.f32.mxu0 0.0
  %6261 = vmatmul.mubr.f32.gmra.mrb[0].mxu0 %v6119
  %v6262 = vpop.f32.mrb[0].mxu0
  %v6263 = vadd.f32 0.0, %v6262
  %v6264 = vpop.f32.mrb[0].mxu0
  %v6265 = vadd.f32 0.0, %v6264
  %6266 = vmatprep.mubr.f32.mxu0 0.0
  %6267 = vmatmul.mubr.f32.gmra.mrb[0].mxu0 %v6122
  %v6268 = vpop.f32.mrb[0].mxu0
  %v6269 = vadd.f32 0.0, %v6268
  %v6270 = vpop.f32.mrb[0].mxu0
  %v6271 = vadd.f32 0.0, %v6270
  %6272 = vmatprep.mubr.f32.mxu0 0.0
  %6273 = vmatmul.mubr.f32.gmra.mrb[0].mxu0 %v6125
  %v6274 = vpop.f32.mrb[0].mxu0
  %v6275 = vadd.f32 0.0, %v6274
  %v6276 = vpop.f32.mrb[0].mxu0
  %v6277 = vadd.f32 0.0, %v6276
  %6278 = vmatprep.mubr.f32.mxu0 0.0
  %6279 = vmatmul.mubr.f32.gmra.mrb[0].mxu0 %v6128
  %v6280 = vpop.f32.mrb[0].mxu0
  %v6281 = vadd.f32 0.0, %v6280
  %v6282 = vpop.f32.mrb[0].mxu0
  %v6283 = vadd.f32 0.0, %v6282
  %6284 = vmatprep.mubr.f32.mxu0 0.0
  %6285 = vmatmul.mubr.f32.gmra.mrb[0].mxu0 %v6131
  %v6286 = vpop.f32.mrb[0].mxu0
  %v6287 = vadd.f32 0.0, %v6286
  %v6288 = vpop.f32.mrb[0].mxu0
  %v6289 = vadd.f32 0.0, %v6288
  %6290 = vmatprep.mubr.f32.mxu0 0.0
  %6291 = vmatmul.mubr.f32.gmra.mrb[0].mxu0 %v6134
  %v6292 = vpop.f32.mrb[0].mxu0
  %v6293 = vadd.f32 0.0, %v6292
  %v6294 = vpop.f32.mrb[0].mxu0
  %v6295 = vadd.f32 0.0, %v6294
  %6296 = vdwg.mxu0
  %v6297 = vtanh.pop %v6203
  %v6298 = vtanh.pop %v6205
  %v6299 = vtanh.pop %v6209
  %v6300 = vtanh.pop %v6211
  %v6301 = vtanh.pop %v6215
  %v6302 = vtanh.pop %v6217
  %v6303 = vtanh.pop %v6221
  %v6304 = vtanh.pop %v6223
  %v6305 = vtanh.pop %v6227
  %v6306 = vtanh.pop %v6229
  %v6307 = vtanh.pop %v6233
  %v6308 = vtanh.pop %v6235
  %v6309 = vtanh.pop %v6239
  %v6310 = vtanh.pop %v6241
  %v6311 = vtanh.pop %v6245
  %v6312 = vtanh.pop %v6247
  %v6313 = vtanh.pop %v6251
  %v6314 = vtanh.pop %v6253
  %v6315 = vtanh.pop %v6257
  %v6316 = vtanh.pop %v6259
  %v6317 = vtanh.pop %v6263
  %v6318 = vtanh.pop %v6265
  %v6319 = vtanh.pop %v6269
  %v6320 = vtanh.pop %v6271
  %v6321 = vtanh.pop %v6275
  %v6322 = vtanh.pop %v6277
  %v6323 = vtanh.pop %v6281
  %v6324 = vtanh.pop %v6283
  %v6325 = vtanh.pop %v6287
  %v6326 = vtanh.pop %v6289
  %v6327 = vtanh.pop %v6293
  %v6328 = vtanh.pop %v6295
  %v6329 = vld [vmem:[%s9 + $0x1] sm:$0x1]
  %6330 = vmatprep.subr.mxu0 %v6298
  %6331 = vmatpush1.msra.mxu0 %v6297
  %6332 = vmatprep.subr.mxu0 %v6300
  %6333 = vmatpush1.msra.mxu0 %v6299
  %6334 = vmatprep.subr.mxu0 %v6302
  %6335 = vmatpush1.msra.mxu0 %v6301
  %6336 = vmatprep.subr.mxu0 %v6304
  %6337 = vmatpush1.msra.mxu0 %v6303
  %6338 = vmatprep.subr.mxu0 %v6306
  %6339 = vmatpush1.msra.mxu0 %v6305
  %6340 = vmatprep.subr.mxu0 %v6308
  %6341 = vmatpush1.msra.mxu0 %v6307
  %6342 = vmatprep.subr.mxu0 %v6310
  %6343 = vmatpush1.msra.mxu0 %v6309
  %6344 = vmatprep.subr.mxu0 %v6312
  %6345 = vmatpush1.msra.mxu0 %v6311
  %6346 = vmatprep.subr.mxu0 %v6314
  %6347 = vmatpush1.msra.mxu0 %v6313
  %6348 = vmatprep.subr.mxu0 %v6316
  %6349 = vmatpush1.msra.mxu0 %v6315
  %6350 = vmatprep.subr.mxu0 %v6318
  %6351 = vmatpush1.msra.mxu0 %v6317
  %6352 = vmatprep.subr.mxu0 %v6320
  %6353 = vmatpush1.msra.mxu0 %v6319
  %6354 = vmatprep.subr.mxu0 %v6322
  %6355 = vmatpush1.msra.mxu0 %v6321
  %6356 = vmatprep.subr.mxu0 %v6324
  %6357 = vmatpush1.msra.mxu0 %v6323
  %6358 = vmatprep.subr.mxu0 %v6326
  %6359 = vmatpush1.msra.mxu0 %v6325
  %6360 = vmatprep.subr.mxu0 %v6328
  %6361 = vmatpush1.msra.mxu0 %v6327
  %6362 = vmatprep.subr.mxu0 0.0
  %6363 = vmatpush1.msra.mxu0 0.0
  %6364 = vmatprep.subr.mxu0 0.0
  %6365 = vmatpush1.msra.mxu0 0.0
  %6366 = vmatprep.subr.mxu0 0.0
  %6367 = vmatpush1.msra.mxu0 0.0
  %6368 = vmatprep.subr.mxu0 0.0
  %6369 = vmatpush1.msra.mxu0 0.0
  %6370 = vmatprep.subr.mxu0 0.0
  %6371 = vmatpush1.msra.mxu0 0.0
  %6372 = vmatprep.subr.mxu0 0.0
  %6373 = vmatpush1.msra.mxu0 0.0
  %6374 = vmatprep.subr.mxu0 0.0
  %6375 = vmatpush1.msra.mxu0 0.0
  %6376 = vmatprep.subr.mxu0 0.0
  %6377 = vmatpush1.msra.mxu0 0.0
  %6378 = vmatprep.subr.mxu0 0.0
  %6379 = vmatpush1.msra.mxu0 0.0
  %6380 = vmatprep.subr.mxu0 0.0
  %6381 = vmatpush1.msra.mxu0 0.0
  %6382 = vmatprep.subr.mxu0 0.0
  %6383 = vmatpush1.msra.mxu0 0.0
  %6384 = vmatprep.subr.mxu0 0.0
  %6385 = vmatpush1.msra.mxu0 0.0
  %6386 = vmatprep.subr.mxu0 0.0
  %6387 = vmatpush1.msra.mxu0 0.0
  %6388 = vmatprep.subr.mxu0 0.0
  %6389 = vmatpush1.msra.mxu0 0.0
  %6390 = vmatprep.subr.mxu0 0.0
  %6391 = vmatpush1.msra.mxu0 0.0
  %6392 = vmatprep.subr.mxu0 0.0
  %6393 = vmatpush1.msra.mxu0 0.0
  %6394 = vmatprep.mubr.f32.mxu0 0.0
  %6395 = vmatmul.mubr.f32.gmra.mrb[0].mxu0 %v6329
  %v6396 = vpop.f32.mrb[0].mxu0
  %v6397 = vadd.f32 0.0, %v6396
  %v6398 = vpop.f32.mrb[0].mxu0
  %v6399 = vadd.f32 0.0, %v6398
  %6400 = vdwg.mxu0
  %v6401 = vadd.f32 %v6070, %v6397
  %v6402 = vadd.f32 %v6071, %v6399
  %v6403 = vld [vmem:[%s8 + $0x100] sm:$0xff]
  %v6404 = vld [vmem:[%s8 + $0x108] sm:$0xff]
  %v6405 = vld [vmem:[%s8 + $0x110] sm:$0xff]
  %v6406 = vld [vmem:[%s8 + $0x118] sm:$0xff]
  %v6407 = vld [vmem:[%s8 + $0x120] sm:$0xff]
  %v6408 = vld [vmem:[%s8 + $0x128] sm:$0xff]
  %v6409 = vld [vmem:[%s8 + $0x130] sm:$0xff]
  %v6410 = vld [vmem:[%s8 + $0x138] sm:$0xff]
  %v6411 = vld [vmem:[%s8 + $0x140] sm:$0xff]
  %v6412 = vld [vmem:[%s8 + $0x148] sm:$0xff]
  %v6413 = vld [vmem:[%s8 + $0x150] sm:$0xff]
  %v6414 = vld [vmem:[%s8 + $0x158] sm:$0xff]
  %v6415 = vld [vmem:[%s8 + $0x160] sm:$0xff]
  %v6416 = vld [vmem:[%s8 + $0x168] sm:$0xff]
  %v6417 = vld [vmem:[%s8 + $0x170] sm:$0xff]
  %v6418 = vld [vmem:[%s8 + $0x178] sm:$0xff]
  %v6420 = vsel %vm5752, %v6403, 0
  %v6423 = vsel %vm5752, %v6404, 0
  %v6426 = vsel %vm5752, %v6405, 0
  %v6429 = vsel %vm5752, %v6406, 0
  %v6432 = vsel %vm5752, %v6407, 0
  %v6435 = vsel %vm5752, %v6408, 0
  %v6438 = vsel %vm5752, %v6409, 0
  %v6441 = vsel %vm5752, %v6410, 0
  %v6444 = vsel %vm5752, %v6411, 0
  %v6447 = vsel %vm5752, %v6412, 0
  %v6450 = vsel %vm5752, %v6413, 0
  %v6453 = vsel %vm5752, %v6414, 0
  %v6456 = vsel %vm5752, %v6415, 0
  %v6459 = vsel %vm5752, %v6416, 0
  %v6462 = vsel %vm5752, %v6417, 0
  %v6465 = vsel %vm5752, %v6418, 0
  %6467 = vmatprep.subr.mxu0 %v5720
  %6468 = vmatpush1.msra.mxu0 %v5718
  %6469 = vmatprep.subr.mxu0 %v5803
  %6470 = vmatpush1.msra.mxu0 %v5803
  %6471 = vmatprep.subr.mxu0 0.0
  %6472 = vmatpush1.msra.mxu0 0.0
  %6473 = vmatprep.subr.mxu0 0.0
  %6474 = vmatpush1.msra.mxu0 0.0
  %6475 = vmatprep.subr.mxu0 0.0
  %6476 = vmatpush1.msra.mxu0 0.0
  %6477 = vmatprep.subr.mxu0 0.0
  %6478 = vmatpush1.msra.mxu0 0.0
  %6479 = vmatprep.subr.mxu0 0.0
  %6480 = vmatpush1.msra.mxu0 0.0
  %6481 = vmatprep.subr.mxu0 0.0
  %6482 = vmatpush1.msra.mxu0 0.0
  %6483 = vmatprep.subr.mxu0 0.0
  %6484 = vmatpush1.msra.mxu0 0.0
  %6485 = vmatprep.subr.mxu0 0.0
  %6486 = vmatpush1.msra.mxu0 0.0
  %6487 = vmatprep.subr.mxu0 0.0
  %6488 = vmatpush1.msra.mxu0 0.0
  %6489 = vmatprep.subr.mxu0 0.0
  %6490 = vmatpush1.msra.mxu0 0.0
  %6491 = vmatprep.subr.mxu0 0.0
  %6492 = vmatpush1.msra.mxu0 0.0
  %6493 = vmatprep.subr.mxu0 0.0
  %6494 = vmatpush1.msra.mxu0 0.0
  %6495 = vmatprep.subr.mxu0 0.0
  %6496 = vmatpush1.msra.mxu0 0.0
  %6497 = vmatprep.subr.mxu0 0.0
  %6498 = vmatpush1.msra.mxu0 0.0
  %6499 = vmatprep.subr.mxu0 0.0
  %6500 = vmatpush1.msra.mxu0 0.0
  %6501 = vmatprep.subr.mxu0 0.0
  %6502 = vmatpush1.msra.mxu0 0.0
  %6503 = vmatprep.subr.mxu0 0.0
  %6504 = vmatpush1.msra.mxu0 0.0
  %6505 = vmatprep.subr.mxu0 0.0
  %6506 = vmatpush1.msra.mxu0 0.0
  %6507 = vmatprep.subr.mxu0 0.0
  %6508 = vmatpush1.msra.mxu0 0.0
  %6509 = vmatprep.subr.mxu0 0.0
  %6510 = vmatpush1.msra.mxu0 0.0
  %6511 = vmatprep.subr.mxu0 0.0
  %6512 = vmatpush1.msra.mxu0 0.0
  %6513 = vmatprep.subr.mxu0 0.0
  %6514 = vmatpush1.msra.mxu0 0.0
  %6515 = vmatprep.subr.mxu0 0.0
  %6516 = vmatpush1.msra.mxu0 0.0
  %6517 = vmatprep.subr.mxu0 0.0
  %6518 = vmatpush1.msra.mxu0 0.0
  %6519 = vmatprep.subr.mxu0 0.0
  %6520 = vmatpush1.msra.mxu0 0.0
  %6521 = vmatprep.subr.mxu0 0.0
  %6522 = vmatpush1.msra.mxu0 0.0
  %6523 = vmatprep.subr.mxu0 0.0
  %6524 = vmatpush1.msra.mxu0 0.0
  %6525 = vmatprep.subr.mxu0 0.0
  %6526 = vmatpush1.msra.mxu0 0.0
  %6527 = vmatprep.subr.mxu0 0.0
  %6528 = vmatpush1.msra.mxu0 0.0
  %6529 = vmatprep.subr.mxu0 0.0
  %6530 = vmatpush1.msra.mxu0 0.0
  %6531 = vmatprep.mubr.f32.mxu0 0.0
  %6532 = vmatmul.mubr.f32.gmra.mrb[0].mxu0 %v6420
  %v6533 = vpop.f32.mrb[0].mxu0
  %v6534 = vadd.f32 0.0, %v6533
  %v6535 = vpop.f32.mrb[0].mxu0
  %v6536 = vadd.f32 0.0, %v6535
  %6537 = vmatprep.mubr.f32.mxu0 0.0
  %6538 = vmatmul.mubr.f32.gmra.mrb[0].mxu0 %v6423
  %v6539 = vpop.f32.mrb[0].mxu0
  %v6540 = vadd.f32 0.0, %v6539
  %v6541 = vpop.f32.mrb[0].mxu0
  %v6542 = vadd.f32 0.0, %v6541
  %6543 = vmatprep.mubr.f32.mxu0 0.0
  %6544 = vmatmul.mubr.f32.gmra.mrb[0].mxu0 %v6426
  %v6545 = vpop.f32.mrb[0].mxu0
  %v6546 = vadd.f32 0.0, %v6545
  %v6547 = vpop.f32.mrb[0].mxu0
  %v6548 = vadd.f32 0.0, %v6547
  %6549 = vmatprep.mubr.f32.mxu0 0.0
  %6550 = vmatmul.mubr.f32.gmra.mrb[0].mxu0 %v6429
  %v6551 = vpop.f32.mrb[0].mxu0
  %v6552 = vadd.f32 0.0, %v6551
  %v6553 = vpop.f32.mrb[0].mxu0
  %v6554 = vadd.f32 0.0, %v6553
  %6555 = vmatprep.mubr.f32.mxu0 0.0
  %6556 = vmatmul.mubr.f32.gmra.mrb[0].mxu0 %v6432
  %v6557 = vpop.f32.mrb[0].mxu0
  %v6558 = vadd.f32 0.0, %v6557
  %v6559 = vpop.f32.mrb[0].mxu0
  %v6560 = vadd.f32 0.0, %v6559
  %6561 = vmatprep.mubr.f32.mxu0 0.0
  %6562 = vmatmul.mubr.f32.gmra.mrb[0].mxu0 %v6435
  %v6563 = vpop.f32.mrb[0].mxu0
  %v6564 = vadd.f32 0.0, %v6563
  %v6565 = vpop.f32.mrb[0].mxu0
  %v6566 = vadd.f32 0.0, %v6565
  %6567 = vmatprep.mubr.f32.mxu0 0.0
  %6568 = vmatmul.mubr.f32.gmra.mrb[0].mxu0 %v6438
  %v6569 = vpop.f32.mrb[0].mxu0
  %v6570 = vadd.f32 0.0, %v6569
  %v6571 = vpop.f32.mrb[0].mxu0
  %v6572 = vadd.f32 0.0, %v6571
  %6573 = vmatprep.mubr.f32.mxu0 0.0
  %6574 = vmatmul.mubr.f32.gmra.mrb[0].mxu0 %v6441
  %v6575 = vpop.f32.mrb[0].mxu0
  %v6576 = vadd.f32 0.0, %v6575
  %v6577 = vpop.f32.mrb[0].mxu0
  %v6578 = vadd.f32 0.0, %v6577
  %6579 = vmatprep.mubr.f32.mxu0 0.0
  %6580 = vmatmul.mubr.f32.gmra.mrb[0].mxu0 %v6444
  %v6581 = vpop.f32.mrb[0].mxu0
  %v6582 = vadd.f32 0.0, %v6581
  %v6583 = vpop.f32.mrb[0].mxu0
  %v6584 = vadd.f32 0.0, %v6583
  %6585 = vmatprep.mubr.f32.mxu0 0.0
  %6586 = vmatmul.mubr.f32.gmra.mrb[0].mxu0 %v6447
  %v6587 = vpop.f32.mrb[0].mxu0
  %v6588 = vadd.f32 0.0, %v6587
  %v6589 = vpop.f32.mrb[0].mxu0
  %v6590 = vadd.f32 0.0, %v6589
  %6591 = vmatprep.mubr.f32.mxu0 0.0
  %6592 = vmatmul.mubr.f32.gmra.mrb[0].mxu0 %v6450
  %v6593 = vpop.f32.mrb[0].mxu0
  %v6594 = vadd.f32 0.0, %v6593
  %v6595 = vpop.f32.mrb[0].mxu0
  %v6596 = vadd.f32 0.0, %v6595
  %6597 = vmatprep.mubr.f32.mxu0 0.0
  %6598 = vmatmul.mubr.f32.gmra.mrb[0].mxu0 %v6453
  %v6599 = vpop.f32.mrb[0].mxu0
  %v6600 = vadd.f32 0.0, %v6599
  %v6601 = vpop.f32.mrb[0].mxu0
  %v6602 = vadd.f32 0.0, %v6601
  %6603 = vmatprep.mubr.f32.mxu0 0.0
  %6604 = vmatmul.mubr.f32.gmra.mrb[0].mxu0 %v6456
  %v6605 = vpop.f32.mrb[0].mxu0
  %v6606 = vadd.f32 0.0, %v6605
  %v6607 = vpop.f32.mrb[0].mxu0
  %v6608 = vadd.f32 0.0, %v6607
  %6609 = vmatprep.mubr.f32.mxu0 0.0
  %6610 = vmatmul.mubr.f32.gmra.mrb[0].mxu0 %v6459
  %v6611 = vpop.f32.mrb[0].mxu0
  %v6612 = vadd.f32 0.0, %v6611
  %v6613 = vpop.f32.mrb[0].mxu0
  %v6614 = vadd.f32 0.0, %v6613
  %6615 = vmatprep.mubr.f32.mxu0 0.0
  %6616 = vmatmul.mubr.f32.gmra.mrb[0].mxu0 %v6462
  %v6617 = vpop.f32.mrb[0].mxu0
  %v6618 = vadd.f32 0.0, %v6617
  %v6619 = vpop.f32.mrb[0].mxu0
  %v6620 = vadd.f32 0.0, %v6619
  %6621 = vmatprep.mubr.f32.mxu0 0.0
  %6622 = vmatmul.mubr.f32.gmra.mrb[0].mxu0 %v6465
  %v6623 = vpop.f32.mrb[0].mxu0
  %v6624 = vadd.f32 0.0, %v6623
  %v6625 = vpop.f32.mrb[0].mxu0
  %v6626 = vadd.f32 0.0, %v6625
  %6627 = vdwg.mxu0
  %v6628 = vtanh.pop %v6534
  %v6629 = vtanh.pop %v6536
  %v6630 = vtanh.pop %v6540
  %v6631 = vtanh.pop %v6542
  %v6632 = vtanh.pop %v6546
  %v6633 = vtanh.pop %v6548
  %v6634 = vtanh.pop %v6552
  %v6635 = vtanh.pop %v6554
  %v6636 = vtanh.pop %v6558
  %v6637 = vtanh.pop %v6560
  %v6638 = vtanh.pop %v6564
  %v6639 = vtanh.pop %v6566
  %v6640 = vtanh.pop %v6570
  %v6641 = vtanh.pop %v6572
  %v6642 = vtanh.pop %v6576
  %v6643 = vtanh.pop %v6578
  %v6644 = vtanh.pop %v6582
  %v6645 = vtanh.pop %v6584
  %v6646 = vtanh.pop %v6588
  %v6647 = vtanh.pop %v6590
  %v6648 = vtanh.pop %v6594
  %v6649 = vtanh.pop %v6596
  %v6650 = vtanh.pop %v6600
  %v6651 = vtanh.pop %v6602
  %v6652 = vtanh.pop %v6606
  %v6653 = vtanh.pop %v6608
  %v6654 = vtanh.pop %v6612
  %v6655 = vtanh.pop %v6614
  %v6656 = vtanh.pop %v6618
  %v6657 = vtanh.pop %v6620
  %v6658 = vtanh.pop %v6624
  %v6659 = vtanh.pop %v6626
  %v6660 = vld [vmem:[%s9 + $0x2] sm:$0x1]
  %6661 = vmatprep.subr.mxu0 %v6629
  %6662 = vmatpush1.msra.mxu0 %v6628
  %6663 = vmatprep.subr.mxu0 %v6631
  %6664 = vmatpush1.msra.mxu0 %v6630
  %6665 = vmatprep.subr.mxu0 %v6633
  %6666 = vmatpush1.msra.mxu0 %v6632
  %6667 = vmatprep.subr.mxu0 %v6635
  %6668 = vmatpush1.msra.mxu0 %v6634
  %6669 = vmatprep.subr.mxu0 %v6637
  %6670 = vmatpush1.msra.mxu0 %v6636
  %6671 = vmatprep.subr.mxu0 %v6639
  %6672 = vmatpush1.msra.mxu0 %v6638
  %6673 = vmatprep.subr.mxu0 %v6641
  %6674 = vmatpush1.msra.mxu0 %v6640
  %6675 = vmatprep.subr.mxu0 %v6643
  %6676 = vmatpush1.msra.mxu0 %v6642
  %6677 = vmatprep.subr.mxu0 %v6645
  %6678 = vmatpush1.msra.mxu0 %v6644
  %6679 = vmatprep.subr.mxu0 %v6647
  %6680 = vmatpush1.msra.mxu0 %v6646
  %6681 = vmatprep.subr.mxu0 %v6649
  %6682 = vmatpush1.msra.mxu0 %v6648
  %6683 = vmatprep.subr.mxu0 %v6651
  %6684 = vmatpush1.msra.mxu0 %v6650
  %6685 = vmatprep.subr.mxu0 %v6653
  %6686 = vmatpush1.msra.mxu0 %v6652
  %6687 = vmatprep.subr.mxu0 %v6655
  %6688 = vmatpush1.msra.mxu0 %v6654
  %6689 = vmatprep.subr.mxu0 %v6657
  %6690 = vmatpush1.msra.mxu0 %v6656
  %6691 = vmatprep.subr.mxu0 %v6659
  %6692 = vmatpush1.msra.mxu0 %v6658
  %6693 = vmatprep.subr.mxu0 0.0
  %6694 = vmatpush1.msra.mxu0 0.0
  %6695 = vmatprep.subr.mxu0 0.0
  %6696 = vmatpush1.msra.mxu0 0.0
  %6697 = vmatprep.subr.mxu0 0.0
  %6698 = vmatpush1.msra.mxu0 0.0
  %6699 = vmatprep.subr.mxu0 0.0
  %6700 = vmatpush1.msra.mxu0 0.0
  %6701 = vmatprep.subr.mxu0 0.0
  %6702 = vmatpush1.msra.mxu0 0.0
  %6703 = vmatprep.subr.mxu0 0.0
  %6704 = vmatpush1.msra.mxu0 0.0
  %6705 = vmatprep.subr.mxu0 0.0
  %6706 = vmatpush1.msra.mxu0 0.0
  %6707 = vmatprep.subr.mxu0 0.0
  %6708 = vmatpush1.msra.mxu0 0.0
  %6709 = vmatprep.subr.mxu0 0.0
  %6710 = vmatpush1.msra.mxu0 0.0
  %6711 = vmatprep.subr.mxu0 0.0
  %6712 = vmatpush1.msra.mxu0 0.0
  %6713 = vmatprep.subr.mxu0 0.0
  %6714 = vmatpush1.msra.mxu0 0.0
  %6715 = vmatprep.subr.mxu0 0.0
  %6716 = vmatpush1.msra.mxu0 0.0
  %6717 = vmatprep.subr.mxu0 0.0
  %6718 = vmatpush1.msra.mxu0 0.0
  %6719 = vmatprep.subr.mxu0 0.0
  %6720 = vmatpush1.msra.mxu0 0.0
  %6721 = vmatprep.subr.mxu0 0.0
  %6722 = vmatpush1.msra.mxu0 0.0
  %6723 = vmatprep.subr.mxu0 0.0
  %6724 = vmatpush1.msra.mxu0 0.0
  %6725 = vmatprep.mubr.f32.mxu0 0.0
  %6726 = vmatmul.mubr.f32.gmra.mrb[0].mxu0 %v6660
  %v6727 = vpop.f32.mrb[0].mxu0
  %v6728 = vadd.f32 0.0, %v6727
  %v6729 = vpop.f32.mrb[0].mxu0
  %v6730 = vadd.f32 0.0, %v6729
  %6731 = vdwg.mxu0
  %v6732 = vadd.f32 %v6401, %v6728
  %v6733 = vadd.f32 %v6402, %v6730
  %v6734 = vld [vmem:[%s8 + $0x180] sm:$0xff]
  %v6735 = vld [vmem:[%s8 + $0x188] sm:$0xff]
  %v6736 = vld [vmem:[%s8 + $0x190] sm:$0xff]
  %v6737 = vld [vmem:[%s8 + $0x198] sm:$0xff]
  %v6738 = vld [vmem:[%s8 + $0x1a0] sm:$0xff]
  %v6739 = vld [vmem:[%s8 + $0x1a8] sm:$0xff]
  %v6740 = vld [vmem:[%s8 + $0x1b0] sm:$0xff]
  %v6741 = vld [vmem:[%s8 + $0x1b8] sm:$0xff]
  %v6742 = vld [vmem:[%s8 + $0x1c0] sm:$0xff]
  %v6743 = vld [vmem:[%s8 + $0x1c8] sm:$0xff]
  %v6744 = vld [vmem:[%s8 + $0x1d0] sm:$0xff]
  %v6745 = vld [vmem:[%s8 + $0x1d8] sm:$0xff]
  %v6746 = vld [vmem:[%s8 + $0x1e0] sm:$0xff]
  %v6747 = vld [vmem:[%s8 + $0x1e8] sm:$0xff]
  %v6748 = vld [vmem:[%s8 + $0x1f0] sm:$0xff]
  %v6749 = vld [vmem:[%s8 + $0x1f8] sm:$0xff]
  %v6751 = vsel %vm5752, %v6734, 0
  %v6754 = vsel %vm5752, %v6735, 0
  %v6757 = vsel %vm5752, %v6736, 0
  %v6760 = vsel %vm5752, %v6737, 0
  %v6763 = vsel %vm5752, %v6738, 0
  %v6766 = vsel %vm5752, %v6739, 0
  %v6769 = vsel %vm5752, %v6740, 0
  %v6772 = vsel %vm5752, %v6741, 0
  %v6775 = vsel %vm5752, %v6742, 0
  %v6778 = vsel %vm5752, %v6743, 0
  %v6781 = vsel %vm5752, %v6744, 0
  %v6784 = vsel %vm5752, %v6745, 0
  %v6787 = vsel %vm5752, %v6746, 0
  %v6790 = vsel %vm5752, %v6747, 0
  %v6793 = vsel %vm5752, %v6748, 0
  %v6796 = vsel %vm5752, %v6749, 0
  %6798 = vmatprep.subr.mxu0 %v5720
  %6799 = vmatpush1.msra.mxu0 %v5718
  %6800 = vmatprep.subr.mxu0 %v5803
  %6801 = vmatpush1.msra.mxu0 %v5803
  %6802 = vmatprep.subr.mxu0 0.0
  %6803 = vmatpush1.msra.mxu0 0.0
  %6804 = vmatprep.subr.mxu0 0.0
  %6805 = vmatpush1.msra.mxu0 0.0
  %6806 = vmatprep.subr.mxu0 0.0
  %6807 = vmatpush1.msra.mxu0 0.0
  %6808 = vmatprep.subr.mxu0 0.0
  %6809 = vmatpush1.msra.mxu0 0.0
  %6810 = vmatprep.subr.mxu0 0.0
  %6811 = vmatpush1.msra.mxu0 0.0
  %6812 = vmatprep.subr.mxu0 0.0
  %6813 = vmatpush1.msra.mxu0 0.0
  %6814 = vmatprep.subr.mxu0 0.0
  %6815 = vmatpush1.msra.mxu0 0.0
  %6816 = vmatprep.subr.mxu0 0.0
  %6817 = vmatpush1.msra.mxu0 0.0
  %6818 = vmatprep.subr.mxu0 0.0
  %6819 = vmatpush1.msra.mxu0 0.0
  %6820 = vmatprep.subr.mxu0 0.0
  %6821 = vmatpush1.msra.mxu0 0.0
  %6822 = vmatprep.subr.mxu0 0.0
  %6823 = vmatpush1.msra.mxu0 0.0
  %6824 = vmatprep.subr.mxu0 0.0
  %6825 = vmatpush1.msra.mxu0 0.0
  %6826 = vmatprep.subr.mxu0 0.0
  %6827 = vmatpush1.msra.mxu0 0.0
  %6828 = vmatprep.subr.mxu0 0.0
  %6829 = vmatpush1.msra.mxu0 0.0
  %6830 = vmatprep.subr.mxu0 0.0
  %6831 = vmatpush1.msra.mxu0 0.0
  %6832 = vmatprep.subr.mxu0 0.0
  %6833 = vmatpush1.msra.mxu0 0.0
  %6834 = vmatprep.subr.mxu0 0.0
  %6835 = vmatpush1.msra.mxu0 0.0
  %6836 = vmatprep.subr.mxu0 0.0
  %6837 = vmatpush1.msra.mxu0 0.0
  %6838 = vmatprep.subr.mxu0 0.0
  %6839 = vmatpush1.msra.mxu0 0.0
  %6840 = vmatprep.subr.mxu0 0.0
  %6841 = vmatpush1.msra.mxu0 0.0
  %6842 = vmatprep.subr.mxu0 0.0
  %6843 = vmatpush1.msra.mxu0 0.0
  %6844 = vmatprep.subr.mxu0 0.0
  %6845 = vmatpush1.msra.mxu0 0.0
  %6846 = vmatprep.subr.mxu0 0.0
  %6847 = vmatpush1.msra.mxu0 0.0
  %6848 = vmatprep.subr.mxu0 0.0
  %6849 = vmatpush1.msra.mxu0 0.0
  %6850 = vmatprep.subr.mxu0 0.0
  %6851 = vmatpush1.msra.mxu0 0.0
  %6852 = vmatprep.subr.mxu0 0.0
  %6853 = vmatpush1.msra.mxu0 0.0
  %6854 = vmatprep.subr.mxu0 0.0
  %6855 = vmatpush1.msra.mxu0 0.0
  %6856 = vmatprep.subr.mxu0 0.0
  %6857 = vmatpush1.msra.mxu0 0.0
  %6858 = vmatprep.subr.mxu0 0.0
  %6859 = vmatpush1.msra.mxu0 0.0
  %6860 = vmatprep.subr.mxu0 0.0
  %6861 = vmatpush1.msra.mxu0 0.0
  %6862 = vmatprep.mubr.f32.mxu0 0.0
  %6863 = vmatmul.mubr.f32.gmra.mrb[0].mxu0 %v6751
  %v6864 = vpop.f32.mrb[0].mxu0
  %v6865 = vadd.f32 0.0, %v6864
  %v6866 = vpop.f32.mrb[0].mxu0
  %v6867 = vadd.f32 0.0, %v6866
  %6868 = vmatprep.mubr.f32.mxu0 0.0
  %6869 = vmatmul.mubr.f32.gmra.mrb[0].mxu0 %v6754
  %v6870 = vpop.f32.mrb[0].mxu0
  %v6871 = vadd.f32 0.0, %v6870
  %v6872 = vpop.f32.mrb[0].mxu0
  %v6873 = vadd.f32 0.0, %v6872
  %6874 = vmatprep.mubr.f32.mxu0 0.0
  %6875 = vmatmul.mubr.f32.gmra.mrb[0].mxu0 %v6757
  %v6876 = vpop.f32.mrb[0].mxu0
  %v6877 = vadd.f32 0.0, %v6876
  %v6878 = vpop.f32.mrb[0].mxu0
  %v6879 = vadd.f32 0.0, %v6878
  %6880 = vmatprep.mubr.f32.mxu0 0.0
  %6881 = vmatmul.mubr.f32.gmra.mrb[0].mxu0 %v6760
  %v6882 = vpop.f32.mrb[0].mxu0
  %v6883 = vadd.f32 0.0, %v6882
  %v6884 = vpop.f32.mrb[0].mxu0
  %v6885 = vadd.f32 0.0, %v6884
  %6886 = vmatprep.mubr.f32.mxu0 0.0
  %6887 = vmatmul.mubr.f32.gmra.mrb[0].mxu0 %v6763
  %v6888 = vpop.f32.mrb[0].mxu0
  %v6889 = vadd.f32 0.0, %v6888
  %v6890 = vpop.f32.mrb[0].mxu0
  %v6891 = vadd.f32 0.0, %v6890
  %6892 = vmatprep.mubr.f32.mxu0 0.0
  %6893 = vmatmul.mubr.f32.gmra.mrb[0].mxu0 %v6766
  %v6894 = vpop.f32.mrb[0].mxu0
  %v6895 = vadd.f32 0.0, %v6894
  %v6896 = vpop.f32.mrb[0].mxu0
  %v6897 = vadd.f32 0.0, %v6896
  %6898 = vmatprep.mubr.f32.mxu0 0.0
  %6899 = vmatmul.mubr.f32.gmra.mrb[0].mxu0 %v6769
  %v6900 = vpop.f32.mrb[0].mxu0
  %v6901 = vadd.f32 0.0, %v6900
  %v6902 = vpop.f32.mrb[0].mxu0
  %v6903 = vadd.f32 0.0, %v6902
  %6904 = vmatprep.mubr.f32.mxu0 0.0
  %6905 = vmatmul.mubr.f32.gmra.mrb[0].mxu0 %v6772
  %v6906 = vpop.f32.mrb[0].mxu0
  %v6907 = vadd.f32 0.0, %v6906
  %v6908 = vpop.f32.mrb[0].mxu0
  %v6909 = vadd.f32 0.0, %v6908
  %6910 = vmatprep.mubr.f32.mxu0 0.0
  %6911 = vmatmul.mubr.f32.gmra.mrb[0].mxu0 %v6775
  %v6912 = vpop.f32.mrb[0].mxu0
  %v6913 = vadd.f32 0.0, %v6912
  %v6914 = vpop.f32.mrb[0].mxu0
  %v6915 = vadd.f32 0.0, %v6914
  %6916 = vmatprep.mubr.f32.mxu0 0.0
  %6917 = vmatmul.mubr.f32.gmra.mrb[0].mxu0 %v6778
  %v6918 = vpop.f32.mrb[0].mxu0
  %v6919 = vadd.f32 0.0, %v6918
  %v6920 = vpop.f32.mrb[0].mxu0
  %v6921 = vadd.f32 0.0, %v6920
  %6922 = vmatprep.mubr.f32.mxu0 0.0
  %6923 = vmatmul.mubr.f32.gmra.mrb[0].mxu0 %v6781
  %v6924 = vpop.f32.mrb[0].mxu0
  %v6925 = vadd.f32 0.0, %v6924
  %v6926 = vpop.f32.mrb[0].mxu0
  %v6927 = vadd.f32 0.0, %v6926
  %6928 = vmatprep.mubr.f32.mxu0 0.0
  %6929 = vmatmul.mubr.f32.gmra.mrb[0].mxu0 %v6784
  %v6930 = vpop.f32.mrb[0].mxu0
  %v6931 = vadd.f32 0.0, %v6930
  %v6932 = vpop.f32.mrb[0].mxu0
  %v6933 = vadd.f32 0.0, %v6932
  %6934 = vmatprep.mubr.f32.mxu0 0.0
  %6935 = vmatmul.mubr.f32.gmra.mrb[0].mxu0 %v6787
  %v6936 = vpop.f32.mrb[0].mxu0
  %v6937 = vadd.f32 0.0, %v6936
  %v6938 = vpop.f32.mrb[0].mxu0
  %v6939 = vadd.f32 0.0, %v6938
  %6940 = vmatprep.mubr.f32.mxu0 0.0
  %6941 = vmatmul.mubr.f32.gmra.mrb[0].mxu0 %v6790
  %v6942 = vpop.f32.mrb[0].mxu0
  %v6943 = vadd.f32 0.0, %v6942
  %v6944 = vpop.f32.mrb[0].mxu0
  %v6945 = vadd.f32 0.0, %v6944
  %6946 = vmatprep.mubr.f32.mxu0 0.0
  %6947 = vmatmul.mubr.f32.gmra.mrb[0].mxu0 %v6793
  %v6948 = vpop.f32.mrb[0].mxu0
  %v6949 = vadd.f32 0.0, %v6948
  %v6950 = vpop.f32.mrb[0].mxu0
  %v6951 = vadd.f32 0.0, %v6950
  %6952 = vmatprep.mubr.f32.mxu0 0.0
  %6953 = vmatmul.mubr.f32.gmra.mrb[0].mxu0 %v6796
  %v6954 = vpop.f32.mrb[0].mxu0
  %v6955 = vadd.f32 0.0, %v6954
  %v6956 = vpop.f32.mrb[0].mxu0
  %v6957 = vadd.f32 0.0, %v6956
  %6958 = vdwg.mxu0
  %v6959 = vtanh.pop %v6865
  %v6960 = vtanh.pop %v6867
  %v6961 = vtanh.pop %v6871
  %v6962 = vtanh.pop %v6873
  %v6963 = vtanh.pop %v6877
  %v6964 = vtanh.pop %v6879
  %v6965 = vtanh.pop %v6883
  %v6966 = vtanh.pop %v6885
  %v6967 = vtanh.pop %v6889
  %v6968 = vtanh.pop %v6891
  %v6969 = vtanh.pop %v6895
  %v6970 = vtanh.pop %v6897
  %v6971 = vtanh.pop %v6901
  %v6972 = vtanh.pop %v6903
  %v6973 = vtanh.pop %v6907
  %v6974 = vtanh.pop %v6909
  %v6975 = vtanh.pop %v6913
  %v6976 = vtanh.pop %v6915
  %v6977 = vtanh.pop %v6919
  %v6978 = vtanh.pop %v6921
  %v6979 = vtanh.pop %v6925
  %v6980 = vtanh.pop %v6927
  %v6981 = vtanh.pop %v6931
  %v6982 = vtanh.pop %v6933
  %v6983 = vtanh.pop %v6937
  %v6984 = vtanh.pop %v6939
  %v6985 = vtanh.pop %v6943
  %v6986 = vtanh.pop %v6945
  %v6987 = vtanh.pop %v6949
  %v6988 = vtanh.pop %v6951
  %v6989 = vtanh.pop %v6955
  %v6990 = vtanh.pop %v6957
  %v6991 = vld [vmem:[%s9 + $0x3] sm:$0x1]
  %6992 = vmatprep.subr.mxu0 %v6960
  %6993 = vmatpush1.msra.mxu0 %v6959
  %6994 = vmatprep.subr.mxu0 %v6962
  %6995 = vmatpush1.msra.mxu0 %v6961
  %6996 = vmatprep.subr.mxu0 %v6964
  %6997 = vmatpush1.msra.mxu0 %v6963
  %6998 = vmatprep.subr.mxu0 %v6966
  %6999 = vmatpush1.msra.mxu0 %v6965
  %7000 = vmatprep.subr.mxu0 %v6968
  %7001 = vmatpush1.msra.mxu0 %v6967
  %7002 = vmatprep.subr.mxu0 %v6970
  %7003 = vmatpush1.msra.mxu0 %v6969
  %7004 = vmatprep.subr.mxu0 %v6972
  %7005 = vmatpush1.msra.mxu0 %v6971
  %7006 = vmatprep.subr.mxu0 %v6974
  %7007 = vmatpush1.msra.mxu0 %v6973
  %7008 = vmatprep.subr.mxu0 %v6976
  %7009 = vmatpush1.msra.mxu0 %v6975
  %7010 = vmatprep.subr.mxu0 %v6978
  %7011 = vmatpush1.msra.mxu0 %v6977
  %7012 = vmatprep.subr.mxu0 %v6980
  %7013 = vmatpush1.msra.mxu0 %v6979
  %7014 = vmatprep.subr.mxu0 %v6982
  %7015 = vmatpush1.msra.mxu0 %v6981
  %7016 = vmatprep.subr.mxu0 %v6984
  %7017 = vmatpush1.msra.mxu0 %v6983
  %7018 = vmatprep.subr.mxu0 %v6986
  %7019 = vmatpush1.msra.mxu0 %v6985
  %7020 = vmatprep.subr.mxu0 %v6988
  %7021 = vmatpush1.msra.mxu0 %v6987
  %7022 = vmatprep.subr.mxu0 %v6990
  %7023 = vmatpush1.msra.mxu0 %v6989
  %7024 = vmatprep.subr.mxu0 0.0
  %7025 = vmatpush1.msra.mxu0 0.0
  %7026 = vmatprep.subr.mxu0 0.0
  %7027 = vmatpush1.msra.mxu0 0.0
  %7028 = vmatprep.subr.mxu0 0.0
  %7029 = vmatpush1.msra.mxu0 0.0
  %7030 = vmatprep.subr.mxu0 0.0
  %7031 = vmatpush1.msra.mxu0 0.0
  %7032 = vmatprep.subr.mxu0 0.0
  %7033 = vmatpush1.msra.mxu0 0.0
  %7034 = vmatprep.subr.mxu0 0.0
  %7035 = vmatpush1.msra.mxu0 0.0
  %7036 = vmatprep.subr.mxu0 0.0
  %7037 = vmatpush1.msra.mxu0 0.0
  %7038 = vmatprep.subr.mxu0 0.0
  %7039 = vmatpush1.msra.mxu0 0.0
  %7040 = vmatprep.subr.mxu0 0.0
  %7041 = vmatpush1.msra.mxu0 0.0
  %7042 = vmatprep.subr.mxu0 0.0
  %7043 = vmatpush1.msra.mxu0 0.0
  %7044 = vmatprep.subr.mxu0 0.0
  %7045 = vmatpush1.msra.mxu0 0.0
  %7046 = vmatprep.subr.mxu0 0.0
  %7047 = vmatpush1.msra.mxu0 0.0
  %7048 = vmatprep.subr.mxu0 0.0
  %7049 = vmatpush1.msra.mxu0 0.0
  %7050 = vmatprep.subr.mxu0 0.0
  %7051 = vmatpush1.msra.mxu0 0.0
  %7052 = vmatprep.subr.mxu0 0.0
  %7053 = vmatpush1.msra.mxu0 0.0
  %7054 = vmatprep.subr.mxu0 0.0
  %7055 = vmatpush1.msra.mxu0 0.0
  %7056 = vmatprep.mubr.f32.mxu0 0.0
  %7057 = vmatmul.mubr.f32.gmra.mrb[0].mxu0 %v6991
  %v7058 = vpop.f32.mrb[0].mxu0
  %v7059 = vadd.f32 0.0, %v7058
  %v7060 = vpop.f32.mrb[0].mxu0
  %v7061 = vadd.f32 0.0, %v7060
  %7062 = vdwg.mxu0
  %v7063 = vadd.f32 %v6732, %v7059
  %v7064 = vadd.f32 %v6733, %v7061
  %7065 = vmatprep.subr.mxu0 %v5724
  %7066 = vmatpush1.msra.mxu0 %v5722
  %7067 = vmatprep.subr.mxu0 %v5803
  %7068 = vmatpush1.msra.mxu0 %v5803
  %7069 = vmatprep.subr.mxu0 0.0
  %7070 = vmatpush1.msra.mxu0 0.0
  %7071 = vmatprep.subr.mxu0 0.0
  %7072 = vmatpush1.msra.mxu0 0.0
  %7073 = vmatprep.subr.mxu0 0.0
  %7074 = vmatpush1.msra.mxu0 0.0
  %7075 = vmatprep.subr.mxu0 0.0
  %7076 = vmatpush1.msra.mxu0 0.0
  %7077 = vmatprep.subr.mxu0 0.0
  %7078 = vmatpush1.msra.mxu0 0.0
  %7079 = vmatprep.subr.mxu0 0.0
  %7080 = vmatpush1.msra.mxu0 0.0
  %7081 = vmatprep.subr.mxu0 0.0
  %7082 = vmatpush1.msra.mxu0 0.0
  %7083 = vmatprep.subr.mxu0 0.0
  %7084 = vmatpush1.msra.mxu0 0.0
  %7085 = vmatprep.subr.mxu0 0.0
  %7086 = vmatpush1.msra.mxu0 0.0
  %7087 = vmatprep.subr.mxu0 0.0
  %7088 = vmatpush1.msra.mxu0 0.0
  %7089 = vmatprep.subr.mxu0 0.0
  %7090 = vmatpush1.msra.mxu0 0.0
  %7091 = vmatprep.subr.mxu0 0.0
  %7092 = vmatpush1.msra.mxu0 0.0
  %7093 = vmatprep.subr.mxu0 0.0
  %7094 = vmatpush1.msra.mxu0 0.0
  %7095 = vmatprep.subr.mxu0 0.0
  %7096 = vmatpush1.msra.mxu0 0.0
  %7097 = vmatprep.subr.mxu0 0.0
  %7098 = vmatpush1.msra.mxu0 0.0
  %7099 = vmatprep.subr.mxu0 0.0
  %7100 = vmatpush1.msra.mxu0 0.0
  %7101 = vmatprep.subr.mxu0 0.0
  %7102 = vmatpush1.msra.mxu0 0.0
  %7103 = vmatprep.subr.mxu0 0.0
  %7104 = vmatpush1.msra.mxu0 0.0
  %7105 = vmatprep.subr.mxu0 0.0
  %7106 = vmatpush1.msra.mxu0 0.0
  %7107 = vmatprep.subr.mxu0 0.0
  %7108 = vmatpush1.msra.mxu0 0.0
  %7109 = vmatprep.subr.mxu0 0.0
  %7110 = vmatpush1.msra.mxu0 0.0
  %7111 = vmatprep.subr.mxu0 0.0
  %7112 = vmatpush1.msra.mxu0 0.0
  %7113 = vmatprep.subr.mxu0 0.0
  %7114 = vmatpush1.msra.mxu0 0.0
  %7115 = vmatprep.subr.mxu0 0.0
  %7116 = vmatpush1.msra.mxu0 0.0
  %7117 = vmatprep.subr.mxu0 0.0
  %7118 = vmatpush1.msra.mxu0 0.0
  %7119 = vmatprep.subr.mxu0 0.0
  %7120 = vmatpush1.msra.mxu0 0.0
  %7121 = vmatprep.subr.mxu0 0.0
  %7122 = vmatpush1.msra.mxu0 0.0
  %7123 = vmatprep.subr.mxu0 0.0
  %7124 = vmatpush1.msra.mxu0 0.0
  %7125 = vmatprep.subr.mxu0 0.0
  %7126 = vmatpush1.msra.mxu0 0.0
  %7127 = vmatprep.subr.mxu0 0.0
  %7128 = vmatpush1.msra.mxu0 0.0
  %7129 = vmatprep.mubr.f32.mxu0 0.0
  %7130 = vmatmul.mubr.f32.gmra.mrb[0].mxu0 %v5754
  %v7131 = vpop.f32.mrb[0].mxu0
  %v7132 = vadd.f32 0.0, %v7131
  %v7133 = vpop.f32.mrb[0].mxu0
  %v7134 = vadd.f32 0.0, %v7133
  %7135 = vmatprep.mubr.f32.mxu0 0.0
  %7136 = vmatmul.mubr.f32.gmra.mrb[0].mxu0 %v5757
  %v7137 = vpop.f32.mrb[0].mxu0
  %v7138 = vadd.f32 0.0, %v7137
  %v7139 = vpop.f32.mrb[0].mxu0
  %v7140 = vadd.f32 0.0, %v7139
  %7141 = vmatprep.mubr.f32.mxu0 0.0
  %7142 = vmatmul.mubr.f32.gmra.mrb[0].mxu0 %v5760
  %v7143 = vpop.f32.mrb[0].mxu0
  %v7144 = vadd.f32 0.0, %v7143
  %v7145 = vpop.f32.mrb[0].mxu0
  %v7146 = vadd.f32 0.0, %v7145
  %7147 = vmatprep.mubr.f32.mxu0 0.0
  %7148 = vmatmul.mubr.f32.gmra.mrb[0].mxu0 %v5763
  %v7149 = vpop.f32.mrb[0].mxu0
  %v7150 = vadd.f32 0.0, %v7149
  %v7151 = vpop.f32.mrb[0].mxu0
  %v7152 = vadd.f32 0.0, %v7151
  %7153 = vmatprep.mubr.f32.mxu0 0.0
  %7154 = vmatmul.mubr.f32.gmra.mrb[0].mxu0 %v5766
  %v7155 = vpop.f32.mrb[0].mxu0
  %v7156 = vadd.f32 0.0, %v7155
  %v7157 = vpop.f32.mrb[0].mxu0
  %v7158 = vadd.f32 0.0, %v7157
  %7159 = vmatprep.mubr.f32.mxu0 0.0
  %7160 = vmatmul.mubr.f32.gmra.mrb[0].mxu0 %v5769
  %v7161 = vpop.f32.mrb[0].mxu0
  %v7162 = vadd.f32 0.0, %v7161
  %v7163 = vpop.f32.mrb[0].mxu0
  %v7164 = vadd.f32 0.0, %v7163
  %7165 = vmatprep.mubr.f32.mxu0 0.0
  %7166 = vmatmul.mubr.f32.gmra.mrb[0].mxu0 %v5772
  %v7167 = vpop.f32.mrb[0].mxu0
  %v7168 = vadd.f32 0.0, %v7167
  %v7169 = vpop.f32.mrb[0].mxu0
  %v7170 = vadd.f32 0.0, %v7169
  %7171 = vmatprep.mubr.f32.mxu0 0.0
  %7172 = vmatmul.mubr.f32.gmra.mrb[0].mxu0 %v5775
  %v7173 = vpop.f32.mrb[0].mxu0
  %v7174 = vadd.f32 0.0, %v7173
  %v7175 = vpop.f32.mrb[0].mxu0
  %v7176 = vadd.f32 0.0, %v7175
  %7177 = vmatprep.mubr.f32.mxu0 0.0
  %7178 = vmatmul.mubr.f32.gmra.mrb[0].mxu0 %v5778
  %v7179 = vpop.f32.mrb[0].mxu0
  %v7180 = vadd.f32 0.0, %v7179
  %v7181 = vpop.f32.mrb[0].mxu0
  %v7182 = vadd.f32 0.0, %v7181
  %7183 = vmatprep.mubr.f32.mxu0 0.0
  %7184 = vmatmul.mubr.f32.gmra.mrb[0].mxu0 %v5781
  %v7185 = vpop.f32.mrb[0].mxu0
  %v7186 = vadd.f32 0.0, %v7185
  %v7187 = vpop.f32.mrb[0].mxu0
  %v7188 = vadd.f32 0.0, %v7187
  %7189 = vmatprep.mubr.f32.mxu0 0.0
  %7190 = vmatmul.mubr.f32.gmra.mrb[0].mxu0 %v5784
  %v7191 = vpop.f32.mrb[0].mxu0
  %v7192 = vadd.f32 0.0, %v7191
  %v7193 = vpop.f32.mrb[0].mxu0
  %v7194 = vadd.f32 0.0, %v7193
  %7195 = vmatprep.mubr.f32.mxu0 0.0
  %7196 = vmatmul.mubr.f32.gmra.mrb[0].mxu0 %v5787
  %v7197 = vpop.f32.mrb[0].mxu0
  %v7198 = vadd.f32 0.0, %v7197
  %v7199 = vpop.f32.mrb[0].mxu0
  %v7200 = vadd.f32 0.0, %v7199
  %7201 = vmatprep.mubr.f32.mxu0 0.0
  %7202 = vmatmul.mubr.f32.gmra.mrb[0].mxu0 %v5790
  %v7203 = vpop.f32.mrb[0].mxu0
  %v7204 = vadd.f32 0.0, %v7203
  %v7205 = vpop.f32.mrb[0].mxu0
  %v7206 = vadd.f32 0.0, %v7205
  %7207 = vmatprep.mubr.f32.mxu0 0.0
  %7208 = vmatmul.mubr.f32.gmra.mrb[0].mxu0 %v5793
  %v7209 = vpop.f32.mrb[0].mxu0
  %v7210 = vadd.f32 0.0, %v7209
  %v7211 = vpop.f32.mrb[0].mxu0
  %v7212 = vadd.f32 0.0, %v7211
  %7213 = vmatprep.mubr.f32.mxu0 0.0
  %7214 = vmatmul.mubr.f32.gmra.mrb[0].mxu0 %v5796
  %v7215 = vpop.f32.mrb[0].mxu0
  %v7216 = vadd.f32 0.0, %v7215
  %v7217 = vpop.f32.mrb[0].mxu0
  %v7218 = vadd.f32 0.0, %v7217
  %7219 = vmatprep.mubr.f32.mxu0 0.0
  %7220 = vmatmul.mubr.f32.gmra.mrb[0].mxu0 %v5799
  %v7221 = vpop.f32.mrb[0].mxu0
  %v7222 = vadd.f32 0.0, %v7221
  %v7223 = vpop.f32.mrb[0].mxu0
  %v7224 = vadd.f32 0.0, %v7223
  %7225 = vdwg.mxu0
  %v7226 = vtanh.pop %v7132
  %v7227 = vtanh.pop %v7134
  %v7228 = vtanh.pop %v7138
  %v7229 = vtanh.pop %v7140
  %v7230 = vtanh.pop %v7144
  %v7231 = vtanh.pop %v7146
  %v7232 = vtanh.pop %v7150
  %v7233 = vtanh.pop %v7152
  %v7234 = vtanh.pop %v7156
  %v7235 = vtanh.pop %v7158
  %v7236 = vtanh.pop %v7162
  %v7237 = vtanh.pop %v7164
  %v7238 = vtanh.pop %v7168
  %v7239 = vtanh.pop %v7170
  %v7240 = vtanh.pop %v7174
  %v7241 = vtanh.pop %v7176
  %v7242 = vtanh.pop %v7180
  %v7243 = vtanh.pop %v7182
  %v7244 = vtanh.pop %v7186
  %v7245 = vtanh.pop %v7188
  %v7246 = vtanh.pop %v7192
  %v7247 = vtanh.pop %v7194
  %v7248 = vtanh.pop %v7198
  %v7249 = vtanh.pop %v7200
  %v7250 = vtanh.pop %v7204
  %v7251 = vtanh.pop %v7206
  %v7252 = vtanh.pop %v7210
  %v7253 = vtanh.pop %v7212
  %v7254 = vtanh.pop %v7216
  %v7255 = vtanh.pop %v7218
  %v7256 = vtanh.pop %v7222
  %v7257 = vtanh.pop %v7224
  %7258 = vmatprep.subr.mxu0 %v7227
  %7259 = vmatpush1.msra.mxu0 %v7226
  %7260 = vmatprep.subr.mxu0 %v7229
  %7261 = vmatpush1.msra.mxu0 %v7228
  %7262 = vmatprep.subr.mxu0 %v7231
  %7263 = vmatpush1.msra.mxu0 %v7230
  %7264 = vmatprep.subr.mxu0 %v7233
  %7265 = vmatpush1.msra.mxu0 %v7232
  %7266 = vmatprep.subr.mxu0 %v7235
  %7267 = vmatpush1.msra.mxu0 %v7234
  %7268 = vmatprep.subr.mxu0 %v7237
  %7269 = vmatpush1.msra.mxu0 %v7236
  %7270 = vmatprep.subr.mxu0 %v7239
  %7271 = vmatpush1.msra.mxu0 %v7238
  %7272 = vmatprep.subr.mxu0 %v7241
  %7273 = vmatpush1.msra.mxu0 %v7240
  %7274 = vmatprep.subr.mxu0 %v7243
  %7275 = vmatpush1.msra.mxu0 %v7242
  %7276 = vmatprep.subr.mxu0 %v7245
  %7277 = vmatpush1.msra.mxu0 %v7244
  %7278 = vmatprep.subr.mxu0 %v7247
  %7279 = vmatpush1.msra.mxu0 %v7246
  %7280 = vmatprep.subr.mxu0 %v7249
  %7281 = vmatpush1.msra.mxu0 %v7248
  %7282 = vmatprep.subr.mxu0 %v7251
  %7283 = vmatpush1.msra.mxu0 %v7250
  %7284 = vmatprep.subr.mxu0 %v7253
  %7285 = vmatpush1.msra.mxu0 %v7252
  %7286 = vmatprep.subr.mxu0 %v7255
  %7287 = vmatpush1.msra.mxu0 %v7254
  %7288 = vmatprep.subr.mxu0 %v7257
  %7289 = vmatpush1.msra.mxu0 %v7256
  %7290 = vmatprep.subr.mxu0 0.0
  %7291 = vmatpush1.msra.mxu0 0.0
  %7292 = vmatprep.subr.mxu0 0.0
  %7293 = vmatpush1.msra.mxu0 0.0
  %7294 = vmatprep.subr.mxu0 0.0
  %7295 = vmatpush1.msra.mxu0 0.0
  %7296 = vmatprep.subr.mxu0 0.0
  %7297 = vmatpush1.msra.mxu0 0.0
  %7298 = vmatprep.subr.mxu0 0.0
  %7299 = vmatpush1.msra.mxu0 0.0
  %7300 = vmatprep.subr.mxu0 0.0
  %7301 = vmatpush1.msra.mxu0 0.0
  %7302 = vmatprep.subr.mxu0 0.0
  %7303 = vmatpush1.msra.mxu0 0.0
  %7304 = vmatprep.subr.mxu0 0.0
  %7305 = vmatpush1.msra.mxu0 0.0
  %7306 = vmatprep.subr.mxu0 0.0
  %7307 = vmatpush1.msra.mxu0 0.0
  %7308 = vmatprep.subr.mxu0 0.0
  %7309 = vmatpush1.msra.mxu0 0.0
  %7310 = vmatprep.subr.mxu0 0.0
  %7311 = vmatpush1.msra.mxu0 0.0
  %7312 = vmatprep.subr.mxu0 0.0
  %7313 = vmatpush1.msra.mxu0 0.0
  %7314 = vmatprep.subr.mxu0 0.0
  %7315 = vmatpush1.msra.mxu0 0.0
  %7316 = vmatprep.subr.mxu0 0.0
  %7317 = vmatpush1.msra.mxu0 0.0
  %7318 = vmatprep.subr.mxu0 0.0
  %7319 = vmatpush1.msra.mxu0 0.0
  %7320 = vmatprep.subr.mxu0 0.0
  %7321 = vmatpush1.msra.mxu0 0.0
  %7322 = vmatprep.mubr.f32.mxu0 0.0
  %7323 = vmatmul.mubr.f32.gmra.mrb[0].mxu0 %v5998
  %v7324 = vpop.f32.mrb[0].mxu0
  %v7325 = vadd.f32 0.0, %v7324
  %v7326 = vpop.f32.mrb[0].mxu0
  %v7327 = vadd.f32 0.0, %v7326
  %7328 = vdwg.mxu0
  %v7329 = vadd.f32 %v5735, %v7325
  %v7330 = vadd.f32 %v5735, %v7327
  %7331 = vmatprep.subr.mxu0 %v5724
  %7332 = vmatpush1.msra.mxu0 %v5722
  %7333 = vmatprep.subr.mxu0 %v5803
  %7334 = vmatpush1.msra.mxu0 %v5803
  %7335 = vmatprep.subr.mxu0 0.0
  %7336 = vmatpush1.msra.mxu0 0.0
  %7337 = vmatprep.subr.mxu0 0.0
  %7338 = vmatpush1.msra.mxu0 0.0
  %7339 = vmatprep.subr.mxu0 0.0
  %7340 = vmatpush1.msra.mxu0 0.0
  %7341 = vmatprep.subr.mxu0 0.0
  %7342 = vmatpush1.msra.mxu0 0.0
  %7343 = vmatprep.subr.mxu0 0.0
  %7344 = vmatpush1.msra.mxu0 0.0
  %7345 = vmatprep.subr.mxu0 0.0
  %7346 = vmatpush1.msra.mxu0 0.0
  %7347 = vmatprep.subr.mxu0 0.0
  %7348 = vmatpush1.msra.mxu0 0.0
  %7349 = vmatprep.subr.mxu0 0.0
  %7350 = vmatpush1.msra.mxu0 0.0
  %7351 = vmatprep.subr.mxu0 0.0
  %7352 = vmatpush1.msra.mxu0 0.0
  %7353 = vmatprep.subr.mxu0 0.0
  %7354 = vmatpush1.msra.mxu0 0.0
  %7355 = vmatprep.subr.mxu0 0.0
  %7356 = vmatpush1.msra.mxu0 0.0
  %7357 = vmatprep.subr.mxu0 0.0
  %7358 = vmatpush1.msra.mxu0 0.0
  %7359 = vmatprep.subr.mxu0 0.0
  %7360 = vmatpush1.msra.mxu0 0.0
  %7361 = vmatprep.subr.mxu0 0.0
  %7362 = vmatpush1.msra.mxu0 0.0
  %7363 = vmatprep.subr.mxu0 0.0
  %7364 = vmatpush1.msra.mxu0 0.0
  %7365 = vmatprep.subr.mxu0 0.0
  %7366 = vmatpush1.msra.mxu0 0.0
  %7367 = vmatprep.subr.mxu0 0.0
  %7368 = vmatpush1.msra.mxu0 0.0
  %7369 = vmatprep.subr.mxu0 0.0
  %7370 = vmatpush1.msra.mxu0 0.0
  %7371 = vmatprep.subr.mxu0 0.0
  %7372 = vmatpush1.msra.mxu0 0.0
  %7373 = vmatprep.subr.mxu0 0.0
  %7374 = vmatpush1.msra.mxu0 0.0
  %7375 = vmatprep.subr.mxu0 0.0
  %7376 = vmatpush1.msra.mxu0 0.0
  %7377 = vmatprep.subr.mxu0 0.0
  %7378 = vmatpush1.msra.mxu0 0.0
  %7379 = vmatprep.subr.mxu0 0.0
  %7380 = vmatpush1.msra.mxu0 0.0
  %7381 = vmatprep.subr.mxu0 0.0
  %7382 = vmatpush1.msra.mxu0 0.0
  %7383 = vmatprep.subr.mxu0 0.0
  %7384 = vmatpush1.msra.mxu0 0.0
  %7385 = vmatprep.subr.mxu0 0.0
  %7386 = vmatpush1.msra.mxu0 0.0
  %7387 = vmatprep.subr.mxu0 0.0
  %7388 = vmatpush1.msra.mxu0 0.0
  %7389 = vmatprep.subr.mxu0 0.0
  %7390 = vmatpush1.msra.mxu0 0.0
  %7391 = vmatprep.subr.mxu0 0.0
  %7392 = vmatpush1.msra.mxu0 0.0
  %7393 = vmatprep.subr.mxu0 0.0
  %7394 = vmatpush1.msra.mxu0 0.0
  %7395 = vmatprep.mubr.f32.mxu0 0.0
  %7396 = vmatmul.mubr.f32.gmra.mrb[0].mxu0 %v6089
  %v7397 = vpop.f32.mrb[0].mxu0
  %v7398 = vadd.f32 0.0, %v7397
  %v7399 = vpop.f32.mrb[0].mxu0
  %v7400 = vadd.f32 0.0, %v7399
  %7401 = vmatprep.mubr.f32.mxu0 0.0
  %7402 = vmatmul.mubr.f32.gmra.mrb[0].mxu0 %v6092
  %v7403 = vpop.f32.mrb[0].mxu0
  %v7404 = vadd.f32 0.0, %v7403
  %v7405 = vpop.f32.mrb[0].mxu0
  %v7406 = vadd.f32 0.0, %v7405
  %7407 = vmatprep.mubr.f32.mxu0 0.0
  %7408 = vmatmul.mubr.f32.gmra.mrb[0].mxu0 %v6095
  %v7409 = vpop.f32.mrb[0].mxu0
  %v7410 = vadd.f32 0.0, %v7409
  %v7411 = vpop.f32.mrb[0].mxu0
  %v7412 = vadd.f32 0.0, %v7411
  %7413 = vmatprep.mubr.f32.mxu0 0.0
  %7414 = vmatmul.mubr.f32.gmra.mrb[0].mxu0 %v6098
  %v7415 = vpop.f32.mrb[0].mxu0
  %v7416 = vadd.f32 0.0, %v7415
  %v7417 = vpop.f32.mrb[0].mxu0
  %v7418 = vadd.f32 0.0, %v7417
  %7419 = vmatprep.mubr.f32.mxu0 0.0
  %7420 = vmatmul.mubr.f32.gmra.mrb[0].mxu0 %v6101
  %v7421 = vpop.f32.mrb[0].mxu0
  %v7422 = vadd.f32 0.0, %v7421
  %v7423 = vpop.f32.mrb[0].mxu0
  %v7424 = vadd.f32 0.0, %v7423
  %7425 = vmatprep.mubr.f32.mxu0 0.0
  %7426 = vmatmul.mubr.f32.gmra.mrb[0].mxu0 %v6104
  %v7427 = vpop.f32.mrb[0].mxu0
  %v7428 = vadd.f32 0.0, %v7427
  %v7429 = vpop.f32.mrb[0].mxu0
  %v7430 = vadd.f32 0.0, %v7429
  %7431 = vmatprep.mubr.f32.mxu0 0.0
  %7432 = vmatmul.mubr.f32.gmra.mrb[0].mxu0 %v6107
  %v7433 = vpop.f32.mrb[0].mxu0
  %v7434 = vadd.f32 0.0, %v7433
  %v7435 = vpop.f32.mrb[0].mxu0
  %v7436 = vadd.f32 0.0, %v7435
  %7437 = vmatprep.mubr.f32.mxu0 0.0
  %7438 = vmatmul.mubr.f32.gmra.mrb[0].mxu0 %v6110
  %v7439 = vpop.f32.mrb[0].mxu0
  %v7440 = vadd.f32 0.0, %v7439
  %v7441 = vpop.f32.mrb[0].mxu0
  %v7442 = vadd.f32 0.0, %v7441
  %7443 = vmatprep.mubr.f32.mxu0 0.0
  %7444 = vmatmul.mubr.f32.gmra.mrb[0].mxu0 %v6113
  %v7445 = vpop.f32.mrb[0].mxu0
  %v7446 = vadd.f32 0.0, %v7445
  %v7447 = vpop.f32.mrb[0].mxu0
  %v7448 = vadd.f32 0.0, %v7447
  %7449 = vmatprep.mubr.f32.mxu0 0.0
  %7450 = vmatmul.mubr.f32.gmra.mrb[0].mxu0 %v6116
  %v7451 = vpop.f32.mrb[0].mxu0
  %v7452 = vadd.f32 0.0, %v7451
  %v7453 = vpop.f32.mrb[0].mxu0
  %v7454 = vadd.f32 0.0, %v7453
  %7455 = vmatprep.mubr.f32.mxu0 0.0
  %7456 = vmatmul.mubr.f32.gmra.mrb[0].mxu0 %v6119
  %v7457 = vpop.f32.mrb[0].mxu0
  %v7458 = vadd.f32 0.0, %v7457
  %v7459 = vpop.f32.mrb[0].mxu0
  %v7460 = vadd.f32 0.0, %v7459
  %7461 = vmatprep.mubr.f32.mxu0 0.0
  %7462 = vmatmul.mubr.f32.gmra.mrb[0].mxu0 %v6122
  %v7463 = vpop.f32.mrb[0].mxu0
  %v7464 = vadd.f32 0.0, %v7463
  %v7465 = vpop.f32.mrb[0].mxu0
  %v7466 = vadd.f32 0.0, %v7465
  %7467 = vmatprep.mubr.f32.mxu0 0.0
  %7468 = vmatmul.mubr.f32.gmra.mrb[0].mxu0 %v6125
  %v7469 = vpop.f32.mrb[0].mxu0
  %v7470 = vadd.f32 0.0, %v7469
  %v7471 = vpop.f32.mrb[0].mxu0
  %v7472 = vadd.f32 0.0, %v7471
  %7473 = vmatprep.mubr.f32.mxu0 0.0
  %7474 = vmatmul.mubr.f32.gmra.mrb[0].mxu0 %v6128
  %v7475 = vpop.f32.mrb[0].mxu0
  %v7476 = vadd.f32 0.0, %v7475
  %v7477 = vpop.f32.mrb[0].mxu0
  %v7478 = vadd.f32 0.0, %v7477
  %7479 = vmatprep.mubr.f32.mxu0 0.0
  %7480 = vmatmul.mubr.f32.gmra.mrb[0].mxu0 %v6131
  %v7481 = vpop.f32.mrb[0].mxu0
  %v7482 = vadd.f32 0.0, %v7481
  %v7483 = vpop.f32.mrb[0].mxu0
  %v7484 = vadd.f32 0.0, %v7483
  %7485 = vmatprep.mubr.f32.mxu0 0.0
  %7486 = vmatmul.mubr.f32.gmra.mrb[0].mxu0 %v6134
  %v7487 = vpop.f32.mrb[0].mxu0
  %v7488 = vadd.f32 0.0, %v7487
  %v7489 = vpop.f32.mrb[0].mxu0
  %v7490 = vadd.f32 0.0, %v7489
  %7491 = vdwg.mxu0
  %v7492 = vtanh.pop %v7398
  %v7493 = vtanh.pop %v7400
  %v7494 = vtanh.pop %v7404
  %v7495 = vtanh.pop %v7406
  %v7496 = vtanh.pop %v7410
  %v7497 = vtanh.pop %v7412
  %v7498 = vtanh.pop %v7416
  %v7499 = vtanh.pop %v7418
  %v7500 = vtanh.pop %v7422
  %v7501 = vtanh.pop %v7424
  %v7502 = vtanh.pop %v7428
  %v7503 = vtanh.pop %v7430
  %v7504 = vtanh.pop %v7434
  %v7505 = vtanh.pop %v7436
  %v7506 = vtanh.pop %v7440
  %v7507 = vtanh.pop %v7442
  %v7508 = vtanh.pop %v7446
  %v7509 = vtanh.pop %v7448
  %v7510 = vtanh.pop %v7452
  %v7511 = vtanh.pop %v7454
  %v7512 = vtanh.pop %v7458
  %v7513 = vtanh.pop %v7460
  %v7514 = vtanh.pop %v7464
  %v7515 = vtanh.pop %v7466
  %v7516 = vtanh.pop %v7470
  %v7517 = vtanh.pop %v7472
  %v7518 = vtanh.pop %v7476
  %v7519 = vtanh.pop %v7478
  %v7520 = vtanh.pop %v7482
  %v7521 = vtanh.pop %v7484
  %v7522 = vtanh.pop %v7488
  %v7523 = vtanh.pop %v7490
  %7524 = vmatprep.subr.mxu0 %v7493
  %7525 = vmatpush1.msra.mxu0 %v7492
  %7526 = vmatprep.subr.mxu0 %v7495
  %7527 = vmatpush1.msra.mxu0 %v7494
  %7528 = vmatprep.subr.mxu0 %v7497
  %7529 = vmatpush1.msra.mxu0 %v7496
  %7530 = vmatprep.subr.mxu0 %v7499
  %7531 = vmatpush1.msra.mxu0 %v7498
  %7532 = vmatprep.subr.mxu0 %v7501
  %7533 = vmatpush1.msra.mxu0 %v7500
  %7534 = vmatprep.subr.mxu0 %v7503
  %7535 = vmatpush1.msra.mxu0 %v7502
  %7536 = vmatprep.subr.mxu0 %v7505
  %7537 = vmatpush1.msra.mxu0 %v7504
  %7538 = vmatprep.subr.mxu0 %v7507
  %7539 = vmatpush1.msra.mxu0 %v7506
  %7540 = vmatprep.subr.mxu0 %v7509
  %7541 = vmatpush1.msra.mxu0 %v7508
  %7542 = vmatprep.subr.mxu0 %v7511
  %7543 = vmatpush1.msra.mxu0 %v7510
  %7544 = vmatprep.subr.mxu0 %v7513
  %7545 = vmatpush1.msra.mxu0 %v7512
  %7546 = vmatprep.subr.mxu0 %v7515
  %7547 = vmatpush1.msra.mxu0 %v7514
  %7548 = vmatprep.subr.mxu0 %v7517
  %7549 = vmatpush1.msra.mxu0 %v7516
  %7550 = vmatprep.subr.mxu0 %v7519
  %7551 = vmatpush1.msra.mxu0 %v7518
  %7552 = vmatprep.subr.mxu0 %v7521
  %7553 = vmatpush1.msra.mxu0 %v7520
  %7554 = vmatprep.subr.mxu0 %v7523
  %7555 = vmatpush1.msra.mxu0 %v7522
  %7556 = vmatprep.subr.mxu0 0.0
  %7557 = vmatpush1.msra.mxu0 0.0
  %7558 = vmatprep.subr.mxu0 0.0
  %7559 = vmatpush1.msra.mxu0 0.0
  %7560 = vmatprep.subr.mxu0 0.0
  %7561 = vmatpush1.msra.mxu0 0.0
  %7562 = vmatprep.subr.mxu0 0.0
  %7563 = vmatpush1.msra.mxu0 0.0
  %7564 = vmatprep.subr.mxu0 0.0
  %7565 = vmatpush1.msra.mxu0 0.0
  %7566 = vmatprep.subr.mxu0 0.0
  %7567 = vmatpush1.msra.mxu0 0.0
  %7568 = vmatprep.subr.mxu0 0.0
  %7569 = vmatpush1.msra.mxu0 0.0
  %7570 = vmatprep.subr.mxu0 0.0
  %7571 = vmatpush1.msra.mxu0 0.0
  %7572 = vmatprep.subr.mxu0 0.0
  %7573 = vmatpush1.msra.mxu0 0.0
  %7574 = vmatprep.subr.mxu0 0.0
  %7575 = vmatpush1.msra.mxu0 0.0
  %7576 = vmatprep.subr.mxu0 0.0
  %7577 = vmatpush1.msra.mxu0 0.0
  %7578 = vmatprep.subr.mxu0 0.0
  %7579 = vmatpush1.msra.mxu0 0.0
  %7580 = vmatprep.subr.mxu0 0.0
  %7581 = vmatpush1.msra.mxu0 0.0
  %7582 = vmatprep.subr.mxu0 0.0
  %7583 = vmatpush1.msra.mxu0 0.0
  %7584 = vmatprep.subr.mxu0 0.0
  %7585 = vmatpush1.msra.mxu0 0.0
  %7586 = vmatprep.subr.mxu0 0.0
  %7587 = vmatpush1.msra.mxu0 0.0
  %7588 = vmatprep.mubr.f32.mxu0 0.0
  %7589 = vmatmul.mubr.f32.gmra.mrb[0].mxu0 %v6329
  %v7590 = vpop.f32.mrb[0].mxu0
  %v7591 = vadd.f32 0.0, %v7590
  %v7592 = vpop.f32.mrb[0].mxu0
  %v7593 = vadd.f32 0.0, %v7592
  %7594 = vdwg.mxu0
  %v7595 = vadd.f32 %v7329, %v7591
  %v7596 = vadd.f32 %v7330, %v7593
  %7597 = vmatprep.subr.mxu0 %v5724
  %7598 = vmatpush1.msra.mxu0 %v5722
  %7599 = vmatprep.subr.mxu0 %v5803
  %7600 = vmatpush1.msra.mxu0 %v5803
  %7601 = vmatprep.subr.mxu0 0.0
  %7602 = vmatpush1.msra.mxu0 0.0
  %7603 = vmatprep.subr.mxu0 0.0
  %7604 = vmatpush1.msra.mxu0 0.0
  %7605 = vmatprep.subr.mxu0 0.0
  %7606 = vmatpush1.msra.mxu0 0.0
  %7607 = vmatprep.subr.mxu0 0.0
  %7608 = vmatpush1.msra.mxu0 0.0
  %7609 = vmatprep.subr.mxu0 0.0
  %7610 = vmatpush1.msra.mxu0 0.0
  %7611 = vmatprep.subr.mxu0 0.0
  %7612 = vmatpush1.msra.mxu0 0.0
  %7613 = vmatprep.subr.mxu0 0.0
  %7614 = vmatpush1.msra.mxu0 0.0
  %7615 = vmatprep.subr.mxu0 0.0
  %7616 = vmatpush1.msra.mxu0 0.0
  %7617 = vmatprep.subr.mxu0 0.0
  %7618 = vmatpush1.msra.mxu0 0.0
  %7619 = vmatprep.subr.mxu0 0.0
  %7620 = vmatpush1.msra.mxu0 0.0
  %7621 = vmatprep.subr.mxu0 0.0
  %7622 = vmatpush1.msra.mxu0 0.0
  %7623 = vmatprep.subr.mxu0 0.0
  %7624 = vmatpush1.msra.mxu0 0.0
  %7625 = vmatprep.subr.mxu0 0.0
  %7626 = vmatpush1.msra.mxu0 0.0
  %7627 = vmatprep.subr.mxu0 0.0
  %7628 = vmatpush1.msra.mxu0 0.0
  %7629 = vmatprep.subr.mxu0 0.0
  %7630 = vmatpush1.msra.mxu0 0.0
  %7631 = vmatprep.subr.mxu0 0.0
  %7632 = vmatpush1.msra.mxu0 0.0
  %7633 = vmatprep.subr.mxu0 0.0
  %7634 = vmatpush1.msra.mxu0 0.0
  %7635 = vmatprep.subr.mxu0 0.0
  %7636 = vmatpush1.msra.mxu0 0.0
  %7637 = vmatprep.subr.mxu0 0.0
  %7638 = vmatpush1.msra.mxu0 0.0
  %7639 = vmatprep.subr.mxu0 0.0
  %7640 = vmatpush1.msra.mxu0 0.0
  %7641 = vmatprep.subr.mxu0 0.0
  %7642 = vmatpush1.msra.mxu0 0.0
  %7643 = vmatprep.subr.mxu0 0.0
  %7644 = vmatpush1.msra.mxu0 0.0
  %7645 = vmatprep.subr.mxu0 0.0
  %7646 = vmatpush1.msra.mxu0 0.0
  %7647 = vmatprep.subr.mxu0 0.0
  %7648 = vmatpush1.msra.mxu0 0.0
  %7649 = vmatprep.subr.mxu0 0.0
  %7650 = vmatpush1.msra.mxu0 0.0
  %7651 = vmatprep.subr.mxu0 0.0
  %7652 = vmatpush1.msra.mxu0 0.0
  %7653 = vmatprep.subr.mxu0 0.0
  %7654 = vmatpush1.msra.mxu0 0.0
  %7655 = vmatprep.subr.mxu0 0.0
  %7656 = vmatpush1.msra.mxu0 0.0
  %7657 = vmatprep.subr.mxu0 0.0
  %7658 = vmatpush1.msra.mxu0 0.0
  %7659 = vmatprep.subr.mxu0 0.0
  %7660 = vmatpush1.msra.mxu0 0.0
  %7661 = vmatprep.mubr.f32.mxu0 0.0
  %7662 = vmatmul.mubr.f32.gmra.mrb[0].mxu0 %v6420
  %v7663 = vpop.f32.mrb[0].mxu0
  %v7664 = vadd.f32 0.0, %v7663
  %v7665 = vpop.f32.mrb[0].mxu0
  %v7666 = vadd.f32 0.0, %v7665
  %7667 = vmatprep.mubr.f32.mxu0 0.0
  %7668 = vmatmul.mubr.f32.gmra.mrb[0].mxu0 %v6423
  %v7669 = vpop.f32.mrb[0].mxu0
  %v7670 = vadd.f32 0.0, %v7669
  %v7671 = vpop.f32.mrb[0].mxu0
  %v7672 = vadd.f32 0.0, %v7671
  %7673 = vmatprep.mubr.f32.mxu0 0.0
  %7674 = vmatmul.mubr.f32.gmra.mrb[0].mxu0 %v6426
  %v7675 = vpop.f32.mrb[0].mxu0
  %v7676 = vadd.f32 0.0, %v7675
  %v7677 = vpop.f32.mrb[0].mxu0
  %v7678 = vadd.f32 0.0, %v7677
  %7679 = vmatprep.mubr.f32.mxu0 0.0
  %7680 = vmatmul.mubr.f32.gmra.mrb[0].mxu0 %v6429
  %v7681 = vpop.f32.mrb[0].mxu0
  %v7682 = vadd.f32 0.0, %v7681
  %v7683 = vpop.f32.mrb[0].mxu0
  %v7684 = vadd.f32 0.0, %v7683
  %7685 = vmatprep.mubr.f32.mxu0 0.0
  %7686 = vmatmul.mubr.f32.gmra.mrb[0].mxu0 %v6432
  %v7687 = vpop.f32.mrb[0].mxu0
  %v7688 = vadd.f32 0.0, %v7687
  %v7689 = vpop.f32.mrb[0].mxu0
  %v7690 = vadd.f32 0.0, %v7689
  %7691 = vmatprep.mubr.f32.mxu0 0.0
  %7692 = vmatmul.mubr.f32.gmra.mrb[0].mxu0 %v6435
  %v7693 = vpop.f32.mrb[0].mxu0
  %v7694 = vadd.f32 0.0, %v7693
  %v7695 = vpop.f32.mrb[0].mxu0
  %v7696 = vadd.f32 0.0, %v7695
  %7697 = vmatprep.mubr.f32.mxu0 0.0
  %7698 = vmatmul.mubr.f32.gmra.mrb[0].mxu0 %v6438
  %v7699 = vpop.f32.mrb[0].mxu0
  %v7700 = vadd.f32 0.0, %v7699
  %v7701 = vpop.f32.mrb[0].mxu0
  %v7702 = vadd.f32 0.0, %v7701
  %7703 = vmatprep.mubr.f32.mxu0 0.0
  %7704 = vmatmul.mubr.f32.gmra.mrb[0].mxu0 %v6441
  %v7705 = vpop.f32.mrb[0].mxu0
  %v7706 = vadd.f32 0.0, %v7705
  %v7707 = vpop.f32.mrb[0].mxu0
  %v7708 = vadd.f32 0.0, %v7707
  %7709 = vmatprep.mubr.f32.mxu0 0.0
  %7710 = vmatmul.mubr.f32.gmra.mrb[0].mxu0 %v6444
  %v7711 = vpop.f32.mrb[0].mxu0
  %v7712 = vadd.f32 0.0, %v7711
  %v7713 = vpop.f32.mrb[0].mxu0
  %v7714 = vadd.f32 0.0, %v7713
  %7715 = vmatprep.mubr.f32.mxu0 0.0
  %7716 = vmatmul.mubr.f32.gmra.mrb[0].mxu0 %v6447
  %v7717 = vpop.f32.mrb[0].mxu0
  %v7718 = vadd.f32 0.0, %v7717
  %v7719 = vpop.f32.mrb[0].mxu0
  %v7720 = vadd.f32 0.0, %v7719
  %7721 = vmatprep.mubr.f32.mxu0 0.0
  %7722 = vmatmul.mubr.f32.gmra.mrb[0].mxu0 %v6450
  %v7723 = vpop.f32.mrb[0].mxu0
  %v7724 = vadd.f32 0.0, %v7723
  %v7725 = vpop.f32.mrb[0].mxu0
  %v7726 = vadd.f32 0.0, %v7725
  %7727 = vmatprep.mubr.f32.mxu0 0.0
  %7728 = vmatmul.mubr.f32.gmra.mrb[0].mxu0 %v6453
  %v7729 = vpop.f32.mrb[0].mxu0
  %v7730 = vadd.f32 0.0, %v7729
  %v7731 = vpop.f32.mrb[0].mxu0
  %v7732 = vadd.f32 0.0, %v7731
  %7733 = vmatprep.mubr.f32.mxu0 0.0
  %7734 = vmatmul.mubr.f32.gmra.mrb[0].mxu0 %v6456
  %v7735 = vpop.f32.mrb[0].mxu0
  %v7736 = vadd.f32 0.0, %v7735
  %v7737 = vpop.f32.mrb[0].mxu0
  %v7738 = vadd.f32 0.0, %v7737
  %7739 = vmatprep.mubr.f32.mxu0 0.0
  %7740 = vmatmul.mubr.f32.gmra.mrb[0].mxu0 %v6459
  %v7741 = vpop.f32.mrb[0].mxu0
  %v7742 = vadd.f32 0.0, %v7741
  %v7743 = vpop.f32.mrb[0].mxu0
  %v7744 = vadd.f32 0.0, %v7743
  %7745 = vmatprep.mubr.f32.mxu0 0.0
  %7746 = vmatmul.mubr.f32.gmra.mrb[0].mxu0 %v6462
  %v7747 = vpop.f32.mrb[0].mxu0
  %v7748 = vadd.f32 0.0, %v7747
  %v7749 = vpop.f32.mrb[0].mxu0
  %v7750 = vadd.f32 0.0, %v7749
  %7751 = vmatprep.mubr.f32.mxu0 0.0
  %7752 = vmatmul.mubr.f32.gmra.mrb[0].mxu0 %v6465
  %v7753 = vpop.f32.mrb[0].mxu0
  %v7754 = vadd.f32 0.0, %v7753
  %v7755 = vpop.f32.mrb[0].mxu0
  %v7756 = vadd.f32 0.0, %v7755
  %7757 = vdwg.mxu0
  %v7758 = vtanh.pop %v7664
  %v7759 = vtanh.pop %v7666
  %v7760 = vtanh.pop %v7670
  %v7761 = vtanh.pop %v7672
  %v7762 = vtanh.pop %v7676
  %v7763 = vtanh.pop %v7678
  %v7764 = vtanh.pop %v7682
  %v7765 = vtanh.pop %v7684
  %v7766 = vtanh.pop %v7688
  %v7767 = vtanh.pop %v7690
  %v7768 = vtanh.pop %v7694
  %v7769 = vtanh.pop %v7696
  %v7770 = vtanh.pop %v7700
  %v7771 = vtanh.pop %v7702
  %v7772 = vtanh.pop %v7706
  %v7773 = vtanh.pop %v7708
  %v7774 = vtanh.pop %v7712
  %v7775 = vtanh.pop %v7714
  %v7776 = vtanh.pop %v7718
  %v7777 = vtanh.pop %v7720
  %v7778 = vtanh.pop %v7724
  %v7779 = vtanh.pop %v7726
  %v7780 = vtanh.pop %v7730
  %v7781 = vtanh.pop %v7732
  %v7782 = vtanh.pop %v7736
  %v7783 = vtanh.pop %v7738
  %v7784 = vtanh.pop %v7742
  %v7785 = vtanh.pop %v7744
  %v7786 = vtanh.pop %v7748
  %v7787 = vtanh.pop %v7750
  %v7788 = vtanh.pop %v7754
  %v7789 = vtanh.pop %v7756
  %7790 = vmatprep.subr.mxu0 %v7759
  %7791 = vmatpush1.msra.mxu0 %v7758
  %7792 = vmatprep.subr.mxu0 %v7761
  %7793 = vmatpush1.msra.mxu0 %v7760
  %7794 = vmatprep.subr.mxu0 %v7763
  %7795 = vmatpush1.msra.mxu0 %v7762
  %7796 = vmatprep.subr.mxu0 %v7765
  %7797 = vmatpush1.msra.mxu0 %v7764
  %7798 = vmatprep.subr.mxu0 %v7767
  %7799 = vmatpush1.msra.mxu0 %v7766
  %7800 = vmatprep.subr.mxu0 %v7769
  %7801 = vmatpush1.msra.mxu0 %v7768
  %7802 = vmatprep.subr.mxu0 %v7771
  %7803 = vmatpush1.msra.mxu0 %v7770
  %7804 = vmatprep.subr.mxu0 %v7773
  %7805 = vmatpush1.msra.mxu0 %v7772
  %7806 = vmatprep.subr.mxu0 %v7775
  %7807 = vmatpush1.msra.mxu0 %v7774
  %7808 = vmatprep.subr.mxu0 %v7777
  %7809 = vmatpush1.msra.mxu0 %v7776
  %7810 = vmatprep.subr.mxu0 %v7779
  %7811 = vmatpush1.msra.mxu0 %v7778
  %7812 = vmatprep.subr.mxu0 %v7781
  %7813 = vmatpush1.msra.mxu0 %v7780
  %7814 = vmatprep.subr.mxu0 %v7783
  %7815 = vmatpush1.msra.mxu0 %v7782
  %7816 = vmatprep.subr.mxu0 %v7785
  %7817 = vmatpush1.msra.mxu0 %v7784
  %7818 = vmatprep.subr.mxu0 %v7787
  %7819 = vmatpush1.msra.mxu0 %v7786
  %7820 = vmatprep.subr.mxu0 %v7789
  %7821 = vmatpush1.msra.mxu0 %v7788
  %7822 = vmatprep.subr.mxu0 0.0
  %7823 = vmatpush1.msra.mxu0 0.0
  %7824 = vmatprep.subr.mxu0 0.0
  %7825 = vmatpush1.msra.mxu0 0.0
  %7826 = vmatprep.subr.mxu0 0.0
  %7827 = vmatpush1.msra.mxu0 0.0
  %7828 = vmatprep.subr.mxu0 0.0
  %7829 = vmatpush1.msra.mxu0 0.0
  %7830 = vmatprep.subr.mxu0 0.0
  %7831 = vmatpush1.msra.mxu0 0.0
  %7832 = vmatprep.subr.mxu0 0.0
  %7833 = vmatpush1.msra.mxu0 0.0
  %7834 = vmatprep.subr.mxu0 0.0
  %7835 = vmatpush1.msra.mxu0 0.0
  %7836 = vmatprep.subr.mxu0 0.0
  %7837 = vmatpush1.msra.mxu0 0.0
  %7838 = vmatprep.subr.mxu0 0.0
  %7839 = vmatpush1.msra.mxu0 0.0
  %7840 = vmatprep.subr.mxu0 0.0
  %7841 = vmatpush1.msra.mxu0 0.0
  %7842 = vmatprep.subr.mxu0 0.0
  %7843 = vmatpush1.msra.mxu0 0.0
  %7844 = vmatprep.subr.mxu0 0.0
  %7845 = vmatpush1.msra.mxu0 0.0
  %7846 = vmatprep.subr.mxu0 0.0
  %7847 = vmatpush1.msra.mxu0 0.0
  %7848 = vmatprep.subr.mxu0 0.0
  %7849 = vmatpush1.msra.mxu0 0.0
  %7850 = vmatprep.subr.mxu0 0.0
  %7851 = vmatpush1.msra.mxu0 0.0
  %7852 = vmatprep.subr.mxu0 0.0
  %7853 = vmatpush1.msra.mxu0 0.0
  %7854 = vmatprep.mubr.f32.mxu0 0.0
  %7855 = vmatmul.mubr.f32.gmra.mrb[0].mxu0 %v6660
  %v7856 = vpop.f32.mrb[0].mxu0
  %v7857 = vadd.f32 0.0, %v7856
  %v7858 = vpop.f32.mrb[0].mxu0
  %v7859 = vadd.f32 0.0, %v7858
  %7860 = vdwg.mxu0
  %v7861 = vadd.f32 %v7595, %v7857
  %v7862 = vadd.f32 %v7596, %v7859
  %7863 = vmatprep.subr.mxu0 %v5724
  %7864 = vmatpush1.msra.mxu0 %v5722
  %7865 = vmatprep.subr.mxu0 %v5803
  %7866 = vmatpush1.msra.mxu0 %v5803
  %7867 = vmatprep.subr.mxu0 0.0
  %7868 = vmatpush1.msra.mxu0 0.0
  %7869 = vmatprep.subr.mxu0 0.0
  %7870 = vmatpush1.msra.mxu0 0.0
  %7871 = vmatprep.subr.mxu0 0.0
  %7872 = vmatpush1.msra.mxu0 0.0
  %7873 = vmatprep.subr.mxu0 0.0
  %7874 = vmatpush1.msra.mxu0 0.0
  %7875 = vmatprep.subr.mxu0 0.0
  %7876 = vmatpush1.msra.mxu0 0.0
  %7877 = vmatprep.subr.mxu0 0.0
  %7878 = vmatpush1.msra.mxu0 0.0
  %7879 = vmatprep.subr.mxu0 0.0
  %7880 = vmatpush1.msra.mxu0 0.0
  %7881 = vmatprep.subr.mxu0 0.0
  %7882 = vmatpush1.msra.mxu0 0.0
  %7883 = vmatprep.subr.mxu0 0.0
  %7884 = vmatpush1.msra.mxu0 0.0
  %7885 = vmatprep.subr.mxu0 0.0
  %7886 = vmatpush1.msra.mxu0 0.0
  %7887 = vmatprep.subr.mxu0 0.0
  %7888 = vmatpush1.msra.mxu0 0.0
  %7889 = vmatprep.subr.mxu0 0.0
  %7890 = vmatpush1.msra.mxu0 0.0
  %7891 = vmatprep.subr.mxu0 0.0
  %7892 = vmatpush1.msra.mxu0 0.0
  %7893 = vmatprep.subr.mxu0 0.0
  %7894 = vmatpush1.msra.mxu0 0.0
  %7895 = vmatprep.subr.mxu0 0.0
  %7896 = vmatpush1.msra.mxu0 0.0
  %7897 = vmatprep.subr.mxu0 0.0
  %7898 = vmatpush1.msra.mxu0 0.0
  %7899 = vmatprep.subr.mxu0 0.0
  %7900 = vmatpush1.msra.mxu0 0.0
  %7901 = vmatprep.subr.mxu0 0.0
  %7902 = vmatpush1.msra.mxu0 0.0
  %7903 = vmatprep.subr.mxu0 0.0
  %7904 = vmatpush1.msra.mxu0 0.0
  %7905 = vmatprep.subr.mxu0 0.0
  %7906 = vmatpush1.msra.mxu0 0.0
  %7907 = vmatprep.subr.mxu0 0.0
  %7908 = vmatpush1.msra.mxu0 0.0
  %7909 = vmatprep.subr.mxu0 0.0
  %7910 = vmatpush1.msra.mxu0 0.0
  %7911 = vmatprep.subr.mxu0 0.0
  %7912 = vmatpush1.msra.mxu0 0.0
  %7913 = vmatprep.subr.mxu0 0.0
  %7914 = vmatpush1.msra.mxu0 0.0
  %7915 = vmatprep.subr.mxu0 0.0
  %7916 = vmatpush1.msra.mxu0 0.0
  %7917 = vmatprep.subr.mxu0 0.0
  %7918 = vmatpush1.msra.mxu0 0.0
  %7919 = vmatprep.subr.mxu0 0.0
  %7920 = vmatpush1.msra.mxu0 0.0
  %7921 = vmatprep.subr.mxu0 0.0
  %7922 = vmatpush1.msra.mxu0 0.0
  %7923 = vmatprep.subr.mxu0 0.0
  %7924 = vmatpush1.msra.mxu0 0.0
  %7925 = vmatprep.subr.mxu0 0.0
  %7926 = vmatpush1.msra.mxu0 0.0
  %7927 = vmatprep.mubr.f32.mxu0 0.0
  %7928 = vmatmul.mubr.f32.gmra.mrb[0].mxu0 %v6751
  %v7929 = vpop.f32.mrb[0].mxu0
  %v7930 = vadd.f32 0.0, %v7929
  %v7931 = vpop.f32.mrb[0].mxu0
  %v7932 = vadd.f32 0.0, %v7931
  %7933 = vmatprep.mubr.f32.mxu0 0.0
  %7934 = vmatmul.mubr.f32.gmra.mrb[0].mxu0 %v6754
  %v7935 = vpop.f32.mrb[0].mxu0
  %v7936 = vadd.f32 0.0, %v7935
  %v7937 = vpop.f32.mrb[0].mxu0
  %v7938 = vadd.f32 0.0, %v7937
  %7939 = vmatprep.mubr.f32.mxu0 0.0
  %7940 = vmatmul.mubr.f32.gmra.mrb[0].mxu0 %v6757
  %v7941 = vpop.f32.mrb[0].mxu0
  %v7942 = vadd.f32 0.0, %v7941
  %v7943 = vpop.f32.mrb[0].mxu0
  %v7944 = vadd.f32 0.0, %v7943
  %7945 = vmatprep.mubr.f32.mxu0 0.0
  %7946 = vmatmul.mubr.f32.gmra.mrb[0].mxu0 %v6760
  %v7947 = vpop.f32.mrb[0].mxu0
  %v7948 = vadd.f32 0.0, %v7947
  %v7949 = vpop.f32.mrb[0].mxu0
  %v7950 = vadd.f32 0.0, %v7949
  %7951 = vmatprep.mubr.f32.mxu0 0.0
  %7952 = vmatmul.mubr.f32.gmra.mrb[0].mxu0 %v6763
  %v7953 = vpop.f32.mrb[0].mxu0
  %v7954 = vadd.f32 0.0, %v7953
  %v7955 = vpop.f32.mrb[0].mxu0
  %v7956 = vadd.f32 0.0, %v7955
  %7957 = vmatprep.mubr.f32.mxu0 0.0
  %7958 = vmatmul.mubr.f32.gmra.mrb[0].mxu0 %v6766
  %v7959 = vpop.f32.mrb[0].mxu0
  %v7960 = vadd.f32 0.0, %v7959
  %v7961 = vpop.f32.mrb[0].mxu0
  %v7962 = vadd.f32 0.0, %v7961
  %7963 = vmatprep.mubr.f32.mxu0 0.0
  %7964 = vmatmul.mubr.f32.gmra.mrb[0].mxu0 %v6769
  %v7965 = vpop.f32.mrb[0].mxu0
  %v7966 = vadd.f32 0.0, %v7965
  %v7967 = vpop.f32.mrb[0].mxu0
  %v7968 = vadd.f32 0.0, %v7967
  %7969 = vmatprep.mubr.f32.mxu0 0.0
  %7970 = vmatmul.mubr.f32.gmra.mrb[0].mxu0 %v6772
  %v7971 = vpop.f32.mrb[0].mxu0
  %v7972 = vadd.f32 0.0, %v7971
  %v7973 = vpop.f32.mrb[0].mxu0
  %v7974 = vadd.f32 0.0, %v7973
  %7975 = vmatprep.mubr.f32.mxu0 0.0
  %7976 = vmatmul.mubr.f32.gmra.mrb[0].mxu0 %v6775
  %v7977 = vpop.f32.mrb[0].mxu0
  %v7978 = vadd.f32 0.0, %v7977
  %v7979 = vpop.f32.mrb[0].mxu0
  %v7980 = vadd.f32 0.0, %v7979
  %7981 = vmatprep.mubr.f32.mxu0 0.0
  %7982 = vmatmul.mubr.f32.gmra.mrb[0].mxu0 %v6778
  %v7983 = vpop.f32.mrb[0].mxu0
  %v7984 = vadd.f32 0.0, %v7983
  %v7985 = vpop.f32.mrb[0].mxu0
  %v7986 = vadd.f32 0.0, %v7985
  %7987 = vmatprep.mubr.f32.mxu0 0.0
  %7988 = vmatmul.mubr.f32.gmra.mrb[0].mxu0 %v6781
  %v7989 = vpop.f32.mrb[0].mxu0
  %v7990 = vadd.f32 0.0, %v7989
  %v7991 = vpop.f32.mrb[0].mxu0
  %v7992 = vadd.f32 0.0, %v7991
  %7993 = vmatprep.mubr.f32.mxu0 0.0
  %7994 = vmatmul.mubr.f32.gmra.mrb[0].mxu0 %v6784
  %v7995 = vpop.f32.mrb[0].mxu0
  %v7996 = vadd.f32 0.0, %v7995
  %v7997 = vpop.f32.mrb[0].mxu0
  %v7998 = vadd.f32 0.0, %v7997
  %7999 = vmatprep.mubr.f32.mxu0 0.0
  %8000 = vmatmul.mubr.f32.gmra.mrb[0].mxu0 %v6787
  %v8001 = vpop.f32.mrb[0].mxu0
  %v8002 = vadd.f32 0.0, %v8001
  %v8003 = vpop.f32.mrb[0].mxu0
  %v8004 = vadd.f32 0.0, %v8003
  %8005 = vmatprep.mubr.f32.mxu0 0.0
  %8006 = vmatmul.mubr.f32.gmra.mrb[0].mxu0 %v6790
  %v8007 = vpop.f32.mrb[0].mxu0
  %v8008 = vadd.f32 0.0, %v8007
  %v8009 = vpop.f32.mrb[0].mxu0
  %v8010 = vadd.f32 0.0, %v8009
  %8011 = vmatprep.mubr.f32.mxu0 0.0
  %8012 = vmatmul.mubr.f32.gmra.mrb[0].mxu0 %v6793
  %v8013 = vpop.f32.mrb[0].mxu0
  %v8014 = vadd.f32 0.0, %v8013
  %v8015 = vpop.f32.mrb[0].mxu0
  %v8016 = vadd.f32 0.0, %v8015
  %8017 = vmatprep.mubr.f32.mxu0 0.0
  %8018 = vmatmul.mubr.f32.gmra.mrb[0].mxu0 %v6796
  %v8019 = vpop.f32.mrb[0].mxu0
  %v8020 = vadd.f32 0.0, %v8019
  %v8021 = vpop.f32.mrb[0].mxu0
  %v8022 = vadd.f32 0.0, %v8021
  %8023 = vdwg.mxu0
  %v8024 = vtanh.pop %v7930
  %v8025 = vtanh.pop %v7932
  %v8026 = vtanh.pop %v7936
  %v8027 = vtanh.pop %v7938
  %v8028 = vtanh.pop %v7942
  %v8029 = vtanh.pop %v7944
  %v8030 = vtanh.pop %v7948
  %v8031 = vtanh.pop %v7950
  %v8032 = vtanh.pop %v7954
  %v8033 = vtanh.pop %v7956
  %v8034 = vtanh.pop %v7960
  %v8035 = vtanh.pop %v7962
  %v8036 = vtanh.pop %v7966
  %v8037 = vtanh.pop %v7968
  %v8038 = vtanh.pop %v7972
  %v8039 = vtanh.pop %v7974
  %v8040 = vtanh.pop %v7978
  %v8041 = vtanh.pop %v7980
  %v8042 = vtanh.pop %v7984
  %v8043 = vtanh.pop %v7986
  %v8044 = vtanh.pop %v7990
  %v8045 = vtanh.pop %v7992
  %v8046 = vtanh.pop %v7996
  %v8047 = vtanh.pop %v7998
  %v8048 = vtanh.pop %v8002
  %v8049 = vtanh.pop %v8004
  %v8050 = vtanh.pop %v8008
  %v8051 = vtanh.pop %v8010
  %v8052 = vtanh.pop %v8014
  %v8053 = vtanh.pop %v8016
  %v8054 = vtanh.pop %v8020
  %v8055 = vtanh.pop %v8022
  %8056 = vmatprep.subr.mxu0 %v8025
  %8057 = vmatpush1.msra.mxu0 %v8024
  %8058 = vmatprep.subr.mxu0 %v8027
  %8059 = vmatpush1.msra.mxu0 %v8026
  %8060 = vmatprep.subr.mxu0 %v8029
  %8061 = vmatpush1.msra.mxu0 %v8028
  %8062 = vmatprep.subr.mxu0 %v8031
  %8063 = vmatpush1.msra.mxu0 %v8030
  %8064 = vmatprep.subr.mxu0 %v8033
  %8065 = vmatpush1.msra.mxu0 %v8032
  %8066 = vmatprep.subr.mxu0 %v8035
  %8067 = vmatpush1.msra.mxu0 %v8034
  %8068 = vmatprep.subr.mxu0 %v8037
  %8069 = vmatpush1.msra.mxu0 %v8036
  %8070 = vmatprep.subr.mxu0 %v8039
  %8071 = vmatpush1.msra.mxu0 %v8038
  %8072 = vmatprep.subr.mxu0 %v8041
  %8073 = vmatpush1.msra.mxu0 %v8040
  %8074 = vmatprep.subr.mxu0 %v8043
  %8075 = vmatpush1.msra.mxu0 %v8042
  %8076 = vmatprep.subr.mxu0 %v8045
  %8077 = vmatpush1.msra.mxu0 %v8044
  %8078 = vmatprep.subr.mxu0 %v8047
  %8079 = vmatpush1.msra.mxu0 %v8046
  %8080 = vmatprep.subr.mxu0 %v8049
  %8081 = vmatpush1.msra.mxu0 %v8048
  %8082 = vmatprep.subr.mxu0 %v8051
  %8083 = vmatpush1.msra.mxu0 %v8050
  %8084 = vmatprep.subr.mxu0 %v8053
  %8085 = vmatpush1.msra.mxu0 %v8052
  %8086 = vmatprep.subr.mxu0 %v8055
  %8087 = vmatpush1.msra.mxu0 %v8054
  %8088 = vmatprep.subr.mxu0 0.0
  %8089 = vmatpush1.msra.mxu0 0.0
  %8090 = vmatprep.subr.mxu0 0.0
  %8091 = vmatpush1.msra.mxu0 0.0
  %8092 = vmatprep.subr.mxu0 0.0
  %8093 = vmatpush1.msra.mxu0 0.0
  %8094 = vmatprep.subr.mxu0 0.0
  %8095 = vmatpush1.msra.mxu0 0.0
  %8096 = vmatprep.subr.mxu0 0.0
  %8097 = vmatpush1.msra.mxu0 0.0
  %8098 = vmatprep.subr.mxu0 0.0
  %8099 = vmatpush1.msra.mxu0 0.0
  %8100 = vmatprep.subr.mxu0 0.0
  %8101 = vmatpush1.msra.mxu0 0.0
  %8102 = vmatprep.subr.mxu0 0.0
  %8103 = vmatpush1.msra.mxu0 0.0
  %8104 = vmatprep.subr.mxu0 0.0
  %8105 = vmatpush1.msra.mxu0 0.0
  %8106 = vmatprep.subr.mxu0 0.0
  %8107 = vmatpush1.msra.mxu0 0.0
  %8108 = vmatprep.subr.mxu0 0.0
  %8109 = vmatpush1.msra.mxu0 0.0
  %8110 = vmatprep.subr.mxu0 0.0
  %8111 = vmatpush1.msra.mxu0 0.0
  %8112 = vmatprep.subr.mxu0 0.0
  %8113 = vmatpush1.msra.mxu0 0.0
  %8114 = vmatprep.subr.mxu0 0.0
  %8115 = vmatpush1.msra.mxu0 0.0
  %8116 = vmatprep.subr.mxu0 0.0
  %8117 = vmatpush1.msra.mxu0 0.0
  %8118 = vmatprep.subr.mxu0 0.0
  %8119 = vmatpush1.msra.mxu0 0.0
  %8120 = vmatprep.mubr.f32.mxu0 0.0
  %8121 = vmatmul.mubr.f32.gmra.mrb[0].mxu0 %v6991
  %v8122 = vpop.f32.mrb[0].mxu0
  %v8123 = vadd.f32 0.0, %v8122
  %v8124 = vpop.f32.mrb[0].mxu0
  %v8125 = vadd.f32 0.0, %v8124
  %8126 = vdwg.mxu0
  %v8127 = vadd.f32 %v7861, %v8123
  %v8128 = vadd.f32 %v7862, %v8125
  %v8131 = vrot.slane %v8127, 7
  %v8132 = vrot.slane %v8128, 7
  %v8135 = vsel %vm5801, %v7063, %v8131
  %v8136 = vsel %vm5801, %v7064, %v8132
  %v8139 = vcombine.low %v8135, %v8136
  %v8141 = vunpack.c.l.s4 1983009808
  %v8142 = vunpack.c.0.s8 %v8141
  %v8143 = vlaneseq
  %v8144 = vshrl.u32 %v8143, 7
  %v8145 = vsub.s32 %v8142, %v8144
  %v8146 = vrot.slane %v8139, %v8145
  %8148 = vst [vmem:[%s11] sm:$0xf] %v8146
  // Predicated region
  $region46: #{cwno2d_forward.1} parent=0 // pred_check
    _
  $region47: #{cwno2d_forward.1} parent=0 // pred_check_branch
    %8150 = sbr.rel (0) target = $region49
  $region48: #{cwno2d_forward.1} parent=0 // pred_region
    _
  $region49: #{cwno2d_forward.1} parent=0 // pred_fallthru
    _
  // Predicated region
  $region50: #{cwno2d_forward.1} parent=0 // pred_check
    _
  $region51: #{cwno2d_forward.1} parent=0 // pred_check_branch
    %8152 = sbr.rel (0) target = $region53
  $region52: #{cwno2d_forward.1} parent=0 // pred_region
    _
  $region53: #{cwno2d_forward.1} parent=0 // pred_fallthru
    _

</llo_original>
